<compile_context>
chip_gen: v7x
topology: tpu7x:2x2x1
jax: 0.10.0
libtpu: 0.0.40
codegen_flags: <defaults>
</compile_context>

<pallas_src>
from functools import partial

import jax
import jax.numpy as jnp
from jax.experimental import pallas as pl
from jax.experimental.pallas import tpu as pltpu


def _round_up(n, m):
    return ((n + m - 1) // m) * m


# --------------------------------------------------------------------------
# Kernel
# --------------------------------------------------------------------------
def _convgru_ode_kernel(
    W, Hp,                            # static (bound with functools.partial)
    dt_ref,                           # SMEM: (T,) per-step dt
    x_ref,                            # VMEM: (T, Cp, Pb) f32 frames (pre-ordered)
    mask_ref,                         # VMEM: (T, 1, Pb) f32 per-pixel obs mask
    tapmask_ref,                      # VMEM: (9, 1, Pb) f32 conv zero-pad masks
    w_ode_ref, b_ode_ref,             # (9, Hp, Hp) bf16, (Hp, 1) f32
    w_xc_ref,                         # (9, 3*Hp, Cp) bf16  hoisted x-contribution
    w_gh_ref, b_g_ref,                # (9, 2*Hp, Hp) bf16, (2*Hp, 1) f32
    w_ch_ref, b_c_ref,                # (9, Hp, Hp) bf16, (Hp, 1) f32
    w_t1_ref, b_t1_ref,               # (Hp, Hp) f32, (Hp, 1) f32
    w_t2_ref, b_t2_ref,               # (2*Hp, Hp) f32, (2*Hp, 1) f32
    out_ref,                          # (1, 2*Hp, Pb) f32  mean||std of transform_z0
):
    T = x_ref.shape[0]
    Pb = x_ref.shape[-1]
    H2 = 2 * Hp

    def conv3(w_ref, src):
        """3x3 'same' conv, accumulated tap-by-tap (one (Cs, Pb) piece live at
        a time).  Rolls & edge masks in f32; operands cast to bf16 for the MXU
        matmul with f32 accumulation."""
        acc = None
        for tap in range(9):
            ky, kx = divmod(tap, 3)
            off = (ky - 1) * W + (kx - 1)
            if off == 0:
                piece = src
            else:
                piece = pltpu.roll(src, shift=(-off) % Pb, axis=1) * tapmask_ref[tap]
            p = jnp.dot(w_ref[tap], piece.astype(jnp.bfloat16),
                        preferred_element_type=jnp.float32)
            acc = p if acc is None else acc + p
        return acc

    def step(t, h):
        dt = dt_ref[t]                                   # scalar from SMEM
        x_t = x_ref[t]                                   # (Cp, Pb) current frame

        # --- Euler ODE step: h_ode = h + ode_func(h) * (t_i - prev_t) ---
        inc = conv3(w_ode_ref, h) + b_ode_ref[...]
        h_ode = h + dt * inc

        # --- ConvGRU cell (x contribution of both convs hoisted into one) ---
        xc = conv3(w_xc_ref, x_t)                        # (3*Hp, Pb)
        gates = jax.nn.sigmoid(xc[:H2] + conv3(w_gh_ref, h_ode) + b_g_ref[...])
        reset = gates[:Hp]                               # gamma
        update = gates[Hp:]                              # beta
        cand = jnp.tanh(xc[H2:] + conv3(w_ch_ref, reset * h_ode) + b_c_ref[...])
        h_new = h_ode + update * (cand - h_ode)

        # --- per-sample observation mask (per-pixel, prebuilt in wrapper) ---
        return h_ode + mask_ref[t] * (h_new - h_ode)

    h0 = jnp.zeros((Hp, Pb), jnp.float32)
    h_final = jax.lax.fori_loop(0, T, step, h0)

    # --- transform_z0 head (two 1x1 convs) on the final hidden state ---
    z1 = jnp.maximum(
        jnp.dot(w_t1_ref[...], h_final, preferred_element_type=jnp.float32)
        + b_t1_ref[...], 0.0)
    z2 = jnp.dot(w_t2_ref[...], z1, preferred_element_type=jnp.float32) + b_t2_ref[...]
    out_ref[0] = z2.astype(out_ref.dtype)


# --------------------------------------------------------------------------
# Parameter generation / packing
# --------------------------------------------------------------------------
def init_params(key, input_dim, hidden_dim):
    """Deterministic synthetic parameters in PyTorch (OIHW) layout."""
    C, Ch = input_dim, hidden_dim
    ks = jax.random.split(key, 8)
    s = 0.1
    return {
        # synthetic stand-in for z0_diffeq_solver.ode_func (3x3-conv field)
        "w_ode": s * jax.random.normal(ks[0], (Ch, Ch, 3, 3), jnp.float32),
        "b_ode": jnp.zeros((Ch,), jnp.float32),
        # ConvGRUCell.conv_gates : Conv2d(C+Ch, 2*Ch, 3, padding=1)
        "w_gates": s * jax.random.normal(ks[1], (2 * Ch, C + Ch, 3, 3), jnp.float32),
        "b_gates": s * jax.random.normal(ks[2], (2 * Ch,), jnp.float32),
        # ConvGRUCell.conv_can : Conv2d(C+Ch, Ch, 3, padding=1)
        "w_can": s * jax.random.normal(ks[3], (Ch, C + Ch, 3, 3), jnp.float32),
        "b_can": s * jax.random.normal(ks[4], (Ch,), jnp.float32),
        # transform_z0 : Conv2d(Ch, Ch, 1) -> ReLU -> Conv2d(Ch, 2*Ch, 1)
        "w_t1": s * jax.random.normal(ks[5], (Ch, Ch), jnp.float32),
        "b_t1": s * jax.random.normal(ks[6], (Ch,), jnp.float32),
        "w_t2": s * jax.random.normal(ks[7], (2 * Ch, Ch), jnp.float32),
        "b_t2": jnp.zeros((2 * Ch,), jnp.float32),
    }


def _prepare_params(params, C, Ch):
    """Pack OIHW parameters into padded, tap-major, matmul-ready layout.

    Conv weights become (9, Cout_pad, Cin_pad) bf16 (tap = ky*3+kx) so the
    kernel takes one clean (Cout, Cin) slice per tap -- no lane-axis slicing.
    Channel padding is zero so padded hidden channels stay exactly zero."""
    Cp = _round_up(C, 8)
    Hp = _round_up(Ch, 8)
    bf = jnp.bfloat16

    def pack3x3(w, cin_lo, cin_n, cin_pad):
        # (O, I, 3, 3) -> (9, O, cin_pad), tap-major
        o = w.shape[0]
        wk = jnp.transpose(w[:, cin_lo:cin_lo + cin_n], (2, 3, 0, 1)).reshape(9, o, cin_n)
        return jnp.pad(wk, ((0, 0), (0, 0), (0, cin_pad - cin_n)))

    def pad_out3(w, groups, pad_to):
        # pad each output-channel group of a (9, O, I) weight to pad_to rows
        return jnp.concatenate(
            [jnp.pad(w[:, s:s + n], ((0, 0), (0, pad_to - n), (0, 0))) for s, n in groups],
            axis=1)

    def pad_rows(w, groups, pad_to):
        return jnp.concatenate(
            [jnp.pad(w[s:s + n], ((0, pad_to - n), (0, 0))) for s, n in groups], axis=0)

    def pad_bias(b, groups, pad_to):
        return jnp.concatenate(
            [jnp.pad(b[s:s + n], (0, pad_to - n)) for s, n in groups]).reshape(-1, 1)

    gate_groups = [(0, Ch), (Ch, Ch)]            # (reset | update) output blocks

    g_x = pack3x3(params["w_gates"], 0, C, Cp)   # gates, x input channels
    g_h = pack3x3(params["w_gates"], C, Ch, Hp)  # gates, h input channels
    c_x = pack3x3(params["w_can"], 0, C, Cp)     # candidate, x input channels
    c_h = pack3x3(params["w_can"], C, Ch, Hp)    # candidate, h input channels
    w_t2_cols = jnp.pad(params["w_t2"], ((0, 0), (0, Hp - Ch)))

    return {
        "Cp": Cp, "Hp": Hp,
        "w_ode": pad_out3(pack3x3(params["w_ode"], 0, Ch, Hp), [(0, Ch)], Hp).astype(bf),
        "b_ode": pad_bias(params["b_ode"], [(0, Ch)], Hp),
        # hoisted x-contribution: rows [0:2Hp] -> gates, [2Hp:3Hp] -> candidate
        "w_xc": jnp.concatenate([pad_out3(g_x, gate_groups, Hp),
                                 pad_out3(c_x, [(0, Ch)], Hp)], axis=1).astype(bf),
        "w_gh": pad_out3(g_h, gate_groups, Hp).astype(bf),
        "b_g": pad_bias(params["b_gates"], gate_groups, Hp),
        "w_ch": pad_out3(c_h, [(0, Ch)], Hp).astype(bf),
        "b_c": pad_bias(params["b_can"], [(0, Ch)], Hp),
        # transform_z0 head (1x1 convs as matmuls, kept f32); mean rows then std rows
        "w_t1": jnp.pad(params["w_t1"], ((0, Hp - Ch), (0, Hp - Ch))),
        "b_t1": pad_bias(params["b_t1"], [(0, Ch)], Hp),
        "w_t2": pad_rows(w_t2_cols, gate_groups, Hp),
        "b_t2": pad_bias(params["b_t2"], gate_groups, Hp),
    }


def _make_tap_masks(H, W, ipb):
    """(9, 1, ipb*H*W) validity masks implementing the zero padding of each
    3x3 conv tap under the flattened (image, y, x) lane layout (they also kill
    the roll wraparound across image boundaries)."""
    y = jnp.arange(H).reshape(H, 1)
    x = jnp.arange(W).reshape(1, W)
    ms = []
    for ky in range(3):
        for kx in range(3):
            dy, dx = ky - 1, kx - 1
            valid = ((y + dy >= 0) & (y + dy < H) & (x + dx >= 0) & (x + dx < W))
            m = jnp.broadcast_to(valid[None], (ipb, H, W)).astype(jnp.float32)
            ms.append(m.reshape(1, ipb * H * W))
    return jnp.stack(ms, axis=0)


# --------------------------------------------------------------------------
# Forward wrapper
# --------------------------------------------------------------------------
@partial(jax.jit, static_argnames=("run_backwards", "batch_blocks"))
def encoder_z0_ode_convgru_forward(input_tensor, time_steps, mask, params,
                                   run_backwards=True, batch_blocks=1):
    """input_tensor: (T, B, C, H, W)  (batch_first=False, NCHW frames)
       time_steps:   (T,) float
       mask:         (B, T) float (1 = observed)
       batch_blocks: 1 for single-TensorCore chips (v5e/v6e); 2 on v7x to
                     shard the 'parallel' axis across both TensorCores.
       returns (mean_z0, std_z0), each (B, hidden_dim, H, W)."""
    T, B, C, H, W = input_tensor.shape
    Ch = params["w_can"].shape[0]
    assert B % batch_blocks == 0
    NB = batch_blocks
    ipb = B // NB                     # images per batch block
    HW = H * W
    Pb = ipb * HW                     # lane extent of every kernel tensor

    kp = _prepare_params(params, C, Ch)
    Cp, Hp = kp["Cp"], kp["Hp"]

    # Time ordering & per-step dt, replicating the original loop exactly
    # (including the ts[-1]+0.01 first step and the ts[i-1] python-wrap the
    #  original module performs, in both run_backwards modes).
    order_py = tuple(reversed(range(T))) if run_backwards else tuple(range(T))
    order = jnp.asarray(order_py, jnp.int32)
    ts = time_steps.astype(jnp.float32)
    prev_idx = order[:-1]
    dt0 = (ts[-1] - (ts[-1] + 0.01)).reshape(1)
    dts = jnp.concatenate([dt0, ts[(prev_idx - 1) % T] - ts[prev_idx]])      # (T,)

    # per-pixel observation mask: (B, T) -> (NB, T, 1, Pb)
    mask_seq = jnp.transpose(mask.astype(jnp.float32), (1, 0))[order]        # (T, B)
    mask_px = mask_seq.reshape(T, NB, ipb, 1)
    mask_px = jnp.broadcast_to(mask_px, (T, NB, ipb, HW))
    mask_px = jnp.transpose(mask_px, (1, 0, 2, 3)).reshape(NB, T, 1, Pb)

    # frames: (T,B,C,H,W) -> (NB, T, Cp, ipb*H*W), channels padded to Cp
    x = input_tensor.astype(jnp.float32)[order]
    x = jnp.pad(x, ((0, 0), (0, 0), (0, Cp - C), (0, 0), (0, 0)))
    x = x.reshape(T, NB, ipb, Cp, H, W)
    x = jnp.transpose(x, (1, 0, 3, 2, 4, 5)).reshape(NB, T, Cp, Pb)

    tap_masks = _make_tap_masks(H, W, ipb)                                   # (9,1,Pb)

    weight_arrays = (kp["w_ode"], kp["b_ode"], kp["w_xc"], kp["w_gh"], kp["b_g"],
                     kp["w_ch"], kp["b_c"], kp["w_t1"], kp["b_t1"], kp["w_t2"],
                     kp["b_t2"])

    smem = pl.BlockSpec(memory_space=pltpu.MemorySpace.SMEM)

    def resident(shape):
        return pl.BlockSpec(shape, lambda nb, _n=len(shape): (0,) * _n)

    in_specs = [
        smem,                                                           # dts (T,)
        pl.BlockSpec((None, T, Cp, Pb), lambda nb: (nb, 0, 0, 0)),      # frames
        pl.BlockSpec((None, T, 1, Pb), lambda nb: (nb, 0, 0, 0)),       # obs mask
        resident(tap_masks.shape),
        resident(kp["w_ode"].shape), resident(kp["b_ode"].shape),
        resident(kp["w_xc"].shape),
        resident(kp["w_gh"].shape), resident(kp["b_g"].shape),
        resident(kp["w_ch"].shape), resident(kp["b_c"].shape),
        resident(kp["w_t1"].shape), resident(kp["b_t1"].shape),
        resident(kp["w_t2"].shape), resident(kp["b_t2"].shape),
    ]

    # VMEM budget: double-buffered frame/mask/output blocks + resident weights
    # + a generous per-step f32 working-set estimate (capped at the v7x 64 MiB
    # per-TensorCore ceiling).
    resident_bytes = sum(int(a.size) * a.dtype.itemsize
                         for a in (tap_masks,) + weight_arrays)
    block_bytes = (T * Cp * Pb + T * Pb + 2 * Hp * Pb) * 4
    work_bytes = 32 * Hp * Pb * 4
    vmem_limit = int(min(max(2 * (resident_bytes + block_bytes) + work_bytes,
                             16 << 20), 64 << 20))

    out = pl.pallas_call(
        partial(_convgru_ode_kernel, W, Hp),
        out_shape=jax.ShapeDtypeStruct((NB, 2 * Hp, Pb), jnp.float32),
        grid_spec=pltpu.PrefetchScalarGridSpec(
            num_scalar_prefetch=0,
            grid=(NB,),
            in_specs=in_specs,
            out_specs=pl.BlockSpec((1, 2 * Hp, Pb), lambda nb: (nb, 0, 0)),
            scratch_shapes=[],
        ),
        compiler_params=pltpu.CompilerParams(
            dimension_semantics=("parallel",),
            vmem_limit_bytes=vmem_limit,
        ),
    )(dts, x, mask_px, tap_masks, *weight_arrays)

    # (NB, 2*Hp, Pb) -> (B, 2*Hp, H, W); split mean/std + abs in plain JAX.
    out = out.reshape(NB, 2 * Hp, ipb, H, W)
    out = jnp.transpose(out, (0, 2, 1, 3, 4)).reshape(B, 2 * Hp, H, W)
    mean_z0 = out[:, :Ch]
    std_z0 = jnp.abs(out[:, Hp:Hp + Ch])
    return mean_z0, std_z0


# --------------------------------------------------------------------------
# Pure-JAX reference (semantics of the PyTorch module)
# --------------------------------------------------------------------------
def _reference_forward(input_tensor, time_steps, mask, params, run_backwards=True):
    T, B, C, H, W = input_tensor.shape
    Ch = params["w_can"].shape[0]
    dn = ("NCHW", "OIHW", "NCHW")
    hi = jax.lax.Precision.HIGHEST

    def conv3(z, w, b):
        o = jax.lax.conv_general_dilated(z, w, (1, 1), ((1, 1), (1, 1)),
                                         dimension_numbers=dn, precision=hi)
        return o + b.reshape(1, -1, 1, 1)

    def conv1(z, w, b):
        o = jax.lax.conv_general_dilated(z, w[:, :, None, None], (1, 1),
                                         ((0, 0), (0, 0)),
                                         dimension_numbers=dn, precision=hi)
        return o + b.reshape(1, -1, 1, 1)

    ts = time_steps.astype(jnp.float32)
    xs = input_tensor.astype(jnp.float32)
    msk = mask.astype(jnp.float32)
    order = list(reversed(range(T))) if run_backwards else list(range(T))

    h = jnp.zeros((B, Ch, H, W), jnp.float32)
    prev_t, t_i = ts[-1] + 0.01, ts[-1]
    for i in order:
        inc = conv3(h, params["w_ode"], params["b_ode"]) * (t_i - prev_t)
        h_ode = h + inc
        xi = xs[i]
        gates = conv3(jnp.concatenate([xi, h_ode], axis=1),
                      params["w_gates"], params["b_gates"])
        reset = jax.nn.sigmoid(gates[:, :Ch])
        update = jax.nn.sigmoid(gates[:, Ch:])
        cand = jnp.tanh(conv3(jnp.concatenate([xi, reset * h_ode], axis=1),
                              params["w_can"], params["b_can"]))
        h_new = (1.0 - update) * h_ode + update * cand
        m = msk[:, i].reshape(B, 1, 1, 1)
        h = m * h_new + (1.0 - m) * h_ode
        prev_t, t_i = ts[i], ts[i - 1]

    z2 = conv1(jax.nn.relu(conv1(h, params["w_t1"], params["b_t1"])),
               params["w_t2"], params["b_t2"])
    return z2[:, :Ch], jnp.abs(z2[:, Ch:])


# --------------------------------------------------------------------------
if __name__ == "__main__":
    key = jax.random.PRNGKey(0)
    B, T, C, H, W = 2, 8, 4, 16, 16
    Ch = C   # the module feeds the hidden state back through the (C-channel)
             # ODE function, so it only works with hidden_dim == input_dim.

    k_params, k_x, k_mask = jax.random.split(key, 3)
    params = init_params(k_params, C, Ch)
    x = jax.random.normal(k_x, (T, B, C, H, W), jnp.float32)   # batch_first=False
    time_steps = jnp.linspace(0.0, 1.0, T).astype(jnp.float32)
    mask = (jax.random.uniform(k_mask, (B, T)) > 0.2).astype(jnp.float32)

    # batch_blocks=1: fold the whole batch into lanes (single-TC v5e/v6e default).
    mean_z0, std_z0 = encoder_z0_ode_convgru_forward(
        x, time_steps, mask, params, run_backwards=True, batch_blocks=1)
    jax.block_until_ready((mean_z0, std_z0))

    assert mean_z0.shape == (B, Ch, H, W) and std_z0.shape == (B, Ch, H, W)
    assert bool(jnp.all(jnp.isfinite(mean_z0))) and bool(jnp.all(jnp.isfinite(std_z0)))
    assert bool(jnp.all(std_z0 >= 0.0))

    # sanity check against a pure-JAX reference of the original module
    mean_ref, std_ref = _reference_forward(x, time_steps, mask, params,
                                           run_backwards=True)
    err = max(float(jnp.max(jnp.abs(mean_z0 - mean_ref))),
              float(jnp.max(jnp.abs(std_z0 - std_ref))))
    assert err < 5e-2, f"kernel/reference mismatch: max abs err {err}"

    print("KERNEL_OK")
</pallas_src>

<mosaic_0001>
module attributes {stable_mosaic.version = 11 : i64} {
  func.func @_convgru_ode_kernel(%arg0: i32, %arg1: memref<8xf32, #tpu.memory_space<smem>>, %arg2: memref<1x8x8x512xf32, #tpu.memory_space<vmem>>, %arg3: memref<1x8x1x512xf32, #tpu.memory_space<vmem>>, %arg4: memref<9x1x512xf32, #tpu.memory_space<vmem>>, %arg5: memref<9x8x8xbf16, #tpu.memory_space<vmem>>, %arg6: memref<8x1xf32, #tpu.memory_space<vmem>>, %arg7: memref<9x24x8xbf16, #tpu.memory_space<vmem>>, %arg8: memref<9x16x8xbf16, #tpu.memory_space<vmem>>, %arg9: memref<16x1xf32, #tpu.memory_space<vmem>>, %arg10: memref<9x8x8xbf16, #tpu.memory_space<vmem>>, %arg11: memref<8x1xf32, #tpu.memory_space<vmem>>, %arg12: memref<8x8xf32, #tpu.memory_space<vmem>>, %arg13: memref<8x1xf32, #tpu.memory_space<vmem>>, %arg14: memref<16x8xf32, #tpu.memory_space<vmem>>, %arg15: memref<16x1xf32, #tpu.memory_space<vmem>>, %arg16: memref<1x16x512xf32, #tpu.memory_space<vmem>>) attributes {dimension_semantics = [#tpu.dimension_semantics<parallel>], iteration_bounds = array<i64: 1>, scalar_prefetch = 0 : i64, scratch_operands = 0 : i64, tpu.core_type = #tpu.core_type<tc>, window_params = [{transform_indices = @transform_0, window_bounds = array<i64: 8>}, {transform_indices = @transform_1, window_bounds = array<i64: 1, 8, 8, 512>}, {transform_indices = @transform_2, window_bounds = array<i64: 1, 8, 1, 512>}, {pipeline_mode = #tpu.pipeline_mode<synchronous>, transform_indices = @transform_3, window_bounds = array<i64: 9, 1, 512>}, {pipeline_mode = #tpu.pipeline_mode<synchronous>, transform_indices = @transform_4, window_bounds = array<i64: 9, 8, 8>}, {pipeline_mode = #tpu.pipeline_mode<synchronous>, transform_indices = @transform_5, window_bounds = array<i64: 8, 1>}, {pipeline_mode = #tpu.pipeline_mode<synchronous>, transform_indices = @transform_6, window_bounds = array<i64: 9, 24, 8>}, {pipeline_mode = #tpu.pipeline_mode<synchronous>, transform_indices = @transform_7, window_bounds = array<i64: 9, 16, 8>}, {pipeline_mode = #tpu.pipeline_mode<synchronous>, transform_indices = @transform_8, window_bounds = array<i64: 16, 1>}, {pipeline_mode = #tpu.pipeline_mode<synchronous>, transform_indices = @transform_9, window_bounds = array<i64: 9, 8, 8>}, {pipeline_mode = #tpu.pipeline_mode<synchronous>, transform_indices = @transform_10, window_bounds = array<i64: 8, 1>}, {pipeline_mode = #tpu.pipeline_mode<synchronous>, transform_indices = @transform_11, window_bounds = array<i64: 8, 8>}, {pipeline_mode = #tpu.pipeline_mode<synchronous>, transform_indices = @transform_12, window_bounds = array<i64: 8, 1>}, {pipeline_mode = #tpu.pipeline_mode<synchronous>, transform_indices = @transform_13, window_bounds = array<i64: 16, 8>}, {pipeline_mode = #tpu.pipeline_mode<synchronous>, transform_indices = @transform_14, window_bounds = array<i64: 16, 1>}, {transform_indices = @transform_15, window_bounds = array<i64: 1, 16, 512>}]} {
    %cst = arith.constant 0.000000e+00 : f32
    %0 = vector.broadcast %cst : f32 to vector<8x512xf32>
    %c0_i32 = arith.constant 0 : i32
    %c8_i32 = arith.constant 8 : i32
    %1 = arith.addi %c0_i32, %c8_i32 : i32
    %c1_i32 = arith.constant 1 : i32
    %2 = scf.for %arg17 = %c0_i32 to %1 step %c1_i32 iter_args(%arg18 = %0) -> (vector<8x512xf32>)  : i32 {
      %18 = arith.index_cast %arg17 : i32 to index
      %19 = memref.load %arg1[%18] : memref<8xf32, #tpu.memory_space<smem>>
      %c0_14 = arith.constant 0 : index
      %20 = arith.index_cast %arg17 : i32 to index
      %c0_15 = arith.constant 0 : index
      %c0_16 = arith.constant 0 : index
      %21 = vector.load %arg2[%c0_14, %20, %c0_15, %c0_16] : memref<1x8x8x512xf32, #tpu.memory_space<vmem>>, vector<1x1x8x512xf32>
      %22 = vector.shape_cast %21 : vector<1x1x8x512xf32> to vector<8x512xf32>
      %c17_i32 = arith.constant 17 : i32
      %23 = tpu.dynamic_rotate %arg18 by %c17_i32 dim 1 : vector<8x512xf32>, i32 -> vector<8x512xf32>
      %c0_17 = arith.constant 0 : index
      %c0_18 = arith.constant 0 : index
      %c0_19 = arith.constant 0 : index
      %24 = vector.load %arg4[%c0_17, %c0_18, %c0_19] : memref<9x1x512xf32, #tpu.memory_space<vmem>>, vector<1x1x512xf32>
      %25 = vector.shape_cast %24 : vector<1x1x512xf32> to vector<1x512xf32>
      %26 = vector.broadcast %25 : vector<1x512xf32> to vector<8x512xf32>
      %27 = arith.mulf %23, %26 : vector<8x512xf32>
      %c0_20 = arith.constant 0 : index
      %c0_21 = arith.constant 0 : index
      %c0_22 = arith.constant 0 : index
      %28 = vector.load %arg5[%c0_20, %c0_21, %c0_22] : memref<9x8x8xbf16, #tpu.memory_space<vmem>>, vector<1x8x8xbf16>
      %29 = vector.shape_cast %28 : vector<1x8x8xbf16> to vector<8x8xbf16>
      %30 = arith.truncf %27 : vector<8x512xf32> to vector<8x512xbf16>
      %cst_23 = arith.constant dense<0.000000e+00> : vector<8x512xf32>
      %31 = tpu.matmul %29, %30, %cst_23 {dimension_numbers = #tpu.dot_dimension_numbers<[1], [0], [0], [1], [0, 0, 1, 1], [], []>} : vector<8x8xbf16>, vector<8x512xbf16>, vector<8x512xf32> -> vector<8x512xf32>
      %c16_i32 = arith.constant 16 : i32
      %32 = tpu.dynamic_rotate %arg18 by %c16_i32 dim 1 : vector<8x512xf32>, i32 -> vector<8x512xf32>
      %c1 = arith.constant 1 : index
      %c0_24 = arith.constant 0 : index
      %c0_25 = arith.constant 0 : index
      %33 = vector.load %arg4[%c1, %c0_24, %c0_25] : memref<9x1x512xf32, #tpu.memory_space<vmem>>, vector<1x1x512xf32>
      %34 = vector.shape_cast %33 : vector<1x1x512xf32> to vector<1x512xf32>
      %35 = vector.broadcast %34 : vector<1x512xf32> to vector<8x512xf32>
      %36 = arith.mulf %32, %35 : vector<8x512xf32>
      %c1_26 = arith.constant 1 : index
      %c0_27 = arith.constant 0 : index
      %c0_28 = arith.constant 0 : index
      %37 = vector.load %arg5[%c1_26, %c0_27, %c0_28] : memref<9x8x8xbf16, #tpu.memory_space<vmem>>, vector<1x8x8xbf16>
      %38 = vector.shape_cast %37 : vector<1x8x8xbf16> to vector<8x8xbf16>
      %39 = arith.truncf %36 : vector<8x512xf32> to vector<8x512xbf16>
      %cst_29 = arith.constant dense<0.000000e+00> : vector<8x512xf32>
      %40 = tpu.matmul %38, %39, %cst_29 {dimension_numbers = #tpu.dot_dimension_numbers<[1], [0], [0], [1], [0, 0, 1, 1], [], []>} : vector<8x8xbf16>, vector<8x512xbf16>, vector<8x512xf32> -> vector<8x512xf32>
      %41 = arith.addf %31, %40 : vector<8x512xf32>
      %c15_i32 = arith.constant 15 : i32
      %42 = tpu.dynamic_rotate %arg18 by %c15_i32 dim 1 : vector<8x512xf32>, i32 -> vector<8x512xf32>
      %c2 = arith.constant 2 : index
      %c0_30 = arith.constant 0 : index
      %c0_31 = arith.constant 0 : index
      %43 = vector.load %arg4[%c2, %c0_30, %c0_31] : memref<9x1x512xf32, #tpu.memory_space<vmem>>, vector<1x1x512xf32>
      %44 = vector.shape_cast %43 : vector<1x1x512xf32> to vector<1x512xf32>
      %45 = vector.broadcast %44 : vector<1x512xf32> to vector<8x512xf32>
      %46 = arith.mulf %42, %45 : vector<8x512xf32>
      %c2_32 = arith.constant 2 : index
      %c0_33 = arith.constant 0 : index
      %c0_34 = arith.constant 0 : index
      %47 = vector.load %arg5[%c2_32, %c0_33, %c0_34] : memref<9x8x8xbf16, #tpu.memory_space<vmem>>, vector<1x8x8xbf16>
      %48 = vector.shape_cast %47 : vector<1x8x8xbf16> to vector<8x8xbf16>
      %49 = arith.truncf %46 : vector<8x512xf32> to vector<8x512xbf16>
      %cst_35 = arith.constant dense<0.000000e+00> : vector<8x512xf32>
      %50 = tpu.matmul %48, %49, %cst_35 {dimension_numbers = #tpu.dot_dimension_numbers<[1], [0], [0], [1], [0, 0, 1, 1], [], []>} : vector<8x8xbf16>, vector<8x512xbf16>, vector<8x512xf32> -> vector<8x512xf32>
      %51 = arith.addf %41, %50 : vector<8x512xf32>
      %c1_i32_36 = arith.constant 1 : i32
      %52 = tpu.dynamic_rotate %arg18 by %c1_i32_36 dim 1 : vector<8x512xf32>, i32 -> vector<8x512xf32>
      %c3 = arith.constant 3 : index
      %c0_37 = arith.constant 0 : index
      %c0_38 = arith.constant 0 : index
      %53 = vector.load %arg4[%c3, %c0_37, %c0_38] : memref<9x1x512xf32, #tpu.memory_space<vmem>>, vector<1x1x512xf32>
      %54 = vector.shape_cast %53 : vector<1x1x512xf32> to vector<1x512xf32>
      %55 = vector.broadcast %54 : vector<1x512xf32> to vector<8x512xf32>
      %56 = arith.mulf %52, %55 : vector<8x512xf32>
      %c3_39 = arith.constant 3 : index
      %c0_40 = arith.constant 0 : index
      %c0_41 = arith.constant 0 : index
      %57 = vector.load %arg5[%c3_39, %c0_40, %c0_41] : memref<9x8x8xbf16, #tpu.memory_space<vmem>>, vector<1x8x8xbf16>
      %58 = vector.shape_cast %57 : vector<1x8x8xbf16> to vector<8x8xbf16>
      %59 = arith.truncf %56 : vector<8x512xf32> to vector<8x512xbf16>
      %cst_42 = arith.constant dense<0.000000e+00> : vector<8x512xf32>
      %60 = tpu.matmul %58, %59, %cst_42 {dimension_numbers = #tpu.dot_dimension_numbers<[1], [0], [0], [1], [0, 0, 1, 1], [], []>} : vector<8x8xbf16>, vector<8x512xbf16>, vector<8x512xf32> -> vector<8x512xf32>
      %61 = arith.addf %51, %60 : vector<8x512xf32>
      %c4 = arith.constant 4 : index
      %c0_43 = arith.constant 0 : index
      %c0_44 = arith.constant 0 : index
      %62 = vector.load %arg5[%c4, %c0_43, %c0_44] : memref<9x8x8xbf16, #tpu.memory_space<vmem>>, vector<1x8x8xbf16>
      %63 = vector.shape_cast %62 : vector<1x8x8xbf16> to vector<8x8xbf16>
      %64 = arith.truncf %arg18 : vector<8x512xf32> to vector<8x512xbf16>
      %cst_45 = arith.constant dense<0.000000e+00> : vector<8x512xf32>
      %65 = tpu.matmul %63, %64, %cst_45 {dimension_numbers = #tpu.dot_dimension_numbers<[1], [0], [0], [1], [0, 0, 1, 1], [], []>} : vector<8x8xbf16>, vector<8x512xbf16>, vector<8x512xf32> -> vector<8x512xf32>
      %66 = arith.addf %61, %65 : vector<8x512xf32>
      %c511_i32 = arith.constant 511 : i32
      %67 = tpu.dynamic_rotate %arg18 by %c511_i32 dim 1 : vector<8x512xf32>, i32 -> vector<8x512xf32>
      %c5 = arith.constant 5 : index
      %c0_46 = arith.constant 0 : index
      %c0_47 = arith.constant 0 : index
      %68 = vector.load %arg4[%c5, %c0_46, %c0_47] : memref<9x1x512xf32, #tpu.memory_space<vmem>>, vector<1x1x512xf32>
      %69 = vector.shape_cast %68 : vector<1x1x512xf32> to vector<1x512xf32>
      %70 = vector.broadcast %69 : vector<1x512xf32> to vector<8x512xf32>
      %71 = arith.mulf %67, %70 : vector<8x512xf32>
      %c5_48 = arith.constant 5 : index
      %c0_49 = arith.constant 0 : index
      %c0_50 = arith.constant 0 : index
      %72 = vector.load %arg5[%c5_48, %c0_49, %c0_50] : memref<9x8x8xbf16, #tpu.memory_space<vmem>>, vector<1x8x8xbf16>
      %73 = vector.shape_cast %72 : vector<1x8x8xbf16> to vector<8x8xbf16>
      %74 = arith.truncf %71 : vector<8x512xf32> to vector<8x512xbf16>
      %cst_51 = arith.constant dense<0.000000e+00> : vector<8x512xf32>
      %75 = tpu.matmul %73, %74, %cst_51 {dimension_numbers = #tpu.dot_dimension_numbers<[1], [0], [0], [1], [0, 0, 1, 1], [], []>} : vector<8x8xbf16>, vector<8x512xbf16>, vector<8x512xf32> -> vector<8x512xf32>
      %76 = arith.addf %66, %75 : vector<8x512xf32>
      %c497_i32 = arith.constant 497 : i32
      %77 = tpu.dynamic_rotate %arg18 by %c497_i32 dim 1 : vector<8x512xf32>, i32 -> vector<8x512xf32>
      %c6 = arith.constant 6 : index
      %c0_52 = arith.constant 0 : index
      %c0_53 = arith.constant 0 : index
      %78 = vector.load %arg4[%c6, %c0_52, %c0_53] : memref<9x1x512xf32, #tpu.memory_space<vmem>>, vector<1x1x512xf32>
      %79 = vector.shape_cast %78 : vector<1x1x512xf32> to vector<1x512xf32>
      %80 = vector.broadcast %79 : vector<1x512xf32> to vector<8x512xf32>
      %81 = arith.mulf %77, %80 : vector<8x512xf32>
      %c6_54 = arith.constant 6 : index
      %c0_55 = arith.constant 0 : index
      %c0_56 = arith.constant 0 : index
      %82 = vector.load %arg5[%c6_54, %c0_55, %c0_56] : memref<9x8x8xbf16, #tpu.memory_space<vmem>>, vector<1x8x8xbf16>
      %83 = vector.shape_cast %82 : vector<1x8x8xbf16> to vector<8x8xbf16>
      %84 = arith.truncf %81 : vector<8x512xf32> to vector<8x512xbf16>
      %cst_57 = arith.constant dense<0.000000e+00> : vector<8x512xf32>
      %85 = tpu.matmul %83, %84, %cst_57 {dimension_numbers = #tpu.dot_dimension_numbers<[1], [0], [0], [1], [0, 0, 1, 1], [], []>} : vector<8x8xbf16>, vector<8x512xbf16>, vector<8x512xf32> -> vector<8x512xf32>
      %86 = arith.addf %76, %85 : vector<8x512xf32>
      %c496_i32 = arith.constant 496 : i32
      %87 = tpu.dynamic_rotate %arg18 by %c496_i32 dim 1 : vector<8x512xf32>, i32 -> vector<8x512xf32>
      %c7 = arith.constant 7 : index
      %c0_58 = arith.constant 0 : index
      %c0_59 = arith.constant 0 : index
      %88 = vector.load %arg4[%c7, %c0_58, %c0_59] : memref<9x1x512xf32, #tpu.memory_space<vmem>>, vector<1x1x512xf32>
      %89 = vector.shape_cast %88 : vector<1x1x512xf32> to vector<1x512xf32>
      %90 = vector.broadcast %89 : vector<1x512xf32> to vector<8x512xf32>
      %91 = arith.mulf %87, %90 : vector<8x512xf32>
      %c7_60 = arith.constant 7 : index
      %c0_61 = arith.constant 0 : index
      %c0_62 = arith.constant 0 : index
      %92 = vector.load %arg5[%c7_60, %c0_61, %c0_62] : memref<9x8x8xbf16, #tpu.memory_space<vmem>>, vector<1x8x8xbf16>
      %93 = vector.shape_cast %92 : vector<1x8x8xbf16> to vector<8x8xbf16>
      %94 = arith.truncf %91 : vector<8x512xf32> to vector<8x512xbf16>
      %cst_63 = arith.constant dense<0.000000e+00> : vector<8x512xf32>
      %95 = tpu.matmul %93, %94, %cst_63 {dimension_numbers = #tpu.dot_dimension_numbers<[1], [0], [0], [1], [0, 0, 1, 1], [], []>} : vector<8x8xbf16>, vector<8x512xbf16>, vector<8x512xf32> -> vector<8x512xf32>
      %96 = arith.addf %86, %95 : vector<8x512xf32>
      %c495_i32 = arith.constant 495 : i32
      %97 = tpu.dynamic_rotate %arg18 by %c495_i32 dim 1 : vector<8x512xf32>, i32 -> vector<8x512xf32>
      %c8 = arith.constant 8 : index
      %c0_64 = arith.constant 0 : index
      %c0_65 = arith.constant 0 : index
      %98 = vector.load %arg4[%c8, %c0_64, %c0_65] : memref<9x1x512xf32, #tpu.memory_space<vmem>>, vector<1x1x512xf32>
      %99 = vector.shape_cast %98 : vector<1x1x512xf32> to vector<1x512xf32>
      %100 = vector.broadcast %99 : vector<1x512xf32> to vector<8x512xf32>
      %101 = arith.mulf %97, %100 : vector<8x512xf32>
      %c8_66 = arith.constant 8 : index
      %c0_67 = arith.constant 0 : index
      %c0_68 = arith.constant 0 : index
      %102 = vector.load %arg5[%c8_66, %c0_67, %c0_68] : memref<9x8x8xbf16, #tpu.memory_space<vmem>>, vector<1x8x8xbf16>
      %103 = vector.shape_cast %102 : vector<1x8x8xbf16> to vector<8x8xbf16>
      %104 = arith.truncf %101 : vector<8x512xf32> to vector<8x512xbf16>
      %cst_69 = arith.constant dense<0.000000e+00> : vector<8x512xf32>
      %105 = tpu.matmul %103, %104, %cst_69 {dimension_numbers = #tpu.dot_dimension_numbers<[1], [0], [0], [1], [0, 0, 1, 1], [], []>} : vector<8x8xbf16>, vector<8x512xbf16>, vector<8x512xf32> -> vector<8x512xf32>
      %106 = arith.addf %96, %105 : vector<8x512xf32>
      %c0_70 = arith.constant 0 : index
      %c0_71 = arith.constant 0 : index
      %107 = vector.load %arg6[%c0_70, %c0_71] : memref<8x1xf32, #tpu.memory_space<vmem>>, vector<8x1xf32>
      %108 = vector.broadcast %107 : vector<8x1xf32> to vector<8x512xf32>
      %109 = arith.addf %106, %108 : vector<8x512xf32>
      %110 = vector.broadcast %19 : f32 to vector<8x512xf32>
      %111 = arith.mulf %110, %109 : vector<8x512xf32>
      %112 = arith.addf %arg18, %111 : vector<8x512xf32>
      %c17_i32_72 = arith.constant 17 : i32
      %113 = tpu.dynamic_rotate %22 by %c17_i32_72 dim 1 : vector<8x512xf32>, i32 -> vector<8x512xf32>
      %c0_73 = arith.constant 0 : index
      %c0_74 = arith.constant 0 : index
      %c0_75 = arith.constant 0 : index
      %114 = vector.load %arg4[%c0_73, %c0_74, %c0_75] : memref<9x1x512xf32, #tpu.memory_space<vmem>>, vector<1x1x512xf32>
      %115 = vector.shape_cast %114 : vector<1x1x512xf32> to vector<1x512xf32>
      %116 = vector.broadcast %115 : vector<1x512xf32> to vector<8x512xf32>
      %117 = arith.mulf %113, %116 : vector<8x512xf32>
      %c0_76 = arith.constant 0 : index
      %c0_77 = arith.constant 0 : index
      %c0_78 = arith.constant 0 : index
      %118 = vector.load %arg7[%c0_76, %c0_77, %c0_78] : memref<9x24x8xbf16, #tpu.memory_space<vmem>>, vector<1x24x8xbf16>
      %119 = vector.shape_cast %118 : vector<1x24x8xbf16> to vector<24x8xbf16>
      %120 = arith.truncf %117 : vector<8x512xf32> to vector<8x512xbf16>
      %cst_79 = arith.constant dense<0.000000e+00> : vector<24x512xf32>
      %121 = tpu.matmul %119, %120, %cst_79 {dimension_numbers = #tpu.dot_dimension_numbers<[1], [0], [0], [1], [0, 0, 1, 1], [], []>} : vector<24x8xbf16>, vector<8x512xbf16>, vector<24x512xf32> -> vector<24x512xf32>
      %c16_i32_80 = arith.constant 16 : i32
      %122 = tpu.dynamic_rotate %22 by %c16_i32_80 dim 1 : vector<8x512xf32>, i32 -> vector<8x512xf32>
      %c1_81 = arith.constant 1 : index
      %c0_82 = arith.constant 0 : index
      %c0_83 = arith.constant 0 : index
      %123 = vector.load %arg4[%c1_81, %c0_82, %c0_83] : memref<9x1x512xf32, #tpu.memory_space<vmem>>, vector<1x1x512xf32>
      %124 = vector.shape_cast %123 : vector<1x1x512xf32> to vector<1x512xf32>
      %125 = vector.broadcast %124 : vector<1x512xf32> to vector<8x512xf32>
      %126 = arith.mulf %122, %125 : vector<8x512xf32>
      %c1_84 = arith.constant 1 : index
      %c0_85 = arith.constant 0 : index
      %c0_86 = arith.constant 0 : index
      %127 = vector.load %arg7[%c1_84, %c0_85, %c0_86] : memref<9x24x8xbf16, #tpu.memory_space<vmem>>, vector<1x24x8xbf16>
      %128 = vector.shape_cast %127 : vector<1x24x8xbf16> to vector<24x8xbf16>
      %129 = arith.truncf %126 : vector<8x512xf32> to vector<8x512xbf16>
      %cst_87 = arith.constant dense<0.000000e+00> : vector<24x512xf32>
      %130 = tpu.matmul %128, %129, %cst_87 {dimension_numbers = #tpu.dot_dimension_numbers<[1], [0], [0], [1], [0, 0, 1, 1], [], []>} : vector<24x8xbf16>, vector<8x512xbf16>, vector<24x512xf32> -> vector<24x512xf32>
      %131 = arith.addf %121, %130 : vector<24x512xf32>
      %c15_i32_88 = arith.constant 15 : i32
      %132 = tpu.dynamic_rotate %22 by %c15_i32_88 dim 1 : vector<8x512xf32>, i32 -> vector<8x512xf32>
      %c2_89 = arith.constant 2 : index
      %c0_90 = arith.constant 0 : index
      %c0_91 = arith.constant 0 : index
      %133 = vector.load %arg4[%c2_89, %c0_90, %c0_91] : memref<9x1x512xf32, #tpu.memory_space<vmem>>, vector<1x1x512xf32>
      %134 = vector.shape_cast %133 : vector<1x1x512xf32> to vector<1x512xf32>
      %135 = vector.broadcast %134 : vector<1x512xf32> to vector<8x512xf32>
      %136 = arith.mulf %132, %135 : vector<8x512xf32>
      %c2_92 = arith.constant 2 : index
      %c0_93 = arith.constant 0 : index
      %c0_94 = arith.constant 0 : index
      %137 = vector.load %arg7[%c2_92, %c0_93, %c0_94] : memref<9x24x8xbf16, #tpu.memory_space<vmem>>, vector<1x24x8xbf16>
      %138 = vector.shape_cast %137 : vector<1x24x8xbf16> to vector<24x8xbf16>
      %139 = arith.truncf %136 : vector<8x512xf32> to vector<8x512xbf16>
      %cst_95 = arith.constant dense<0.000000e+00> : vector<24x512xf32>
      %140 = tpu.matmul %138, %139, %cst_95 {dimension_numbers = #tpu.dot_dimension_numbers<[1], [0], [0], [1], [0, 0, 1, 1], [], []>} : vector<24x8xbf16>, vector<8x512xbf16>, vector<24x512xf32> -> vector<24x512xf32>
      %141 = arith.addf %131, %140 : vector<24x512xf32>
      %c1_i32_96 = arith.constant 1 : i32
      %142 = tpu.dynamic_rotate %22 by %c1_i32_96 dim 1 : vector<8x512xf32>, i32 -> vector<8x512xf32>
      %c3_97 = arith.constant 3 : index
      %c0_98 = arith.constant 0 : index
      %c0_99 = arith.constant 0 : index
      %143 = vector.load %arg4[%c3_97, %c0_98, %c0_99] : memref<9x1x512xf32, #tpu.memory_space<vmem>>, vector<1x1x512xf32>
      %144 = vector.shape_cast %143 : vector<1x1x512xf32> to vector<1x512xf32>
      %145 = vector.broadcast %144 : vector<1x512xf32> to vector<8x512xf32>
      %146 = arith.mulf %142, %145 : vector<8x512xf32>
      %c3_100 = arith.constant 3 : index
      %c0_101 = arith.constant 0 : index
      %c0_102 = arith.constant 0 : index
      %147 = vector.load %arg7[%c3_100, %c0_101, %c0_102] : memref<9x24x8xbf16, #tpu.memory_space<vmem>>, vector<1x24x8xbf16>
      %148 = vector.shape_cast %147 : vector<1x24x8xbf16> to vector<24x8xbf16>
      %149 = arith.truncf %146 : vector<8x512xf32> to vector<8x512xbf16>
      %cst_103 = arith.constant dense<0.000000e+00> : vector<24x512xf32>
      %150 = tpu.matmul %148, %149, %cst_103 {dimension_numbers = #tpu.dot_dimension_numbers<[1], [0], [0], [1], [0, 0, 1, 1], [], []>} : vector<24x8xbf16>, vector<8x512xbf16>, vector<24x512xf32> -> vector<24x512xf32>
      %151 = arith.addf %141, %150 : vector<24x512xf32>
      %c4_104 = arith.constant 4 : index
      %c0_105 = arith.constant 0 : index
      %c0_106 = arith.constant 0 : index
      %152 = vector.load %arg7[%c4_104, %c0_105, %c0_106] : memref<9x24x8xbf16, #tpu.memory_space<vmem>>, vector<1x24x8xbf16>
      %153 = vector.shape_cast %152 : vector<1x24x8xbf16> to vector<24x8xbf16>
      %154 = arith.truncf %22 : vector<8x512xf32> to vector<8x512xbf16>
      %cst_107 = arith.constant dense<0.000000e+00> : vector<24x512xf32>
      %155 = tpu.matmul %153, %154, %cst_107 {dimension_numbers = #tpu.dot_dimension_numbers<[1], [0], [0], [1], [0, 0, 1, 1], [], []>} : vector<24x8xbf16>, vector<8x512xbf16>, vector<24x512xf32> -> vector<24x512xf32>
      %156 = arith.addf %151, %155 : vector<24x512xf32>
      %c511_i32_108 = arith.constant 511 : i32
      %157 = tpu.dynamic_rotate %22 by %c511_i32_108 dim 1 : vector<8x512xf32>, i32 -> vector<8x512xf32>
      %c5_109 = arith.constant 5 : index
      %c0_110 = arith.constant 0 : index
      %c0_111 = arith.constant 0 : index
      %158 = vector.load %arg4[%c5_109, %c0_110, %c0_111] : memref<9x1x512xf32, #tpu.memory_space<vmem>>, vector<1x1x512xf32>
      %159 = vector.shape_cast %158 : vector<1x1x512xf32> to vector<1x512xf32>
      %160 = vector.broadcast %159 : vector<1x512xf32> to vector<8x512xf32>
      %161 = arith.mulf %157, %160 : vector<8x512xf32>
      %c5_112 = arith.constant 5 : index
      %c0_113 = arith.constant 0 : index
      %c0_114 = arith.constant 0 : index
      %162 = vector.load %arg7[%c5_112, %c0_113, %c0_114] : memref<9x24x8xbf16, #tpu.memory_space<vmem>>, vector<1x24x8xbf16>
      %163 = vector.shape_cast %162 : vector<1x24x8xbf16> to vector<24x8xbf16>
      %164 = arith.truncf %161 : vector<8x512xf32> to vector<8x512xbf16>
      %cst_115 = arith.constant dense<0.000000e+00> : vector<24x512xf32>
      %165 = tpu.matmul %163, %164, %cst_115 {dimension_numbers = #tpu.dot_dimension_numbers<[1], [0], [0], [1], [0, 0, 1, 1], [], []>} : vector<24x8xbf16>, vector<8x512xbf16>, vector<24x512xf32> -> vector<24x512xf32>
      %166 = arith.addf %156, %165 : vector<24x512xf32>
      %c497_i32_116 = arith.constant 497 : i32
      %167 = tpu.dynamic_rotate %22 by %c497_i32_116 dim 1 : vector<8x512xf32>, i32 -> vector<8x512xf32>
      %c6_117 = arith.constant 6 : index
      %c0_118 = arith.constant 0 : index
      %c0_119 = arith.constant 0 : index
      %168 = vector.load %arg4[%c6_117, %c0_118, %c0_119] : memref<9x1x512xf32, #tpu.memory_space<vmem>>, vector<1x1x512xf32>
      %169 = vector.shape_cast %168 : vector<1x1x512xf32> to vector<1x512xf32>
      %170 = vector.broadcast %169 : vector<1x512xf32> to vector<8x512xf32>
      %171 = arith.mulf %167, %170 : vector<8x512xf32>
      %c6_120 = arith.constant 6 : index
      %c0_121 = arith.constant 0 : index
      %c0_122 = arith.constant 0 : index
      %172 = vector.load %arg7[%c6_120, %c0_121, %c0_122] : memref<9x24x8xbf16, #tpu.memory_space<vmem>>, vector<1x24x8xbf16>
      %173 = vector.shape_cast %172 : vector<1x24x8xbf16> to vector<24x8xbf16>
      %174 = arith.truncf %171 : vector<8x512xf32> to vector<8x512xbf16>
      %cst_123 = arith.constant dense<0.000000e+00> : vector<24x512xf32>
      %175 = tpu.matmul %173, %174, %cst_123 {dimension_numbers = #tpu.dot_dimension_numbers<[1], [0], [0], [1], [0, 0, 1, 1], [], []>} : vector<24x8xbf16>, vector<8x512xbf16>, vector<24x512xf32> -> vector<24x512xf32>
      %176 = arith.addf %166, %175 : vector<24x512xf32>
      %c496_i32_124 = arith.constant 496 : i32
      %177 = tpu.dynamic_rotate %22 by %c496_i32_124 dim 1 : vector<8x512xf32>, i32 -> vector<8x512xf32>
      %c7_125 = arith.constant 7 : index
      %c0_126 = arith.constant 0 : index
      %c0_127 = arith.constant 0 : index
      %178 = vector.load %arg4[%c7_125, %c0_126, %c0_127] : memref<9x1x512xf32, #tpu.memory_space<vmem>>, vector<1x1x512xf32>
      %179 = vector.shape_cast %178 : vector<1x1x512xf32> to vector<1x512xf32>
      %180 = vector.broadcast %179 : vector<1x512xf32> to vector<8x512xf32>
      %181 = arith.mulf %177, %180 : vector<8x512xf32>
      %c7_128 = arith.constant 7 : index
      %c0_129 = arith.constant 0 : index
      %c0_130 = arith.constant 0 : index
      %182 = vector.load %arg7[%c7_128, %c0_129, %c0_130] : memref<9x24x8xbf16, #tpu.memory_space<vmem>>, vector<1x24x8xbf16>
      %183 = vector.shape_cast %182 : vector<1x24x8xbf16> to vector<24x8xbf16>
      %184 = arith.truncf %181 : vector<8x512xf32> to vector<8x512xbf16>
      %cst_131 = arith.constant dense<0.000000e+00> : vector<24x512xf32>
      %185 = tpu.matmul %183, %184, %cst_131 {dimension_numbers = #tpu.dot_dimension_numbers<[1], [0], [0], [1], [0, 0, 1, 1], [], []>} : vector<24x8xbf16>, vector<8x512xbf16>, vector<24x512xf32> -> vector<24x512xf32>
      %186 = arith.addf %176, %185 : vector<24x512xf32>
      %c495_i32_132 = arith.constant 495 : i32
      %187 = tpu.dynamic_rotate %22 by %c495_i32_132 dim 1 : vector<8x512xf32>, i32 -> vector<8x512xf32>
      %c8_133 = arith.constant 8 : index
      %c0_134 = arith.constant 0 : index
      %c0_135 = arith.constant 0 : index
      %188 = vector.load %arg4[%c8_133, %c0_134, %c0_135] : memref<9x1x512xf32, #tpu.memory_space<vmem>>, vector<1x1x512xf32>
      %189 = vector.shape_cast %188 : vector<1x1x512xf32> to vector<1x512xf32>
      %190 = vector.broadcast %189 : vector<1x512xf32> to vector<8x512xf32>
      %191 = arith.mulf %187, %190 : vector<8x512xf32>
      %c8_136 = arith.constant 8 : index
      %c0_137 = arith.constant 0 : index
      %c0_138 = arith.constant 0 : index
      %192 = vector.load %arg7[%c8_136, %c0_137, %c0_138] : memref<9x24x8xbf16, #tpu.memory_space<vmem>>, vector<1x24x8xbf16>
      %193 = vector.shape_cast %192 : vector<1x24x8xbf16> to vector<24x8xbf16>
      %194 = arith.truncf %191 : vector<8x512xf32> to vector<8x512xbf16>
      %cst_139 = arith.constant dense<0.000000e+00> : vector<24x512xf32>
      %195 = tpu.matmul %193, %194, %cst_139 {dimension_numbers = #tpu.dot_dimension_numbers<[1], [0], [0], [1], [0, 0, 1, 1], [], []>} : vector<24x8xbf16>, vector<8x512xbf16>, vector<24x512xf32> -> vector<24x512xf32>
      %196 = arith.addf %186, %195 : vector<24x512xf32>
      %197 = vector.extract_strided_slice %196 {offsets = [0, 0], sizes = [16, 512], strides = [1, 1]} : vector<24x512xf32> to vector<16x512xf32>
      %c17_i32_140 = arith.constant 17 : i32
      %198 = tpu.dynamic_rotate %112 by %c17_i32_140 dim 1 : vector<8x512xf32>, i32 -> vector<8x512xf32>
      %c0_141 = arith.constant 0 : index
      %c0_142 = arith.constant 0 : index
      %c0_143 = arith.constant 0 : index
      %199 = vector.load %arg4[%c0_141, %c0_142, %c0_143] : memref<9x1x512xf32, #tpu.memory_space<vmem>>, vector<1x1x512xf32>
      %200 = vector.shape_cast %199 : vector<1x1x512xf32> to vector<1x512xf32>
      %201 = vector.broadcast %200 : vector<1x512xf32> to vector<8x512xf32>
      %202 = arith.mulf %198, %201 : vector<8x512xf32>
      %c0_144 = arith.constant 0 : index
      %c0_145 = arith.constant 0 : index
      %c0_146 = arith.constant 0 : index
      %203 = vector.load %arg8[%c0_144, %c0_145, %c0_146] : memref<9x16x8xbf16, #tpu.memory_space<vmem>>, vector<1x16x8xbf16>
      %204 = vector.shape_cast %203 : vector<1x16x8xbf16> to vector<16x8xbf16>
      %205 = arith.truncf %202 : vector<8x512xf32> to vector<8x512xbf16>
      %cst_147 = arith.constant dense<0.000000e+00> : vector<16x512xf32>
      %206 = tpu.matmul %204, %205, %cst_147 {dimension_numbers = #tpu.dot_dimension_numbers<[1], [0], [0], [1], [0, 0, 1, 1], [], []>} : vector<16x8xbf16>, vector<8x512xbf16>, vector<16x512xf32> -> vector<16x512xf32>
      %c16_i32_148 = arith.constant 16 : i32
      %207 = tpu.dynamic_rotate %112 by %c16_i32_148 dim 1 : vector<8x512xf32>, i32 -> vector<8x512xf32>
      %c1_149 = arith.constant 1 : index
      %c0_150 = arith.constant 0 : index
      %c0_151 = arith.constant 0 : index
      %208 = vector.load %arg4[%c1_149, %c0_150, %c0_151] : memref<9x1x512xf32, #tpu.memory_space<vmem>>, vector<1x1x512xf32>
      %209 = vector.shape_cast %208 : vector<1x1x512xf32> to vector<1x512xf32>
      %210 = vector.broadcast %209 : vector<1x512xf32> to vector<8x512xf32>
      %211 = arith.mulf %207, %210 : vector<8x512xf32>
      %c1_152 = arith.constant 1 : index
      %c0_153 = arith.constant 0 : index
      %c0_154 = arith.constant 0 : index
      %212 = vector.load %arg8[%c1_152, %c0_153, %c0_154] : memref<9x16x8xbf16, #tpu.memory_space<vmem>>, vector<1x16x8xbf16>
      %213 = vector.shape_cast %212 : vector<1x16x8xbf16> to vector<16x8xbf16>
      %214 = arith.truncf %211 : vector<8x512xf32> to vector<8x512xbf16>
      %cst_155 = arith.constant dense<0.000000e+00> : vector<16x512xf32>
      %215 = tpu.matmul %213, %214, %cst_155 {dimension_numbers = #tpu.dot_dimension_numbers<[1], [0], [0], [1], [0, 0, 1, 1], [], []>} : vector<16x8xbf16>, vector<8x512xbf16>, vector<16x512xf32> -> vector<16x512xf32>
      %216 = arith.addf %206, %215 : vector<16x512xf32>
      %c15_i32_156 = arith.constant 15 : i32
      %217 = tpu.dynamic_rotate %112 by %c15_i32_156 dim 1 : vector<8x512xf32>, i32 -> vector<8x512xf32>
      %c2_157 = arith.constant 2 : index
      %c0_158 = arith.constant 0 : index
      %c0_159 = arith.constant 0 : index
      %218 = vector.load %arg4[%c2_157, %c0_158, %c0_159] : memref<9x1x512xf32, #tpu.memory_space<vmem>>, vector<1x1x512xf32>
      %219 = vector.shape_cast %218 : vector<1x1x512xf32> to vector<1x512xf32>
      %220 = vector.broadcast %219 : vector<1x512xf32> to vector<8x512xf32>
      %221 = arith.mulf %217, %220 : vector<8x512xf32>
      %c2_160 = arith.constant 2 : index
      %c0_161 = arith.constant 0 : index
      %c0_162 = arith.constant 0 : index
      %222 = vector.load %arg8[%c2_160, %c0_161, %c0_162] : memref<9x16x8xbf16, #tpu.memory_space<vmem>>, vector<1x16x8xbf16>
      %223 = vector.shape_cast %222 : vector<1x16x8xbf16> to vector<16x8xbf16>
      %224 = arith.truncf %221 : vector<8x512xf32> to vector<8x512xbf16>
      %cst_163 = arith.constant dense<0.000000e+00> : vector<16x512xf32>
      %225 = tpu.matmul %223, %224, %cst_163 {dimension_numbers = #tpu.dot_dimension_numbers<[1], [0], [0], [1], [0, 0, 1, 1], [], []>} : vector<16x8xbf16>, vector<8x512xbf16>, vector<16x512xf32> -> vector<16x512xf32>
      %226 = arith.addf %216, %225 : vector<16x512xf32>
      %c1_i32_164 = arith.constant 1 : i32
      %227 = tpu.dynamic_rotate %112 by %c1_i32_164 dim 1 : vector<8x512xf32>, i32 -> vector<8x512xf32>
      %c3_165 = arith.constant 3 : index
      %c0_166 = arith.constant 0 : index
      %c0_167 = arith.constant 0 : index
      %228 = vector.load %arg4[%c3_165, %c0_166, %c0_167] : memref<9x1x512xf32, #tpu.memory_space<vmem>>, vector<1x1x512xf32>
      %229 = vector.shape_cast %228 : vector<1x1x512xf32> to vector<1x512xf32>
      %230 = vector.broadcast %229 : vector<1x512xf32> to vector<8x512xf32>
      %231 = arith.mulf %227, %230 : vector<8x512xf32>
      %c3_168 = arith.constant 3 : index
      %c0_169 = arith.constant 0 : index
      %c0_170 = arith.constant 0 : index
      %232 = vector.load %arg8[%c3_168, %c0_169, %c0_170] : memref<9x16x8xbf16, #tpu.memory_space<vmem>>, vector<1x16x8xbf16>
      %233 = vector.shape_cast %232 : vector<1x16x8xbf16> to vector<16x8xbf16>
      %234 = arith.truncf %231 : vector<8x512xf32> to vector<8x512xbf16>
      %cst_171 = arith.constant dense<0.000000e+00> : vector<16x512xf32>
      %235 = tpu.matmul %233, %234, %cst_171 {dimension_numbers = #tpu.dot_dimension_numbers<[1], [0], [0], [1], [0, 0, 1, 1], [], []>} : vector<16x8xbf16>, vector<8x512xbf16>, vector<16x512xf32> -> vector<16x512xf32>
      %236 = arith.addf %226, %235 : vector<16x512xf32>
      %c4_172 = arith.constant 4 : index
      %c0_173 = arith.constant 0 : index
      %c0_174 = arith.constant 0 : index
      %237 = vector.load %arg8[%c4_172, %c0_173, %c0_174] : memref<9x16x8xbf16, #tpu.memory_space<vmem>>, vector<1x16x8xbf16>
      %238 = vector.shape_cast %237 : vector<1x16x8xbf16> to vector<16x8xbf16>
      %239 = arith.truncf %112 : vector<8x512xf32> to vector<8x512xbf16>
      %cst_175 = arith.constant dense<0.000000e+00> : vector<16x512xf32>
      %240 = tpu.matmul %238, %239, %cst_175 {dimension_numbers = #tpu.dot_dimension_numbers<[1], [0], [0], [1], [0, 0, 1, 1], [], []>} : vector<16x8xbf16>, vector<8x512xbf16>, vector<16x512xf32> -> vector<16x512xf32>
      %241 = arith.addf %236, %240 : vector<16x512xf32>
      %c511_i32_176 = arith.constant 511 : i32
      %242 = tpu.dynamic_rotate %112 by %c511_i32_176 dim 1 : vector<8x512xf32>, i32 -> vector<8x512xf32>
      %c5_177 = arith.constant 5 : index
      %c0_178 = arith.constant 0 : index
      %c0_179 = arith.constant 0 : index
      %243 = vector.load %arg4[%c5_177, %c0_178, %c0_179] : memref<9x1x512xf32, #tpu.memory_space<vmem>>, vector<1x1x512xf32>
      %244 = vector.shape_cast %243 : vector<1x1x512xf32> to vector<1x512xf32>
      %245 = vector.broadcast %244 : vector<1x512xf32> to vector<8x512xf32>
      %246 = arith.mulf %242, %245 : vector<8x512xf32>
      %c5_180 = arith.constant 5 : index
      %c0_181 = arith.constant 0 : index
      %c0_182 = arith.constant 0 : index
      %247 = vector.load %arg8[%c5_180, %c0_181, %c0_182] : memref<9x16x8xbf16, #tpu.memory_space<vmem>>, vector<1x16x8xbf16>
      %248 = vector.shape_cast %247 : vector<1x16x8xbf16> to vector<16x8xbf16>
      %249 = arith.truncf %246 : vector<8x512xf32> to vector<8x512xbf16>
      %cst_183 = arith.constant dense<0.000000e+00> : vector<16x512xf32>
      %250 = tpu.matmul %248, %249, %cst_183 {dimension_numbers = #tpu.dot_dimension_numbers<[1], [0], [0], [1], [0, 0, 1, 1], [], []>} : vector<16x8xbf16>, vector<8x512xbf16>, vector<16x512xf32> -> vector<16x512xf32>
      %251 = arith.addf %241, %250 : vector<16x512xf32>
      %c497_i32_184 = arith.constant 497 : i32
      %252 = tpu.dynamic_rotate %112 by %c497_i32_184 dim 1 : vector<8x512xf32>, i32 -> vector<8x512xf32>
      %c6_185 = arith.constant 6 : index
      %c0_186 = arith.constant 0 : index
      %c0_187 = arith.constant 0 : index
      %253 = vector.load %arg4[%c6_185, %c0_186, %c0_187] : memref<9x1x512xf32, #tpu.memory_space<vmem>>, vector<1x1x512xf32>
      %254 = vector.shape_cast %253 : vector<1x1x512xf32> to vector<1x512xf32>
      %255 = vector.broadcast %254 : vector<1x512xf32> to vector<8x512xf32>
      %256 = arith.mulf %252, %255 : vector<8x512xf32>
      %c6_188 = arith.constant 6 : index
      %c0_189 = arith.constant 0 : index
      %c0_190 = arith.constant 0 : index
      %257 = vector.load %arg8[%c6_188, %c0_189, %c0_190] : memref<9x16x8xbf16, #tpu.memory_space<vmem>>, vector<1x16x8xbf16>
      %258 = vector.shape_cast %257 : vector<1x16x8xbf16> to vector<16x8xbf16>
      %259 = arith.truncf %256 : vector<8x512xf32> to vector<8x512xbf16>
      %cst_191 = arith.constant dense<0.000000e+00> : vector<16x512xf32>
      %260 = tpu.matmul %258, %259, %cst_191 {dimension_numbers = #tpu.dot_dimension_numbers<[1], [0], [0], [1], [0, 0, 1, 1], [], []>} : vector<16x8xbf16>, vector<8x512xbf16>, vector<16x512xf32> -> vector<16x512xf32>
      %261 = arith.addf %251, %260 : vector<16x512xf32>
      %c496_i32_192 = arith.constant 496 : i32
      %262 = tpu.dynamic_rotate %112 by %c496_i32_192 dim 1 : vector<8x512xf32>, i32 -> vector<8x512xf32>
      %c7_193 = arith.constant 7 : index
      %c0_194 = arith.constant 0 : index
      %c0_195 = arith.constant 0 : index
      %263 = vector.load %arg4[%c7_193, %c0_194, %c0_195] : memref<9x1x512xf32, #tpu.memory_space<vmem>>, vector<1x1x512xf32>
      %264 = vector.shape_cast %263 : vector<1x1x512xf32> to vector<1x512xf32>
      %265 = vector.broadcast %264 : vector<1x512xf32> to vector<8x512xf32>
      %266 = arith.mulf %262, %265 : vector<8x512xf32>
      %c7_196 = arith.constant 7 : index
      %c0_197 = arith.constant 0 : index
      %c0_198 = arith.constant 0 : index
      %267 = vector.load %arg8[%c7_196, %c0_197, %c0_198] : memref<9x16x8xbf16, #tpu.memory_space<vmem>>, vector<1x16x8xbf16>
      %268 = vector.shape_cast %267 : vector<1x16x8xbf16> to vector<16x8xbf16>
      %269 = arith.truncf %266 : vector<8x512xf32> to vector<8x512xbf16>
      %cst_199 = arith.constant dense<0.000000e+00> : vector<16x512xf32>
      %270 = tpu.matmul %268, %269, %cst_199 {dimension_numbers = #tpu.dot_dimension_numbers<[1], [0], [0], [1], [0, 0, 1, 1], [], []>} : vector<16x8xbf16>, vector<8x512xbf16>, vector<16x512xf32> -> vector<16x512xf32>
      %271 = arith.addf %261, %270 : vector<16x512xf32>
      %c495_i32_200 = arith.constant 495 : i32
      %272 = tpu.dynamic_rotate %112 by %c495_i32_200 dim 1 : vector<8x512xf32>, i32 -> vector<8x512xf32>
      %c8_201 = arith.constant 8 : index
      %c0_202 = arith.constant 0 : index
      %c0_203 = arith.constant 0 : index
      %273 = vector.load %arg4[%c8_201, %c0_202, %c0_203] : memref<9x1x512xf32, #tpu.memory_space<vmem>>, vector<1x1x512xf32>
      %274 = vector.shape_cast %273 : vector<1x1x512xf32> to vector<1x512xf32>
      %275 = vector.broadcast %274 : vector<1x512xf32> to vector<8x512xf32>
      %276 = arith.mulf %272, %275 : vector<8x512xf32>
      %c8_204 = arith.constant 8 : index
      %c0_205 = arith.constant 0 : index
      %c0_206 = arith.constant 0 : index
      %277 = vector.load %arg8[%c8_204, %c0_205, %c0_206] : memref<9x16x8xbf16, #tpu.memory_space<vmem>>, vector<1x16x8xbf16>
      %278 = vector.shape_cast %277 : vector<1x16x8xbf16> to vector<16x8xbf16>
      %279 = arith.truncf %276 : vector<8x512xf32> to vector<8x512xbf16>
      %cst_207 = arith.constant dense<0.000000e+00> : vector<16x512xf32>
      %280 = tpu.matmul %278, %279, %cst_207 {dimension_numbers = #tpu.dot_dimension_numbers<[1], [0], [0], [1], [0, 0, 1, 1], [], []>} : vector<16x8xbf16>, vector<8x512xbf16>, vector<16x512xf32> -> vector<16x512xf32>
      %281 = arith.addf %271, %280 : vector<16x512xf32>
      %282 = arith.addf %197, %281 : vector<16x512xf32>
      %c0_208 = arith.constant 0 : index
      %c0_209 = arith.constant 0 : index
      %283 = vector.load %arg9[%c0_208, %c0_209] : memref<16x1xf32, #tpu.memory_space<vmem>>, vector<16x1xf32>
      %284 = vector.broadcast %283 : vector<16x1xf32> to vector<16x512xf32>
      %285 = arith.addf %282, %284 : vector<16x512xf32>
      %286 = arith.negf %285 : vector<16x512xf32>
      %287 = math.exp %286 : vector<16x512xf32>
      %cst_210 = arith.constant 1.000000e+00 : f32
      %288 = vector.broadcast %cst_210 : f32 to vector<16x512xf32>
      %289 = arith.addf %288, %287 : vector<16x512xf32>
      %290 = arith.divf %288, %289 : vector<16x512xf32>
      %291 = vector.extract_strided_slice %290 {offsets = [0, 0], sizes = [8, 512], strides = [1, 1]} : vector<16x512xf32> to vector<8x512xf32>
      %292 = vector.extract_strided_slice %290 {offsets = [8, 0], sizes = [8, 512], strides = [1, 1]} : vector<16x512xf32> to vector<8x512xf32>
      %293 = vector.extract_strided_slice %196 {offsets = [16, 0], sizes = [8, 512], strides = [1, 1]} : vector<24x512xf32> to vector<8x512xf32>
      %294 = arith.mulf %291, %112 : vector<8x512xf32>
      %c17_i32_211 = arith.constant 17 : i32
      %295 = tpu.dynamic_rotate %294 by %c17_i32_211 dim 1 : vector<8x512xf32>, i32 -> vector<8x512xf32>
      %c0_212 = arith.constant 0 : index
      %c0_213 = arith.constant 0 : index
      %c0_214 = arith.constant 0 : index
      %296 = vector.load %arg4[%c0_212, %c0_213, %c0_214] : memref<9x1x512xf32, #tpu.memory_space<vmem>>, vector<1x1x512xf32>
      %297 = vector.shape_cast %296 : vector<1x1x512xf32> to vector<1x512xf32>
      %298 = vector.broadcast %297 : vector<1x512xf32> to vector<8x512xf32>
      %299 = arith.mulf %295, %298 : vector<8x512xf32>
      %c0_215 = arith.constant 0 : index
      %c0_216 = arith.constant 0 : index
      %c0_217 = arith.constant 0 : index
      %300 = vector.load %arg10[%c0_215, %c0_216, %c0_217] : memref<9x8x8xbf16, #tpu.memory_space<vmem>>, vector<1x8x8xbf16>
      %301 = vector.shape_cast %300 : vector<1x8x8xbf16> to vector<8x8xbf16>
      %302 = arith.truncf %299 : vector<8x512xf32> to vector<8x512xbf16>
      %cst_218 = arith.constant dense<0.000000e+00> : vector<8x512xf32>
      %303 = tpu.matmul %301, %302, %cst_218 {dimension_numbers = #tpu.dot_dimension_numbers<[1], [0], [0], [1], [0, 0, 1, 1], [], []>} : vector<8x8xbf16>, vector<8x512xbf16>, vector<8x512xf32> -> vector<8x512xf32>
      %c16_i32_219 = arith.constant 16 : i32
      %304 = tpu.dynamic_rotate %294 by %c16_i32_219 dim 1 : vector<8x512xf32>, i32 -> vector<8x512xf32>
      %c1_220 = arith.constant 1 : index
      %c0_221 = arith.constant 0 : index
      %c0_222 = arith.constant 0 : index
      %305 = vector.load %arg4[%c1_220, %c0_221, %c0_222] : memref<9x1x512xf32, #tpu.memory_space<vmem>>, vector<1x1x512xf32>
      %306 = vector.shape_cast %305 : vector<1x1x512xf32> to vector<1x512xf32>
      %307 = vector.broadcast %306 : vector<1x512xf32> to vector<8x512xf32>
      %308 = arith.mulf %304, %307 : vector<8x512xf32>
      %c1_223 = arith.constant 1 : index
      %c0_224 = arith.constant 0 : index
      %c0_225 = arith.constant 0 : index
      %309 = vector.load %arg10[%c1_223, %c0_224, %c0_225] : memref<9x8x8xbf16, #tpu.memory_space<vmem>>, vector<1x8x8xbf16>
      %310 = vector.shape_cast %309 : vector<1x8x8xbf16> to vector<8x8xbf16>
      %311 = arith.truncf %308 : vector<8x512xf32> to vector<8x512xbf16>
      %cst_226 = arith.constant dense<0.000000e+00> : vector<8x512xf32>
      %312 = tpu.matmul %310, %311, %cst_226 {dimension_numbers = #tpu.dot_dimension_numbers<[1], [0], [0], [1], [0, 0, 1, 1], [], []>} : vector<8x8xbf16>, vector<8x512xbf16>, vector<8x512xf32> -> vector<8x512xf32>
      %313 = arith.addf %303, %312 : vector<8x512xf32>
      %c15_i32_227 = arith.constant 15 : i32
      %314 = tpu.dynamic_rotate %294 by %c15_i32_227 dim 1 : vector<8x512xf32>, i32 -> vector<8x512xf32>
      %c2_228 = arith.constant 2 : index
      %c0_229 = arith.constant 0 : index
      %c0_230 = arith.constant 0 : index
      %315 = vector.load %arg4[%c2_228, %c0_229, %c0_230] : memref<9x1x512xf32, #tpu.memory_space<vmem>>, vector<1x1x512xf32>
      %316 = vector.shape_cast %315 : vector<1x1x512xf32> to vector<1x512xf32>
      %317 = vector.broadcast %316 : vector<1x512xf32> to vector<8x512xf32>
      %318 = arith.mulf %314, %317 : vector<8x512xf32>
      %c2_231 = arith.constant 2 : index
      %c0_232 = arith.constant 0 : index
      %c0_233 = arith.constant 0 : index
      %319 = vector.load %arg10[%c2_231, %c0_232, %c0_233] : memref<9x8x8xbf16, #tpu.memory_space<vmem>>, vector<1x8x8xbf16>
      %320 = vector.shape_cast %319 : vector<1x8x8xbf16> to vector<8x8xbf16>
      %321 = arith.truncf %318 : vector<8x512xf32> to vector<8x512xbf16>
      %cst_234 = arith.constant dense<0.000000e+00> : vector<8x512xf32>
      %322 = tpu.matmul %320, %321, %cst_234 {dimension_numbers = #tpu.dot_dimension_numbers<[1], [0], [0], [1], [0, 0, 1, 1], [], []>} : vector<8x8xbf16>, vector<8x512xbf16>, vector<8x512xf32> -> vector<8x512xf32>
      %323 = arith.addf %313, %322 : vector<8x512xf32>
      %c1_i32_235 = arith.constant 1 : i32
      %324 = tpu.dynamic_rotate %294 by %c1_i32_235 dim 1 : vector<8x512xf32>, i32 -> vector<8x512xf32>
      %c3_236 = arith.constant 3 : index
      %c0_237 = arith.constant 0 : index
      %c0_238 = arith.constant 0 : index
      %325 = vector.load %arg4[%c3_236, %c0_237, %c0_238] : memref<9x1x512xf32, #tpu.memory_space<vmem>>, vector<1x1x512xf32>
      %326 = vector.shape_cast %325 : vector<1x1x512xf32> to vector<1x512xf32>
      %327 = vector.broadcast %326 : vector<1x512xf32> to vector<8x512xf32>
      %328 = arith.mulf %324, %327 : vector<8x512xf32>
      %c3_239 = arith.constant 3 : index
      %c0_240 = arith.constant 0 : index
      %c0_241 = arith.constant 0 : index
      %329 = vector.load %arg10[%c3_239, %c0_240, %c0_241] : memref<9x8x8xbf16, #tpu.memory_space<vmem>>, vector<1x8x8xbf16>
      %330 = vector.shape_cast %329 : vector<1x8x8xbf16> to vector<8x8xbf16>
      %331 = arith.truncf %328 : vector<8x512xf32> to vector<8x512xbf16>
      %cst_242 = arith.constant dense<0.000000e+00> : vector<8x512xf32>
      %332 = tpu.matmul %330, %331, %cst_242 {dimension_numbers = #tpu.dot_dimension_numbers<[1], [0], [0], [1], [0, 0, 1, 1], [], []>} : vector<8x8xbf16>, vector<8x512xbf16>, vector<8x512xf32> -> vector<8x512xf32>
      %333 = arith.addf %323, %332 : vector<8x512xf32>
      %c4_243 = arith.constant 4 : index
      %c0_244 = arith.constant 0 : index
      %c0_245 = arith.constant 0 : index
      %334 = vector.load %arg10[%c4_243, %c0_244, %c0_245] : memref<9x8x8xbf16, #tpu.memory_space<vmem>>, vector<1x8x8xbf16>
      %335 = vector.shape_cast %334 : vector<1x8x8xbf16> to vector<8x8xbf16>
      %336 = arith.truncf %294 : vector<8x512xf32> to vector<8x512xbf16>
      %cst_246 = arith.constant dense<0.000000e+00> : vector<8x512xf32>
      %337 = tpu.matmul %335, %336, %cst_246 {dimension_numbers = #tpu.dot_dimension_numbers<[1], [0], [0], [1], [0, 0, 1, 1], [], []>} : vector<8x8xbf16>, vector<8x512xbf16>, vector<8x512xf32> -> vector<8x512xf32>
      %338 = arith.addf %333, %337 : vector<8x512xf32>
      %c511_i32_247 = arith.constant 511 : i32
      %339 = tpu.dynamic_rotate %294 by %c511_i32_247 dim 1 : vector<8x512xf32>, i32 -> vector<8x512xf32>
      %c5_248 = arith.constant 5 : index
      %c0_249 = arith.constant 0 : index
      %c0_250 = arith.constant 0 : index
      %340 = vector.load %arg4[%c5_248, %c0_249, %c0_250] : memref<9x1x512xf32, #tpu.memory_space<vmem>>, vector<1x1x512xf32>
      %341 = vector.shape_cast %340 : vector<1x1x512xf32> to vector<1x512xf32>
      %342 = vector.broadcast %341 : vector<1x512xf32> to vector<8x512xf32>
      %343 = arith.mulf %339, %342 : vector<8x512xf32>
      %c5_251 = arith.constant 5 : index
      %c0_252 = arith.constant 0 : index
      %c0_253 = arith.constant 0 : index
      %344 = vector.load %arg10[%c5_251, %c0_252, %c0_253] : memref<9x8x8xbf16, #tpu.memory_space<vmem>>, vector<1x8x8xbf16>
      %345 = vector.shape_cast %344 : vector<1x8x8xbf16> to vector<8x8xbf16>
      %346 = arith.truncf %343 : vector<8x512xf32> to vector<8x512xbf16>
      %cst_254 = arith.constant dense<0.000000e+00> : vector<8x512xf32>
      %347 = tpu.matmul %345, %346, %cst_254 {dimension_numbers = #tpu.dot_dimension_numbers<[1], [0], [0], [1], [0, 0, 1, 1], [], []>} : vector<8x8xbf16>, vector<8x512xbf16>, vector<8x512xf32> -> vector<8x512xf32>
      %348 = arith.addf %338, %347 : vector<8x512xf32>
      %c497_i32_255 = arith.constant 497 : i32
      %349 = tpu.dynamic_rotate %294 by %c497_i32_255 dim 1 : vector<8x512xf32>, i32 -> vector<8x512xf32>
      %c6_256 = arith.constant 6 : index
      %c0_257 = arith.constant 0 : index
      %c0_258 = arith.constant 0 : index
      %350 = vector.load %arg4[%c6_256, %c0_257, %c0_258] : memref<9x1x512xf32, #tpu.memory_space<vmem>>, vector<1x1x512xf32>
      %351 = vector.shape_cast %350 : vector<1x1x512xf32> to vector<1x512xf32>
      %352 = vector.broadcast %351 : vector<1x512xf32> to vector<8x512xf32>
      %353 = arith.mulf %349, %352 : vector<8x512xf32>
      %c6_259 = arith.constant 6 : index
      %c0_260 = arith.constant 0 : index
      %c0_261 = arith.constant 0 : index
      %354 = vector.load %arg10[%c6_259, %c0_260, %c0_261] : memref<9x8x8xbf16, #tpu.memory_space<vmem>>, vector<1x8x8xbf16>
      %355 = vector.shape_cast %354 : vector<1x8x8xbf16> to vector<8x8xbf16>
      %356 = arith.truncf %353 : vector<8x512xf32> to vector<8x512xbf16>
      %cst_262 = arith.constant dense<0.000000e+00> : vector<8x512xf32>
      %357 = tpu.matmul %355, %356, %cst_262 {dimension_numbers = #tpu.dot_dimension_numbers<[1], [0], [0], [1], [0, 0, 1, 1], [], []>} : vector<8x8xbf16>, vector<8x512xbf16>, vector<8x512xf32> -> vector<8x512xf32>
      %358 = arith.addf %348, %357 : vector<8x512xf32>
      %c496_i32_263 = arith.constant 496 : i32
      %359 = tpu.dynamic_rotate %294 by %c496_i32_263 dim 1 : vector<8x512xf32>, i32 -> vector<8x512xf32>
      %c7_264 = arith.constant 7 : index
      %c0_265 = arith.constant 0 : index
      %c0_266 = arith.constant 0 : index
      %360 = vector.load %arg4[%c7_264, %c0_265, %c0_266] : memref<9x1x512xf32, #tpu.memory_space<vmem>>, vector<1x1x512xf32>
      %361 = vector.shape_cast %360 : vector<1x1x512xf32> to vector<1x512xf32>
      %362 = vector.broadcast %361 : vector<1x512xf32> to vector<8x512xf32>
      %363 = arith.mulf %359, %362 : vector<8x512xf32>
      %c7_267 = arith.constant 7 : index
      %c0_268 = arith.constant 0 : index
      %c0_269 = arith.constant 0 : index
      %364 = vector.load %arg10[%c7_267, %c0_268, %c0_269] : memref<9x8x8xbf16, #tpu.memory_space<vmem>>, vector<1x8x8xbf16>
      %365 = vector.shape_cast %364 : vector<1x8x8xbf16> to vector<8x8xbf16>
      %366 = arith.truncf %363 : vector<8x512xf32> to vector<8x512xbf16>
      %cst_270 = arith.constant dense<0.000000e+00> : vector<8x512xf32>
      %367 = tpu.matmul %365, %366, %cst_270 {dimension_numbers = #tpu.dot_dimension_numbers<[1], [0], [0], [1], [0, 0, 1, 1], [], []>} : vector<8x8xbf16>, vector<8x512xbf16>, vector<8x512xf32> -> vector<8x512xf32>
      %368 = arith.addf %358, %367 : vector<8x512xf32>
      %c495_i32_271 = arith.constant 495 : i32
      %369 = tpu.dynamic_rotate %294 by %c495_i32_271 dim 1 : vector<8x512xf32>, i32 -> vector<8x512xf32>
      %c8_272 = arith.constant 8 : index
      %c0_273 = arith.constant 0 : index
      %c0_274 = arith.constant 0 : index
      %370 = vector.load %arg4[%c8_272, %c0_273, %c0_274] : memref<9x1x512xf32, #tpu.memory_space<vmem>>, vector<1x1x512xf32>
      %371 = vector.shape_cast %370 : vector<1x1x512xf32> to vector<1x512xf32>
      %372 = vector.broadcast %371 : vector<1x512xf32> to vector<8x512xf32>
      %373 = arith.mulf %369, %372 : vector<8x512xf32>
      %c8_275 = arith.constant 8 : index
      %c0_276 = arith.constant 0 : index
      %c0_277 = arith.constant 0 : index
      %374 = vector.load %arg10[%c8_275, %c0_276, %c0_277] : memref<9x8x8xbf16, #tpu.memory_space<vmem>>, vector<1x8x8xbf16>
      %375 = vector.shape_cast %374 : vector<1x8x8xbf16> to vector<8x8xbf16>
      %376 = arith.truncf %373 : vector<8x512xf32> to vector<8x512xbf16>
      %cst_278 = arith.constant dense<0.000000e+00> : vector<8x512xf32>
      %377 = tpu.matmul %375, %376, %cst_278 {dimension_numbers = #tpu.dot_dimension_numbers<[1], [0], [0], [1], [0, 0, 1, 1], [], []>} : vector<8x8xbf16>, vector<8x512xbf16>, vector<8x512xf32> -> vector<8x512xf32>
      %378 = arith.addf %368, %377 : vector<8x512xf32>
      %379 = arith.addf %293, %378 : vector<8x512xf32>
      %c0_279 = arith.constant 0 : index
      %c0_280 = arith.constant 0 : index
      %380 = vector.load %arg11[%c0_279, %c0_280] : memref<8x1xf32, #tpu.memory_space<vmem>>, vector<8x1xf32>
      %381 = vector.broadcast %380 : vector<8x1xf32> to vector<8x512xf32>
      %382 = arith.addf %379, %381 : vector<8x512xf32>
      %383 = math.tanh %382 : vector<8x512xf32>
      %384 = arith.subf %383, %112 : vector<8x512xf32>
      %385 = arith.mulf %292, %384 : vector<8x512xf32>
      %386 = arith.addf %112, %385 : vector<8x512xf32>
      %c0_281 = arith.constant 0 : index
      %387 = arith.index_cast %arg17 : i32 to index
      %c0_282 = arith.constant 0 : index
      %c0_283 = arith.constant 0 : index
      %388 = vector.load %arg3[%c0_281, %387, %c0_282, %c0_283] : memref<1x8x1x512xf32, #tpu.memory_space<vmem>>, vector<1x1x1x512xf32>
      %389 = vector.shape_cast %388 : vector<1x1x1x512xf32> to vector<1x512xf32>
      %390 = arith.subf %386, %112 : vector<8x512xf32>
      %391 = vector.broadcast %389 : vector<1x512xf32> to vector<8x512xf32>
      %392 = arith.mulf %391, %390 : vector<8x512xf32>
      %393 = arith.addf %112, %392 : vector<8x512xf32>
      scf.yield %393 : vector<8x512xf32>
    }
    %c8_i32_0 = arith.constant 8 : i32
    %c0 = arith.constant 0 : index
    %c0_1 = arith.constant 0 : index
    %3 = vector.load %arg12[%c0, %c0_1] : memref<8x8xf32, #tpu.memory_space<vmem>>, vector<8x8xf32>
    %cst_2 = arith.constant dense<0.000000e+00> : vector<8x512xf32>
    %4 = tpu.matmul %3, %2, %cst_2 {dimension_numbers = #tpu.dot_dimension_numbers<[1], [0], [0], [1], [0, 0, 1, 1], [], []>} : vector<8x8xf32>, vector<8x512xf32>, vector<8x512xf32> -> vector<8x512xf32>
    %c0_3 = arith.constant 0 : index
    %c0_4 = arith.constant 0 : index
    %5 = vector.load %arg13[%c0_3, %c0_4] : memref<8x1xf32, #tpu.memory_space<vmem>>, vector<8x1xf32>
    %6 = vector.broadcast %5 : vector<8x1xf32> to vector<8x512xf32>
    %7 = arith.addf %4, %6 : vector<8x512xf32>
    %cst_5 = arith.constant 0.000000e+00 : f32
    %8 = vector.broadcast %cst_5 : f32 to vector<8x512xf32>
    %9 = arith.maximumf %7, %8 : vector<8x512xf32>
    %c0_6 = arith.constant 0 : index
    %c0_7 = arith.constant 0 : index
    %10 = vector.load %arg14[%c0_6, %c0_7] : memref<16x8xf32, #tpu.memory_space<vmem>>, vector<16x8xf32>
    %cst_8 = arith.constant dense<0.000000e+00> : vector<16x512xf32>
    %11 = tpu.matmul %10, %9, %cst_8 {dimension_numbers = #tpu.dot_dimension_numbers<[1], [0], [0], [1], [0, 0, 1, 1], [], []>} : vector<16x8xf32>, vector<8x512xf32>, vector<16x512xf32> -> vector<16x512xf32>
    %c0_9 = arith.constant 0 : index
    %c0_10 = arith.constant 0 : index
    %12 = vector.load %arg15[%c0_9, %c0_10] : memref<16x1xf32, #tpu.memory_space<vmem>>, vector<16x1xf32>
    %13 = vector.broadcast %12 : vector<16x1xf32> to vector<16x512xf32>
    %14 = arith.addf %11, %13 : vector<16x512xf32>
    %c0_11 = arith.constant 0 : index
    %c0_12 = arith.constant 0 : index
    %c0_13 = arith.constant 0 : index
    %15 = vector.load %arg16[%c0_11, %c0_12, %c0_13] : memref<1x16x512xf32, #tpu.memory_space<vmem>>, vector<1x16x512xf32>
    %16 = vector.shape_cast %15 : vector<1x16x512xf32> to vector<16x512xf32>
    %17 = vector.shape_cast %14 : vector<16x512xf32> to vector<1x16x512xf32>
    tpu.vector_store %arg16[%c0_11, %c0_12, %c0_13], %17 {strides = array<i32>} : memref<1x16x512xf32, #tpu.memory_space<vmem>>, vector<1x16x512xf32>,
    return
  }
  func.func @transform_0(%arg0: i32) -> i32 {
    %c0_i32 = arith.constant 0 : i32
    %c0_i32_0 = arith.constant 0 : i32
    return %c0_i32 : i32
  }
  func.func @transform_1(%arg0: i32) -> (i32, i32, i32, i32) {
    %c0_i32 = arith.constant 0 : i32
    %c0_i32_0 = arith.constant 0 : i32
    %c0_i32_1 = arith.constant 0 : i32
    %c0_i32_2 = arith.constant 0 : i32
    return %arg0, %c0_i32, %c0_i32_0, %c0_i32_1 : i32, i32, i32, i32
  }
  func.func @transform_2(%arg0: i32) -> (i32, i32, i32, i32) {
    %c0_i32 = arith.constant 0 : i32
    %c0_i32_0 = arith.constant 0 : i32
    %c0_i32_1 = arith.constant 0 : i32
    %c0_i32_2 = arith.constant 0 : i32
    return %arg0, %c0_i32, %c0_i32_0, %c0_i32_1 : i32, i32, i32, i32
  }
  func.func @transform_3(%arg0: i32) -> (i32, i32, i32) {
    %c0_i32 = arith.constant 0 : i32
    %c0_i32_0 = arith.constant 0 : i32
    %c0_i32_1 = arith.constant 0 : i32
    %c0_i32_2 = arith.constant 0 : i32
    return %c0_i32, %c0_i32_0, %c0_i32_1 : i32, i32, i32
  }
  func.func @transform_4(%arg0: i32) -> (i32, i32, i32) {
    %c0_i32 = arith.constant 0 : i32
    %c0_i32_0 = arith.constant 0 : i32
    %c0_i32_1 = arith.constant 0 : i32
    %c0_i32_2 = arith.constant 0 : i32
    return %c0_i32, %c0_i32_0, %c0_i32_1 : i32, i32, i32
  }
  func.func @transform_5(%arg0: i32) -> (i32, i32) {
    %c0_i32 = arith.constant 0 : i32
    %c0_i32_0 = arith.constant 0 : i32
    %c0_i32_1 = arith.constant 0 : i32
    return %c0_i32, %c0_i32_0 : i32, i32
  }
  func.func @transform_6(%arg0: i32) -> (i32, i32, i32) {
    %c0_i32 = arith.constant 0 : i32
    %c0_i32_0 = arith.constant 0 : i32
    %c0_i32_1 = arith.constant 0 : i32
    %c0_i32_2 = arith.constant 0 : i32
    return %c0_i32, %c0_i32_0, %c0_i32_1 : i32, i32, i32
  }
  func.func @transform_7(%arg0: i32) -> (i32, i32, i32) {
    %c0_i32 = arith.constant 0 : i32
    %c0_i32_0 = arith.constant 0 : i32
    %c0_i32_1 = arith.constant 0 : i32
    %c0_i32_2 = arith.constant 0 : i32
    return %c0_i32, %c0_i32_0, %c0_i32_1 : i32, i32, i32
  }
  func.func @transform_8(%arg0: i32) -> (i32, i32) {
    %c0_i32 = arith.constant 0 : i32
    %c0_i32_0 = arith.constant 0 : i32
    %c0_i32_1 = arith.constant 0 : i32
    return %c0_i32, %c0_i32_0 : i32, i32
  }
  func.func @transform_9(%arg0: i32) -> (i32, i32, i32) {
    %c0_i32 = arith.constant 0 : i32
    %c0_i32_0 = arith.constant 0 : i32
    %c0_i32_1 = arith.constant 0 : i32
    %c0_i32_2 = arith.constant 0 : i32
    return %c0_i32, %c0_i32_0, %c0_i32_1 : i32, i32, i32
  }
  func.func @transform_10(%arg0: i32) -> (i32, i32) {
    %c0_i32 = arith.constant 0 : i32
    %c0_i32_0 = arith.constant 0 : i32
    %c0_i32_1 = arith.constant 0 : i32
    return %c0_i32, %c0_i32_0 : i32, i32
  }
  func.func @transform_11(%arg0: i32) -> (i32, i32) {
    %c0_i32 = arith.constant 0 : i32
    %c0_i32_0 = arith.constant 0 : i32
    %c0_i32_1 = arith.constant 0 : i32
    return %c0_i32, %c0_i32_0 : i32, i32
  }
  func.func @transform_12(%arg0: i32) -> (i32, i32) {
    %c0_i32 = arith.constant 0 : i32
    %c0_i32_0 = arith.constant 0 : i32
    %c0_i32_1 = arith.constant 0 : i32
    return %c0_i32, %c0_i32_0 : i32, i32
  }
  func.func @transform_13(%arg0: i32) -> (i32, i32) {
    %c0_i32 = arith.constant 0 : i32
    %c0_i32_0 = arith.constant 0 : i32
    %c0_i32_1 = arith.constant 0 : i32
    return %c0_i32, %c0_i32_0 : i32, i32
  }
  func.func @transform_14(%arg0: i32) -> (i32, i32) {
    %c0_i32 = arith.constant 0 : i32
    %c0_i32_0 = arith.constant 0 : i32
    %c0_i32_1 = arith.constant 0 : i32
    return %c0_i32, %c0_i32_0 : i32, i32
  }
  func.func @transform_15(%arg0: i32) -> (i32, i32, i32) {
    %c0_i32 = arith.constant 0 : i32
    %c0_i32_0 = arith.constant 0 : i32
    %c0_i32_1 = arith.constant 0 : i32
    return %arg0, %c0_i32, %c0_i32_0 : i32, i32, i32
  }
}

</mosaic_0001>

<llo_original>
// kernel: sub.3
$region0: #{sub.3}
  #allocation0 [shape = 's32[1]{0}', space=sflag, size = 0x4, scoped, tag = 'scoped memory for sub.3']
  %s0 = inlined_call_operand.vmem [shape: f32[7], index: 0, kind: input, shape index: {}]
  %s1 = inlined_call_operand.vmem [shape: f32[7], index: 1, kind: input, shape index: {}]
  %s2 = inlined_call_operand.vmem [shape: f32[7], index: 2, kind: output, shape index: {}]
  %v3 = vld [vmem:[%s0] sm:$0x1]
  %v4 = vld [vmem:[%s1] sm:$0x1]
  %5 = xla_tuple %v3, %v4
  %6 = xla_tuple %5
  %v7 = vsub.f32 %v3, %v4
  %8 = xla_tuple %v7
  %9 = vst [vmem:[%s2] sm:$0x1] %v7

// kernel: encoder_z0_ode_convgru_forward.1
$region0: #{encoder_z0_ode_convgru_forward.1}
  #allocation0 [shape = 'u32[]', space=smem, size = 0x4, offset = 0x4, fixed_abs, tag = 'smem constant byte address 0x4 - core index']
  #allocation1 [shape = 'u32[144,128]{1,0:T(1,128)}', space=vmem, size = 0x12000, scoped, tag = 'internal scratch']
  %s0 = inlined_call_operand.vmem [shape: f32[8], index: 0, kind: input, shape index: {}]
  %s1 = inlined_call_operand.vmem [shape: f32[1,8,8,512], index: 1, kind: input, shape index: {}]
  %s2 = inlined_call_operand.vmem [shape: f32[1,8,1,512], index: 2, kind: input, shape index: {}]
  %s3 = inlined_call_operand.vmem [shape: f32[9,1,512], index: 3, kind: input, shape index: {}]
  %s4 = inlined_call_operand.vmem [shape: bf16[9,8,8], index: 4, kind: input, shape index: {}]
  %s5 = inlined_call_operand.vmem [shape: f32[8,1], index: 5, kind: input, shape index: {}]
  %s6 = inlined_call_operand.vmem [shape: bf16[9,24,8], index: 6, kind: input, shape index: {}]
  %s7 = inlined_call_operand.vmem [shape: bf16[9,16,8], index: 7, kind: input, shape index: {}]
  %s8 = inlined_call_operand.vmem [shape: f32[16,1], index: 8, kind: input, shape index: {}]
  %s9 = inlined_call_operand.vmem [shape: bf16[9,8,8], index: 9, kind: input, shape index: {}]
  %s10 = inlined_call_operand.vmem [shape: f32[8,1], index: 10, kind: input, shape index: {}]
  %s11 = inlined_call_operand.vmem [shape: f32[8,8], index: 11, kind: input, shape index: {}]
  %s12 = inlined_call_operand.vmem [shape: f32[8,1], index: 12, kind: input, shape index: {}]
  %s13 = inlined_call_operand.vmem [shape: f32[16,8], index: 13, kind: input, shape index: {}]
  %s14 = inlined_call_operand.vmem [shape: f32[16,1], index: 14, kind: input, shape index: {}]
  %s15 = inlined_call_operand.vmem [shape: f32[1,16,512], index: 15, kind: output, shape index: {}]
  %s16 = sld [smem:[#allocation0]]
  $region81: #{encoder_z0_ode_convgru_forward.1} parent=0
    _
  %s18 = ssub.s32 1, %s16
  %s19 = scalar_select 0, %s18, %s16
  $region1: #{encoder_z0_ode_convgru_forward.1} parent=0
    #allocation2 [shape = 'u8[512]{0}', space=smem, size = 0x200, scoped, tag = 'input window, operand 0, single buffered']
    #allocation3 [shape = 's32[1]{0}', space=sflag, size = 0x4, scoped, tag = 'scoped memory for encoder_z0_ode_convgru_forward.1']
    %20 = vsyncpa [#allocation3], 0
    // Predicated region
    $region2: #{encoder_z0_ode_convgru_forward.1} parent=1 // pred_check
      _
    $region3: #{encoder_z0_ode_convgru_forward.1} parent=1 // pred_check_branch
      %22 = sbr.rel (0) target = $region5
    $region4: #{encoder_z0_ode_convgru_forward.1} parent=1 // pred_region
      %s24 = ssub.s32 16, 16
      %25 = vsyncadd [#allocation3], %s24
      %s27 = sshll.u32 %s0, 4
      %s28 = int_to_ptr.vmem [resolvable:$true] %s27
      %30 = dma.vmem_to_smem %s28, 16, [#allocation2], [#allocation3]
    $region5: #{encoder_z0_ode_convgru_forward.1} parent=1 // pred_fallthru
      _
    // Predicated region
    $region6: #{encoder_z0_ode_convgru_forward.1} parent=1 // pred_check
      _
    $region7: #{encoder_z0_ode_convgru_forward.1} parent=1 // pred_check_branch
      %32 = sbr.rel (0) target = $region9
    $region8: #{encoder_z0_ode_convgru_forward.1} parent=1 // pred_region
      _
    $region9: #{encoder_z0_ode_convgru_forward.1} parent=1 // pred_fallthru
      _
    // Predicated region
    $region10: #{encoder_z0_ode_convgru_forward.1} parent=1 // pred_check
      _
    $region11: #{encoder_z0_ode_convgru_forward.1} parent=1 // pred_check_branch
      %34 = sbr.rel (0) target = $region13
    $region12: #{encoder_z0_ode_convgru_forward.1} parent=1 // pred_region
      _
    $region13: #{encoder_z0_ode_convgru_forward.1} parent=1 // pred_fallthru
      _
    // Predicated region
    $region14: #{encoder_z0_ode_convgru_forward.1} parent=1 // pred_check
      _
    $region15: #{encoder_z0_ode_convgru_forward.1} parent=1 // pred_check_branch
      %36 = sbr.rel (0) target = $region17
    $region16: #{encoder_z0_ode_convgru_forward.1} parent=1 // pred_region
      _
    $region17: #{encoder_z0_ode_convgru_forward.1} parent=1 // pred_fallthru
      _
    // Predicated region
    $region18: #{encoder_z0_ode_convgru_forward.1} parent=1 // pred_check
      _
    $region19: #{encoder_z0_ode_convgru_forward.1} parent=1 // pred_check_branch
      %38 = sbr.rel (0) target = $region21
    $region20: #{encoder_z0_ode_convgru_forward.1} parent=1 // pred_region
      _
    $region21: #{encoder_z0_ode_convgru_forward.1} parent=1 // pred_fallthru
      _
    // Predicated region
    $region22: #{encoder_z0_ode_convgru_forward.1} parent=1 // pred_check
      _
    $region23: #{encoder_z0_ode_convgru_forward.1} parent=1 // pred_check_branch
      %40 = sbr.rel (0) target = $region25
    $region24: #{encoder_z0_ode_convgru_forward.1} parent=1 // pred_region
      _
    $region25: #{encoder_z0_ode_convgru_forward.1} parent=1 // pred_fallthru
      _
    // Predicated region
    $region26: #{encoder_z0_ode_convgru_forward.1} parent=1 // pred_check
      _
    $region27: #{encoder_z0_ode_convgru_forward.1} parent=1 // pred_check_branch
      %42 = sbr.rel (0) target = $region29
    $region28: #{encoder_z0_ode_convgru_forward.1} parent=1 // pred_region
      _
    $region29: #{encoder_z0_ode_convgru_forward.1} parent=1 // pred_fallthru
      _
    // Predicated region
    $region30: #{encoder_z0_ode_convgru_forward.1} parent=1 // pred_check
      _
    $region31: #{encoder_z0_ode_convgru_forward.1} parent=1 // pred_check_branch
      %44 = sbr.rel (0) target = $region33
    $region32: #{encoder_z0_ode_convgru_forward.1} parent=1 // pred_region
      _
    $region33: #{encoder_z0_ode_convgru_forward.1} parent=1 // pred_fallthru
      _
    // Predicated region
    $region34: #{encoder_z0_ode_convgru_forward.1} parent=1 // pred_check
      _
    $region35: #{encoder_z0_ode_convgru_forward.1} parent=1 // pred_check_branch
      %46 = sbr.rel (0) target = $region37
    $region36: #{encoder_z0_ode_convgru_forward.1} parent=1 // pred_region
      _
    $region37: #{encoder_z0_ode_convgru_forward.1} parent=1 // pred_fallthru
      _
    // Predicated region
    $region38: #{encoder_z0_ode_convgru_forward.1} parent=1 // pred_check
      _
    $region39: #{encoder_z0_ode_convgru_forward.1} parent=1 // pred_check_branch
      %48 = sbr.rel (0) target = $region41
    $region40: #{encoder_z0_ode_convgru_forward.1} parent=1 // pred_region
      _
    $region41: #{encoder_z0_ode_convgru_forward.1} parent=1 // pred_fallthru
      _
    // Predicated region
    $region42: #{encoder_z0_ode_convgru_forward.1} parent=1 // pred_check
      _
    $region43: #{encoder_z0_ode_convgru_forward.1} parent=1 // pred_check_branch
      %50 = sbr.rel (0) target = $region45
    $region44: #{encoder_z0_ode_convgru_forward.1} parent=1 // pred_region
      _
    $region45: #{encoder_z0_ode_convgru_forward.1} parent=1 // pred_fallthru
      _
    // Predicated region
    $region46: #{encoder_z0_ode_convgru_forward.1} parent=1 // pred_check
      _
    $region47: #{encoder_z0_ode_convgru_forward.1} parent=1 // pred_check_branch
      %52 = sbr.rel (0) target = $region49
    $region48: #{encoder_z0_ode_convgru_forward.1} parent=1 // pred_region
      _
    $region49: #{encoder_z0_ode_convgru_forward.1} parent=1 // pred_fallthru
      _
    // Predicated region
    $region50: #{encoder_z0_ode_convgru_forward.1} parent=1 // pred_check
      _
    $region51: #{encoder_z0_ode_convgru_forward.1} parent=1 // pred_check_branch
      %54 = sbr.rel (0) target = $region53
    $region52: #{encoder_z0_ode_convgru_forward.1} parent=1 // pred_region
      _
    $region53: #{encoder_z0_ode_convgru_forward.1} parent=1 // pred_fallthru
      _
    // Predicated region
    $region54: #{encoder_z0_ode_convgru_forward.1} parent=1 // pred_check
      _
    $region55: #{encoder_z0_ode_convgru_forward.1} parent=1 // pred_check_branch
      %56 = sbr.rel (0) target = $region57
    $region56: #{encoder_z0_ode_convgru_forward.1} parent=1 // pred_region
      _
    $region57: #{encoder_z0_ode_convgru_forward.1} parent=1 // pred_fallthru
      _
    // Predicated region
    $region58: #{encoder_z0_ode_convgru_forward.1} parent=1 // pred_check
      _
    $region59: #{encoder_z0_ode_convgru_forward.1} parent=1 // pred_check_branch
      %58 = sbr.rel (0) target = $region61
    $region60: #{encoder_z0_ode_convgru_forward.1} parent=1 // pred_region
      _
    $region61: #{encoder_z0_ode_convgru_forward.1} parent=1 // pred_fallthru
      _
    // Predicated region
    $region62: #{encoder_z0_ode_convgru_forward.1} parent=1 // pred_check
      _
    $region63: #{encoder_z0_ode_convgru_forward.1} parent=1 // pred_check_branch
      %60 = sbr.rel (0) target = $region65
    $region64: #{encoder_z0_ode_convgru_forward.1} parent=1 // pred_region
      %61 = dma.done [#allocation3], 16
    $region65: #{encoder_z0_ode_convgru_forward.1} parent=1 // pred_fallthru
      _
    %62 = sfence
    loop: start=0, step=1, limit=8
    $region66: #{encoder_z0_ode_convgru_forward.1} parent=1 // loop_pre_header
      _
    $region67: #{encoder_z0_ode_convgru_forward.1} parent=1 // loop_header
      %s65 = sphi 0, %s69
      %p66 = scmp.ge.s32.totalorder %s65, 8
      %v70 = vphi 0.0, %v5236
      %v71 = vphi 0.0, %v5237
      %v72 = vphi 0.0, %v5238
      %v73 = vphi 0.0, %v5239
    $region68: #{encoder_z0_ode_convgru_forward.1} parent=1 // loop_header_branch
      %68 = sbr.rel (%p66) target = $region72
    $region69: #{encoder_z0_ode_convgru_forward.1} parent=1 // loop_body
      %s74 = sld [smem:[#allocation2 + %s65]]
      %s75 = smul.u32 %s65, 4
      %s76 = smul.addr %s75, 8
      %s77 = scalar_lea.vmem %s1, %s76
      %v78 = vld [vmem:[%s77] sm:$0xff]
      %v79 = vld [vmem:[%s77 + $0x8] sm:$0xff]
      %v80 = vld [vmem:[%s77 + $0x10] sm:$0xff]
      %v81 = vld [vmem:[%s77 + $0x18] sm:$0xff]
      %82 = vrot.lane.b32.xlu0 %v70, 17
      %v83 = vpop.permute.xlu0 %82
      %84 = vrot.lane.b32.xlu0 %v71, 17
      %v85 = vpop.permute.xlu0 %84
      %86 = vrot.lane.b32.xlu0 %v72, 17
      %v87 = vpop.permute.xlu0 %86
      %88 = vrot.lane.b32.xlu0 %v73, 17
      %v89 = vpop.permute.xlu0 %88
      %v90 = vlaneseq
      %v91 = vand.u32 %v90, 127
      %vm92 = vcmp.lt.s32.totalorder %v91, 17
      %v93 = vsel %vm92, %v87, %v89
      %v94 = vsel %vm92, %v85, %v87
      %v95 = vsel %vm92, %v83, %v85
      %v96 = vsel %vm92, %v89, %v83
      %v97 = vld [vmem:[%s3] sm:$0xf]
      %v99 = vlaneseq
      %v100 = vshrl.u32 %v99, 7
      %v101 = vsub.s32 0, %v100
      %v102 = vrot.slane %v97, %v101
      %v103 = vlaneseq
      %v104 = vshrl.u32 %v103, 7
      %v105 = vsub.s32 1, %v104
      %v106 = vrot.slane %v97, %v105
      %v107 = vlaneseq
      %v108 = vshrl.u32 %v107, 7
      %v109 = vsub.s32 2, %v108
      %v110 = vrot.slane %v97, %v109
      %v111 = vlaneseq
      %v112 = vshrl.u32 %v111, 7
      %v113 = vsub.s32 3, %v112
      %v114 = vrot.slane %v97, %v113
      %v119 = vmul.f32 %v96, %v102
      %v120 = vmul.f32 %v95, %v106
      %v121 = vmul.f32 %v94, %v110
      %v122 = vmul.f32 %v93, %v114
      %v123 = vld [vmem:[%s4] sm:$0xf]
      %v124 = vpack.c.bf16 %v119, %v119
      %v125 = vpack.c.bf16 %v120, %v120
      %v126 = vpack.c.bf16 %v121, %v121
      %v127 = vpack.c.bf16 %v122, %v122
      %128 = vrot.lane.b32.xlu0 %v70, 16
      %v129 = vpop.permute.xlu0 %128
      %130 = vrot.lane.b32.xlu0 %v71, 16
      %v131 = vpop.permute.xlu0 %130
      %132 = vrot.lane.b32.xlu0 %v72, 16
      %v133 = vpop.permute.xlu0 %132
      %134 = vrot.lane.b32.xlu0 %v73, 16
      %v135 = vpop.permute.xlu0 %134
      %vm136 = vcmp.lt.s32.totalorder %v91, 16
      %v137 = vsel %vm136, %v133, %v135
      %v138 = vsel %vm136, %v131, %v133
      %v139 = vsel %vm136, %v129, %v131
      %v140 = vsel %vm136, %v135, %v129
      %s141 = scalar_lea.vmem %s3, 4
      %v142 = vld [vmem:[%s141] sm:$0xf]
      %v144 = vlaneseq
      %v145 = vshrl.u32 %v144, 7
      %v146 = vsub.s32 0, %v145
      %v147 = vrot.slane %v142, %v146
      %v148 = vlaneseq
      %v149 = vshrl.u32 %v148, 7
      %v150 = vsub.s32 1, %v149
      %v151 = vrot.slane %v142, %v150
      %v152 = vlaneseq
      %v153 = vshrl.u32 %v152, 7
      %v154 = vsub.s32 2, %v153
      %v155 = vrot.slane %v142, %v154
      %v156 = vlaneseq
      %v157 = vshrl.u32 %v156, 7
      %v158 = vsub.s32 3, %v157
      %v159 = vrot.slane %v142, %v158
      %v164 = vmul.f32 %v140, %v147
      %v165 = vmul.f32 %v139, %v151
      %v166 = vmul.f32 %v138, %v155
      %v167 = vmul.f32 %v137, %v159
      %s168 = scalar_lea.vmem %s4, 4
      %v169 = vld [vmem:[%s168] sm:$0xf]
      %v170 = vpack.c.bf16 %v164, %v164
      %v171 = vpack.c.bf16 %v165, %v165
      %v172 = vpack.c.bf16 %v166, %v166
      %v173 = vpack.c.bf16 %v167, %v167
      %vm174 = vcmask 64512
      %v176 = vsel %vm174, %v169, 0
      %vm178 = vcmask 1043456
      %v180 = vsel %vm178, %v170, 0
      %v183 = vsel %vm178, %v171, 0
      %v186 = vsel %vm178, %v172, 0
      %v189 = vsel %vm178, %v173, 0
      %191 = vmatprep.subr.bf16.mxu0 %v183
      %192 = vmatpush1.bf16.msra.mxu0 %v180
      %193 = vmatprep.subr.bf16.mxu0 0
      %194 = vmatpush1.bf16.msra.mxu0 0
      %195 = vmatprep.subr.bf16.mxu0 0
      %196 = vmatpush1.bf16.msra.mxu0 0
      %197 = vmatprep.subr.bf16.mxu0 0
      %198 = vmatpush1.bf16.msra.mxu0 0
      %199 = vmatprep.subr.bf16.mxu0 0
      %200 = vmatpush1.bf16.msra.mxu0 0
      %201 = vmatprep.subr.bf16.mxu0 0
      %202 = vmatpush1.bf16.msra.mxu0 0
      %203 = vmatprep.subr.bf16.mxu0 0
      %204 = vmatpush1.bf16.msra.mxu0 0
      %205 = vmatprep.subr.bf16.mxu0 0
      %206 = vmatpush1.bf16.msra.mxu0 0
      %207 = vmatprep.subr.bf16.mxu0 0
      %208 = vmatpush1.bf16.msra.mxu0 0
      %209 = vmatprep.subr.bf16.mxu0 0
      %210 = vmatpush1.bf16.msra.mxu0 0
      %211 = vmatprep.subr.bf16.mxu0 0
      %212 = vmatpush1.bf16.msra.mxu0 0
      %213 = vmatprep.subr.bf16.mxu0 0
      %214 = vmatpush1.bf16.msra.mxu0 0
      %215 = vmatprep.subr.bf16.mxu0 0
      %216 = vmatpush1.bf16.msra.mxu0 0
      %217 = vmatprep.subr.bf16.mxu0 0
      %218 = vmatpush1.bf16.msra.mxu0 0
      %219 = vmatprep.subr.bf16.mxu0 0
      %220 = vmatpush1.bf16.msra.mxu0 0
      %221 = vmatprep.subr.bf16.mxu0 0
      %222 = vmatpush1.bf16.msra.mxu0 0
      %223 = vmatprep.mubr.bf16.mxu0 0
      %224 = vmatmul.mubr.bf16.gmra.mrb[0].mxu0 %v176
      %v225 = vpop.f32.mrb[0].mxu0
      %v226 = vadd.f32 0.0, %v225
      %v227 = vpop.f32.mrb[0].mxu0
      %v228 = vadd.f32 0.0, %v227
      %v229 = vpop.f32.mrb[0].mxu0
      %v230 = vpop.f32.mrb[0].mxu0
      %231 = vdwg.mxu0
      %232 = vmatprep.subr.bf16.mxu0 %v189
      %233 = vmatpush1.bf16.msra.mxu0 %v186
      %234 = vmatprep.subr.bf16.mxu0 0
      %235 = vmatpush1.bf16.msra.mxu0 0
      %236 = vmatprep.subr.bf16.mxu0 0
      %237 = vmatpush1.bf16.msra.mxu0 0
      %238 = vmatprep.subr.bf16.mxu0 0
      %239 = vmatpush1.bf16.msra.mxu0 0
      %240 = vmatprep.subr.bf16.mxu0 0
      %241 = vmatpush1.bf16.msra.mxu0 0
      %242 = vmatprep.subr.bf16.mxu0 0
      %243 = vmatpush1.bf16.msra.mxu0 0
      %244 = vmatprep.subr.bf16.mxu0 0
      %245 = vmatpush1.bf16.msra.mxu0 0
      %246 = vmatprep.subr.bf16.mxu0 0
      %247 = vmatpush1.bf16.msra.mxu0 0
      %248 = vmatprep.subr.bf16.mxu0 0
      %249 = vmatpush1.bf16.msra.mxu0 0
      %250 = vmatprep.subr.bf16.mxu0 0
      %251 = vmatpush1.bf16.msra.mxu0 0
      %252 = vmatprep.subr.bf16.mxu0 0
      %253 = vmatpush1.bf16.msra.mxu0 0
      %254 = vmatprep.subr.bf16.mxu0 0
      %255 = vmatpush1.bf16.msra.mxu0 0
      %256 = vmatprep.subr.bf16.mxu0 0
      %257 = vmatpush1.bf16.msra.mxu0 0
      %258 = vmatprep.subr.bf16.mxu0 0
      %259 = vmatpush1.bf16.msra.mxu0 0
      %260 = vmatprep.subr.bf16.mxu0 0
      %261 = vmatpush1.bf16.msra.mxu0 0
      %262 = vmatprep.subr.bf16.mxu0 0
      %263 = vmatpush1.bf16.msra.mxu0 0
      %264 = vmatprep.mubr.bf16.mxu0 0
      %265 = vmatmul.mubr.bf16.gmra.mrb[0].mxu0 %v176
      %v266 = vpop.f32.mrb[0].mxu0
      %v267 = vadd.f32 0.0, %v266
      %v268 = vpop.f32.mrb[0].mxu0
      %v269 = vadd.f32 0.0, %v268
      %v270 = vpop.f32.mrb[0].mxu0
      %v271 = vpop.f32.mrb[0].mxu0
      %272 = vdwg.mxu0
      %v274 = vsel %vm174, %v123, 0
      %v277 = vsel %vm178, %v124, 0
      %v280 = vsel %vm178, %v125, 0
      %v283 = vsel %vm178, %v126, 0
      %v286 = vsel %vm178, %v127, 0
      %288 = vmatprep.subr.bf16.mxu0 %v280
      %289 = vmatpush1.bf16.msra.mxu0 %v277
      %290 = vmatprep.subr.bf16.mxu0 0
      %291 = vmatpush1.bf16.msra.mxu0 0
      %292 = vmatprep.subr.bf16.mxu0 0
      %293 = vmatpush1.bf16.msra.mxu0 0
      %294 = vmatprep.subr.bf16.mxu0 0
      %295 = vmatpush1.bf16.msra.mxu0 0
      %296 = vmatprep.subr.bf16.mxu0 0
      %297 = vmatpush1.bf16.msra.mxu0 0
      %298 = vmatprep.subr.bf16.mxu0 0
      %299 = vmatpush1.bf16.msra.mxu0 0
      %300 = vmatprep.subr.bf16.mxu0 0
      %301 = vmatpush1.bf16.msra.mxu0 0
      %302 = vmatprep.subr.bf16.mxu0 0
      %303 = vmatpush1.bf16.msra.mxu0 0
      %304 = vmatprep.subr.bf16.mxu0 0
      %305 = vmatpush1.bf16.msra.mxu0 0
      %306 = vmatprep.subr.bf16.mxu0 0
      %307 = vmatpush1.bf16.msra.mxu0 0
      %308 = vmatprep.subr.bf16.mxu0 0
      %309 = vmatpush1.bf16.msra.mxu0 0
      %310 = vmatprep.subr.bf16.mxu0 0
      %311 = vmatpush1.bf16.msra.mxu0 0
      %312 = vmatprep.subr.bf16.mxu0 0
      %313 = vmatpush1.bf16.msra.mxu0 0
      %314 = vmatprep.subr.bf16.mxu0 0
      %315 = vmatpush1.bf16.msra.mxu0 0
      %316 = vmatprep.subr.bf16.mxu0 0
      %317 = vmatpush1.bf16.msra.mxu0 0
      %318 = vmatprep.subr.bf16.mxu0 0
      %319 = vmatpush1.bf16.msra.mxu0 0
      %320 = vmatprep.mubr.bf16.mxu0 0
      %321 = vmatmul.mubr.bf16.gmra.mrb[0].mxu0 %v274
      %v322 = vpop.f32.mrb[0].mxu0
      %v323 = vadd.f32 %v226, %v322
      %v324 = vpop.f32.mrb[0].mxu0
      %v325 = vadd.f32 %v228, %v324
      %v326 = vpop.f32.mrb[0].mxu0
      %v327 = vpop.f32.mrb[0].mxu0
      %328 = vdwg.mxu0
      %329 = vmatprep.subr.bf16.mxu0 %v286
      %330 = vmatpush1.bf16.msra.mxu0 %v283
      %331 = vmatprep.subr.bf16.mxu0 0
      %332 = vmatpush1.bf16.msra.mxu0 0
      %333 = vmatprep.subr.bf16.mxu0 0
      %334 = vmatpush1.bf16.msra.mxu0 0
      %335 = vmatprep.subr.bf16.mxu0 0
      %336 = vmatpush1.bf16.msra.mxu0 0
      %337 = vmatprep.subr.bf16.mxu0 0
      %338 = vmatpush1.bf16.msra.mxu0 0
      %339 = vmatprep.subr.bf16.mxu0 0
      %340 = vmatpush1.bf16.msra.mxu0 0
      %341 = vmatprep.subr.bf16.mxu0 0
      %342 = vmatpush1.bf16.msra.mxu0 0
      %343 = vmatprep.subr.bf16.mxu0 0
      %344 = vmatpush1.bf16.msra.mxu0 0
      %345 = vmatprep.subr.bf16.mxu0 0
      %346 = vmatpush1.bf16.msra.mxu0 0
      %347 = vmatprep.subr.bf16.mxu0 0
      %348 = vmatpush1.bf16.msra.mxu0 0
      %349 = vmatprep.subr.bf16.mxu0 0
      %350 = vmatpush1.bf16.msra.mxu0 0
      %351 = vmatprep.subr.bf16.mxu0 0
      %352 = vmatpush1.bf16.msra.mxu0 0
      %353 = vmatprep.subr.bf16.mxu0 0
      %354 = vmatpush1.bf16.msra.mxu0 0
      %355 = vmatprep.subr.bf16.mxu0 0
      %356 = vmatpush1.bf16.msra.mxu0 0
      %357 = vmatprep.subr.bf16.mxu0 0
      %358 = vmatpush1.bf16.msra.mxu0 0
      %359 = vmatprep.subr.bf16.mxu0 0
      %360 = vmatpush1.bf16.msra.mxu0 0
      %361 = vmatprep.mubr.bf16.mxu0 0
      %362 = vmatmul.mubr.bf16.gmra.mrb[0].mxu0 %v274
      %v363 = vpop.f32.mrb[0].mxu0
      %v364 = vadd.f32 %v267, %v363
      %v365 = vpop.f32.mrb[0].mxu0
      %v366 = vadd.f32 %v269, %v365
      %v367 = vpop.f32.mrb[0].mxu0
      %v368 = vpop.f32.mrb[0].mxu0
      %369 = vdwg.mxu0
      %370 = vrot.lane.b32.xlu0 %v70, 15
      %v371 = vpop.permute.xlu0 %370
      %372 = vrot.lane.b32.xlu0 %v71, 15
      %v373 = vpop.permute.xlu0 %372
      %374 = vrot.lane.b32.xlu0 %v72, 15
      %v375 = vpop.permute.xlu0 %374
      %376 = vrot.lane.b32.xlu0 %v73, 15
      %v377 = vpop.permute.xlu0 %376
      %vm378 = vcmp.lt.s32.totalorder %v91, 15
      %v379 = vsel %vm378, %v375, %v377
      %v380 = vsel %vm378, %v373, %v375
      %v381 = vsel %vm378, %v371, %v373
      %v382 = vsel %vm378, %v377, %v371
      %s383 = scalar_lea.vmem %s3, 8
      %v384 = vld [vmem:[%s383] sm:$0xf]
      %v386 = vlaneseq
      %v387 = vshrl.u32 %v386, 7
      %v388 = vsub.s32 0, %v387
      %v389 = vrot.slane %v384, %v388
      %v390 = vlaneseq
      %v391 = vshrl.u32 %v390, 7
      %v392 = vsub.s32 1, %v391
      %v393 = vrot.slane %v384, %v392
      %v394 = vlaneseq
      %v395 = vshrl.u32 %v394, 7
      %v396 = vsub.s32 2, %v395
      %v397 = vrot.slane %v384, %v396
      %v398 = vlaneseq
      %v399 = vshrl.u32 %v398, 7
      %v400 = vsub.s32 3, %v399
      %v401 = vrot.slane %v384, %v400
      %v406 = vmul.f32 %v382, %v389
      %v407 = vmul.f32 %v381, %v393
      %v408 = vmul.f32 %v380, %v397
      %v409 = vmul.f32 %v379, %v401
      %s410 = scalar_lea.vmem %s4, 8
      %v411 = vld [vmem:[%s410] sm:$0xf]
      %v412 = vpack.c.bf16 %v406, %v406
      %v413 = vpack.c.bf16 %v407, %v407
      %v414 = vpack.c.bf16 %v408, %v408
      %v415 = vpack.c.bf16 %v409, %v409
      %v417 = vsel %vm174, %v411, 0
      %v420 = vsel %vm178, %v412, 0
      %v423 = vsel %vm178, %v413, 0
      %v426 = vsel %vm178, %v414, 0
      %v429 = vsel %vm178, %v415, 0
      %431 = vmatprep.subr.bf16.mxu0 %v423
      %432 = vmatpush1.bf16.msra.mxu0 %v420
      %433 = vmatprep.subr.bf16.mxu0 0
      %434 = vmatpush1.bf16.msra.mxu0 0
      %435 = vmatprep.subr.bf16.mxu0 0
      %436 = vmatpush1.bf16.msra.mxu0 0
      %437 = vmatprep.subr.bf16.mxu0 0
      %438 = vmatpush1.bf16.msra.mxu0 0
      %439 = vmatprep.subr.bf16.mxu0 0
      %440 = vmatpush1.bf16.msra.mxu0 0
      %441 = vmatprep.subr.bf16.mxu0 0
      %442 = vmatpush1.bf16.msra.mxu0 0
      %443 = vmatprep.subr.bf16.mxu0 0
      %444 = vmatpush1.bf16.msra.mxu0 0
      %445 = vmatprep.subr.bf16.mxu0 0
      %446 = vmatpush1.bf16.msra.mxu0 0
      %447 = vmatprep.subr.bf16.mxu0 0
      %448 = vmatpush1.bf16.msra.mxu0 0
      %449 = vmatprep.subr.bf16.mxu0 0
      %450 = vmatpush1.bf16.msra.mxu0 0
      %451 = vmatprep.subr.bf16.mxu0 0
      %452 = vmatpush1.bf16.msra.mxu0 0
      %453 = vmatprep.subr.bf16.mxu0 0
      %454 = vmatpush1.bf16.msra.mxu0 0
      %455 = vmatprep.subr.bf16.mxu0 0
      %456 = vmatpush1.bf16.msra.mxu0 0
      %457 = vmatprep.subr.bf16.mxu0 0
      %458 = vmatpush1.bf16.msra.mxu0 0
      %459 = vmatprep.subr.bf16.mxu0 0
      %460 = vmatpush1.bf16.msra.mxu0 0
      %461 = vmatprep.subr.bf16.mxu0 0
      %462 = vmatpush1.bf16.msra.mxu0 0
      %463 = vmatprep.mubr.bf16.mxu0 0
      %464 = vmatmul.mubr.bf16.gmra.mrb[0].mxu0 %v417
      %v465 = vpop.f32.mrb[0].mxu0
      %v466 = vadd.f32 0.0, %v465
      %v467 = vpop.f32.mrb[0].mxu0
      %v468 = vadd.f32 0.0, %v467
      %v469 = vpop.f32.mrb[0].mxu0
      %v470 = vpop.f32.mrb[0].mxu0
      %471 = vdwg.mxu0
      %472 = vmatprep.subr.bf16.mxu0 %v429
      %473 = vmatpush1.bf16.msra.mxu0 %v426
      %474 = vmatprep.subr.bf16.mxu0 0
      %475 = vmatpush1.bf16.msra.mxu0 0
      %476 = vmatprep.subr.bf16.mxu0 0
      %477 = vmatpush1.bf16.msra.mxu0 0
      %478 = vmatprep.subr.bf16.mxu0 0
      %479 = vmatpush1.bf16.msra.mxu0 0
      %480 = vmatprep.subr.bf16.mxu0 0
      %481 = vmatpush1.bf16.msra.mxu0 0
      %482 = vmatprep.subr.bf16.mxu0 0
      %483 = vmatpush1.bf16.msra.mxu0 0
      %484 = vmatprep.subr.bf16.mxu0 0
      %485 = vmatpush1.bf16.msra.mxu0 0
      %486 = vmatprep.subr.bf16.mxu0 0
      %487 = vmatpush1.bf16.msra.mxu0 0
      %488 = vmatprep.subr.bf16.mxu0 0
      %489 = vmatpush1.bf16.msra.mxu0 0
      %490 = vmatprep.subr.bf16.mxu0 0
      %491 = vmatpush1.bf16.msra.mxu0 0
      %492 = vmatprep.subr.bf16.mxu0 0
      %493 = vmatpush1.bf16.msra.mxu0 0
      %494 = vmatprep.subr.bf16.mxu0 0
      %495 = vmatpush1.bf16.msra.mxu0 0
      %496 = vmatprep.subr.bf16.mxu0 0
      %497 = vmatpush1.bf16.msra.mxu0 0
      %498 = vmatprep.subr.bf16.mxu0 0
      %499 = vmatpush1.bf16.msra.mxu0 0
      %500 = vmatprep.subr.bf16.mxu0 0
      %501 = vmatpush1.bf16.msra.mxu0 0
      %502 = vmatprep.subr.bf16.mxu0 0
      %503 = vmatpush1.bf16.msra.mxu0 0
      %504 = vmatprep.mubr.bf16.mxu0 0
      %505 = vmatmul.mubr.bf16.gmra.mrb[0].mxu0 %v417
      %v506 = vpop.f32.mrb[0].mxu0
      %v507 = vadd.f32 0.0, %v506
      %v508 = vpop.f32.mrb[0].mxu0
      %v509 = vadd.f32 0.0, %v508
      %v510 = vpop.f32.mrb[0].mxu0
      %v511 = vpop.f32.mrb[0].mxu0
      %512 = vdwg.mxu0
      %v513 = vadd.f32 %v323, %v466
      %v514 = vadd.f32 %v325, %v468
      %v515 = vadd.f32 %v364, %v507
      %v516 = vadd.f32 %v366, %v509
      %517 = vrot.lane.b32.xlu0 %v70, 1
      %v518 = vpop.permute.xlu0 %517
      %519 = vrot.lane.b32.xlu0 %v71, 1
      %v520 = vpop.permute.xlu0 %519
      %521 = vrot.lane.b32.xlu0 %v72, 1
      %v522 = vpop.permute.xlu0 %521
      %523 = vrot.lane.b32.xlu0 %v73, 1
      %v524 = vpop.permute.xlu0 %523
      %vm525 = vcmp.lt.s32.totalorder %v91, 1
      %v526 = vsel %vm525, %v522, %v524
      %v527 = vsel %vm525, %v520, %v522
      %v528 = vsel %vm525, %v518, %v520
      %v529 = vsel %vm525, %v524, %v518
      %s530 = scalar_lea.vmem %s3, 12
      %v531 = vld [vmem:[%s530] sm:$0xf]
      %v533 = vlaneseq
      %v534 = vshrl.u32 %v533, 7
      %v535 = vsub.s32 0, %v534
      %v536 = vrot.slane %v531, %v535
      %v537 = vlaneseq
      %v538 = vshrl.u32 %v537, 7
      %v539 = vsub.s32 1, %v538
      %v540 = vrot.slane %v531, %v539
      %v541 = vlaneseq
      %v542 = vshrl.u32 %v541, 7
      %v543 = vsub.s32 2, %v542
      %v544 = vrot.slane %v531, %v543
      %v545 = vlaneseq
      %v546 = vshrl.u32 %v545, 7
      %v547 = vsub.s32 3, %v546
      %v548 = vrot.slane %v531, %v547
      %v553 = vmul.f32 %v529, %v536
      %v554 = vmul.f32 %v528, %v540
      %v555 = vmul.f32 %v527, %v544
      %v556 = vmul.f32 %v526, %v548
      %s557 = scalar_lea.vmem %s4, 12
      %v558 = vld [vmem:[%s557] sm:$0xf]
      %v559 = vpack.c.bf16 %v553, %v553
      %v560 = vpack.c.bf16 %v554, %v554
      %v561 = vpack.c.bf16 %v555, %v555
      %v562 = vpack.c.bf16 %v556, %v556
      %v564 = vsel %vm174, %v558, 0
      %v567 = vsel %vm178, %v559, 0
      %v570 = vsel %vm178, %v560, 0
      %v573 = vsel %vm178, %v561, 0
      %v576 = vsel %vm178, %v562, 0
      %578 = vmatprep.subr.bf16.mxu0 %v570
      %579 = vmatpush1.bf16.msra.mxu0 %v567
      %580 = vmatprep.subr.bf16.mxu0 0
      %581 = vmatpush1.bf16.msra.mxu0 0
      %582 = vmatprep.subr.bf16.mxu0 0
      %583 = vmatpush1.bf16.msra.mxu0 0
      %584 = vmatprep.subr.bf16.mxu0 0
      %585 = vmatpush1.bf16.msra.mxu0 0
      %586 = vmatprep.subr.bf16.mxu0 0
      %587 = vmatpush1.bf16.msra.mxu0 0
      %588 = vmatprep.subr.bf16.mxu0 0
      %589 = vmatpush1.bf16.msra.mxu0 0
      %590 = vmatprep.subr.bf16.mxu0 0
      %591 = vmatpush1.bf16.msra.mxu0 0
      %592 = vmatprep.subr.bf16.mxu0 0
      %593 = vmatpush1.bf16.msra.mxu0 0
      %594 = vmatprep.subr.bf16.mxu0 0
      %595 = vmatpush1.bf16.msra.mxu0 0
      %596 = vmatprep.subr.bf16.mxu0 0
      %597 = vmatpush1.bf16.msra.mxu0 0
      %598 = vmatprep.subr.bf16.mxu0 0
      %599 = vmatpush1.bf16.msra.mxu0 0
      %600 = vmatprep.subr.bf16.mxu0 0
      %601 = vmatpush1.bf16.msra.mxu0 0
      %602 = vmatprep.subr.bf16.mxu0 0
      %603 = vmatpush1.bf16.msra.mxu0 0
      %604 = vmatprep.subr.bf16.mxu0 0
      %605 = vmatpush1.bf16.msra.mxu0 0
      %606 = vmatprep.subr.bf16.mxu0 0
      %607 = vmatpush1.bf16.msra.mxu0 0
      %608 = vmatprep.subr.bf16.mxu0 0
      %609 = vmatpush1.bf16.msra.mxu0 0
      %610 = vmatprep.mubr.bf16.mxu0 0
      %611 = vmatmul.mubr.bf16.gmra.mrb[0].mxu0 %v564
      %v612 = vpop.f32.mrb[0].mxu0
      %v613 = vadd.f32 0.0, %v612
      %v614 = vpop.f32.mrb[0].mxu0
      %v615 = vadd.f32 0.0, %v614
      %v616 = vpop.f32.mrb[0].mxu0
      %v617 = vpop.f32.mrb[0].mxu0
      %618 = vdwg.mxu0
      %619 = vmatprep.subr.bf16.mxu0 %v576
      %620 = vmatpush1.bf16.msra.mxu0 %v573
      %621 = vmatprep.subr.bf16.mxu0 0
      %622 = vmatpush1.bf16.msra.mxu0 0
      %623 = vmatprep.subr.bf16.mxu0 0
      %624 = vmatpush1.bf16.msra.mxu0 0
      %625 = vmatprep.subr.bf16.mxu0 0
      %626 = vmatpush1.bf16.msra.mxu0 0
      %627 = vmatprep.subr.bf16.mxu0 0
      %628 = vmatpush1.bf16.msra.mxu0 0
      %629 = vmatprep.subr.bf16.mxu0 0
      %630 = vmatpush1.bf16.msra.mxu0 0
      %631 = vmatprep.subr.bf16.mxu0 0
      %632 = vmatpush1.bf16.msra.mxu0 0
      %633 = vmatprep.subr.bf16.mxu0 0
      %634 = vmatpush1.bf16.msra.mxu0 0
      %635 = vmatprep.subr.bf16.mxu0 0
      %636 = vmatpush1.bf16.msra.mxu0 0
      %637 = vmatprep.subr.bf16.mxu0 0
      %638 = vmatpush1.bf16.msra.mxu0 0
      %639 = vmatprep.subr.bf16.mxu0 0
      %640 = vmatpush1.bf16.msra.mxu0 0
      %641 = vmatprep.subr.bf16.mxu0 0
      %642 = vmatpush1.bf16.msra.mxu0 0
      %643 = vmatprep.subr.bf16.mxu0 0
      %644 = vmatpush1.bf16.msra.mxu0 0
      %645 = vmatprep.subr.bf16.mxu0 0
      %646 = vmatpush1.bf16.msra.mxu0 0
      %647 = vmatprep.subr.bf16.mxu0 0
      %648 = vmatpush1.bf16.msra.mxu0 0
      %649 = vmatprep.subr.bf16.mxu0 0
      %650 = vmatpush1.bf16.msra.mxu0 0
      %651 = vmatprep.mubr.bf16.mxu0 0
      %652 = vmatmul.mubr.bf16.gmra.mrb[0].mxu0 %v564
      %v653 = vpop.f32.mrb[0].mxu0
      %v654 = vadd.f32 0.0, %v653
      %v655 = vpop.f32.mrb[0].mxu0
      %v656 = vadd.f32 0.0, %v655
      %v657 = vpop.f32.mrb[0].mxu0
      %v658 = vpop.f32.mrb[0].mxu0
      %659 = vdwg.mxu0
      %v660 = vadd.f32 %v513, %v613
      %v661 = vadd.f32 %v514, %v615
      %v662 = vadd.f32 %v515, %v654
      %v663 = vadd.f32 %v516, %v656
      %s664 = scalar_lea.vmem %s4, 16
      %v665 = vld [vmem:[%s664] sm:$0xf]
      %v666 = vpack.c.bf16 %v70, %v70
      %v667 = vpack.c.bf16 %v71, %v71
      %v668 = vpack.c.bf16 %v72, %v72
      %v669 = vpack.c.bf16 %v73, %v73
      %v671 = vsel %vm174, %v665, 0
      %v674 = vsel %vm178, %v666, 0
      %v677 = vsel %vm178, %v667, 0
      %v680 = vsel %vm178, %v668, 0
      %v683 = vsel %vm178, %v669, 0
      %685 = vmatprep.subr.bf16.mxu0 %v677
      %686 = vmatpush1.bf16.msra.mxu0 %v674
      %687 = vmatprep.subr.bf16.mxu0 0
      %688 = vmatpush1.bf16.msra.mxu0 0
      %689 = vmatprep.subr.bf16.mxu0 0
      %690 = vmatpush1.bf16.msra.mxu0 0
      %691 = vmatprep.subr.bf16.mxu0 0
      %692 = vmatpush1.bf16.msra.mxu0 0
      %693 = vmatprep.subr.bf16.mxu0 0
      %694 = vmatpush1.bf16.msra.mxu0 0
      %695 = vmatprep.subr.bf16.mxu0 0
      %696 = vmatpush1.bf16.msra.mxu0 0
      %697 = vmatprep.subr.bf16.mxu0 0
      %698 = vmatpush1.bf16.msra.mxu0 0
      %699 = vmatprep.subr.bf16.mxu0 0
      %700 = vmatpush1.bf16.msra.mxu0 0
      %701 = vmatprep.subr.bf16.mxu0 0
      %702 = vmatpush1.bf16.msra.mxu0 0
      %703 = vmatprep.subr.bf16.mxu0 0
      %704 = vmatpush1.bf16.msra.mxu0 0
      %705 = vmatprep.subr.bf16.mxu0 0
      %706 = vmatpush1.bf16.msra.mxu0 0
      %707 = vmatprep.subr.bf16.mxu0 0
      %708 = vmatpush1.bf16.msra.mxu0 0
      %709 = vmatprep.subr.bf16.mxu0 0
      %710 = vmatpush1.bf16.msra.mxu0 0
      %711 = vmatprep.subr.bf16.mxu0 0
      %712 = vmatpush1.bf16.msra.mxu0 0
      %713 = vmatprep.subr.bf16.mxu0 0
      %714 = vmatpush1.bf16.msra.mxu0 0
      %715 = vmatprep.subr.bf16.mxu0 0
      %716 = vmatpush1.bf16.msra.mxu0 0
      %717 = vmatprep.mubr.bf16.mxu0 0
      %718 = vmatmul.mubr.bf16.gmra.mrb[0].mxu0 %v671
      %v719 = vpop.f32.mrb[0].mxu0
      %v720 = vadd.f32 0.0, %v719
      %v721 = vpop.f32.mrb[0].mxu0
      %v722 = vadd.f32 0.0, %v721
      %v723 = vpop.f32.mrb[0].mxu0
      %v724 = vpop.f32.mrb[0].mxu0
      %725 = vdwg.mxu0
      %726 = vmatprep.subr.bf16.mxu0 %v683
      %727 = vmatpush1.bf16.msra.mxu0 %v680
      %728 = vmatprep.subr.bf16.mxu0 0
      %729 = vmatpush1.bf16.msra.mxu0 0
      %730 = vmatprep.subr.bf16.mxu0 0
      %731 = vmatpush1.bf16.msra.mxu0 0
      %732 = vmatprep.subr.bf16.mxu0 0
      %733 = vmatpush1.bf16.msra.mxu0 0
      %734 = vmatprep.subr.bf16.mxu0 0
      %735 = vmatpush1.bf16.msra.mxu0 0
      %736 = vmatprep.subr.bf16.mxu0 0
      %737 = vmatpush1.bf16.msra.mxu0 0
      %738 = vmatprep.subr.bf16.mxu0 0
      %739 = vmatpush1.bf16.msra.mxu0 0
      %740 = vmatprep.subr.bf16.mxu0 0
      %741 = vmatpush1.bf16.msra.mxu0 0
      %742 = vmatprep.subr.bf16.mxu0 0
      %743 = vmatpush1.bf16.msra.mxu0 0
      %744 = vmatprep.subr.bf16.mxu0 0
      %745 = vmatpush1.bf16.msra.mxu0 0
      %746 = vmatprep.subr.bf16.mxu0 0
      %747 = vmatpush1.bf16.msra.mxu0 0
      %748 = vmatprep.subr.bf16.mxu0 0
      %749 = vmatpush1.bf16.msra.mxu0 0
      %750 = vmatprep.subr.bf16.mxu0 0
      %751 = vmatpush1.bf16.msra.mxu0 0
      %752 = vmatprep.subr.bf16.mxu0 0
      %753 = vmatpush1.bf16.msra.mxu0 0
      %754 = vmatprep.subr.bf16.mxu0 0
      %755 = vmatpush1.bf16.msra.mxu0 0
      %756 = vmatprep.subr.bf16.mxu0 0
      %757 = vmatpush1.bf16.msra.mxu0 0
      %758 = vmatprep.mubr.bf16.mxu0 0
      %759 = vmatmul.mubr.bf16.gmra.mrb[0].mxu0 %v671
      %v760 = vpop.f32.mrb[0].mxu0
      %v761 = vadd.f32 0.0, %v760
      %v762 = vpop.f32.mrb[0].mxu0
      %v763 = vadd.f32 0.0, %v762
      %v764 = vpop.f32.mrb[0].mxu0
      %v765 = vpop.f32.mrb[0].mxu0
      %766 = vdwg.mxu0
      %v767 = vadd.f32 %v660, %v720
      %v768 = vadd.f32 %v661, %v722
      %v769 = vadd.f32 %v662, %v761
      %v770 = vadd.f32 %v663, %v763
      %771 = vrot.lane.b32.xlu0 %v70, 127
      %v772 = vpop.permute.xlu0 %771
      %773 = vrot.lane.b32.xlu0 %v71, 127
      %v774 = vpop.permute.xlu0 %773
      %775 = vrot.lane.b32.xlu0 %v72, 127
      %v776 = vpop.permute.xlu0 %775
      %777 = vrot.lane.b32.xlu0 %v73, 127
      %v778 = vpop.permute.xlu0 %777
      %vm779 = vcmp.lt.s32.totalorder %v91, 127
      %v780 = vsel %vm779, %v776, %v778
      %v781 = vsel %vm779, %v774, %v776
      %v782 = vsel %vm779, %v772, %v774
      %v783 = vsel %vm779, %v778, %v772
      %s784 = scalar_lea.vmem %s3, 20
      %v785 = vld [vmem:[%s784] sm:$0xf]
      %v787 = vlaneseq
      %v788 = vshrl.u32 %v787, 7
      %v789 = vsub.s32 0, %v788
      %v790 = vrot.slane %v785, %v789
      %v791 = vlaneseq
      %v792 = vshrl.u32 %v791, 7
      %v793 = vsub.s32 1, %v792
      %v794 = vrot.slane %v785, %v793
      %v795 = vlaneseq
      %v796 = vshrl.u32 %v795, 7
      %v797 = vsub.s32 2, %v796
      %v798 = vrot.slane %v785, %v797
      %v799 = vlaneseq
      %v800 = vshrl.u32 %v799, 7
      %v801 = vsub.s32 3, %v800
      %v802 = vrot.slane %v785, %v801
      %v807 = vmul.f32 %v782, %v790
      %v808 = vmul.f32 %v781, %v794
      %v809 = vmul.f32 %v780, %v798
      %v810 = vmul.f32 %v783, %v802
      %s811 = scalar_lea.vmem %s4, 20
      %v812 = vld [vmem:[%s811] sm:$0xf]
      %v813 = vpack.c.bf16 %v807, %v807
      %v814 = vpack.c.bf16 %v808, %v808
      %v815 = vpack.c.bf16 %v809, %v809
      %v816 = vpack.c.bf16 %v810, %v810
      %v818 = vsel %vm174, %v812, 0
      %v821 = vsel %vm178, %v813, 0
      %v824 = vsel %vm178, %v814, 0
      %v827 = vsel %vm178, %v815, 0
      %v830 = vsel %vm178, %v816, 0
      %832 = vmatprep.subr.bf16.mxu0 %v824
      %833 = vmatpush1.bf16.msra.mxu0 %v821
      %834 = vmatprep.subr.bf16.mxu0 0
      %835 = vmatpush1.bf16.msra.mxu0 0
      %836 = vmatprep.subr.bf16.mxu0 0
      %837 = vmatpush1.bf16.msra.mxu0 0
      %838 = vmatprep.subr.bf16.mxu0 0
      %839 = vmatpush1.bf16.msra.mxu0 0
      %840 = vmatprep.subr.bf16.mxu0 0
      %841 = vmatpush1.bf16.msra.mxu0 0
      %842 = vmatprep.subr.bf16.mxu0 0
      %843 = vmatpush1.bf16.msra.mxu0 0
      %844 = vmatprep.subr.bf16.mxu0 0
      %845 = vmatpush1.bf16.msra.mxu0 0
      %846 = vmatprep.subr.bf16.mxu0 0
      %847 = vmatpush1.bf16.msra.mxu0 0
      %848 = vmatprep.subr.bf16.mxu0 0
      %849 = vmatpush1.bf16.msra.mxu0 0
      %850 = vmatprep.subr.bf16.mxu0 0
      %851 = vmatpush1.bf16.msra.mxu0 0
      %852 = vmatprep.subr.bf16.mxu0 0
      %853 = vmatpush1.bf16.msra.mxu0 0
      %854 = vmatprep.subr.bf16.mxu0 0
      %855 = vmatpush1.bf16.msra.mxu0 0
      %856 = vmatprep.subr.bf16.mxu0 0
      %857 = vmatpush1.bf16.msra.mxu0 0
      %858 = vmatprep.subr.bf16.mxu0 0
      %859 = vmatpush1.bf16.msra.mxu0 0
      %860 = vmatprep.subr.bf16.mxu0 0
      %861 = vmatpush1.bf16.msra.mxu0 0
      %862 = vmatprep.subr.bf16.mxu0 0
      %863 = vmatpush1.bf16.msra.mxu0 0
      %864 = vmatprep.mubr.bf16.mxu0 0
      %865 = vmatmul.mubr.bf16.gmra.mrb[0].mxu0 %v818
      %v866 = vpop.f32.mrb[0].mxu0
      %v867 = vadd.f32 0.0, %v866
      %v868 = vpop.f32.mrb[0].mxu0
      %v869 = vadd.f32 0.0, %v868
      %v870 = vpop.f32.mrb[0].mxu0
      %v871 = vpop.f32.mrb[0].mxu0
      %872 = vdwg.mxu0
      %873 = vmatprep.subr.bf16.mxu0 %v830
      %874 = vmatpush1.bf16.msra.mxu0 %v827
      %875 = vmatprep.subr.bf16.mxu0 0
      %876 = vmatpush1.bf16.msra.mxu0 0
      %877 = vmatprep.subr.bf16.mxu0 0
      %878 = vmatpush1.bf16.msra.mxu0 0
      %879 = vmatprep.subr.bf16.mxu0 0
      %880 = vmatpush1.bf16.msra.mxu0 0
      %881 = vmatprep.subr.bf16.mxu0 0
      %882 = vmatpush1.bf16.msra.mxu0 0
      %883 = vmatprep.subr.bf16.mxu0 0
      %884 = vmatpush1.bf16.msra.mxu0 0
      %885 = vmatprep.subr.bf16.mxu0 0
      %886 = vmatpush1.bf16.msra.mxu0 0
      %887 = vmatprep.subr.bf16.mxu0 0
      %888 = vmatpush1.bf16.msra.mxu0 0
      %889 = vmatprep.subr.bf16.mxu0 0
      %890 = vmatpush1.bf16.msra.mxu0 0
      %891 = vmatprep.subr.bf16.mxu0 0
      %892 = vmatpush1.bf16.msra.mxu0 0
      %893 = vmatprep.subr.bf16.mxu0 0
      %894 = vmatpush1.bf16.msra.mxu0 0
      %895 = vmatprep.subr.bf16.mxu0 0
      %896 = vmatpush1.bf16.msra.mxu0 0
      %897 = vmatprep.subr.bf16.mxu0 0
      %898 = vmatpush1.bf16.msra.mxu0 0
      %899 = vmatprep.subr.bf16.mxu0 0
      %900 = vmatpush1.bf16.msra.mxu0 0
      %901 = vmatprep.subr.bf16.mxu0 0
      %902 = vmatpush1.bf16.msra.mxu0 0
      %903 = vmatprep.subr.bf16.mxu0 0
      %904 = vmatpush1.bf16.msra.mxu0 0
      %905 = vmatprep.mubr.bf16.mxu0 0
      %906 = vmatmul.mubr.bf16.gmra.mrb[0].mxu0 %v818
      %v907 = vpop.f32.mrb[0].mxu0
      %v908 = vadd.f32 0.0, %v907
      %v909 = vpop.f32.mrb[0].mxu0
      %v910 = vadd.f32 0.0, %v909
      %v911 = vpop.f32.mrb[0].mxu0
      %v912 = vpop.f32.mrb[0].mxu0
      %913 = vdwg.mxu0
      %v914 = vadd.f32 %v767, %v867
      %v915 = vadd.f32 %v768, %v869
      %v916 = vadd.f32 %v769, %v908
      %v917 = vadd.f32 %v770, %v910
      %918 = vrot.lane.b32.xlu0 %v70, 113
      %v919 = vpop.permute.xlu0 %918
      %920 = vrot.lane.b32.xlu0 %v71, 113
      %v921 = vpop.permute.xlu0 %920
      %922 = vrot.lane.b32.xlu0 %v72, 113
      %v923 = vpop.permute.xlu0 %922
      %924 = vrot.lane.b32.xlu0 %v73, 113
      %v925 = vpop.permute.xlu0 %924
      %vm926 = vcmp.lt.s32.totalorder %v91, 113
      %v927 = vsel %vm926, %v923, %v925
      %v928 = vsel %vm926, %v921, %v923
      %v929 = vsel %vm926, %v919, %v921
      %v930 = vsel %vm926, %v925, %v919
      %s931 = scalar_lea.vmem %s3, 24
      %v932 = vld [vmem:[%s931] sm:$0xf]
      %v934 = vlaneseq
      %v935 = vshrl.u32 %v934, 7
      %v936 = vsub.s32 0, %v935
      %v937 = vrot.slane %v932, %v936
      %v938 = vlaneseq
      %v939 = vshrl.u32 %v938, 7
      %v940 = vsub.s32 1, %v939
      %v941 = vrot.slane %v932, %v940
      %v942 = vlaneseq
      %v943 = vshrl.u32 %v942, 7
      %v944 = vsub.s32 2, %v943
      %v945 = vrot.slane %v932, %v944
      %v946 = vlaneseq
      %v947 = vshrl.u32 %v946, 7
      %v948 = vsub.s32 3, %v947
      %v949 = vrot.slane %v932, %v948
      %v954 = vmul.f32 %v929, %v937
      %v955 = vmul.f32 %v928, %v941
      %v956 = vmul.f32 %v927, %v945
      %v957 = vmul.f32 %v930, %v949
      %s958 = scalar_lea.vmem %s4, 24
      %v959 = vld [vmem:[%s958] sm:$0xf]
      %v960 = vpack.c.bf16 %v954, %v954
      %v961 = vpack.c.bf16 %v955, %v955
      %v962 = vpack.c.bf16 %v956, %v956
      %v963 = vpack.c.bf16 %v957, %v957
      %v965 = vsel %vm174, %v959, 0
      %v968 = vsel %vm178, %v960, 0
      %v971 = vsel %vm178, %v961, 0
      %v974 = vsel %vm178, %v962, 0
      %v977 = vsel %vm178, %v963, 0
      %979 = vmatprep.subr.bf16.mxu0 %v971
      %980 = vmatpush1.bf16.msra.mxu0 %v968
      %981 = vmatprep.subr.bf16.mxu0 0
      %982 = vmatpush1.bf16.msra.mxu0 0
      %983 = vmatprep.subr.bf16.mxu0 0
      %984 = vmatpush1.bf16.msra.mxu0 0
      %985 = vmatprep.subr.bf16.mxu0 0
      %986 = vmatpush1.bf16.msra.mxu0 0
      %987 = vmatprep.subr.bf16.mxu0 0
      %988 = vmatpush1.bf16.msra.mxu0 0
      %989 = vmatprep.subr.bf16.mxu0 0
      %990 = vmatpush1.bf16.msra.mxu0 0
      %991 = vmatprep.subr.bf16.mxu0 0
      %992 = vmatpush1.bf16.msra.mxu0 0
      %993 = vmatprep.subr.bf16.mxu0 0
      %994 = vmatpush1.bf16.msra.mxu0 0
      %995 = vmatprep.subr.bf16.mxu0 0
      %996 = vmatpush1.bf16.msra.mxu0 0
      %997 = vmatprep.subr.bf16.mxu0 0
      %998 = vmatpush1.bf16.msra.mxu0 0
      %999 = vmatprep.subr.bf16.mxu0 0
      %1000 = vmatpush1.bf16.msra.mxu0 0
      %1001 = vmatprep.subr.bf16.mxu0 0
      %1002 = vmatpush1.bf16.msra.mxu0 0
      %1003 = vmatprep.subr.bf16.mxu0 0
      %1004 = vmatpush1.bf16.msra.mxu0 0
      %1005 = vmatprep.subr.bf16.mxu0 0
      %1006 = vmatpush1.bf16.msra.mxu0 0
      %1007 = vmatprep.subr.bf16.mxu0 0
      %1008 = vmatpush1.bf16.msra.mxu0 0
      %1009 = vmatprep.subr.bf16.mxu0 0
      %1010 = vmatpush1.bf16.msra.mxu0 0
      %1011 = vmatprep.mubr.bf16.mxu0 0
      %1012 = vmatmul.mubr.bf16.gmra.mrb[0].mxu0 %v965
      %v1013 = vpop.f32.mrb[0].mxu0
      %v1014 = vadd.f32 0.0, %v1013
      %v1015 = vpop.f32.mrb[0].mxu0
      %v1016 = vadd.f32 0.0, %v1015
      %v1017 = vpop.f32.mrb[0].mxu0
      %v1018 = vpop.f32.mrb[0].mxu0
      %1019 = vdwg.mxu0
      %1020 = vmatprep.subr.bf16.mxu0 %v977
      %1021 = vmatpush1.bf16.msra.mxu0 %v974
      %1022 = vmatprep.subr.bf16.mxu0 0
      %1023 = vmatpush1.bf16.msra.mxu0 0
      %1024 = vmatprep.subr.bf16.mxu0 0
      %1025 = vmatpush1.bf16.msra.mxu0 0
      %1026 = vmatprep.subr.bf16.mxu0 0
      %1027 = vmatpush1.bf16.msra.mxu0 0
      %1028 = vmatprep.subr.bf16.mxu0 0
      %1029 = vmatpush1.bf16.msra.mxu0 0
      %1030 = vmatprep.subr.bf16.mxu0 0
      %1031 = vmatpush1.bf16.msra.mxu0 0
      %1032 = vmatprep.subr.bf16.mxu0 0
      %1033 = vmatpush1.bf16.msra.mxu0 0
      %1034 = vmatprep.subr.bf16.mxu0 0
      %1035 = vmatpush1.bf16.msra.mxu0 0
      %1036 = vmatprep.subr.bf16.mxu0 0
      %1037 = vmatpush1.bf16.msra.mxu0 0
      %1038 = vmatprep.subr.bf16.mxu0 0
      %1039 = vmatpush1.bf16.msra.mxu0 0
      %1040 = vmatprep.subr.bf16.mxu0 0
      %1041 = vmatpush1.bf16.msra.mxu0 0
      %1042 = vmatprep.subr.bf16.mxu0 0
      %1043 = vmatpush1.bf16.msra.mxu0 0
      %1044 = vmatprep.subr.bf16.mxu0 0
      %1045 = vmatpush1.bf16.msra.mxu0 0
      %1046 = vmatprep.subr.bf16.mxu0 0
      %1047 = vmatpush1.bf16.msra.mxu0 0
      %1048 = vmatprep.subr.bf16.mxu0 0
      %1049 = vmatpush1.bf16.msra.mxu0 0
      %1050 = vmatprep.subr.bf16.mxu0 0
      %1051 = vmatpush1.bf16.msra.mxu0 0
      %1052 = vmatprep.mubr.bf16.mxu0 0
      %1053 = vmatmul.mubr.bf16.gmra.mrb[0].mxu0 %v965
      %v1054 = vpop.f32.mrb[0].mxu0
      %v1055 = vadd.f32 0.0, %v1054
      %v1056 = vpop.f32.mrb[0].mxu0
      %v1057 = vadd.f32 0.0, %v1056
      %v1058 = vpop.f32.mrb[0].mxu0
      %v1059 = vpop.f32.mrb[0].mxu0
      %1060 = vdwg.mxu0
      %v1061 = vadd.f32 %v914, %v1014
      %v1062 = vadd.f32 %v915, %v1016
      %v1063 = vadd.f32 %v916, %v1055
      %v1064 = vadd.f32 %v917, %v1057
      %1065 = vrot.lane.b32.xlu0 %v70, 112
      %v1066 = vpop.permute.xlu0 %1065
      %1067 = vrot.lane.b32.xlu0 %v71, 112
      %v1068 = vpop.permute.xlu0 %1067
      %1069 = vrot.lane.b32.xlu0 %v72, 112
      %v1070 = vpop.permute.xlu0 %1069
      %1071 = vrot.lane.b32.xlu0 %v73, 112
      %v1072 = vpop.permute.xlu0 %1071
      %vm1073 = vcmp.lt.s32.totalorder %v91, 112
      %v1074 = vsel %vm1073, %v1070, %v1072
      %v1075 = vsel %vm1073, %v1068, %v1070
      %v1076 = vsel %vm1073, %v1066, %v1068
      %v1077 = vsel %vm1073, %v1072, %v1066
      %s1078 = scalar_lea.vmem %s3, 28
      %v1079 = vld [vmem:[%s1078] sm:$0xf]
      %v1081 = vlaneseq
      %v1082 = vshrl.u32 %v1081, 7
      %v1083 = vsub.s32 0, %v1082
      %v1084 = vrot.slane %v1079, %v1083
      %v1085 = vlaneseq
      %v1086 = vshrl.u32 %v1085, 7
      %v1087 = vsub.s32 1, %v1086
      %v1088 = vrot.slane %v1079, %v1087
      %v1089 = vlaneseq
      %v1090 = vshrl.u32 %v1089, 7
      %v1091 = vsub.s32 2, %v1090
      %v1092 = vrot.slane %v1079, %v1091
      %v1093 = vlaneseq
      %v1094 = vshrl.u32 %v1093, 7
      %v1095 = vsub.s32 3, %v1094
      %v1096 = vrot.slane %v1079, %v1095
      %v1101 = vmul.f32 %v1076, %v1084
      %v1102 = vmul.f32 %v1075, %v1088
      %v1103 = vmul.f32 %v1074, %v1092
      %v1104 = vmul.f32 %v1077, %v1096
      %s1105 = scalar_lea.vmem %s4, 28
      %v1106 = vld [vmem:[%s1105] sm:$0xf]
      %v1107 = vpack.c.bf16 %v1101, %v1101
      %v1108 = vpack.c.bf16 %v1102, %v1102
      %v1109 = vpack.c.bf16 %v1103, %v1103
      %v1110 = vpack.c.bf16 %v1104, %v1104
      %v1112 = vsel %vm174, %v1106, 0
      %v1115 = vsel %vm178, %v1107, 0
      %v1118 = vsel %vm178, %v1108, 0
      %v1121 = vsel %vm178, %v1109, 0
      %v1124 = vsel %vm178, %v1110, 0
      %1126 = vmatprep.subr.bf16.mxu0 %v1118
      %1127 = vmatpush1.bf16.msra.mxu0 %v1115
      %1128 = vmatprep.subr.bf16.mxu0 0
      %1129 = vmatpush1.bf16.msra.mxu0 0
      %1130 = vmatprep.subr.bf16.mxu0 0
      %1131 = vmatpush1.bf16.msra.mxu0 0
      %1132 = vmatprep.subr.bf16.mxu0 0
      %1133 = vmatpush1.bf16.msra.mxu0 0
      %1134 = vmatprep.subr.bf16.mxu0 0
      %1135 = vmatpush1.bf16.msra.mxu0 0
      %1136 = vmatprep.subr.bf16.mxu0 0
      %1137 = vmatpush1.bf16.msra.mxu0 0
      %1138 = vmatprep.subr.bf16.mxu0 0
      %1139 = vmatpush1.bf16.msra.mxu0 0
      %1140 = vmatprep.subr.bf16.mxu0 0
      %1141 = vmatpush1.bf16.msra.mxu0 0
      %1142 = vmatprep.subr.bf16.mxu0 0
      %1143 = vmatpush1.bf16.msra.mxu0 0
      %1144 = vmatprep.subr.bf16.mxu0 0
      %1145 = vmatpush1.bf16.msra.mxu0 0
      %1146 = vmatprep.subr.bf16.mxu0 0
      %1147 = vmatpush1.bf16.msra.mxu0 0
      %1148 = vmatprep.subr.bf16.mxu0 0
      %1149 = vmatpush1.bf16.msra.mxu0 0
      %1150 = vmatprep.subr.bf16.mxu0 0
      %1151 = vmatpush1.bf16.msra.mxu0 0
      %1152 = vmatprep.subr.bf16.mxu0 0
      %1153 = vmatpush1.bf16.msra.mxu0 0
      %1154 = vmatprep.subr.bf16.mxu0 0
      %1155 = vmatpush1.bf16.msra.mxu0 0
      %1156 = vmatprep.subr.bf16.mxu0 0
      %1157 = vmatpush1.bf16.msra.mxu0 0
      %1158 = vmatprep.mubr.bf16.mxu0 0
      %1159 = vmatmul.mubr.bf16.gmra.mrb[0].mxu0 %v1112
      %v1160 = vpop.f32.mrb[0].mxu0
      %v1161 = vadd.f32 0.0, %v1160
      %v1162 = vpop.f32.mrb[0].mxu0
      %v1163 = vadd.f32 0.0, %v1162
      %v1164 = vpop.f32.mrb[0].mxu0
      %v1165 = vpop.f32.mrb[0].mxu0
      %1166 = vdwg.mxu0
      %1167 = vmatprep.subr.bf16.mxu0 %v1124
      %1168 = vmatpush1.bf16.msra.mxu0 %v1121
      %1169 = vmatprep.subr.bf16.mxu0 0
      %1170 = vmatpush1.bf16.msra.mxu0 0
      %1171 = vmatprep.subr.bf16.mxu0 0
      %1172 = vmatpush1.bf16.msra.mxu0 0
      %1173 = vmatprep.subr.bf16.mxu0 0
      %1174 = vmatpush1.bf16.msra.mxu0 0
      %1175 = vmatprep.subr.bf16.mxu0 0
      %1176 = vmatpush1.bf16.msra.mxu0 0
      %1177 = vmatprep.subr.bf16.mxu0 0
      %1178 = vmatpush1.bf16.msra.mxu0 0
      %1179 = vmatprep.subr.bf16.mxu0 0
      %1180 = vmatpush1.bf16.msra.mxu0 0
      %1181 = vmatprep.subr.bf16.mxu0 0
      %1182 = vmatpush1.bf16.msra.mxu0 0
      %1183 = vmatprep.subr.bf16.mxu0 0
      %1184 = vmatpush1.bf16.msra.mxu0 0
      %1185 = vmatprep.subr.bf16.mxu0 0
      %1186 = vmatpush1.bf16.msra.mxu0 0
      %1187 = vmatprep.subr.bf16.mxu0 0
      %1188 = vmatpush1.bf16.msra.mxu0 0
      %1189 = vmatprep.subr.bf16.mxu0 0
      %1190 = vmatpush1.bf16.msra.mxu0 0
      %1191 = vmatprep.subr.bf16.mxu0 0
      %1192 = vmatpush1.bf16.msra.mxu0 0
      %1193 = vmatprep.subr.bf16.mxu0 0
      %1194 = vmatpush1.bf16.msra.mxu0 0
      %1195 = vmatprep.subr.bf16.mxu0 0
      %1196 = vmatpush1.bf16.msra.mxu0 0
      %1197 = vmatprep.subr.bf16.mxu0 0
      %1198 = vmatpush1.bf16.msra.mxu0 0
      %1199 = vmatprep.mubr.bf16.mxu0 0
      %1200 = vmatmul.mubr.bf16.gmra.mrb[0].mxu0 %v1112
      %v1201 = vpop.f32.mrb[0].mxu0
      %v1202 = vadd.f32 0.0, %v1201
      %v1203 = vpop.f32.mrb[0].mxu0
      %v1204 = vadd.f32 0.0, %v1203
      %v1205 = vpop.f32.mrb[0].mxu0
      %v1206 = vpop.f32.mrb[0].mxu0
      %1207 = vdwg.mxu0
      %v1208 = vadd.f32 %v1061, %v1161
      %v1209 = vadd.f32 %v1062, %v1163
      %v1210 = vadd.f32 %v1063, %v1202
      %v1211 = vadd.f32 %v1064, %v1204
      %1212 = vrot.lane.b32.xlu0 %v70, 111
      %v1213 = vpop.permute.xlu0 %1212
      %1214 = vrot.lane.b32.xlu0 %v71, 111
      %v1215 = vpop.permute.xlu0 %1214
      %1216 = vrot.lane.b32.xlu0 %v72, 111
      %v1217 = vpop.permute.xlu0 %1216
      %1218 = vrot.lane.b32.xlu0 %v73, 111
      %v1219 = vpop.permute.xlu0 %1218
      %vm1220 = vcmp.lt.s32.totalorder %v91, 111
      %v1221 = vsel %vm1220, %v1217, %v1219
      %v1222 = vsel %vm1220, %v1215, %v1217
      %v1223 = vsel %vm1220, %v1213, %v1215
      %v1224 = vsel %vm1220, %v1219, %v1213
      %s1225 = scalar_lea.vmem %s3, 32
      %v1226 = vld [vmem:[%s1225] sm:$0xf]
      %v1228 = vlaneseq
      %v1229 = vshrl.u32 %v1228, 7
      %v1230 = vsub.s32 0, %v1229
      %v1231 = vrot.slane %v1226, %v1230
      %v1232 = vlaneseq
      %v1233 = vshrl.u32 %v1232, 7
      %v1234 = vsub.s32 1, %v1233
      %v1235 = vrot.slane %v1226, %v1234
      %v1236 = vlaneseq
      %v1237 = vshrl.u32 %v1236, 7
      %v1238 = vsub.s32 2, %v1237
      %v1239 = vrot.slane %v1226, %v1238
      %v1240 = vlaneseq
      %v1241 = vshrl.u32 %v1240, 7
      %v1242 = vsub.s32 3, %v1241
      %v1243 = vrot.slane %v1226, %v1242
      %v1248 = vmul.f32 %v1223, %v1231
      %v1249 = vmul.f32 %v1222, %v1235
      %v1250 = vmul.f32 %v1221, %v1239
      %v1251 = vmul.f32 %v1224, %v1243
      %s1252 = scalar_lea.vmem %s4, 32
      %v1253 = vld [vmem:[%s1252] sm:$0xf]
      %v1254 = vpack.c.bf16 %v1248, %v1248
      %v1255 = vpack.c.bf16 %v1249, %v1249
      %v1256 = vpack.c.bf16 %v1250, %v1250
      %v1257 = vpack.c.bf16 %v1251, %v1251
      %v1259 = vsel %vm174, %v1253, 0
      %v1262 = vsel %vm178, %v1254, 0
      %v1265 = vsel %vm178, %v1255, 0
      %v1268 = vsel %vm178, %v1256, 0
      %v1271 = vsel %vm178, %v1257, 0
      %1273 = vmatprep.subr.bf16.mxu0 %v1265
      %1274 = vmatpush1.bf16.msra.mxu0 %v1262
      %1275 = vmatprep.subr.bf16.mxu0 0
      %1276 = vmatpush1.bf16.msra.mxu0 0
      %1277 = vmatprep.subr.bf16.mxu0 0
      %1278 = vmatpush1.bf16.msra.mxu0 0
      %1279 = vmatprep.subr.bf16.mxu0 0
      %1280 = vmatpush1.bf16.msra.mxu0 0
      %1281 = vmatprep.subr.bf16.mxu0 0
      %1282 = vmatpush1.bf16.msra.mxu0 0
      %1283 = vmatprep.subr.bf16.mxu0 0
      %1284 = vmatpush1.bf16.msra.mxu0 0
      %1285 = vmatprep.subr.bf16.mxu0 0
      %1286 = vmatpush1.bf16.msra.mxu0 0
      %1287 = vmatprep.subr.bf16.mxu0 0
      %1288 = vmatpush1.bf16.msra.mxu0 0
      %1289 = vmatprep.subr.bf16.mxu0 0
      %1290 = vmatpush1.bf16.msra.mxu0 0
      %1291 = vmatprep.subr.bf16.mxu0 0
      %1292 = vmatpush1.bf16.msra.mxu0 0
      %1293 = vmatprep.subr.bf16.mxu0 0
      %1294 = vmatpush1.bf16.msra.mxu0 0
      %1295 = vmatprep.subr.bf16.mxu0 0
      %1296 = vmatpush1.bf16.msra.mxu0 0
      %1297 = vmatprep.subr.bf16.mxu0 0
      %1298 = vmatpush1.bf16.msra.mxu0 0
      %1299 = vmatprep.subr.bf16.mxu0 0
      %1300 = vmatpush1.bf16.msra.mxu0 0
      %1301 = vmatprep.subr.bf16.mxu0 0
      %1302 = vmatpush1.bf16.msra.mxu0 0
      %1303 = vmatprep.subr.bf16.mxu0 0
      %1304 = vmatpush1.bf16.msra.mxu0 0
      %1305 = vmatprep.mubr.bf16.mxu0 0
      %1306 = vmatmul.mubr.bf16.gmra.mrb[0].mxu0 %v1259
      %v1307 = vpop.f32.mrb[0].mxu0
      %v1308 = vadd.f32 0.0, %v1307
      %v1309 = vpop.f32.mrb[0].mxu0
      %v1310 = vadd.f32 0.0, %v1309
      %v1311 = vpop.f32.mrb[0].mxu0
      %v1312 = vpop.f32.mrb[0].mxu0
      %1313 = vdwg.mxu0
      %1314 = vmatprep.subr.bf16.mxu0 %v1271
      %1315 = vmatpush1.bf16.msra.mxu0 %v1268
      %1316 = vmatprep.subr.bf16.mxu0 0
      %1317 = vmatpush1.bf16.msra.mxu0 0
      %1318 = vmatprep.subr.bf16.mxu0 0
      %1319 = vmatpush1.bf16.msra.mxu0 0
      %1320 = vmatprep.subr.bf16.mxu0 0
      %1321 = vmatpush1.bf16.msra.mxu0 0
      %1322 = vmatprep.subr.bf16.mxu0 0
      %1323 = vmatpush1.bf16.msra.mxu0 0
      %1324 = vmatprep.subr.bf16.mxu0 0
      %1325 = vmatpush1.bf16.msra.mxu0 0
      %1326 = vmatprep.subr.bf16.mxu0 0
      %1327 = vmatpush1.bf16.msra.mxu0 0
      %1328 = vmatprep.subr.bf16.mxu0 0
      %1329 = vmatpush1.bf16.msra.mxu0 0
      %1330 = vmatprep.subr.bf16.mxu0 0
      %1331 = vmatpush1.bf16.msra.mxu0 0
      %1332 = vmatprep.subr.bf16.mxu0 0
      %1333 = vmatpush1.bf16.msra.mxu0 0
      %1334 = vmatprep.subr.bf16.mxu0 0
      %1335 = vmatpush1.bf16.msra.mxu0 0
      %1336 = vmatprep.subr.bf16.mxu0 0
      %1337 = vmatpush1.bf16.msra.mxu0 0
      %1338 = vmatprep.subr.bf16.mxu0 0
      %1339 = vmatpush1.bf16.msra.mxu0 0
      %1340 = vmatprep.subr.bf16.mxu0 0
      %1341 = vmatpush1.bf16.msra.mxu0 0
      %1342 = vmatprep.subr.bf16.mxu0 0
      %1343 = vmatpush1.bf16.msra.mxu0 0
      %1344 = vmatprep.subr.bf16.mxu0 0
      %1345 = vmatpush1.bf16.msra.mxu0 0
      %1346 = vmatprep.mubr.bf16.mxu0 0
      %1347 = vmatmul.mubr.bf16.gmra.mrb[0].mxu0 %v1259
      %v1348 = vpop.f32.mrb[0].mxu0
      %v1349 = vadd.f32 0.0, %v1348
      %v1350 = vpop.f32.mrb[0].mxu0
      %v1351 = vadd.f32 0.0, %v1350
      %v1352 = vpop.f32.mrb[0].mxu0
      %v1353 = vpop.f32.mrb[0].mxu0
      %1354 = vdwg.mxu0
      %v1355 = vadd.f32 %v1208, %v1308
      %v1356 = vadd.f32 %v1209, %v1310
      %v1357 = vadd.f32 %v1210, %v1349
      %v1358 = vadd.f32 %v1211, %v1351
      %v1359 = vld [vmem:[%s5] sm:$0xff]
      %1361 = vset.pattern.permute.xlu0 0
      %1362 = vperm.xlu0 %1361, %v1359
      %v1363 = vpop.permute.xlu0 %1362
      %v1365 = vadd.f32 %v1355, %v1363
      %v1366 = vadd.f32 %v1356, %v1363
      %v1367 = vadd.f32 %v1357, %v1363
      %v1368 = vadd.f32 %v1358, %v1363
      %v1369 = vstv %s74
      %v1370 = vmul.f32 %v1369, %v1365
      %v1371 = vmul.f32 %v1369, %v1366
      %v1372 = vmul.f32 %v1369, %v1367
      %v1373 = vmul.f32 %v1369, %v1368
      %v1374 = vadd.f32 %v70, %v1370
      %v1375 = vadd.f32 %v71, %v1371
      %v1376 = vadd.f32 %v72, %v1372
      %v1377 = vadd.f32 %v73, %v1373
      %1378 = vrot.lane.b32.xlu0 %v78, 17
      %v1379 = vpop.permute.xlu0 %1378
      %1380 = vrot.lane.b32.xlu0 %v79, 17
      %v1381 = vpop.permute.xlu0 %1380
      %1382 = vrot.lane.b32.xlu0 %v80, 17
      %v1383 = vpop.permute.xlu0 %1382
      %1384 = vrot.lane.b32.xlu0 %v81, 17
      %v1385 = vpop.permute.xlu0 %1384
      %v1386 = vsel %vm92, %v1383, %v1385
      %v1387 = vsel %vm92, %v1381, %v1383
      %v1388 = vsel %vm92, %v1379, %v1381
      %v1389 = vsel %vm92, %v1385, %v1379
      %v1390 = vmul.f32 %v1389, %v102
      %v1391 = vmul.f32 %v1388, %v106
      %v1392 = vmul.f32 %v1387, %v110
      %v1393 = vmul.f32 %v1386, %v114
      %v1394 = vld [vmem:[%s6] sm:$0xf]
      %v1395 = vld [vmem:[%s6 + $0x4] sm:$0xf]
      %v1396 = vld [vmem:[%s6 + $0x8] sm:$0xf]
      %v1397 = vpack.c.bf16 %v1390, %v1390
      %v1398 = vpack.c.bf16 %v1391, %v1391
      %v1399 = vpack.c.bf16 %v1392, %v1392
      %v1400 = vpack.c.bf16 %v1393, %v1393
      %1401 = vrot.lane.b32.xlu0 %v78, 16
      %v1402 = vpop.permute.xlu0 %1401
      %1403 = vrot.lane.b32.xlu0 %v79, 16
      %v1404 = vpop.permute.xlu0 %1403
      %1405 = vrot.lane.b32.xlu0 %v80, 16
      %v1406 = vpop.permute.xlu0 %1405
      %1407 = vrot.lane.b32.xlu0 %v81, 16
      %v1408 = vpop.permute.xlu0 %1407
      %v1409 = vsel %vm136, %v1406, %v1408
      %v1410 = vsel %vm136, %v1404, %v1406
      %v1411 = vsel %vm136, %v1402, %v1404
      %v1412 = vsel %vm136, %v1408, %v1402
      %v1413 = vmul.f32 %v1412, %v147
      %v1414 = vmul.f32 %v1411, %v151
      %v1415 = vmul.f32 %v1410, %v155
      %v1416 = vmul.f32 %v1409, %v159
      %s1417 = scalar_lea.vmem %s6, 12
      %v1418 = vld [vmem:[%s1417] sm:$0xf]
      %v1419 = vld [vmem:[%s1417 + $0x4] sm:$0xf]
      %v1420 = vld [vmem:[%s1417 + $0x8] sm:$0xf]
      %v1421 = vpack.c.bf16 %v1413, %v1413
      %v1422 = vpack.c.bf16 %v1414, %v1414
      %v1423 = vpack.c.bf16 %v1415, %v1415
      %v1424 = vpack.c.bf16 %v1416, %v1416
      %v1428 = vunpack.c.l.b16 %v1418
      %v1429 = vunpack.c.l.b16 %v1419
      %v1430 = vunpack.c.l.b16 %v1420
      %v1431 = vpack.c.b16 %v1429, %v1428
      %v1432 = vpack.c.b16 %v1430, %v1430
      %v1434 = vsel %vm174, %v1431, 0
      %v1437 = vsel %vm174, %v1432, 0
      %v1440 = vsel %vm178, %v1421, 0
      %v1443 = vsel %vm178, %v1422, 0
      %v1446 = vsel %vm178, %v1423, 0
      %v1449 = vsel %vm178, %v1424, 0
      %1451 = vmatprep.subr.bf16.mxu0 %v1443
      %1452 = vmatpush1.bf16.msra.mxu0 %v1440
      %1453 = vmatprep.subr.bf16.mxu0 0
      %1454 = vmatpush1.bf16.msra.mxu0 0
      %1455 = vmatprep.subr.bf16.mxu0 0
      %1456 = vmatpush1.bf16.msra.mxu0 0
      %1457 = vmatprep.subr.bf16.mxu0 0
      %1458 = vmatpush1.bf16.msra.mxu0 0
      %1459 = vmatprep.subr.bf16.mxu0 0
      %1460 = vmatpush1.bf16.msra.mxu0 0
      %1461 = vmatprep.subr.bf16.mxu0 0
      %1462 = vmatpush1.bf16.msra.mxu0 0
      %1463 = vmatprep.subr.bf16.mxu0 0
      %1464 = vmatpush1.bf16.msra.mxu0 0
      %1465 = vmatprep.subr.bf16.mxu0 0
      %1466 = vmatpush1.bf16.msra.mxu0 0
      %1467 = vmatprep.subr.bf16.mxu0 0
      %1468 = vmatpush1.bf16.msra.mxu0 0
      %1469 = vmatprep.subr.bf16.mxu0 0
      %1470 = vmatpush1.bf16.msra.mxu0 0
      %1471 = vmatprep.subr.bf16.mxu0 0
      %1472 = vmatpush1.bf16.msra.mxu0 0
      %1473 = vmatprep.subr.bf16.mxu0 0
      %1474 = vmatpush1.bf16.msra.mxu0 0
      %1475 = vmatprep.subr.bf16.mxu0 0
      %1476 = vmatpush1.bf16.msra.mxu0 0
      %1477 = vmatprep.subr.bf16.mxu0 0
      %1478 = vmatpush1.bf16.msra.mxu0 0
      %1479 = vmatprep.subr.bf16.mxu0 0
      %1480 = vmatpush1.bf16.msra.mxu0 0
      %1481 = vmatprep.subr.bf16.mxu0 0
      %1482 = vmatpush1.bf16.msra.mxu0 0
      %1483 = vmatprep.mubr.bf16.mxu0 0
      %1484 = vmatmul.mubr.bf16.gmra.mrb[0].mxu0 %v1434
      %v1485 = vpop.f32.mrb[0].mxu0
      %v1486 = vadd.f32 0.0, %v1485
      %v1487 = vpop.f32.mrb[0].mxu0
      %v1488 = vadd.f32 0.0, %v1487
      %v1489 = vpop.f32.mrb[0].mxu0
      %v1490 = vadd.f32 0.0, %v1489
      %v1491 = vpop.f32.mrb[0].mxu0
      %v1492 = vadd.f32 0.0, %v1491
      %1493 = vmatprep.mubr.bf16.mxu0 0
      %1494 = vmatmul.mubr.bf16.gmra.mrb[0].mxu0 %v1437
      %v1495 = vpop.f32.mrb[0].mxu0
      %v1496 = vadd.f32 0.0, %v1495
      %v1497 = vpop.f32.mrb[0].mxu0
      %v1498 = vadd.f32 0.0, %v1497
      %v1499 = vpop.f32.mrb[0].mxu0
      %v1500 = vpop.f32.mrb[0].mxu0
      %1501 = vdwg.mxu0
      %1502 = vmatprep.subr.bf16.mxu0 %v1449
      %1503 = vmatpush1.bf16.msra.mxu0 %v1446
      %1504 = vmatprep.subr.bf16.mxu0 0
      %1505 = vmatpush1.bf16.msra.mxu0 0
      %1506 = vmatprep.subr.bf16.mxu0 0
      %1507 = vmatpush1.bf16.msra.mxu0 0
      %1508 = vmatprep.subr.bf16.mxu0 0
      %1509 = vmatpush1.bf16.msra.mxu0 0
      %1510 = vmatprep.subr.bf16.mxu0 0
      %1511 = vmatpush1.bf16.msra.mxu0 0
      %1512 = vmatprep.subr.bf16.mxu0 0
      %1513 = vmatpush1.bf16.msra.mxu0 0
      %1514 = vmatprep.subr.bf16.mxu0 0
      %1515 = vmatpush1.bf16.msra.mxu0 0
      %1516 = vmatprep.subr.bf16.mxu0 0
      %1517 = vmatpush1.bf16.msra.mxu0 0
      %1518 = vmatprep.subr.bf16.mxu0 0
      %1519 = vmatpush1.bf16.msra.mxu0 0
      %1520 = vmatprep.subr.bf16.mxu0 0
      %1521 = vmatpush1.bf16.msra.mxu0 0
      %1522 = vmatprep.subr.bf16.mxu0 0
      %1523 = vmatpush1.bf16.msra.mxu0 0
      %1524 = vmatprep.subr.bf16.mxu0 0
      %1525 = vmatpush1.bf16.msra.mxu0 0
      %1526 = vmatprep.subr.bf16.mxu0 0
      %1527 = vmatpush1.bf16.msra.mxu0 0
      %1528 = vmatprep.subr.bf16.mxu0 0
      %1529 = vmatpush1.bf16.msra.mxu0 0
      %1530 = vmatprep.subr.bf16.mxu0 0
      %1531 = vmatpush1.bf16.msra.mxu0 0
      %1532 = vmatprep.subr.bf16.mxu0 0
      %1533 = vmatpush1.bf16.msra.mxu0 0
      %1534 = vmatprep.mubr.bf16.mxu0 0
      %1535 = vmatmul.mubr.bf16.gmra.mrb[0].mxu0 %v1434
      %v1536 = vpop.f32.mrb[0].mxu0
      %v1537 = vadd.f32 0.0, %v1536
      %v1538 = vpop.f32.mrb[0].mxu0
      %v1539 = vadd.f32 0.0, %v1538
      %v1540 = vpop.f32.mrb[0].mxu0
      %v1541 = vadd.f32 0.0, %v1540
      %v1542 = vpop.f32.mrb[0].mxu0
      %v1543 = vadd.f32 0.0, %v1542
      %1544 = vmatprep.mubr.bf16.mxu0 0
      %1545 = vmatmul.mubr.bf16.gmra.mrb[0].mxu0 %v1437
      %v1546 = vpop.f32.mrb[0].mxu0
      %v1547 = vadd.f32 0.0, %v1546
      %v1548 = vpop.f32.mrb[0].mxu0
      %v1549 = vadd.f32 0.0, %v1548
      %v1550 = vpop.f32.mrb[0].mxu0
      %v1551 = vpop.f32.mrb[0].mxu0
      %1552 = vdwg.mxu0
      %v1556 = vunpack.c.l.b16 %v1394
      %v1557 = vunpack.c.l.b16 %v1395
      %v1558 = vunpack.c.l.b16 %v1396
      %v1559 = vpack.c.b16 %v1557, %v1556
      %v1560 = vpack.c.b16 %v1558, %v1558
      %v1562 = vsel %vm174, %v1559, 0
      %v1565 = vsel %vm174, %v1560, 0
      %v1568 = vsel %vm178, %v1397, 0
      %v1571 = vsel %vm178, %v1398, 0
      %v1574 = vsel %vm178, %v1399, 0
      %v1577 = vsel %vm178, %v1400, 0
      %1579 = vmatprep.subr.bf16.mxu0 %v1571
      %1580 = vmatpush1.bf16.msra.mxu0 %v1568
      %1581 = vmatprep.subr.bf16.mxu0 0
      %1582 = vmatpush1.bf16.msra.mxu0 0
      %1583 = vmatprep.subr.bf16.mxu0 0
      %1584 = vmatpush1.bf16.msra.mxu0 0
      %1585 = vmatprep.subr.bf16.mxu0 0
      %1586 = vmatpush1.bf16.msra.mxu0 0
      %1587 = vmatprep.subr.bf16.mxu0 0
      %1588 = vmatpush1.bf16.msra.mxu0 0
      %1589 = vmatprep.subr.bf16.mxu0 0
      %1590 = vmatpush1.bf16.msra.mxu0 0
      %1591 = vmatprep.subr.bf16.mxu0 0
      %1592 = vmatpush1.bf16.msra.mxu0 0
      %1593 = vmatprep.subr.bf16.mxu0 0
      %1594 = vmatpush1.bf16.msra.mxu0 0
      %1595 = vmatprep.subr.bf16.mxu0 0
      %1596 = vmatpush1.bf16.msra.mxu0 0
      %1597 = vmatprep.subr.bf16.mxu0 0
      %1598 = vmatpush1.bf16.msra.mxu0 0
      %1599 = vmatprep.subr.bf16.mxu0 0
      %1600 = vmatpush1.bf16.msra.mxu0 0
      %1601 = vmatprep.subr.bf16.mxu0 0
      %1602 = vmatpush1.bf16.msra.mxu0 0
      %1603 = vmatprep.subr.bf16.mxu0 0
      %1604 = vmatpush1.bf16.msra.mxu0 0
      %1605 = vmatprep.subr.bf16.mxu0 0
      %1606 = vmatpush1.bf16.msra.mxu0 0
      %1607 = vmatprep.subr.bf16.mxu0 0
      %1608 = vmatpush1.bf16.msra.mxu0 0
      %1609 = vmatprep.subr.bf16.mxu0 0
      %1610 = vmatpush1.bf16.msra.mxu0 0
      %1611 = vmatprep.mubr.bf16.mxu0 0
      %1612 = vmatmul.mubr.bf16.gmra.mrb[0].mxu0 %v1562
      %v1613 = vpop.f32.mrb[0].mxu0
      %v1614 = vadd.f32 %v1486, %v1613
      %v1615 = vpop.f32.mrb[0].mxu0
      %v1616 = vadd.f32 %v1488, %v1615
      %v1617 = vpop.f32.mrb[0].mxu0
      %v1618 = vadd.f32 %v1490, %v1617
      %v1619 = vpop.f32.mrb[0].mxu0
      %v1620 = vadd.f32 %v1492, %v1619
      %1621 = vmatprep.mubr.bf16.mxu0 0
      %1622 = vmatmul.mubr.bf16.gmra.mrb[0].mxu0 %v1565
      %v1623 = vpop.f32.mrb[0].mxu0
      %v1624 = vadd.f32 %v1496, %v1623
      %v1625 = vpop.f32.mrb[0].mxu0
      %v1626 = vadd.f32 %v1498, %v1625
      %v1627 = vpop.f32.mrb[0].mxu0
      %v1628 = vpop.f32.mrb[0].mxu0
      %1629 = vdwg.mxu0
      %1630 = vmatprep.subr.bf16.mxu0 %v1577
      %1631 = vmatpush1.bf16.msra.mxu0 %v1574
      %1632 = vmatprep.subr.bf16.mxu0 0
      %1633 = vmatpush1.bf16.msra.mxu0 0
      %1634 = vmatprep.subr.bf16.mxu0 0
      %1635 = vmatpush1.bf16.msra.mxu0 0
      %1636 = vmatprep.subr.bf16.mxu0 0
      %1637 = vmatpush1.bf16.msra.mxu0 0
      %1638 = vmatprep.subr.bf16.mxu0 0
      %1639 = vmatpush1.bf16.msra.mxu0 0
      %1640 = vmatprep.subr.bf16.mxu0 0
      %1641 = vmatpush1.bf16.msra.mxu0 0
      %1642 = vmatprep.subr.bf16.mxu0 0
      %1643 = vmatpush1.bf16.msra.mxu0 0
      %1644 = vmatprep.subr.bf16.mxu0 0
      %1645 = vmatpush1.bf16.msra.mxu0 0
      %1646 = vmatprep.subr.bf16.mxu0 0
      %1647 = vmatpush1.bf16.msra.mxu0 0
      %1648 = vmatprep.subr.bf16.mxu0 0
      %1649 = vmatpush1.bf16.msra.mxu0 0
      %1650 = vmatprep.subr.bf16.mxu0 0
      %1651 = vmatpush1.bf16.msra.mxu0 0
      %1652 = vmatprep.subr.bf16.mxu0 0
      %1653 = vmatpush1.bf16.msra.mxu0 0
      %1654 = vmatprep.subr.bf16.mxu0 0
      %1655 = vmatpush1.bf16.msra.mxu0 0
      %1656 = vmatprep.subr.bf16.mxu0 0
      %1657 = vmatpush1.bf16.msra.mxu0 0
      %1658 = vmatprep.subr.bf16.mxu0 0
      %1659 = vmatpush1.bf16.msra.mxu0 0
      %1660 = vmatprep.subr.bf16.mxu0 0
      %1661 = vmatpush1.bf16.msra.mxu0 0
      %1662 = vmatprep.mubr.bf16.mxu0 0
      %1663 = vmatmul.mubr.bf16.gmra.mrb[0].mxu0 %v1562
      %v1664 = vpop.f32.mrb[0].mxu0
      %v1665 = vadd.f32 %v1537, %v1664
      %v1666 = vpop.f32.mrb[0].mxu0
      %v1667 = vadd.f32 %v1539, %v1666
      %v1668 = vpop.f32.mrb[0].mxu0
      %v1669 = vadd.f32 %v1541, %v1668
      %v1670 = vpop.f32.mrb[0].mxu0
      %v1671 = vadd.f32 %v1543, %v1670
      %1672 = vmatprep.mubr.bf16.mxu0 0
      %1673 = vmatmul.mubr.bf16.gmra.mrb[0].mxu0 %v1565
      %v1674 = vpop.f32.mrb[0].mxu0
      %v1675 = vadd.f32 %v1547, %v1674
      %v1676 = vpop.f32.mrb[0].mxu0
      %v1677 = vadd.f32 %v1549, %v1676
      %v1678 = vpop.f32.mrb[0].mxu0
      %v1679 = vpop.f32.mrb[0].mxu0
      %1680 = vdwg.mxu0
      %1681 = vrot.lane.b32.xlu0 %v78, 15
      %v1682 = vpop.permute.xlu0 %1681
      %1683 = vrot.lane.b32.xlu0 %v79, 15
      %v1684 = vpop.permute.xlu0 %1683
      %1685 = vrot.lane.b32.xlu0 %v80, 15
      %v1686 = vpop.permute.xlu0 %1685
      %1687 = vrot.lane.b32.xlu0 %v81, 15
      %v1688 = vpop.permute.xlu0 %1687
      %v1689 = vsel %vm378, %v1686, %v1688
      %v1690 = vsel %vm378, %v1684, %v1686
      %v1691 = vsel %vm378, %v1682, %v1684
      %v1692 = vsel %vm378, %v1688, %v1682
      %v1693 = vmul.f32 %v1692, %v389
      %v1694 = vmul.f32 %v1691, %v393
      %v1695 = vmul.f32 %v1690, %v397
      %v1696 = vmul.f32 %v1689, %v401
      %s1697 = scalar_lea.vmem %s6, 24
      %v1698 = vld [vmem:[%s1697] sm:$0xf]
      %v1699 = vld [vmem:[%s1697 + $0x4] sm:$0xf]
      %v1700 = vld [vmem:[%s1697 + $0x8] sm:$0xf]
      %v1701 = vpack.c.bf16 %v1693, %v1693
      %v1702 = vpack.c.bf16 %v1694, %v1694
      %v1703 = vpack.c.bf16 %v1695, %v1695
      %v1704 = vpack.c.bf16 %v1696, %v1696
      %v1708 = vunpack.c.l.b16 %v1698
      %v1709 = vunpack.c.l.b16 %v1699
      %v1710 = vunpack.c.l.b16 %v1700
      %v1711 = vpack.c.b16 %v1709, %v1708
      %v1712 = vpack.c.b16 %v1710, %v1710
      %v1714 = vsel %vm174, %v1711, 0
      %v1717 = vsel %vm174, %v1712, 0
      %v1720 = vsel %vm178, %v1701, 0
      %v1723 = vsel %vm178, %v1702, 0
      %v1726 = vsel %vm178, %v1703, 0
      %v1729 = vsel %vm178, %v1704, 0
      %1731 = vmatprep.subr.bf16.mxu0 %v1723
      %1732 = vmatpush1.bf16.msra.mxu0 %v1720
      %1733 = vmatprep.subr.bf16.mxu0 0
      %1734 = vmatpush1.bf16.msra.mxu0 0
      %1735 = vmatprep.subr.bf16.mxu0 0
      %1736 = vmatpush1.bf16.msra.mxu0 0
      %1737 = vmatprep.subr.bf16.mxu0 0
      %1738 = vmatpush1.bf16.msra.mxu0 0
      %1739 = vmatprep.subr.bf16.mxu0 0
      %1740 = vmatpush1.bf16.msra.mxu0 0
      %1741 = vmatprep.subr.bf16.mxu0 0
      %1742 = vmatpush1.bf16.msra.mxu0 0
      %1743 = vmatprep.subr.bf16.mxu0 0
      %1744 = vmatpush1.bf16.msra.mxu0 0
      %1745 = vmatprep.subr.bf16.mxu0 0
      %1746 = vmatpush1.bf16.msra.mxu0 0
      %1747 = vmatprep.subr.bf16.mxu0 0
      %1748 = vmatpush1.bf16.msra.mxu0 0
      %1749 = vmatprep.subr.bf16.mxu0 0
      %1750 = vmatpush1.bf16.msra.mxu0 0
      %1751 = vmatprep.subr.bf16.mxu0 0
      %1752 = vmatpush1.bf16.msra.mxu0 0
      %1753 = vmatprep.subr.bf16.mxu0 0
      %1754 = vmatpush1.bf16.msra.mxu0 0
      %1755 = vmatprep.subr.bf16.mxu0 0
      %1756 = vmatpush1.bf16.msra.mxu0 0
      %1757 = vmatprep.subr.bf16.mxu0 0
      %1758 = vmatpush1.bf16.msra.mxu0 0
      %1759 = vmatprep.subr.bf16.mxu0 0
      %1760 = vmatpush1.bf16.msra.mxu0 0
      %1761 = vmatprep.subr.bf16.mxu0 0
      %1762 = vmatpush1.bf16.msra.mxu0 0
      %1763 = vmatprep.mubr.bf16.mxu0 0
      %1764 = vmatmul.mubr.bf16.gmra.mrb[0].mxu0 %v1714
      %v1765 = vpop.f32.mrb[0].mxu0
      %v1766 = vadd.f32 0.0, %v1765
      %v1767 = vpop.f32.mrb[0].mxu0
      %v1768 = vadd.f32 0.0, %v1767
      %v1769 = vpop.f32.mrb[0].mxu0
      %v1770 = vadd.f32 0.0, %v1769
      %v1771 = vpop.f32.mrb[0].mxu0
      %v1772 = vadd.f32 0.0, %v1771
      %1773 = vmatprep.mubr.bf16.mxu0 0
      %1774 = vmatmul.mubr.bf16.gmra.mrb[0].mxu0 %v1717
      %v1775 = vpop.f32.mrb[0].mxu0
      %v1776 = vadd.f32 0.0, %v1775
      %v1777 = vpop.f32.mrb[0].mxu0
      %v1778 = vadd.f32 0.0, %v1777
      %v1779 = vpop.f32.mrb[0].mxu0
      %v1780 = vpop.f32.mrb[0].mxu0
      %1781 = vdwg.mxu0
      %1782 = vmatprep.subr.bf16.mxu0 %v1729
      %1783 = vmatpush1.bf16.msra.mxu0 %v1726
      %1784 = vmatprep.subr.bf16.mxu0 0
      %1785 = vmatpush1.bf16.msra.mxu0 0
      %1786 = vmatprep.subr.bf16.mxu0 0
      %1787 = vmatpush1.bf16.msra.mxu0 0
      %1788 = vmatprep.subr.bf16.mxu0 0
      %1789 = vmatpush1.bf16.msra.mxu0 0
      %1790 = vmatprep.subr.bf16.mxu0 0
      %1791 = vmatpush1.bf16.msra.mxu0 0
      %1792 = vmatprep.subr.bf16.mxu0 0
      %1793 = vmatpush1.bf16.msra.mxu0 0
      %1794 = vmatprep.subr.bf16.mxu0 0
      %1795 = vmatpush1.bf16.msra.mxu0 0
      %1796 = vmatprep.subr.bf16.mxu0 0
      %1797 = vmatpush1.bf16.msra.mxu0 0
      %1798 = vmatprep.subr.bf16.mxu0 0
      %1799 = vmatpush1.bf16.msra.mxu0 0
      %1800 = vmatprep.subr.bf16.mxu0 0
      %1801 = vmatpush1.bf16.msra.mxu0 0
      %1802 = vmatprep.subr.bf16.mxu0 0
      %1803 = vmatpush1.bf16.msra.mxu0 0
      %1804 = vmatprep.subr.bf16.mxu0 0
      %1805 = vmatpush1.bf16.msra.mxu0 0
      %1806 = vmatprep.subr.bf16.mxu0 0
      %1807 = vmatpush1.bf16.msra.mxu0 0
      %1808 = vmatprep.subr.bf16.mxu0 0
      %1809 = vmatpush1.bf16.msra.mxu0 0
      %1810 = vmatprep.subr.bf16.mxu0 0
      %1811 = vmatpush1.bf16.msra.mxu0 0
      %1812 = vmatprep.subr.bf16.mxu0 0
      %1813 = vmatpush1.bf16.msra.mxu0 0
      %1814 = vmatprep.mubr.bf16.mxu0 0
      %1815 = vmatmul.mubr.bf16.gmra.mrb[0].mxu0 %v1714
      %v1816 = vpop.f32.mrb[0].mxu0
      %v1817 = vadd.f32 0.0, %v1816
      %v1818 = vpop.f32.mrb[0].mxu0
      %v1819 = vadd.f32 0.0, %v1818
      %v1820 = vpop.f32.mrb[0].mxu0
      %v1821 = vadd.f32 0.0, %v1820
      %v1822 = vpop.f32.mrb[0].mxu0
      %v1823 = vadd.f32 0.0, %v1822
      %1824 = vmatprep.mubr.bf16.mxu0 0
      %1825 = vmatmul.mubr.bf16.gmra.mrb[0].mxu0 %v1717
      %v1826 = vpop.f32.mrb[0].mxu0
      %v1827 = vadd.f32 0.0, %v1826
      %v1828 = vpop.f32.mrb[0].mxu0
      %v1829 = vadd.f32 0.0, %v1828
      %v1830 = vpop.f32.mrb[0].mxu0
      %v1831 = vpop.f32.mrb[0].mxu0
      %1832 = vdwg.mxu0
      %v1833 = vadd.f32 %v1614, %v1766
      %v1834 = vadd.f32 %v1616, %v1768
      %v1835 = vadd.f32 %v1665, %v1817
      %v1836 = vadd.f32 %v1667, %v1819
      %v1837 = vadd.f32 %v1618, %v1770
      %v1838 = vadd.f32 %v1620, %v1772
      %v1839 = vadd.f32 %v1669, %v1821
      %v1840 = vadd.f32 %v1671, %v1823
      %v1841 = vadd.f32 %v1624, %v1776
      %v1842 = vadd.f32 %v1626, %v1778
      %v1843 = vadd.f32 %v1675, %v1827
      %v1844 = vadd.f32 %v1677, %v1829
      %1845 = vrot.lane.b32.xlu0 %v78, 1
      %v1846 = vpop.permute.xlu0 %1845
      %1847 = vrot.lane.b32.xlu0 %v79, 1
      %v1848 = vpop.permute.xlu0 %1847
      %1849 = vrot.lane.b32.xlu0 %v80, 1
      %v1850 = vpop.permute.xlu0 %1849
      %1851 = vrot.lane.b32.xlu0 %v81, 1
      %v1852 = vpop.permute.xlu0 %1851
      %v1853 = vsel %vm525, %v1850, %v1852
      %v1854 = vsel %vm525, %v1848, %v1850
      %v1855 = vsel %vm525, %v1846, %v1848
      %v1856 = vsel %vm525, %v1852, %v1846
      %v1857 = vmul.f32 %v1856, %v536
      %v1858 = vmul.f32 %v1855, %v540
      %v1859 = vmul.f32 %v1854, %v544
      %v1860 = vmul.f32 %v1853, %v548
      %s1861 = scalar_lea.vmem %s6, 36
      %v1862 = vld [vmem:[%s1861] sm:$0xf]
      %v1863 = vld [vmem:[%s1861 + $0x4] sm:$0xf]
      %v1864 = vld [vmem:[%s1861 + $0x8] sm:$0xf]
      %v1865 = vpack.c.bf16 %v1857, %v1857
      %v1866 = vpack.c.bf16 %v1858, %v1858
      %v1867 = vpack.c.bf16 %v1859, %v1859
      %v1868 = vpack.c.bf16 %v1860, %v1860
      %v1872 = vunpack.c.l.b16 %v1862
      %v1873 = vunpack.c.l.b16 %v1863
      %v1874 = vunpack.c.l.b16 %v1864
      %v1875 = vpack.c.b16 %v1873, %v1872
      %v1876 = vpack.c.b16 %v1874, %v1874
      %v1878 = vsel %vm174, %v1875, 0
      %v1881 = vsel %vm174, %v1876, 0
      %v1884 = vsel %vm178, %v1865, 0
      %v1887 = vsel %vm178, %v1866, 0
      %v1890 = vsel %vm178, %v1867, 0
      %v1893 = vsel %vm178, %v1868, 0
      %1895 = vmatprep.subr.bf16.mxu0 %v1887
      %1896 = vmatpush1.bf16.msra.mxu0 %v1884
      %1897 = vmatprep.subr.bf16.mxu0 0
      %1898 = vmatpush1.bf16.msra.mxu0 0
      %1899 = vmatprep.subr.bf16.mxu0 0
      %1900 = vmatpush1.bf16.msra.mxu0 0
      %1901 = vmatprep.subr.bf16.mxu0 0
      %1902 = vmatpush1.bf16.msra.mxu0 0
      %1903 = vmatprep.subr.bf16.mxu0 0
      %1904 = vmatpush1.bf16.msra.mxu0 0
      %1905 = vmatprep.subr.bf16.mxu0 0
      %1906 = vmatpush1.bf16.msra.mxu0 0
      %1907 = vmatprep.subr.bf16.mxu0 0
      %1908 = vmatpush1.bf16.msra.mxu0 0
      %1909 = vmatprep.subr.bf16.mxu0 0
      %1910 = vmatpush1.bf16.msra.mxu0 0
      %1911 = vmatprep.subr.bf16.mxu0 0
      %1912 = vmatpush1.bf16.msra.mxu0 0
      %1913 = vmatprep.subr.bf16.mxu0 0
      %1914 = vmatpush1.bf16.msra.mxu0 0
      %1915 = vmatprep.subr.bf16.mxu0 0
      %1916 = vmatpush1.bf16.msra.mxu0 0
      %1917 = vmatprep.subr.bf16.mxu0 0
      %1918 = vmatpush1.bf16.msra.mxu0 0
      %1919 = vmatprep.subr.bf16.mxu0 0
      %1920 = vmatpush1.bf16.msra.mxu0 0
      %1921 = vmatprep.subr.bf16.mxu0 0
      %1922 = vmatpush1.bf16.msra.mxu0 0
      %1923 = vmatprep.subr.bf16.mxu0 0
      %1924 = vmatpush1.bf16.msra.mxu0 0
      %1925 = vmatprep.subr.bf16.mxu0 0
      %1926 = vmatpush1.bf16.msra.mxu0 0
      %1927 = vmatprep.mubr.bf16.mxu0 0
      %1928 = vmatmul.mubr.bf16.gmra.mrb[0].mxu0 %v1878
      %v1929 = vpop.f32.mrb[0].mxu0
      %v1930 = vadd.f32 0.0, %v1929
      %v1931 = vpop.f32.mrb[0].mxu0
      %v1932 = vadd.f32 0.0, %v1931
      %v1933 = vpop.f32.mrb[0].mxu0
      %v1934 = vadd.f32 0.0, %v1933
      %v1935 = vpop.f32.mrb[0].mxu0
      %v1936 = vadd.f32 0.0, %v1935
      %1937 = vmatprep.mubr.bf16.mxu0 0
      %1938 = vmatmul.mubr.bf16.gmra.mrb[0].mxu0 %v1881
      %v1939 = vpop.f32.mrb[0].mxu0
      %v1940 = vadd.f32 0.0, %v1939
      %v1941 = vpop.f32.mrb[0].mxu0
      %v1942 = vadd.f32 0.0, %v1941
      %v1943 = vpop.f32.mrb[0].mxu0
      %v1944 = vpop.f32.mrb[0].mxu0
      %1945 = vdwg.mxu0
      %1946 = vmatprep.subr.bf16.mxu0 %v1893
      %1947 = vmatpush1.bf16.msra.mxu0 %v1890
      %1948 = vmatprep.subr.bf16.mxu0 0
      %1949 = vmatpush1.bf16.msra.mxu0 0
      %1950 = vmatprep.subr.bf16.mxu0 0
      %1951 = vmatpush1.bf16.msra.mxu0 0
      %1952 = vmatprep.subr.bf16.mxu0 0
      %1953 = vmatpush1.bf16.msra.mxu0 0
      %1954 = vmatprep.subr.bf16.mxu0 0
      %1955 = vmatpush1.bf16.msra.mxu0 0
      %1956 = vmatprep.subr.bf16.mxu0 0
      %1957 = vmatpush1.bf16.msra.mxu0 0
      %1958 = vmatprep.subr.bf16.mxu0 0
      %1959 = vmatpush1.bf16.msra.mxu0 0
      %1960 = vmatprep.subr.bf16.mxu0 0
      %1961 = vmatpush1.bf16.msra.mxu0 0
      %1962 = vmatprep.subr.bf16.mxu0 0
      %1963 = vmatpush1.bf16.msra.mxu0 0
      %1964 = vmatprep.subr.bf16.mxu0 0
      %1965 = vmatpush1.bf16.msra.mxu0 0
      %1966 = vmatprep.subr.bf16.mxu0 0
      %1967 = vmatpush1.bf16.msra.mxu0 0
      %1968 = vmatprep.subr.bf16.mxu0 0
      %1969 = vmatpush1.bf16.msra.mxu0 0
      %1970 = vmatprep.subr.bf16.mxu0 0
      %1971 = vmatpush1.bf16.msra.mxu0 0
      %1972 = vmatprep.subr.bf16.mxu0 0
      %1973 = vmatpush1.bf16.msra.mxu0 0
      %1974 = vmatprep.subr.bf16.mxu0 0
      %1975 = vmatpush1.bf16.msra.mxu0 0
      %1976 = vmatprep.subr.bf16.mxu0 0
      %1977 = vmatpush1.bf16.msra.mxu0 0
      %1978 = vmatprep.mubr.bf16.mxu0 0
      %1979 = vmatmul.mubr.bf16.gmra.mrb[0].mxu0 %v1878
      %v1980 = vpop.f32.mrb[0].mxu0
      %v1981 = vadd.f32 0.0, %v1980
      %v1982 = vpop.f32.mrb[0].mxu0
      %v1983 = vadd.f32 0.0, %v1982
      %v1984 = vpop.f32.mrb[0].mxu0
      %v1985 = vadd.f32 0.0, %v1984
      %v1986 = vpop.f32.mrb[0].mxu0
      %v1987 = vadd.f32 0.0, %v1986
      %1988 = vmatprep.mubr.bf16.mxu0 0
      %1989 = vmatmul.mubr.bf16.gmra.mrb[0].mxu0 %v1881
      %v1990 = vpop.f32.mrb[0].mxu0
      %v1991 = vadd.f32 0.0, %v1990
      %v1992 = vpop.f32.mrb[0].mxu0
      %v1993 = vadd.f32 0.0, %v1992
      %v1994 = vpop.f32.mrb[0].mxu0
      %v1995 = vpop.f32.mrb[0].mxu0
      %1996 = vdwg.mxu0
      %v1997 = vadd.f32 %v1833, %v1930
      %v1998 = vadd.f32 %v1834, %v1932
      %v1999 = vadd.f32 %v1835, %v1981
      %v2000 = vadd.f32 %v1836, %v1983
      %v2001 = vadd.f32 %v1837, %v1934
      %v2002 = vadd.f32 %v1838, %v1936
      %v2003 = vadd.f32 %v1839, %v1985
      %v2004 = vadd.f32 %v1840, %v1987
      %v2005 = vadd.f32 %v1841, %v1940
      %v2006 = vadd.f32 %v1842, %v1942
      %v2007 = vadd.f32 %v1843, %v1991
      %v2008 = vadd.f32 %v1844, %v1993
      %s2009 = scalar_lea.vmem %s6, 48
      %v2010 = vld [vmem:[%s2009] sm:$0xf]
      %v2011 = vld [vmem:[%s2009 + $0x4] sm:$0xf]
      %v2012 = vld [vmem:[%s2009 + $0x8] sm:$0xf]
      %v2013 = vpack.c.bf16 %v78, %v78
      %v2014 = vpack.c.bf16 %v79, %v79
      %v2015 = vpack.c.bf16 %v80, %v80
      %v2016 = vpack.c.bf16 %v81, %v81
      %v2020 = vunpack.c.l.b16 %v2010
      %v2021 = vunpack.c.l.b16 %v2011
      %v2022 = vunpack.c.l.b16 %v2012
      %v2023 = vpack.c.b16 %v2021, %v2020
      %v2024 = vpack.c.b16 %v2022, %v2022
      %v2026 = vsel %vm174, %v2023, 0
      %v2029 = vsel %vm174, %v2024, 0
      %v2032 = vsel %vm178, %v2013, 0
      %v2035 = vsel %vm178, %v2014, 0
      %v2038 = vsel %vm178, %v2015, 0
      %v2041 = vsel %vm178, %v2016, 0
      %2043 = vmatprep.subr.bf16.mxu0 %v2035
      %2044 = vmatpush1.bf16.msra.mxu0 %v2032
      %2045 = vmatprep.subr.bf16.mxu0 0
      %2046 = vmatpush1.bf16.msra.mxu0 0
      %2047 = vmatprep.subr.bf16.mxu0 0
      %2048 = vmatpush1.bf16.msra.mxu0 0
      %2049 = vmatprep.subr.bf16.mxu0 0
      %2050 = vmatpush1.bf16.msra.mxu0 0
      %2051 = vmatprep.subr.bf16.mxu0 0
      %2052 = vmatpush1.bf16.msra.mxu0 0
      %2053 = vmatprep.subr.bf16.mxu0 0
      %2054 = vmatpush1.bf16.msra.mxu0 0
      %2055 = vmatprep.subr.bf16.mxu0 0
      %2056 = vmatpush1.bf16.msra.mxu0 0
      %2057 = vmatprep.subr.bf16.mxu0 0
      %2058 = vmatpush1.bf16.msra.mxu0 0
      %2059 = vmatprep.subr.bf16.mxu0 0
      %2060 = vmatpush1.bf16.msra.mxu0 0
      %2061 = vmatprep.subr.bf16.mxu0 0
      %2062 = vmatpush1.bf16.msra.mxu0 0
      %2063 = vmatprep.subr.bf16.mxu0 0
      %2064 = vmatpush1.bf16.msra.mxu0 0
      %2065 = vmatprep.subr.bf16.mxu0 0
      %2066 = vmatpush1.bf16.msra.mxu0 0
      %2067 = vmatprep.subr.bf16.mxu0 0
      %2068 = vmatpush1.bf16.msra.mxu0 0
      %2069 = vmatprep.subr.bf16.mxu0 0
      %2070 = vmatpush1.bf16.msra.mxu0 0
      %2071 = vmatprep.subr.bf16.mxu0 0
      %2072 = vmatpush1.bf16.msra.mxu0 0
      %2073 = vmatprep.subr.bf16.mxu0 0
      %2074 = vmatpush1.bf16.msra.mxu0 0
      %2075 = vmatprep.mubr.bf16.mxu0 0
      %2076 = vmatmul.mubr.bf16.gmra.mrb[0].mxu0 %v2026
      %v2077 = vpop.f32.mrb[0].mxu0
      %v2078 = vadd.f32 0.0, %v2077
      %v2079 = vpop.f32.mrb[0].mxu0
      %v2080 = vadd.f32 0.0, %v2079
      %v2081 = vpop.f32.mrb[0].mxu0
      %v2082 = vadd.f32 0.0, %v2081
      %v2083 = vpop.f32.mrb[0].mxu0
      %v2084 = vadd.f32 0.0, %v2083
      %2085 = vmatprep.mubr.bf16.mxu0 0
      %2086 = vmatmul.mubr.bf16.gmra.mrb[0].mxu0 %v2029
      %v2087 = vpop.f32.mrb[0].mxu0
      %v2088 = vadd.f32 0.0, %v2087
      %v2089 = vpop.f32.mrb[0].mxu0
      %v2090 = vadd.f32 0.0, %v2089
      %v2091 = vpop.f32.mrb[0].mxu0
      %v2092 = vpop.f32.mrb[0].mxu0
      %2093 = vdwg.mxu0
      %2094 = vmatprep.subr.bf16.mxu0 %v2041
      %2095 = vmatpush1.bf16.msra.mxu0 %v2038
      %2096 = vmatprep.subr.bf16.mxu0 0
      %2097 = vmatpush1.bf16.msra.mxu0 0
      %2098 = vmatprep.subr.bf16.mxu0 0
      %2099 = vmatpush1.bf16.msra.mxu0 0
      %2100 = vmatprep.subr.bf16.mxu0 0
      %2101 = vmatpush1.bf16.msra.mxu0 0
      %2102 = vmatprep.subr.bf16.mxu0 0
      %2103 = vmatpush1.bf16.msra.mxu0 0
      %2104 = vmatprep.subr.bf16.mxu0 0
      %2105 = vmatpush1.bf16.msra.mxu0 0
      %2106 = vmatprep.subr.bf16.mxu0 0
      %2107 = vmatpush1.bf16.msra.mxu0 0
      %2108 = vmatprep.subr.bf16.mxu0 0
      %2109 = vmatpush1.bf16.msra.mxu0 0
      %2110 = vmatprep.subr.bf16.mxu0 0
      %2111 = vmatpush1.bf16.msra.mxu0 0
      %2112 = vmatprep.subr.bf16.mxu0 0
      %2113 = vmatpush1.bf16.msra.mxu0 0
      %2114 = vmatprep.subr.bf16.mxu0 0
      %2115 = vmatpush1.bf16.msra.mxu0 0
      %2116 = vmatprep.subr.bf16.mxu0 0
      %2117 = vmatpush1.bf16.msra.mxu0 0
      %2118 = vmatprep.subr.bf16.mxu0 0
      %2119 = vmatpush1.bf16.msra.mxu0 0
      %2120 = vmatprep.subr.bf16.mxu0 0
      %2121 = vmatpush1.bf16.msra.mxu0 0
      %2122 = vmatprep.subr.bf16.mxu0 0
      %2123 = vmatpush1.bf16.msra.mxu0 0
      %2124 = vmatprep.subr.bf16.mxu0 0
      %2125 = vmatpush1.bf16.msra.mxu0 0
      %2126 = vmatprep.mubr.bf16.mxu0 0
      %2127 = vmatmul.mubr.bf16.gmra.mrb[0].mxu0 %v2026
      %v2128 = vpop.f32.mrb[0].mxu0
      %v2129 = vadd.f32 0.0, %v2128
      %v2130 = vpop.f32.mrb[0].mxu0
      %v2131 = vadd.f32 0.0, %v2130
      %v2132 = vpop.f32.mrb[0].mxu0
      %v2133 = vadd.f32 0.0, %v2132
      %v2134 = vpop.f32.mrb[0].mxu0
      %v2135 = vadd.f32 0.0, %v2134
      %2136 = vmatprep.mubr.bf16.mxu0 0
      %2137 = vmatmul.mubr.bf16.gmra.mrb[0].mxu0 %v2029
      %v2138 = vpop.f32.mrb[0].mxu0
      %v2139 = vadd.f32 0.0, %v2138
      %v2140 = vpop.f32.mrb[0].mxu0
      %v2141 = vadd.f32 0.0, %v2140
      %v2142 = vpop.f32.mrb[0].mxu0
      %v2143 = vpop.f32.mrb[0].mxu0
      %2144 = vdwg.mxu0
      %v2145 = vadd.f32 %v1997, %v2078
      %v2146 = vadd.f32 %v1998, %v2080
      %v2147 = vadd.f32 %v1999, %v2129
      %v2148 = vadd.f32 %v2000, %v2131
      %v2149 = vadd.f32 %v2001, %v2082
      %v2150 = vadd.f32 %v2002, %v2084
      %v2151 = vadd.f32 %v2003, %v2133
      %v2152 = vadd.f32 %v2004, %v2135
      %v2153 = vadd.f32 %v2005, %v2088
      %v2154 = vadd.f32 %v2006, %v2090
      %v2155 = vadd.f32 %v2007, %v2139
      %v2156 = vadd.f32 %v2008, %v2141
      %2157 = vrot.lane.b32.xlu0 %v78, 127
      %v2158 = vpop.permute.xlu0 %2157
      %2159 = vrot.lane.b32.xlu0 %v79, 127
      %v2160 = vpop.permute.xlu0 %2159
      %2161 = vrot.lane.b32.xlu0 %v80, 127
      %v2162 = vpop.permute.xlu0 %2161
      %2163 = vrot.lane.b32.xlu0 %v81, 127
      %v2164 = vpop.permute.xlu0 %2163
      %v2165 = vsel %vm779, %v2162, %v2164
      %v2166 = vsel %vm779, %v2160, %v2162
      %v2167 = vsel %vm779, %v2158, %v2160
      %v2168 = vsel %vm779, %v2164, %v2158
      %v2169 = vmul.f32 %v2167, %v790
      %v2170 = vmul.f32 %v2166, %v794
      %v2171 = vmul.f32 %v2165, %v798
      %v2172 = vmul.f32 %v2168, %v802
      %s2173 = scalar_lea.vmem %s6, 60
      %v2174 = vld [vmem:[%s2173] sm:$0xf]
      %v2175 = vld [vmem:[%s2173 + $0x4] sm:$0xf]
      %v2176 = vld [vmem:[%s2173 + $0x8] sm:$0xf]
      %v2177 = vpack.c.bf16 %v2169, %v2169
      %v2178 = vpack.c.bf16 %v2170, %v2170
      %v2179 = vpack.c.bf16 %v2171, %v2171
      %v2180 = vpack.c.bf16 %v2172, %v2172
      %v2184 = vunpack.c.l.b16 %v2174
      %v2185 = vunpack.c.l.b16 %v2175
      %v2186 = vunpack.c.l.b16 %v2176
      %v2187 = vpack.c.b16 %v2185, %v2184
      %v2188 = vpack.c.b16 %v2186, %v2186
      %v2190 = vsel %vm174, %v2187, 0
      %v2193 = vsel %vm174, %v2188, 0
      %v2196 = vsel %vm178, %v2177, 0
      %v2199 = vsel %vm178, %v2178, 0
      %v2202 = vsel %vm178, %v2179, 0
      %v2205 = vsel %vm178, %v2180, 0
      %2207 = vmatprep.subr.bf16.mxu0 %v2199
      %2208 = vmatpush1.bf16.msra.mxu0 %v2196
      %2209 = vmatprep.subr.bf16.mxu0 0
      %2210 = vmatpush1.bf16.msra.mxu0 0
      %2211 = vmatprep.subr.bf16.mxu0 0
      %2212 = vmatpush1.bf16.msra.mxu0 0
      %2213 = vmatprep.subr.bf16.mxu0 0
      %2214 = vmatpush1.bf16.msra.mxu0 0
      %2215 = vmatprep.subr.bf16.mxu0 0
      %2216 = vmatpush1.bf16.msra.mxu0 0
      %2217 = vmatprep.subr.bf16.mxu0 0
      %2218 = vmatpush1.bf16.msra.mxu0 0
      %2219 = vmatprep.subr.bf16.mxu0 0
      %2220 = vmatpush1.bf16.msra.mxu0 0
      %2221 = vmatprep.subr.bf16.mxu0 0
      %2222 = vmatpush1.bf16.msra.mxu0 0
      %2223 = vmatprep.subr.bf16.mxu0 0
      %2224 = vmatpush1.bf16.msra.mxu0 0
      %2225 = vmatprep.subr.bf16.mxu0 0
      %2226 = vmatpush1.bf16.msra.mxu0 0
      %2227 = vmatprep.subr.bf16.mxu0 0
      %2228 = vmatpush1.bf16.msra.mxu0 0
      %2229 = vmatprep.subr.bf16.mxu0 0
      %2230 = vmatpush1.bf16.msra.mxu0 0
      %2231 = vmatprep.subr.bf16.mxu0 0
      %2232 = vmatpush1.bf16.msra.mxu0 0
      %2233 = vmatprep.subr.bf16.mxu0 0
      %2234 = vmatpush1.bf16.msra.mxu0 0
      %2235 = vmatprep.subr.bf16.mxu0 0
      %2236 = vmatpush1.bf16.msra.mxu0 0
      %2237 = vmatprep.subr.bf16.mxu0 0
      %2238 = vmatpush1.bf16.msra.mxu0 0
      %2239 = vmatprep.mubr.bf16.mxu0 0
      %2240 = vmatmul.mubr.bf16.gmra.mrb[0].mxu0 %v2190
      %v2241 = vpop.f32.mrb[0].mxu0
      %v2242 = vadd.f32 0.0, %v2241
      %v2243 = vpop.f32.mrb[0].mxu0
      %v2244 = vadd.f32 0.0, %v2243
      %v2245 = vpop.f32.mrb[0].mxu0
      %v2246 = vadd.f32 0.0, %v2245
      %v2247 = vpop.f32.mrb[0].mxu0
      %v2248 = vadd.f32 0.0, %v2247
      %2249 = vmatprep.mubr.bf16.mxu0 0
      %2250 = vmatmul.mubr.bf16.gmra.mrb[0].mxu0 %v2193
      %v2251 = vpop.f32.mrb[0].mxu0
      %v2252 = vadd.f32 0.0, %v2251
      %v2253 = vpop.f32.mrb[0].mxu0
      %v2254 = vadd.f32 0.0, %v2253
      %v2255 = vpop.f32.mrb[0].mxu0
      %v2256 = vpop.f32.mrb[0].mxu0
      %2257 = vdwg.mxu0
      %2258 = vmatprep.subr.bf16.mxu0 %v2205
      %2259 = vmatpush1.bf16.msra.mxu0 %v2202
      %2260 = vmatprep.subr.bf16.mxu0 0
      %2261 = vmatpush1.bf16.msra.mxu0 0
      %2262 = vmatprep.subr.bf16.mxu0 0
      %2263 = vmatpush1.bf16.msra.mxu0 0
      %2264 = vmatprep.subr.bf16.mxu0 0
      %2265 = vmatpush1.bf16.msra.mxu0 0
      %2266 = vmatprep.subr.bf16.mxu0 0
      %2267 = vmatpush1.bf16.msra.mxu0 0
      %2268 = vmatprep.subr.bf16.mxu0 0
      %2269 = vmatpush1.bf16.msra.mxu0 0
      %2270 = vmatprep.subr.bf16.mxu0 0
      %2271 = vmatpush1.bf16.msra.mxu0 0
      %2272 = vmatprep.subr.bf16.mxu0 0
      %2273 = vmatpush1.bf16.msra.mxu0 0
      %2274 = vmatprep.subr.bf16.mxu0 0
      %2275 = vmatpush1.bf16.msra.mxu0 0
      %2276 = vmatprep.subr.bf16.mxu0 0
      %2277 = vmatpush1.bf16.msra.mxu0 0
      %2278 = vmatprep.subr.bf16.mxu0 0
      %2279 = vmatpush1.bf16.msra.mxu0 0
      %2280 = vmatprep.subr.bf16.mxu0 0
      %2281 = vmatpush1.bf16.msra.mxu0 0
      %2282 = vmatprep.subr.bf16.mxu0 0
      %2283 = vmatpush1.bf16.msra.mxu0 0
      %2284 = vmatprep.subr.bf16.mxu0 0
      %2285 = vmatpush1.bf16.msra.mxu0 0
      %2286 = vmatprep.subr.bf16.mxu0 0
      %2287 = vmatpush1.bf16.msra.mxu0 0
      %2288 = vmatprep.subr.bf16.mxu0 0
      %2289 = vmatpush1.bf16.msra.mxu0 0
      %2290 = vmatprep.mubr.bf16.mxu0 0
      %2291 = vmatmul.mubr.bf16.gmra.mrb[0].mxu0 %v2190
      %v2292 = vpop.f32.mrb[0].mxu0
      %v2293 = vadd.f32 0.0, %v2292
      %v2294 = vpop.f32.mrb[0].mxu0
      %v2295 = vadd.f32 0.0, %v2294
      %v2296 = vpop.f32.mrb[0].mxu0
      %v2297 = vadd.f32 0.0, %v2296
      %v2298 = vpop.f32.mrb[0].mxu0
      %v2299 = vadd.f32 0.0, %v2298
      %2300 = vmatprep.mubr.bf16.mxu0 0
      %2301 = vmatmul.mubr.bf16.gmra.mrb[0].mxu0 %v2193
      %v2302 = vpop.f32.mrb[0].mxu0
      %v2303 = vadd.f32 0.0, %v2302
      %v2304 = vpop.f32.mrb[0].mxu0
      %v2305 = vadd.f32 0.0, %v2304
      %v2306 = vpop.f32.mrb[0].mxu0
      %v2307 = vpop.f32.mrb[0].mxu0
      %2308 = vdwg.mxu0
      %v2309 = vadd.f32 %v2145, %v2242
      %v2310 = vadd.f32 %v2146, %v2244
      %v2311 = vadd.f32 %v2147, %v2293
      %v2312 = vadd.f32 %v2148, %v2295
      %v2313 = vadd.f32 %v2149, %v2246
      %v2314 = vadd.f32 %v2150, %v2248
      %v2315 = vadd.f32 %v2151, %v2297
      %v2316 = vadd.f32 %v2152, %v2299
      %v2317 = vadd.f32 %v2153, %v2252
      %v2318 = vadd.f32 %v2154, %v2254
      %v2319 = vadd.f32 %v2155, %v2303
      %v2320 = vadd.f32 %v2156, %v2305
      %2321 = vrot.lane.b32.xlu0 %v78, 113
      %v2322 = vpop.permute.xlu0 %2321
      %2323 = vrot.lane.b32.xlu0 %v79, 113
      %v2324 = vpop.permute.xlu0 %2323
      %2325 = vrot.lane.b32.xlu0 %v80, 113
      %v2326 = vpop.permute.xlu0 %2325
      %2327 = vrot.lane.b32.xlu0 %v81, 113
      %v2328 = vpop.permute.xlu0 %2327
      %v2329 = vsel %vm926, %v2326, %v2328
      %v2330 = vsel %vm926, %v2324, %v2326
      %v2331 = vsel %vm926, %v2322, %v2324
      %v2332 = vsel %vm926, %v2328, %v2322
      %v2333 = vmul.f32 %v2331, %v937
      %v2334 = vmul.f32 %v2330, %v941
      %v2335 = vmul.f32 %v2329, %v945
      %v2336 = vmul.f32 %v2332, %v949
      %s2337 = scalar_lea.vmem %s6, 72
      %v2338 = vld [vmem:[%s2337] sm:$0xf]
      %v2339 = vld [vmem:[%s2337 + $0x4] sm:$0xf]
      %v2340 = vld [vmem:[%s2337 + $0x8] sm:$0xf]
      %v2341 = vpack.c.bf16 %v2333, %v2333
      %v2342 = vpack.c.bf16 %v2334, %v2334
      %v2343 = vpack.c.bf16 %v2335, %v2335
      %v2344 = vpack.c.bf16 %v2336, %v2336
      %v2348 = vunpack.c.l.b16 %v2338
      %v2349 = vunpack.c.l.b16 %v2339
      %v2350 = vunpack.c.l.b16 %v2340
      %v2351 = vpack.c.b16 %v2349, %v2348
      %v2352 = vpack.c.b16 %v2350, %v2350
      %v2354 = vsel %vm174, %v2351, 0
      %v2357 = vsel %vm174, %v2352, 0
      %v2360 = vsel %vm178, %v2341, 0
      %v2363 = vsel %vm178, %v2342, 0
      %v2366 = vsel %vm178, %v2343, 0
      %v2369 = vsel %vm178, %v2344, 0
      %2371 = vmatprep.subr.bf16.mxu0 %v2363
      %2372 = vmatpush1.bf16.msra.mxu0 %v2360
      %2373 = vmatprep.subr.bf16.mxu0 0
      %2374 = vmatpush1.bf16.msra.mxu0 0
      %2375 = vmatprep.subr.bf16.mxu0 0
      %2376 = vmatpush1.bf16.msra.mxu0 0
      %2377 = vmatprep.subr.bf16.mxu0 0
      %2378 = vmatpush1.bf16.msra.mxu0 0
      %2379 = vmatprep.subr.bf16.mxu0 0
      %2380 = vmatpush1.bf16.msra.mxu0 0
      %2381 = vmatprep.subr.bf16.mxu0 0
      %2382 = vmatpush1.bf16.msra.mxu0 0
      %2383 = vmatprep.subr.bf16.mxu0 0
      %2384 = vmatpush1.bf16.msra.mxu0 0
      %2385 = vmatprep.subr.bf16.mxu0 0
      %2386 = vmatpush1.bf16.msra.mxu0 0
      %2387 = vmatprep.subr.bf16.mxu0 0
      %2388 = vmatpush1.bf16.msra.mxu0 0
      %2389 = vmatprep.subr.bf16.mxu0 0
      %2390 = vmatpush1.bf16.msra.mxu0 0
      %2391 = vmatprep.subr.bf16.mxu0 0
      %2392 = vmatpush1.bf16.msra.mxu0 0
      %2393 = vmatprep.subr.bf16.mxu0 0
      %2394 = vmatpush1.bf16.msra.mxu0 0
      %2395 = vmatprep.subr.bf16.mxu0 0
      %2396 = vmatpush1.bf16.msra.mxu0 0
      %2397 = vmatprep.subr.bf16.mxu0 0
      %2398 = vmatpush1.bf16.msra.mxu0 0
      %2399 = vmatprep.subr.bf16.mxu0 0
      %2400 = vmatpush1.bf16.msra.mxu0 0
      %2401 = vmatprep.subr.bf16.mxu0 0
      %2402 = vmatpush1.bf16.msra.mxu0 0
      %2403 = vmatprep.mubr.bf16.mxu0 0
      %2404 = vmatmul.mubr.bf16.gmra.mrb[0].mxu0 %v2354
      %v2405 = vpop.f32.mrb[0].mxu0
      %v2406 = vadd.f32 0.0, %v2405
      %v2407 = vpop.f32.mrb[0].mxu0
      %v2408 = vadd.f32 0.0, %v2407
      %v2409 = vpop.f32.mrb[0].mxu0
      %v2410 = vadd.f32 0.0, %v2409
      %v2411 = vpop.f32.mrb[0].mxu0
      %v2412 = vadd.f32 0.0, %v2411
      %2413 = vmatprep.mubr.bf16.mxu0 0
      %2414 = vmatmul.mubr.bf16.gmra.mrb[0].mxu0 %v2357
      %v2415 = vpop.f32.mrb[0].mxu0
      %v2416 = vadd.f32 0.0, %v2415
      %v2417 = vpop.f32.mrb[0].mxu0
      %v2418 = vadd.f32 0.0, %v2417
      %v2419 = vpop.f32.mrb[0].mxu0
      %v2420 = vpop.f32.mrb[0].mxu0
      %2421 = vdwg.mxu0
      %2422 = vmatprep.subr.bf16.mxu0 %v2369
      %2423 = vmatpush1.bf16.msra.mxu0 %v2366
      %2424 = vmatprep.subr.bf16.mxu0 0
      %2425 = vmatpush1.bf16.msra.mxu0 0
      %2426 = vmatprep.subr.bf16.mxu0 0
      %2427 = vmatpush1.bf16.msra.mxu0 0
      %2428 = vmatprep.subr.bf16.mxu0 0
      %2429 = vmatpush1.bf16.msra.mxu0 0
      %2430 = vmatprep.subr.bf16.mxu0 0
      %2431 = vmatpush1.bf16.msra.mxu0 0
      %2432 = vmatprep.subr.bf16.mxu0 0
      %2433 = vmatpush1.bf16.msra.mxu0 0
      %2434 = vmatprep.subr.bf16.mxu0 0
      %2435 = vmatpush1.bf16.msra.mxu0 0
      %2436 = vmatprep.subr.bf16.mxu0 0
      %2437 = vmatpush1.bf16.msra.mxu0 0
      %2438 = vmatprep.subr.bf16.mxu0 0
      %2439 = vmatpush1.bf16.msra.mxu0 0
      %2440 = vmatprep.subr.bf16.mxu0 0
      %2441 = vmatpush1.bf16.msra.mxu0 0
      %2442 = vmatprep.subr.bf16.mxu0 0
      %2443 = vmatpush1.bf16.msra.mxu0 0
      %2444 = vmatprep.subr.bf16.mxu0 0
      %2445 = vmatpush1.bf16.msra.mxu0 0
      %2446 = vmatprep.subr.bf16.mxu0 0
      %2447 = vmatpush1.bf16.msra.mxu0 0
      %2448 = vmatprep.subr.bf16.mxu0 0
      %2449 = vmatpush1.bf16.msra.mxu0 0
      %2450 = vmatprep.subr.bf16.mxu0 0
      %2451 = vmatpush1.bf16.msra.mxu0 0
      %2452 = vmatprep.subr.bf16.mxu0 0
      %2453 = vmatpush1.bf16.msra.mxu0 0
      %2454 = vmatprep.mubr.bf16.mxu0 0
      %2455 = vmatmul.mubr.bf16.gmra.mrb[0].mxu0 %v2354
      %v2456 = vpop.f32.mrb[0].mxu0
      %v2457 = vadd.f32 0.0, %v2456
      %v2458 = vpop.f32.mrb[0].mxu0
      %v2459 = vadd.f32 0.0, %v2458
      %v2460 = vpop.f32.mrb[0].mxu0
      %v2461 = vadd.f32 0.0, %v2460
      %v2462 = vpop.f32.mrb[0].mxu0
      %v2463 = vadd.f32 0.0, %v2462
      %2464 = vmatprep.mubr.bf16.mxu0 0
      %2465 = vmatmul.mubr.bf16.gmra.mrb[0].mxu0 %v2357
      %v2466 = vpop.f32.mrb[0].mxu0
      %v2467 = vadd.f32 0.0, %v2466
      %v2468 = vpop.f32.mrb[0].mxu0
      %v2469 = vadd.f32 0.0, %v2468
      %v2470 = vpop.f32.mrb[0].mxu0
      %v2471 = vpop.f32.mrb[0].mxu0
      %2472 = vdwg.mxu0
      %v2473 = vadd.f32 %v2309, %v2406
      %v2474 = vadd.f32 %v2310, %v2408
      %v2475 = vadd.f32 %v2311, %v2457
      %v2476 = vadd.f32 %v2312, %v2459
      %v2477 = vadd.f32 %v2313, %v2410
      %v2478 = vadd.f32 %v2314, %v2412
      %v2479 = vadd.f32 %v2315, %v2461
      %v2480 = vadd.f32 %v2316, %v2463
      %v2481 = vadd.f32 %v2317, %v2416
      %v2482 = vadd.f32 %v2318, %v2418
      %v2483 = vadd.f32 %v2319, %v2467
      %v2484 = vadd.f32 %v2320, %v2469
      %2485 = vrot.lane.b32.xlu0 %v78, 112
      %v2486 = vpop.permute.xlu0 %2485
      %2487 = vrot.lane.b32.xlu0 %v79, 112
      %v2488 = vpop.permute.xlu0 %2487
      %2489 = vrot.lane.b32.xlu0 %v80, 112
      %v2490 = vpop.permute.xlu0 %2489
      %2491 = vrot.lane.b32.xlu0 %v81, 112
      %v2492 = vpop.permute.xlu0 %2491
      %v2493 = vsel %vm1073, %v2490, %v2492
      %v2494 = vsel %vm1073, %v2488, %v2490
      %v2495 = vsel %vm1073, %v2486, %v2488
      %v2496 = vsel %vm1073, %v2492, %v2486
      %v2497 = vmul.f32 %v2495, %v1084
      %v2498 = vmul.f32 %v2494, %v1088
      %v2499 = vmul.f32 %v2493, %v1092
      %v2500 = vmul.f32 %v2496, %v1096
      %s2501 = scalar_lea.vmem %s6, 84
      %v2502 = vld [vmem:[%s2501] sm:$0xf]
      %v2503 = vld [vmem:[%s2501 + $0x4] sm:$0xf]
      %v2504 = vld [vmem:[%s2501 + $0x8] sm:$0xf]
      %v2505 = vpack.c.bf16 %v2497, %v2497
      %v2506 = vpack.c.bf16 %v2498, %v2498
      %v2507 = vpack.c.bf16 %v2499, %v2499
      %v2508 = vpack.c.bf16 %v2500, %v2500
      %v2512 = vunpack.c.l.b16 %v2502
      %v2513 = vunpack.c.l.b16 %v2503
      %v2514 = vunpack.c.l.b16 %v2504
      %v2515 = vpack.c.b16 %v2513, %v2512
      %v2516 = vpack.c.b16 %v2514, %v2514
      %v2518 = vsel %vm174, %v2515, 0
      %v2521 = vsel %vm174, %v2516, 0
      %v2524 = vsel %vm178, %v2505, 0
      %v2527 = vsel %vm178, %v2506, 0
      %v2530 = vsel %vm178, %v2507, 0
      %v2533 = vsel %vm178, %v2508, 0
      %2535 = vmatprep.subr.bf16.mxu0 %v2527
      %2536 = vmatpush1.bf16.msra.mxu0 %v2524
      %2537 = vmatprep.subr.bf16.mxu0 0
      %2538 = vmatpush1.bf16.msra.mxu0 0
      %2539 = vmatprep.subr.bf16.mxu0 0
      %2540 = vmatpush1.bf16.msra.mxu0 0
      %2541 = vmatprep.subr.bf16.mxu0 0
      %2542 = vmatpush1.bf16.msra.mxu0 0
      %2543 = vmatprep.subr.bf16.mxu0 0
      %2544 = vmatpush1.bf16.msra.mxu0 0
      %2545 = vmatprep.subr.bf16.mxu0 0
      %2546 = vmatpush1.bf16.msra.mxu0 0
      %2547 = vmatprep.subr.bf16.mxu0 0
      %2548 = vmatpush1.bf16.msra.mxu0 0
      %2549 = vmatprep.subr.bf16.mxu0 0
      %2550 = vmatpush1.bf16.msra.mxu0 0
      %2551 = vmatprep.subr.bf16.mxu0 0
      %2552 = vmatpush1.bf16.msra.mxu0 0
      %2553 = vmatprep.subr.bf16.mxu0 0
      %2554 = vmatpush1.bf16.msra.mxu0 0
      %2555 = vmatprep.subr.bf16.mxu0 0
      %2556 = vmatpush1.bf16.msra.mxu0 0
      %2557 = vmatprep.subr.bf16.mxu0 0
      %2558 = vmatpush1.bf16.msra.mxu0 0
      %2559 = vmatprep.subr.bf16.mxu0 0
      %2560 = vmatpush1.bf16.msra.mxu0 0
      %2561 = vmatprep.subr.bf16.mxu0 0
      %2562 = vmatpush1.bf16.msra.mxu0 0
      %2563 = vmatprep.subr.bf16.mxu0 0
      %2564 = vmatpush1.bf16.msra.mxu0 0
      %2565 = vmatprep.subr.bf16.mxu0 0
      %2566 = vmatpush1.bf16.msra.mxu0 0
      %2567 = vmatprep.mubr.bf16.mxu0 0
      %2568 = vmatmul.mubr.bf16.gmra.mrb[0].mxu0 %v2518
      %v2569 = vpop.f32.mrb[0].mxu0
      %v2570 = vadd.f32 0.0, %v2569
      %v2571 = vpop.f32.mrb[0].mxu0
      %v2572 = vadd.f32 0.0, %v2571
      %v2573 = vpop.f32.mrb[0].mxu0
      %v2574 = vadd.f32 0.0, %v2573
      %v2575 = vpop.f32.mrb[0].mxu0
      %v2576 = vadd.f32 0.0, %v2575
      %2577 = vmatprep.mubr.bf16.mxu0 0
      %2578 = vmatmul.mubr.bf16.gmra.mrb[0].mxu0 %v2521
      %v2579 = vpop.f32.mrb[0].mxu0
      %v2580 = vadd.f32 0.0, %v2579
      %v2581 = vpop.f32.mrb[0].mxu0
      %v2582 = vadd.f32 0.0, %v2581
      %v2583 = vpop.f32.mrb[0].mxu0
      %v2584 = vpop.f32.mrb[0].mxu0
      %2585 = vdwg.mxu0
      %2586 = vmatprep.subr.bf16.mxu0 %v2533
      %2587 = vmatpush1.bf16.msra.mxu0 %v2530
      %2588 = vmatprep.subr.bf16.mxu0 0
      %2589 = vmatpush1.bf16.msra.mxu0 0
      %2590 = vmatprep.subr.bf16.mxu0 0
      %2591 = vmatpush1.bf16.msra.mxu0 0
      %2592 = vmatprep.subr.bf16.mxu0 0
      %2593 = vmatpush1.bf16.msra.mxu0 0
      %2594 = vmatprep.subr.bf16.mxu0 0
      %2595 = vmatpush1.bf16.msra.mxu0 0
      %2596 = vmatprep.subr.bf16.mxu0 0
      %2597 = vmatpush1.bf16.msra.mxu0 0
      %2598 = vmatprep.subr.bf16.mxu0 0
      %2599 = vmatpush1.bf16.msra.mxu0 0
      %2600 = vmatprep.subr.bf16.mxu0 0
      %2601 = vmatpush1.bf16.msra.mxu0 0
      %2602 = vmatprep.subr.bf16.mxu0 0
      %2603 = vmatpush1.bf16.msra.mxu0 0
      %2604 = vmatprep.subr.bf16.mxu0 0
      %2605 = vmatpush1.bf16.msra.mxu0 0
      %2606 = vmatprep.subr.bf16.mxu0 0
      %2607 = vmatpush1.bf16.msra.mxu0 0
      %2608 = vmatprep.subr.bf16.mxu0 0
      %2609 = vmatpush1.bf16.msra.mxu0 0
      %2610 = vmatprep.subr.bf16.mxu0 0
      %2611 = vmatpush1.bf16.msra.mxu0 0
      %2612 = vmatprep.subr.bf16.mxu0 0
      %2613 = vmatpush1.bf16.msra.mxu0 0
      %2614 = vmatprep.subr.bf16.mxu0 0
      %2615 = vmatpush1.bf16.msra.mxu0 0
      %2616 = vmatprep.subr.bf16.mxu0 0
      %2617 = vmatpush1.bf16.msra.mxu0 0
      %2618 = vmatprep.mubr.bf16.mxu0 0
      %2619 = vmatmul.mubr.bf16.gmra.mrb[0].mxu0 %v2518
      %v2620 = vpop.f32.mrb[0].mxu0
      %v2621 = vadd.f32 0.0, %v2620
      %v2622 = vpop.f32.mrb[0].mxu0
      %v2623 = vadd.f32 0.0, %v2622
      %v2624 = vpop.f32.mrb[0].mxu0
      %v2625 = vadd.f32 0.0, %v2624
      %v2626 = vpop.f32.mrb[0].mxu0
      %v2627 = vadd.f32 0.0, %v2626
      %2628 = vmatprep.mubr.bf16.mxu0 0
      %2629 = vmatmul.mubr.bf16.gmra.mrb[0].mxu0 %v2521
      %v2630 = vpop.f32.mrb[0].mxu0
      %v2631 = vadd.f32 0.0, %v2630
      %v2632 = vpop.f32.mrb[0].mxu0
      %v2633 = vadd.f32 0.0, %v2632
      %v2634 = vpop.f32.mrb[0].mxu0
      %v2635 = vpop.f32.mrb[0].mxu0
      %2636 = vdwg.mxu0
      %v2637 = vadd.f32 %v2473, %v2570
      %v2638 = vadd.f32 %v2474, %v2572
      %v2639 = vadd.f32 %v2475, %v2621
      %v2640 = vadd.f32 %v2476, %v2623
      %v2641 = vadd.f32 %v2477, %v2574
      %v2642 = vadd.f32 %v2478, %v2576
      %v2643 = vadd.f32 %v2479, %v2625
      %v2644 = vadd.f32 %v2480, %v2627
      %v2645 = vadd.f32 %v2481, %v2580
      %v2646 = vadd.f32 %v2482, %v2582
      %v2647 = vadd.f32 %v2483, %v2631
      %v2648 = vadd.f32 %v2484, %v2633
      %2649 = vrot.lane.b32.xlu0 %v78, 111
      %v2650 = vpop.permute.xlu0 %2649
      %2651 = vrot.lane.b32.xlu0 %v79, 111
      %v2652 = vpop.permute.xlu0 %2651
      %2653 = vrot.lane.b32.xlu0 %v80, 111
      %v2654 = vpop.permute.xlu0 %2653
      %2655 = vrot.lane.b32.xlu0 %v81, 111
      %v2656 = vpop.permute.xlu0 %2655
      %v2657 = vsel %vm1220, %v2654, %v2656
      %v2658 = vsel %vm1220, %v2652, %v2654
      %v2659 = vsel %vm1220, %v2650, %v2652
      %v2660 = vsel %vm1220, %v2656, %v2650
      %v2661 = vmul.f32 %v2659, %v1231
      %v2662 = vmul.f32 %v2658, %v1235
      %v2663 = vmul.f32 %v2657, %v1239
      %v2664 = vmul.f32 %v2660, %v1243
      %s2665 = scalar_lea.vmem %s6, 96
      %v2666 = vld [vmem:[%s2665] sm:$0xf]
      %v2667 = vld [vmem:[%s2665 + $0x4] sm:$0xf]
      %v2668 = vld [vmem:[%s2665 + $0x8] sm:$0xf]
      %v2669 = vpack.c.bf16 %v2661, %v2661
      %v2670 = vpack.c.bf16 %v2662, %v2662
      %v2671 = vpack.c.bf16 %v2663, %v2663
      %v2672 = vpack.c.bf16 %v2664, %v2664
      %v2676 = vunpack.c.l.b16 %v2666
      %v2677 = vunpack.c.l.b16 %v2667
      %v2678 = vunpack.c.l.b16 %v2668
      %v2679 = vpack.c.b16 %v2677, %v2676
      %v2680 = vpack.c.b16 %v2678, %v2678
      %v2682 = vsel %vm174, %v2679, 0
      %v2685 = vsel %vm174, %v2680, 0
      %v2688 = vsel %vm178, %v2669, 0
      %v2691 = vsel %vm178, %v2670, 0
      %v2694 = vsel %vm178, %v2671, 0
      %v2697 = vsel %vm178, %v2672, 0
      %2699 = vmatprep.subr.bf16.mxu0 %v2691
      %2700 = vmatpush1.bf16.msra.mxu0 %v2688
      %2701 = vmatprep.subr.bf16.mxu0 0
      %2702 = vmatpush1.bf16.msra.mxu0 0
      %2703 = vmatprep.subr.bf16.mxu0 0
      %2704 = vmatpush1.bf16.msra.mxu0 0
      %2705 = vmatprep.subr.bf16.mxu0 0
      %2706 = vmatpush1.bf16.msra.mxu0 0
      %2707 = vmatprep.subr.bf16.mxu0 0
      %2708 = vmatpush1.bf16.msra.mxu0 0
      %2709 = vmatprep.subr.bf16.mxu0 0
      %2710 = vmatpush1.bf16.msra.mxu0 0
      %2711 = vmatprep.subr.bf16.mxu0 0
      %2712 = vmatpush1.bf16.msra.mxu0 0
      %2713 = vmatprep.subr.bf16.mxu0 0
      %2714 = vmatpush1.bf16.msra.mxu0 0
      %2715 = vmatprep.subr.bf16.mxu0 0
      %2716 = vmatpush1.bf16.msra.mxu0 0
      %2717 = vmatprep.subr.bf16.mxu0 0
      %2718 = vmatpush1.bf16.msra.mxu0 0
      %2719 = vmatprep.subr.bf16.mxu0 0
      %2720 = vmatpush1.bf16.msra.mxu0 0
      %2721 = vmatprep.subr.bf16.mxu0 0
      %2722 = vmatpush1.bf16.msra.mxu0 0
      %2723 = vmatprep.subr.bf16.mxu0 0
      %2724 = vmatpush1.bf16.msra.mxu0 0
      %2725 = vmatprep.subr.bf16.mxu0 0
      %2726 = vmatpush1.bf16.msra.mxu0 0
      %2727 = vmatprep.subr.bf16.mxu0 0
      %2728 = vmatpush1.bf16.msra.mxu0 0
      %2729 = vmatprep.subr.bf16.mxu0 0
      %2730 = vmatpush1.bf16.msra.mxu0 0
      %2731 = vmatprep.mubr.bf16.mxu0 0
      %2732 = vmatmul.mubr.bf16.gmra.mrb[0].mxu0 %v2682
      %v2733 = vpop.f32.mrb[0].mxu0
      %v2734 = vadd.f32 0.0, %v2733
      %v2735 = vpop.f32.mrb[0].mxu0
      %v2736 = vadd.f32 0.0, %v2735
      %v2737 = vpop.f32.mrb[0].mxu0
      %v2738 = vadd.f32 0.0, %v2737
      %v2739 = vpop.f32.mrb[0].mxu0
      %v2740 = vadd.f32 0.0, %v2739
      %2741 = vmatprep.mubr.bf16.mxu0 0
      %2742 = vmatmul.mubr.bf16.gmra.mrb[0].mxu0 %v2685
      %v2743 = vpop.f32.mrb[0].mxu0
      %v2744 = vadd.f32 0.0, %v2743
      %v2745 = vpop.f32.mrb[0].mxu0
      %v2746 = vadd.f32 0.0, %v2745
      %v2747 = vpop.f32.mrb[0].mxu0
      %v2748 = vpop.f32.mrb[0].mxu0
      %2749 = vdwg.mxu0
      %2750 = vmatprep.subr.bf16.mxu0 %v2697
      %2751 = vmatpush1.bf16.msra.mxu0 %v2694
      %2752 = vmatprep.subr.bf16.mxu0 0
      %2753 = vmatpush1.bf16.msra.mxu0 0
      %2754 = vmatprep.subr.bf16.mxu0 0
      %2755 = vmatpush1.bf16.msra.mxu0 0
      %2756 = vmatprep.subr.bf16.mxu0 0
      %2757 = vmatpush1.bf16.msra.mxu0 0
      %2758 = vmatprep.subr.bf16.mxu0 0
      %2759 = vmatpush1.bf16.msra.mxu0 0
      %2760 = vmatprep.subr.bf16.mxu0 0
      %2761 = vmatpush1.bf16.msra.mxu0 0
      %2762 = vmatprep.subr.bf16.mxu0 0
      %2763 = vmatpush1.bf16.msra.mxu0 0
      %2764 = vmatprep.subr.bf16.mxu0 0
      %2765 = vmatpush1.bf16.msra.mxu0 0
      %2766 = vmatprep.subr.bf16.mxu0 0
      %2767 = vmatpush1.bf16.msra.mxu0 0
      %2768 = vmatprep.subr.bf16.mxu0 0
      %2769 = vmatpush1.bf16.msra.mxu0 0
      %2770 = vmatprep.subr.bf16.mxu0 0
      %2771 = vmatpush1.bf16.msra.mxu0 0
      %2772 = vmatprep.subr.bf16.mxu0 0
      %2773 = vmatpush1.bf16.msra.mxu0 0
      %2774 = vmatprep.subr.bf16.mxu0 0
      %2775 = vmatpush1.bf16.msra.mxu0 0
      %2776 = vmatprep.subr.bf16.mxu0 0
      %2777 = vmatpush1.bf16.msra.mxu0 0
      %2778 = vmatprep.subr.bf16.mxu0 0
      %2779 = vmatpush1.bf16.msra.mxu0 0
      %2780 = vmatprep.subr.bf16.mxu0 0
      %2781 = vmatpush1.bf16.msra.mxu0 0
      %2782 = vmatprep.mubr.bf16.mxu0 0
      %2783 = vmatmul.mubr.bf16.gmra.mrb[0].mxu0 %v2682
      %v2784 = vpop.f32.mrb[0].mxu0
      %v2785 = vadd.f32 0.0, %v2784
      %v2786 = vpop.f32.mrb[0].mxu0
      %v2787 = vadd.f32 0.0, %v2786
      %v2788 = vpop.f32.mrb[0].mxu0
      %v2789 = vadd.f32 0.0, %v2788
      %v2790 = vpop.f32.mrb[0].mxu0
      %v2791 = vadd.f32 0.0, %v2790
      %2792 = vmatprep.mubr.bf16.mxu0 0
      %2793 = vmatmul.mubr.bf16.gmra.mrb[0].mxu0 %v2685
      %v2794 = vpop.f32.mrb[0].mxu0
      %v2795 = vadd.f32 0.0, %v2794
      %v2796 = vpop.f32.mrb[0].mxu0
      %v2797 = vadd.f32 0.0, %v2796
      %v2798 = vpop.f32.mrb[0].mxu0
      %v2799 = vpop.f32.mrb[0].mxu0
      %2800 = vdwg.mxu0
      %v2801 = vadd.f32 %v2637, %v2734
      %v2802 = vadd.f32 %v2638, %v2736
      %v2803 = vadd.f32 %v2639, %v2785
      %v2804 = vadd.f32 %v2640, %v2787
      %v2805 = vadd.f32 %v2641, %v2738
      %v2806 = vadd.f32 %v2642, %v2740
      %v2807 = vadd.f32 %v2643, %v2789
      %v2808 = vadd.f32 %v2644, %v2791
      %v2809 = vadd.f32 %v2645, %v2744
      %v2810 = vadd.f32 %v2646, %v2746
      %v2811 = vadd.f32 %v2647, %v2795
      %v2812 = vadd.f32 %v2648, %v2797
      %2813 = vrot.lane.b32.xlu0 %v1374, 17
      %v2814 = vpop.permute.xlu0 %2813
      %2815 = vrot.lane.b32.xlu0 %v1375, 17
      %v2816 = vpop.permute.xlu0 %2815
      %2817 = vrot.lane.b32.xlu0 %v1376, 17
      %v2818 = vpop.permute.xlu0 %2817
      %2819 = vrot.lane.b32.xlu0 %v1377, 17
      %v2820 = vpop.permute.xlu0 %2819
      %v2821 = vsel %vm92, %v2818, %v2820
      %v2822 = vsel %vm92, %v2816, %v2818
      %v2823 = vsel %vm92, %v2814, %v2816
      %v2824 = vsel %vm92, %v2820, %v2814
      %v2825 = vmul.f32 %v2824, %v102
      %v2826 = vmul.f32 %v2823, %v106
      %v2827 = vmul.f32 %v2822, %v110
      %v2828 = vmul.f32 %v2821, %v114
      %v2829 = vld [vmem:[%s7] sm:$0xf]
      %v2830 = vld [vmem:[%s7 + $0x4] sm:$0xf]
      %v2831 = vpack.c.bf16 %v2825, %v2825
      %v2832 = vpack.c.bf16 %v2826, %v2826
      %v2833 = vpack.c.bf16 %v2827, %v2827
      %v2834 = vpack.c.bf16 %v2828, %v2828
      %2835 = vrot.lane.b32.xlu0 %v1374, 16
      %v2836 = vpop.permute.xlu0 %2835
      %2837 = vrot.lane.b32.xlu0 %v1375, 16
      %v2838 = vpop.permute.xlu0 %2837
      %2839 = vrot.lane.b32.xlu0 %v1376, 16
      %v2840 = vpop.permute.xlu0 %2839
      %2841 = vrot.lane.b32.xlu0 %v1377, 16
      %v2842 = vpop.permute.xlu0 %2841
      %v2843 = vsel %vm136, %v2840, %v2842
      %v2844 = vsel %vm136, %v2838, %v2840
      %v2845 = vsel %vm136, %v2836, %v2838
      %v2846 = vsel %vm136, %v2842, %v2836
      %v2847 = vmul.f32 %v2846, %v147
      %v2848 = vmul.f32 %v2845, %v151
      %v2849 = vmul.f32 %v2844, %v155
      %v2850 = vmul.f32 %v2843, %v159
      %s2851 = scalar_lea.vmem %s7, 8
      %v2852 = vld [vmem:[%s2851] sm:$0xf]
      %v2853 = vld [vmem:[%s2851 + $0x4] sm:$0xf]
      %v2854 = vpack.c.bf16 %v2847, %v2847
      %v2855 = vpack.c.bf16 %v2848, %v2848
      %v2856 = vpack.c.bf16 %v2849, %v2849
      %v2857 = vpack.c.bf16 %v2850, %v2850
      %v2860 = vunpack.c.l.b16 %v2852
      %v2861 = vunpack.c.l.b16 %v2853
      %v2862 = vpack.c.b16 %v2861, %v2860
      %v2864 = vsel %vm174, %v2862, 0
      %v2867 = vsel %vm178, %v2854, 0
      %v2870 = vsel %vm178, %v2855, 0
      %v2873 = vsel %vm178, %v2856, 0
      %v2876 = vsel %vm178, %v2857, 0
      %2878 = vmatprep.subr.bf16.mxu0 %v2870
      %2879 = vmatpush1.bf16.msra.mxu0 %v2867
      %2880 = vmatprep.subr.bf16.mxu0 0
      %2881 = vmatpush1.bf16.msra.mxu0 0
      %2882 = vmatprep.subr.bf16.mxu0 0
      %2883 = vmatpush1.bf16.msra.mxu0 0
      %2884 = vmatprep.subr.bf16.mxu0 0
      %2885 = vmatpush1.bf16.msra.mxu0 0
      %2886 = vmatprep.subr.bf16.mxu0 0
      %2887 = vmatpush1.bf16.msra.mxu0 0
      %2888 = vmatprep.subr.bf16.mxu0 0
      %2889 = vmatpush1.bf16.msra.mxu0 0
      %2890 = vmatprep.subr.bf16.mxu0 0
      %2891 = vmatpush1.bf16.msra.mxu0 0
      %2892 = vmatprep.subr.bf16.mxu0 0
      %2893 = vmatpush1.bf16.msra.mxu0 0
      %2894 = vmatprep.subr.bf16.mxu0 0
      %2895 = vmatpush1.bf16.msra.mxu0 0
      %2896 = vmatprep.subr.bf16.mxu0 0
      %2897 = vmatpush1.bf16.msra.mxu0 0
      %2898 = vmatprep.subr.bf16.mxu0 0
      %2899 = vmatpush1.bf16.msra.mxu0 0
      %2900 = vmatprep.subr.bf16.mxu0 0
      %2901 = vmatpush1.bf16.msra.mxu0 0
      %2902 = vmatprep.subr.bf16.mxu0 0
      %2903 = vmatpush1.bf16.msra.mxu0 0
      %2904 = vmatprep.subr.bf16.mxu0 0
      %2905 = vmatpush1.bf16.msra.mxu0 0
      %2906 = vmatprep.subr.bf16.mxu0 0
      %2907 = vmatpush1.bf16.msra.mxu0 0
      %2908 = vmatprep.subr.bf16.mxu0 0
      %2909 = vmatpush1.bf16.msra.mxu0 0
      %2910 = vmatprep.mubr.bf16.mxu0 0
      %2911 = vmatmul.mubr.bf16.gmra.mrb[0].mxu0 %v2864
      %v2912 = vpop.f32.mrb[0].mxu0
      %v2913 = vadd.f32 0.0, %v2912
      %v2914 = vpop.f32.mrb[0].mxu0
      %v2915 = vadd.f32 0.0, %v2914
      %v2916 = vpop.f32.mrb[0].mxu0
      %v2917 = vadd.f32 0.0, %v2916
      %v2918 = vpop.f32.mrb[0].mxu0
      %v2919 = vadd.f32 0.0, %v2918
      %2920 = vdwg.mxu0
      %2921 = vmatprep.subr.bf16.mxu0 %v2876
      %2922 = vmatpush1.bf16.msra.mxu0 %v2873
      %2923 = vmatprep.subr.bf16.mxu0 0
      %2924 = vmatpush1.bf16.msra.mxu0 0
      %2925 = vmatprep.subr.bf16.mxu0 0
      %2926 = vmatpush1.bf16.msra.mxu0 0
      %2927 = vmatprep.subr.bf16.mxu0 0
      %2928 = vmatpush1.bf16.msra.mxu0 0
      %2929 = vmatprep.subr.bf16.mxu0 0
      %2930 = vmatpush1.bf16.msra.mxu0 0
      %2931 = vmatprep.subr.bf16.mxu0 0
      %2932 = vmatpush1.bf16.msra.mxu0 0
      %2933 = vmatprep.subr.bf16.mxu0 0
      %2934 = vmatpush1.bf16.msra.mxu0 0
      %2935 = vmatprep.subr.bf16.mxu0 0
      %2936 = vmatpush1.bf16.msra.mxu0 0
      %2937 = vmatprep.subr.bf16.mxu0 0
      %2938 = vmatpush1.bf16.msra.mxu0 0
      %2939 = vmatprep.subr.bf16.mxu0 0
      %2940 = vmatpush1.bf16.msra.mxu0 0
      %2941 = vmatprep.subr.bf16.mxu0 0
      %2942 = vmatpush1.bf16.msra.mxu0 0
      %2943 = vmatprep.subr.bf16.mxu0 0
      %2944 = vmatpush1.bf16.msra.mxu0 0
      %2945 = vmatprep.subr.bf16.mxu0 0
      %2946 = vmatpush1.bf16.msra.mxu0 0
      %2947 = vmatprep.subr.bf16.mxu0 0
      %2948 = vmatpush1.bf16.msra.mxu0 0
      %2949 = vmatprep.subr.bf16.mxu0 0
      %2950 = vmatpush1.bf16.msra.mxu0 0
      %2951 = vmatprep.subr.bf16.mxu0 0
      %2952 = vmatpush1.bf16.msra.mxu0 0
      %2953 = vmatprep.mubr.bf16.mxu0 0
      %2954 = vmatmul.mubr.bf16.gmra.mrb[0].mxu0 %v2864
      %v2955 = vpop.f32.mrb[0].mxu0
      %v2956 = vadd.f32 0.0, %v2955
      %v2957 = vpop.f32.mrb[0].mxu0
      %v2958 = vadd.f32 0.0, %v2957
      %v2959 = vpop.f32.mrb[0].mxu0
      %v2960 = vadd.f32 0.0, %v2959
      %v2961 = vpop.f32.mrb[0].mxu0
      %v2962 = vadd.f32 0.0, %v2961
      %2963 = vdwg.mxu0
      %v2966 = vunpack.c.l.b16 %v2829
      %v2967 = vunpack.c.l.b16 %v2830
      %v2968 = vpack.c.b16 %v2967, %v2966
      %v2970 = vsel %vm174, %v2968, 0
      %v2973 = vsel %vm178, %v2831, 0
      %v2976 = vsel %vm178, %v2832, 0
      %v2979 = vsel %vm178, %v2833, 0
      %v2982 = vsel %vm178, %v2834, 0
      %2984 = vmatprep.subr.bf16.mxu0 %v2976
      %2985 = vmatpush1.bf16.msra.mxu0 %v2973
      %2986 = vmatprep.subr.bf16.mxu0 0
      %2987 = vmatpush1.bf16.msra.mxu0 0
      %2988 = vmatprep.subr.bf16.mxu0 0
      %2989 = vmatpush1.bf16.msra.mxu0 0
      %2990 = vmatprep.subr.bf16.mxu0 0
      %2991 = vmatpush1.bf16.msra.mxu0 0
      %2992 = vmatprep.subr.bf16.mxu0 0
      %2993 = vmatpush1.bf16.msra.mxu0 0
      %2994 = vmatprep.subr.bf16.mxu0 0
      %2995 = vmatpush1.bf16.msra.mxu0 0
      %2996 = vmatprep.subr.bf16.mxu0 0
      %2997 = vmatpush1.bf16.msra.mxu0 0
      %2998 = vmatprep.subr.bf16.mxu0 0
      %2999 = vmatpush1.bf16.msra.mxu0 0
      %3000 = vmatprep.subr.bf16.mxu0 0
      %3001 = vmatpush1.bf16.msra.mxu0 0
      %3002 = vmatprep.subr.bf16.mxu0 0
      %3003 = vmatpush1.bf16.msra.mxu0 0
      %3004 = vmatprep.subr.bf16.mxu0 0
      %3005 = vmatpush1.bf16.msra.mxu0 0
      %3006 = vmatprep.subr.bf16.mxu0 0
      %3007 = vmatpush1.bf16.msra.mxu0 0
      %3008 = vmatprep.subr.bf16.mxu0 0
      %3009 = vmatpush1.bf16.msra.mxu0 0
      %3010 = vmatprep.subr.bf16.mxu0 0
      %3011 = vmatpush1.bf16.msra.mxu0 0
      %3012 = vmatprep.subr.bf16.mxu0 0
      %3013 = vmatpush1.bf16.msra.mxu0 0
      %3014 = vmatprep.subr.bf16.mxu0 0
      %3015 = vmatpush1.bf16.msra.mxu0 0
      %3016 = vmatprep.mubr.bf16.mxu0 0
      %3017 = vmatmul.mubr.bf16.gmra.mrb[0].mxu0 %v2970
      %v3018 = vpop.f32.mrb[0].mxu0
      %v3019 = vadd.f32 %v2913, %v3018
      %v3020 = vpop.f32.mrb[0].mxu0
      %v3021 = vadd.f32 %v2915, %v3020
      %v3022 = vpop.f32.mrb[0].mxu0
      %v3023 = vadd.f32 %v2917, %v3022
      %v3024 = vpop.f32.mrb[0].mxu0
      %v3025 = vadd.f32 %v2919, %v3024
      %3026 = vdwg.mxu0
      %3027 = vmatprep.subr.bf16.mxu0 %v2982
      %3028 = vmatpush1.bf16.msra.mxu0 %v2979
      %3029 = vmatprep.subr.bf16.mxu0 0
      %3030 = vmatpush1.bf16.msra.mxu0 0
      %3031 = vmatprep.subr.bf16.mxu0 0
      %3032 = vmatpush1.bf16.msra.mxu0 0
      %3033 = vmatprep.subr.bf16.mxu0 0
      %3034 = vmatpush1.bf16.msra.mxu0 0
      %3035 = vmatprep.subr.bf16.mxu0 0
      %3036 = vmatpush1.bf16.msra.mxu0 0
      %3037 = vmatprep.subr.bf16.mxu0 0
      %3038 = vmatpush1.bf16.msra.mxu0 0
      %3039 = vmatprep.subr.bf16.mxu0 0
      %3040 = vmatpush1.bf16.msra.mxu0 0
      %3041 = vmatprep.subr.bf16.mxu0 0
      %3042 = vmatpush1.bf16.msra.mxu0 0
      %3043 = vmatprep.subr.bf16.mxu0 0
      %3044 = vmatpush1.bf16.msra.mxu0 0
      %3045 = vmatprep.subr.bf16.mxu0 0
      %3046 = vmatpush1.bf16.msra.mxu0 0
      %3047 = vmatprep.subr.bf16.mxu0 0
      %3048 = vmatpush1.bf16.msra.mxu0 0
      %3049 = vmatprep.subr.bf16.mxu0 0
      %3050 = vmatpush1.bf16.msra.mxu0 0
      %3051 = vmatprep.subr.bf16.mxu0 0
      %3052 = vmatpush1.bf16.msra.mxu0 0
      %3053 = vmatprep.subr.bf16.mxu0 0
      %3054 = vmatpush1.bf16.msra.mxu0 0
      %3055 = vmatprep.subr.bf16.mxu0 0
      %3056 = vmatpush1.bf16.msra.mxu0 0
      %3057 = vmatprep.subr.bf16.mxu0 0
      %3058 = vmatpush1.bf16.msra.mxu0 0
      %3059 = vmatprep.mubr.bf16.mxu0 0
      %3060 = vmatmul.mubr.bf16.gmra.mrb[0].mxu0 %v2970
      %v3061 = vpop.f32.mrb[0].mxu0
      %v3062 = vadd.f32 %v2956, %v3061
      %v3063 = vpop.f32.mrb[0].mxu0
      %v3064 = vadd.f32 %v2958, %v3063
      %v3065 = vpop.f32.mrb[0].mxu0
      %v3066 = vadd.f32 %v2960, %v3065
      %v3067 = vpop.f32.mrb[0].mxu0
      %v3068 = vadd.f32 %v2962, %v3067
      %3069 = vdwg.mxu0
      %3070 = vrot.lane.b32.xlu0 %v1374, 15
      %v3071 = vpop.permute.xlu0 %3070
      %3072 = vrot.lane.b32.xlu0 %v1375, 15
      %v3073 = vpop.permute.xlu0 %3072
      %3074 = vrot.lane.b32.xlu0 %v1376, 15
      %v3075 = vpop.permute.xlu0 %3074
      %3076 = vrot.lane.b32.xlu0 %v1377, 15
      %v3077 = vpop.permute.xlu0 %3076
      %v3078 = vsel %vm378, %v3075, %v3077
      %v3079 = vsel %vm378, %v3073, %v3075
      %v3080 = vsel %vm378, %v3071, %v3073
      %v3081 = vsel %vm378, %v3077, %v3071
      %v3082 = vmul.f32 %v3081, %v389
      %v3083 = vmul.f32 %v3080, %v393
      %v3084 = vmul.f32 %v3079, %v397
      %v3085 = vmul.f32 %v3078, %v401
      %s3086 = scalar_lea.vmem %s7, 16
      %v3087 = vld [vmem:[%s3086] sm:$0xf]
      %v3088 = vld [vmem:[%s3086 + $0x4] sm:$0xf]
      %v3089 = vpack.c.bf16 %v3082, %v3082
      %v3090 = vpack.c.bf16 %v3083, %v3083
      %v3091 = vpack.c.bf16 %v3084, %v3084
      %v3092 = vpack.c.bf16 %v3085, %v3085
      %v3095 = vunpack.c.l.b16 %v3087
      %v3096 = vunpack.c.l.b16 %v3088
      %v3097 = vpack.c.b16 %v3096, %v3095
      %v3099 = vsel %vm174, %v3097, 0
      %v3102 = vsel %vm178, %v3089, 0
      %v3105 = vsel %vm178, %v3090, 0
      %v3108 = vsel %vm178, %v3091, 0
      %v3111 = vsel %vm178, %v3092, 0
      %3113 = vmatprep.subr.bf16.mxu0 %v3105
      %3114 = vmatpush1.bf16.msra.mxu0 %v3102
      %3115 = vmatprep.subr.bf16.mxu0 0
      %3116 = vmatpush1.bf16.msra.mxu0 0
      %3117 = vmatprep.subr.bf16.mxu0 0
      %3118 = vmatpush1.bf16.msra.mxu0 0
      %3119 = vmatprep.subr.bf16.mxu0 0
      %3120 = vmatpush1.bf16.msra.mxu0 0
      %3121 = vmatprep.subr.bf16.mxu0 0
      %3122 = vmatpush1.bf16.msra.mxu0 0
      %3123 = vmatprep.subr.bf16.mxu0 0
      %3124 = vmatpush1.bf16.msra.mxu0 0
      %3125 = vmatprep.subr.bf16.mxu0 0
      %3126 = vmatpush1.bf16.msra.mxu0 0
      %3127 = vmatprep.subr.bf16.mxu0 0
      %3128 = vmatpush1.bf16.msra.mxu0 0
      %3129 = vmatprep.subr.bf16.mxu0 0
      %3130 = vmatpush1.bf16.msra.mxu0 0
      %3131 = vmatprep.subr.bf16.mxu0 0
      %3132 = vmatpush1.bf16.msra.mxu0 0
      %3133 = vmatprep.subr.bf16.mxu0 0
      %3134 = vmatpush1.bf16.msra.mxu0 0
      %3135 = vmatprep.subr.bf16.mxu0 0
      %3136 = vmatpush1.bf16.msra.mxu0 0
      %3137 = vmatprep.subr.bf16.mxu0 0
      %3138 = vmatpush1.bf16.msra.mxu0 0
      %3139 = vmatprep.subr.bf16.mxu0 0
      %3140 = vmatpush1.bf16.msra.mxu0 0
      %3141 = vmatprep.subr.bf16.mxu0 0
      %3142 = vmatpush1.bf16.msra.mxu0 0
      %3143 = vmatprep.subr.bf16.mxu0 0
      %3144 = vmatpush1.bf16.msra.mxu0 0
      %3145 = vmatprep.mubr.bf16.mxu0 0
      %3146 = vmatmul.mubr.bf16.gmra.mrb[0].mxu0 %v3099
      %v3147 = vpop.f32.mrb[0].mxu0
      %v3148 = vadd.f32 0.0, %v3147
      %v3149 = vpop.f32.mrb[0].mxu0
      %v3150 = vadd.f32 0.0, %v3149
      %v3151 = vpop.f32.mrb[0].mxu0
      %v3152 = vadd.f32 0.0, %v3151
      %v3153 = vpop.f32.mrb[0].mxu0
      %v3154 = vadd.f32 0.0, %v3153
      %3155 = vdwg.mxu0
      %3156 = vmatprep.subr.bf16.mxu0 %v3111
      %3157 = vmatpush1.bf16.msra.mxu0 %v3108
      %3158 = vmatprep.subr.bf16.mxu0 0
      %3159 = vmatpush1.bf16.msra.mxu0 0
      %3160 = vmatprep.subr.bf16.mxu0 0
      %3161 = vmatpush1.bf16.msra.mxu0 0
      %3162 = vmatprep.subr.bf16.mxu0 0
      %3163 = vmatpush1.bf16.msra.mxu0 0
      %3164 = vmatprep.subr.bf16.mxu0 0
      %3165 = vmatpush1.bf16.msra.mxu0 0
      %3166 = vmatprep.subr.bf16.mxu0 0
      %3167 = vmatpush1.bf16.msra.mxu0 0
      %3168 = vmatprep.subr.bf16.mxu0 0
      %3169 = vmatpush1.bf16.msra.mxu0 0
      %3170 = vmatprep.subr.bf16.mxu0 0
      %3171 = vmatpush1.bf16.msra.mxu0 0
      %3172 = vmatprep.subr.bf16.mxu0 0
      %3173 = vmatpush1.bf16.msra.mxu0 0
      %3174 = vmatprep.subr.bf16.mxu0 0
      %3175 = vmatpush1.bf16.msra.mxu0 0
      %3176 = vmatprep.subr.bf16.mxu0 0
      %3177 = vmatpush1.bf16.msra.mxu0 0
      %3178 = vmatprep.subr.bf16.mxu0 0
      %3179 = vmatpush1.bf16.msra.mxu0 0
      %3180 = vmatprep.subr.bf16.mxu0 0
      %3181 = vmatpush1.bf16.msra.mxu0 0
      %3182 = vmatprep.subr.bf16.mxu0 0
      %3183 = vmatpush1.bf16.msra.mxu0 0
      %3184 = vmatprep.subr.bf16.mxu0 0
      %3185 = vmatpush1.bf16.msra.mxu0 0
      %3186 = vmatprep.subr.bf16.mxu0 0
      %3187 = vmatpush1.bf16.msra.mxu0 0
      %3188 = vmatprep.mubr.bf16.mxu0 0
      %3189 = vmatmul.mubr.bf16.gmra.mrb[0].mxu0 %v3099
      %v3190 = vpop.f32.mrb[0].mxu0
      %v3191 = vadd.f32 0.0, %v3190
      %v3192 = vpop.f32.mrb[0].mxu0
      %v3193 = vadd.f32 0.0, %v3192
      %v3194 = vpop.f32.mrb[0].mxu0
      %v3195 = vadd.f32 0.0, %v3194
      %v3196 = vpop.f32.mrb[0].mxu0
      %v3197 = vadd.f32 0.0, %v3196
      %3198 = vdwg.mxu0
      %v3199 = vadd.f32 %v3019, %v3148
      %v3200 = vadd.f32 %v3021, %v3150
      %v3201 = vadd.f32 %v3062, %v3191
      %v3202 = vadd.f32 %v3064, %v3193
      %v3203 = vadd.f32 %v3023, %v3152
      %v3204 = vadd.f32 %v3025, %v3154
      %v3205 = vadd.f32 %v3066, %v3195
      %v3206 = vadd.f32 %v3068, %v3197
      %3207 = vrot.lane.b32.xlu0 %v1374, 1
      %v3208 = vpop.permute.xlu0 %3207
      %3209 = vrot.lane.b32.xlu0 %v1375, 1
      %v3210 = vpop.permute.xlu0 %3209
      %3211 = vrot.lane.b32.xlu0 %v1376, 1
      %v3212 = vpop.permute.xlu0 %3211
      %3213 = vrot.lane.b32.xlu0 %v1377, 1
      %v3214 = vpop.permute.xlu0 %3213
      %v3215 = vsel %vm525, %v3212, %v3214
      %v3216 = vsel %vm525, %v3210, %v3212
      %v3217 = vsel %vm525, %v3208, %v3210
      %v3218 = vsel %vm525, %v3214, %v3208
      %v3219 = vmul.f32 %v3218, %v536
      %v3220 = vmul.f32 %v3217, %v540
      %v3221 = vmul.f32 %v3216, %v544
      %v3222 = vmul.f32 %v3215, %v548
      %s3223 = scalar_lea.vmem %s7, 24
      %v3224 = vld [vmem:[%s3223] sm:$0xf]
      %v3225 = vld [vmem:[%s3223 + $0x4] sm:$0xf]
      %v3226 = vpack.c.bf16 %v3219, %v3219
      %v3227 = vpack.c.bf16 %v3220, %v3220
      %v3228 = vpack.c.bf16 %v3221, %v3221
      %v3229 = vpack.c.bf16 %v3222, %v3222
      %v3232 = vunpack.c.l.b16 %v3224
      %v3233 = vunpack.c.l.b16 %v3225
      %v3234 = vpack.c.b16 %v3233, %v3232
      %v3236 = vsel %vm174, %v3234, 0
      %v3239 = vsel %vm178, %v3226, 0
      %v3242 = vsel %vm178, %v3227, 0
      %v3245 = vsel %vm178, %v3228, 0
      %v3248 = vsel %vm178, %v3229, 0
      %3250 = vmatprep.subr.bf16.mxu0 %v3242
      %3251 = vmatpush1.bf16.msra.mxu0 %v3239
      %3252 = vmatprep.subr.bf16.mxu0 0
      %3253 = vmatpush1.bf16.msra.mxu0 0
      %3254 = vmatprep.subr.bf16.mxu0 0
      %3255 = vmatpush1.bf16.msra.mxu0 0
      %3256 = vmatprep.subr.bf16.mxu0 0
      %3257 = vmatpush1.bf16.msra.mxu0 0
      %3258 = vmatprep.subr.bf16.mxu0 0
      %3259 = vmatpush1.bf16.msra.mxu0 0
      %3260 = vmatprep.subr.bf16.mxu0 0
      %3261 = vmatpush1.bf16.msra.mxu0 0
      %3262 = vmatprep.subr.bf16.mxu0 0
      %3263 = vmatpush1.bf16.msra.mxu0 0
      %3264 = vmatprep.subr.bf16.mxu0 0
      %3265 = vmatpush1.bf16.msra.mxu0 0
      %3266 = vmatprep.subr.bf16.mxu0 0
      %3267 = vmatpush1.bf16.msra.mxu0 0
      %3268 = vmatprep.subr.bf16.mxu0 0
      %3269 = vmatpush1.bf16.msra.mxu0 0
      %3270 = vmatprep.subr.bf16.mxu0 0
      %3271 = vmatpush1.bf16.msra.mxu0 0
      %3272 = vmatprep.subr.bf16.mxu0 0
      %3273 = vmatpush1.bf16.msra.mxu0 0
      %3274 = vmatprep.subr.bf16.mxu0 0
      %3275 = vmatpush1.bf16.msra.mxu0 0
      %3276 = vmatprep.subr.bf16.mxu0 0
      %3277 = vmatpush1.bf16.msra.mxu0 0
      %3278 = vmatprep.subr.bf16.mxu0 0
      %3279 = vmatpush1.bf16.msra.mxu0 0
      %3280 = vmatprep.subr.bf16.mxu0 0
      %3281 = vmatpush1.bf16.msra.mxu0 0
      %3282 = vmatprep.mubr.bf16.mxu0 0
      %3283 = vmatmul.mubr.bf16.gmra.mrb[0].mxu0 %v3236
      %v3284 = vpop.f32.mrb[0].mxu0
      %v3285 = vadd.f32 0.0, %v3284
      %v3286 = vpop.f32.mrb[0].mxu0
      %v3287 = vadd.f32 0.0, %v3286
      %v3288 = vpop.f32.mrb[0].mxu0
      %v3289 = vadd.f32 0.0, %v3288
      %v3290 = vpop.f32.mrb[0].mxu0
      %v3291 = vadd.f32 0.0, %v3290
      %3292 = vdwg.mxu0
      %3293 = vmatprep.subr.bf16.mxu0 %v3248
      %3294 = vmatpush1.bf16.msra.mxu0 %v3245
      %3295 = vmatprep.subr.bf16.mxu0 0
      %3296 = vmatpush1.bf16.msra.mxu0 0
      %3297 = vmatprep.subr.bf16.mxu0 0
      %3298 = vmatpush1.bf16.msra.mxu0 0
      %3299 = vmatprep.subr.bf16.mxu0 0
      %3300 = vmatpush1.bf16.msra.mxu0 0
      %3301 = vmatprep.subr.bf16.mxu0 0
      %3302 = vmatpush1.bf16.msra.mxu0 0
      %3303 = vmatprep.subr.bf16.mxu0 0
      %3304 = vmatpush1.bf16.msra.mxu0 0
      %3305 = vmatprep.subr.bf16.mxu0 0
      %3306 = vmatpush1.bf16.msra.mxu0 0
      %3307 = vmatprep.subr.bf16.mxu0 0
      %3308 = vmatpush1.bf16.msra.mxu0 0
      %3309 = vmatprep.subr.bf16.mxu0 0
      %3310 = vmatpush1.bf16.msra.mxu0 0
      %3311 = vmatprep.subr.bf16.mxu0 0
      %3312 = vmatpush1.bf16.msra.mxu0 0
      %3313 = vmatprep.subr.bf16.mxu0 0
      %3314 = vmatpush1.bf16.msra.mxu0 0
      %3315 = vmatprep.subr.bf16.mxu0 0
      %3316 = vmatpush1.bf16.msra.mxu0 0
      %3317 = vmatprep.subr.bf16.mxu0 0
      %3318 = vmatpush1.bf16.msra.mxu0 0
      %3319 = vmatprep.subr.bf16.mxu0 0
      %3320 = vmatpush1.bf16.msra.mxu0 0
      %3321 = vmatprep.subr.bf16.mxu0 0
      %3322 = vmatpush1.bf16.msra.mxu0 0
      %3323 = vmatprep.subr.bf16.mxu0 0
      %3324 = vmatpush1.bf16.msra.mxu0 0
      %3325 = vmatprep.mubr.bf16.mxu0 0
      %3326 = vmatmul.mubr.bf16.gmra.mrb[0].mxu0 %v3236
      %v3327 = vpop.f32.mrb[0].mxu0
      %v3328 = vadd.f32 0.0, %v3327
      %v3329 = vpop.f32.mrb[0].mxu0
      %v3330 = vadd.f32 0.0, %v3329
      %v3331 = vpop.f32.mrb[0].mxu0
      %v3332 = vadd.f32 0.0, %v3331
      %v3333 = vpop.f32.mrb[0].mxu0
      %v3334 = vadd.f32 0.0, %v3333
      %3335 = vdwg.mxu0
      %v3336 = vadd.f32 %v3199, %v3285
      %v3337 = vadd.f32 %v3200, %v3287
      %v3338 = vadd.f32 %v3201, %v3328
      %v3339 = vadd.f32 %v3202, %v3330
      %v3340 = vadd.f32 %v3203, %v3289
      %v3341 = vadd.f32 %v3204, %v3291
      %v3342 = vadd.f32 %v3205, %v3332
      %v3343 = vadd.f32 %v3206, %v3334
      %s3344 = scalar_lea.vmem %s7, 32
      %v3345 = vld [vmem:[%s3344] sm:$0xf]
      %v3346 = vld [vmem:[%s3344 + $0x4] sm:$0xf]
      %v3347 = vpack.c.bf16 %v1374, %v1374
      %v3348 = vpack.c.bf16 %v1375, %v1375
      %v3349 = vpack.c.bf16 %v1376, %v1376
      %v3350 = vpack.c.bf16 %v1377, %v1377
      %v3353 = vunpack.c.l.b16 %v3345
      %v3354 = vunpack.c.l.b16 %v3346
      %v3355 = vpack.c.b16 %v3354, %v3353
      %v3357 = vsel %vm174, %v3355, 0
      %v3360 = vsel %vm178, %v3347, 0
      %v3363 = vsel %vm178, %v3348, 0
      %v3366 = vsel %vm178, %v3349, 0
      %v3369 = vsel %vm178, %v3350, 0
      %3371 = vmatprep.subr.bf16.mxu0 %v3363
      %3372 = vmatpush1.bf16.msra.mxu0 %v3360
      %3373 = vmatprep.subr.bf16.mxu0 0
      %3374 = vmatpush1.bf16.msra.mxu0 0
      %3375 = vmatprep.subr.bf16.mxu0 0
      %3376 = vmatpush1.bf16.msra.mxu0 0
      %3377 = vmatprep.subr.bf16.mxu0 0
      %3378 = vmatpush1.bf16.msra.mxu0 0
      %3379 = vmatprep.subr.bf16.mxu0 0
      %3380 = vmatpush1.bf16.msra.mxu0 0
      %3381 = vmatprep.subr.bf16.mxu0 0
      %3382 = vmatpush1.bf16.msra.mxu0 0
      %3383 = vmatprep.subr.bf16.mxu0 0
      %3384 = vmatpush1.bf16.msra.mxu0 0
      %3385 = vmatprep.subr.bf16.mxu0 0
      %3386 = vmatpush1.bf16.msra.mxu0 0
      %3387 = vmatprep.subr.bf16.mxu0 0
      %3388 = vmatpush1.bf16.msra.mxu0 0
      %3389 = vmatprep.subr.bf16.mxu0 0
      %3390 = vmatpush1.bf16.msra.mxu0 0
      %3391 = vmatprep.subr.bf16.mxu0 0
      %3392 = vmatpush1.bf16.msra.mxu0 0
      %3393 = vmatprep.subr.bf16.mxu0 0
      %3394 = vmatpush1.bf16.msra.mxu0 0
      %3395 = vmatprep.subr.bf16.mxu0 0
      %3396 = vmatpush1.bf16.msra.mxu0 0
      %3397 = vmatprep.subr.bf16.mxu0 0
      %3398 = vmatpush1.bf16.msra.mxu0 0
      %3399 = vmatprep.subr.bf16.mxu0 0
      %3400 = vmatpush1.bf16.msra.mxu0 0
      %3401 = vmatprep.subr.bf16.mxu0 0
      %3402 = vmatpush1.bf16.msra.mxu0 0
      %3403 = vmatprep.mubr.bf16.mxu0 0
      %3404 = vmatmul.mubr.bf16.gmra.mrb[0].mxu0 %v3357
      %v3405 = vpop.f32.mrb[0].mxu0
      %v3406 = vadd.f32 0.0, %v3405
      %v3407 = vpop.f32.mrb[0].mxu0
      %v3408 = vadd.f32 0.0, %v3407
      %v3409 = vpop.f32.mrb[0].mxu0
      %v3410 = vadd.f32 0.0, %v3409
      %v3411 = vpop.f32.mrb[0].mxu0
      %v3412 = vadd.f32 0.0, %v3411
      %3413 = vdwg.mxu0
      %3414 = vmatprep.subr.bf16.mxu0 %v3369
      %3415 = vmatpush1.bf16.msra.mxu0 %v3366
      %3416 = vmatprep.subr.bf16.mxu0 0
      %3417 = vmatpush1.bf16.msra.mxu0 0
      %3418 = vmatprep.subr.bf16.mxu0 0
      %3419 = vmatpush1.bf16.msra.mxu0 0
      %3420 = vmatprep.subr.bf16.mxu0 0
      %3421 = vmatpush1.bf16.msra.mxu0 0
      %3422 = vmatprep.subr.bf16.mxu0 0
      %3423 = vmatpush1.bf16.msra.mxu0 0
      %3424 = vmatprep.subr.bf16.mxu0 0
      %3425 = vmatpush1.bf16.msra.mxu0 0
      %3426 = vmatprep.subr.bf16.mxu0 0
      %3427 = vmatpush1.bf16.msra.mxu0 0
      %3428 = vmatprep.subr.bf16.mxu0 0
      %3429 = vmatpush1.bf16.msra.mxu0 0
      %3430 = vmatprep.subr.bf16.mxu0 0
      %3431 = vmatpush1.bf16.msra.mxu0 0
      %3432 = vmatprep.subr.bf16.mxu0 0
      %3433 = vmatpush1.bf16.msra.mxu0 0
      %3434 = vmatprep.subr.bf16.mxu0 0
      %3435 = vmatpush1.bf16.msra.mxu0 0
      %3436 = vmatprep.subr.bf16.mxu0 0
      %3437 = vmatpush1.bf16.msra.mxu0 0
      %3438 = vmatprep.subr.bf16.mxu0 0
      %3439 = vmatpush1.bf16.msra.mxu0 0
      %3440 = vmatprep.subr.bf16.mxu0 0
      %3441 = vmatpush1.bf16.msra.mxu0 0
      %3442 = vmatprep.subr.bf16.mxu0 0
      %3443 = vmatpush1.bf16.msra.mxu0 0
      %3444 = vmatprep.subr.bf16.mxu0 0
      %3445 = vmatpush1.bf16.msra.mxu0 0
      %3446 = vmatprep.mubr.bf16.mxu0 0
      %3447 = vmatmul.mubr.bf16.gmra.mrb[0].mxu0 %v3357
      %v3448 = vpop.f32.mrb[0].mxu0
      %v3449 = vadd.f32 0.0, %v3448
      %v3450 = vpop.f32.mrb[0].mxu0
      %v3451 = vadd.f32 0.0, %v3450
      %v3452 = vpop.f32.mrb[0].mxu0
      %v3453 = vadd.f32 0.0, %v3452
      %v3454 = vpop.f32.mrb[0].mxu0
      %v3455 = vadd.f32 0.0, %v3454
      %3456 = vdwg.mxu0
      %v3457 = vadd.f32 %v3336, %v3406
      %v3458 = vadd.f32 %v3337, %v3408
      %v3459 = vadd.f32 %v3338, %v3449
      %v3460 = vadd.f32 %v3339, %v3451
      %v3461 = vadd.f32 %v3340, %v3410
      %v3462 = vadd.f32 %v3341, %v3412
      %v3463 = vadd.f32 %v3342, %v3453
      %v3464 = vadd.f32 %v3343, %v3455
      %3465 = vrot.lane.b32.xlu0 %v1374, 127
      %v3466 = vpop.permute.xlu0 %3465
      %3467 = vrot.lane.b32.xlu0 %v1375, 127
      %v3468 = vpop.permute.xlu0 %3467
      %3469 = vrot.lane.b32.xlu0 %v1376, 127
      %v3470 = vpop.permute.xlu0 %3469
      %3471 = vrot.lane.b32.xlu0 %v1377, 127
      %v3472 = vpop.permute.xlu0 %3471
      %v3473 = vsel %vm779, %v3470, %v3472
      %v3474 = vsel %vm779, %v3468, %v3470
      %v3475 = vsel %vm779, %v3466, %v3468
      %v3476 = vsel %vm779, %v3472, %v3466
      %v3477 = vmul.f32 %v3475, %v790
      %v3478 = vmul.f32 %v3474, %v794
      %v3479 = vmul.f32 %v3473, %v798
      %v3480 = vmul.f32 %v3476, %v802
      %s3481 = scalar_lea.vmem %s7, 40
      %v3482 = vld [vmem:[%s3481] sm:$0xf]
      %v3483 = vld [vmem:[%s3481 + $0x4] sm:$0xf]
      %v3484 = vpack.c.bf16 %v3477, %v3477
      %v3485 = vpack.c.bf16 %v3478, %v3478
      %v3486 = vpack.c.bf16 %v3479, %v3479
      %v3487 = vpack.c.bf16 %v3480, %v3480
      %v3490 = vunpack.c.l.b16 %v3482
      %v3491 = vunpack.c.l.b16 %v3483
      %v3492 = vpack.c.b16 %v3491, %v3490
      %v3494 = vsel %vm174, %v3492, 0
      %v3497 = vsel %vm178, %v3484, 0
      %v3500 = vsel %vm178, %v3485, 0
      %v3503 = vsel %vm178, %v3486, 0
      %v3506 = vsel %vm178, %v3487, 0
      %3508 = vmatprep.subr.bf16.mxu0 %v3500
      %3509 = vmatpush1.bf16.msra.mxu0 %v3497
      %3510 = vmatprep.subr.bf16.mxu0 0
      %3511 = vmatpush1.bf16.msra.mxu0 0
      %3512 = vmatprep.subr.bf16.mxu0 0
      %3513 = vmatpush1.bf16.msra.mxu0 0
      %3514 = vmatprep.subr.bf16.mxu0 0
      %3515 = vmatpush1.bf16.msra.mxu0 0
      %3516 = vmatprep.subr.bf16.mxu0 0
      %3517 = vmatpush1.bf16.msra.mxu0 0
      %3518 = vmatprep.subr.bf16.mxu0 0
      %3519 = vmatpush1.bf16.msra.mxu0 0
      %3520 = vmatprep.subr.bf16.mxu0 0
      %3521 = vmatpush1.bf16.msra.mxu0 0
      %3522 = vmatprep.subr.bf16.mxu0 0
      %3523 = vmatpush1.bf16.msra.mxu0 0
      %3524 = vmatprep.subr.bf16.mxu0 0
      %3525 = vmatpush1.bf16.msra.mxu0 0
      %3526 = vmatprep.subr.bf16.mxu0 0
      %3527 = vmatpush1.bf16.msra.mxu0 0
      %3528 = vmatprep.subr.bf16.mxu0 0
      %3529 = vmatpush1.bf16.msra.mxu0 0
      %3530 = vmatprep.subr.bf16.mxu0 0
      %3531 = vmatpush1.bf16.msra.mxu0 0
      %3532 = vmatprep.subr.bf16.mxu0 0
      %3533 = vmatpush1.bf16.msra.mxu0 0
      %3534 = vmatprep.subr.bf16.mxu0 0
      %3535 = vmatpush1.bf16.msra.mxu0 0
      %3536 = vmatprep.subr.bf16.mxu0 0
      %3537 = vmatpush1.bf16.msra.mxu0 0
      %3538 = vmatprep.subr.bf16.mxu0 0
      %3539 = vmatpush1.bf16.msra.mxu0 0
      %3540 = vmatprep.mubr.bf16.mxu0 0
      %3541 = vmatmul.mubr.bf16.gmra.mrb[0].mxu0 %v3494
      %v3542 = vpop.f32.mrb[0].mxu0
      %v3543 = vadd.f32 0.0, %v3542
      %v3544 = vpop.f32.mrb[0].mxu0
      %v3545 = vadd.f32 0.0, %v3544
      %v3546 = vpop.f32.mrb[0].mxu0
      %v3547 = vadd.f32 0.0, %v3546
      %v3548 = vpop.f32.mrb[0].mxu0
      %v3549 = vadd.f32 0.0, %v3548
      %3550 = vdwg.mxu0
      %3551 = vmatprep.subr.bf16.mxu0 %v3506
      %3552 = vmatpush1.bf16.msra.mxu0 %v3503
      %3553 = vmatprep.subr.bf16.mxu0 0
      %3554 = vmatpush1.bf16.msra.mxu0 0
      %3555 = vmatprep.subr.bf16.mxu0 0
      %3556 = vmatpush1.bf16.msra.mxu0 0
      %3557 = vmatprep.subr.bf16.mxu0 0
      %3558 = vmatpush1.bf16.msra.mxu0 0
      %3559 = vmatprep.subr.bf16.mxu0 0
      %3560 = vmatpush1.bf16.msra.mxu0 0
      %3561 = vmatprep.subr.bf16.mxu0 0
      %3562 = vmatpush1.bf16.msra.mxu0 0
      %3563 = vmatprep.subr.bf16.mxu0 0
      %3564 = vmatpush1.bf16.msra.mxu0 0
      %3565 = vmatprep.subr.bf16.mxu0 0
      %3566 = vmatpush1.bf16.msra.mxu0 0
      %3567 = vmatprep.subr.bf16.mxu0 0
      %3568 = vmatpush1.bf16.msra.mxu0 0
      %3569 = vmatprep.subr.bf16.mxu0 0
      %3570 = vmatpush1.bf16.msra.mxu0 0
      %3571 = vmatprep.subr.bf16.mxu0 0
      %3572 = vmatpush1.bf16.msra.mxu0 0
      %3573 = vmatprep.subr.bf16.mxu0 0
      %3574 = vmatpush1.bf16.msra.mxu0 0
      %3575 = vmatprep.subr.bf16.mxu0 0
      %3576 = vmatpush1.bf16.msra.mxu0 0
      %3577 = vmatprep.subr.bf16.mxu0 0
      %3578 = vmatpush1.bf16.msra.mxu0 0
      %3579 = vmatprep.subr.bf16.mxu0 0
      %3580 = vmatpush1.bf16.msra.mxu0 0
      %3581 = vmatprep.subr.bf16.mxu0 0
      %3582 = vmatpush1.bf16.msra.mxu0 0
      %3583 = vmatprep.mubr.bf16.mxu0 0
      %3584 = vmatmul.mubr.bf16.gmra.mrb[0].mxu0 %v3494
      %v3585 = vpop.f32.mrb[0].mxu0
      %v3586 = vadd.f32 0.0, %v3585
      %v3587 = vpop.f32.mrb[0].mxu0
      %v3588 = vadd.f32 0.0, %v3587
      %v3589 = vpop.f32.mrb[0].mxu0
      %v3590 = vadd.f32 0.0, %v3589
      %v3591 = vpop.f32.mrb[0].mxu0
      %v3592 = vadd.f32 0.0, %v3591
      %3593 = vdwg.mxu0
      %v3594 = vadd.f32 %v3457, %v3543
      %v3595 = vadd.f32 %v3458, %v3545
      %v3596 = vadd.f32 %v3459, %v3586
      %v3597 = vadd.f32 %v3460, %v3588
      %v3598 = vadd.f32 %v3461, %v3547
      %v3599 = vadd.f32 %v3462, %v3549
      %v3600 = vadd.f32 %v3463, %v3590
      %v3601 = vadd.f32 %v3464, %v3592
      %3602 = vrot.lane.b32.xlu0 %v1374, 113
      %v3603 = vpop.permute.xlu0 %3602
      %3604 = vrot.lane.b32.xlu0 %v1375, 113
      %v3605 = vpop.permute.xlu0 %3604
      %3606 = vrot.lane.b32.xlu0 %v1376, 113
      %v3607 = vpop.permute.xlu0 %3606
      %3608 = vrot.lane.b32.xlu0 %v1377, 113
      %v3609 = vpop.permute.xlu0 %3608
      %v3610 = vsel %vm926, %v3607, %v3609
      %v3611 = vsel %vm926, %v3605, %v3607
      %v3612 = vsel %vm926, %v3603, %v3605
      %v3613 = vsel %vm926, %v3609, %v3603
      %v3614 = vmul.f32 %v3612, %v937
      %v3615 = vmul.f32 %v3611, %v941
      %v3616 = vmul.f32 %v3610, %v945
      %v3617 = vmul.f32 %v3613, %v949
      %s3618 = scalar_lea.vmem %s7, 48
      %v3619 = vld [vmem:[%s3618] sm:$0xf]
      %v3620 = vld [vmem:[%s3618 + $0x4] sm:$0xf]
      %v3621 = vpack.c.bf16 %v3614, %v3614
      %v3622 = vpack.c.bf16 %v3615, %v3615
      %v3623 = vpack.c.bf16 %v3616, %v3616
      %v3624 = vpack.c.bf16 %v3617, %v3617
      %v3627 = vunpack.c.l.b16 %v3619
      %v3628 = vunpack.c.l.b16 %v3620
      %v3629 = vpack.c.b16 %v3628, %v3627
      %v3631 = vsel %vm174, %v3629, 0
      %v3634 = vsel %vm178, %v3621, 0
      %v3637 = vsel %vm178, %v3622, 0
      %v3640 = vsel %vm178, %v3623, 0
      %v3643 = vsel %vm178, %v3624, 0
      %3645 = vmatprep.subr.bf16.mxu0 %v3637
      %3646 = vmatpush1.bf16.msra.mxu0 %v3634
      %3647 = vmatprep.subr.bf16.mxu0 0
      %3648 = vmatpush1.bf16.msra.mxu0 0
      %3649 = vmatprep.subr.bf16.mxu0 0
      %3650 = vmatpush1.bf16.msra.mxu0 0
      %3651 = vmatprep.subr.bf16.mxu0 0
      %3652 = vmatpush1.bf16.msra.mxu0 0
      %3653 = vmatprep.subr.bf16.mxu0 0
      %3654 = vmatpush1.bf16.msra.mxu0 0
      %3655 = vmatprep.subr.bf16.mxu0 0
      %3656 = vmatpush1.bf16.msra.mxu0 0
      %3657 = vmatprep.subr.bf16.mxu0 0
      %3658 = vmatpush1.bf16.msra.mxu0 0
      %3659 = vmatprep.subr.bf16.mxu0 0
      %3660 = vmatpush1.bf16.msra.mxu0 0
      %3661 = vmatprep.subr.bf16.mxu0 0
      %3662 = vmatpush1.bf16.msra.mxu0 0
      %3663 = vmatprep.subr.bf16.mxu0 0
      %3664 = vmatpush1.bf16.msra.mxu0 0
      %3665 = vmatprep.subr.bf16.mxu0 0
      %3666 = vmatpush1.bf16.msra.mxu0 0
      %3667 = vmatprep.subr.bf16.mxu0 0
      %3668 = vmatpush1.bf16.msra.mxu0 0
      %3669 = vmatprep.subr.bf16.mxu0 0
      %3670 = vmatpush1.bf16.msra.mxu0 0
      %3671 = vmatprep.subr.bf16.mxu0 0
      %3672 = vmatpush1.bf16.msra.mxu0 0
      %3673 = vmatprep.subr.bf16.mxu0 0
      %3674 = vmatpush1.bf16.msra.mxu0 0
      %3675 = vmatprep.subr.bf16.mxu0 0
      %3676 = vmatpush1.bf16.msra.mxu0 0
      %3677 = vmatprep.mubr.bf16.mxu0 0
      %3678 = vmatmul.mubr.bf16.gmra.mrb[0].mxu0 %v3631
      %v3679 = vpop.f32.mrb[0].mxu0
      %v3680 = vadd.f32 0.0, %v3679
      %v3681 = vpop.f32.mrb[0].mxu0
      %v3682 = vadd.f32 0.0, %v3681
      %v3683 = vpop.f32.mrb[0].mxu0
      %v3684 = vadd.f32 0.0, %v3683
      %v3685 = vpop.f32.mrb[0].mxu0
      %v3686 = vadd.f32 0.0, %v3685
      %3687 = vdwg.mxu0
      %3688 = vmatprep.subr.bf16.mxu0 %v3643
      %3689 = vmatpush1.bf16.msra.mxu0 %v3640
      %3690 = vmatprep.subr.bf16.mxu0 0
      %3691 = vmatpush1.bf16.msra.mxu0 0
      %3692 = vmatprep.subr.bf16.mxu0 0
      %3693 = vmatpush1.bf16.msra.mxu0 0
      %3694 = vmatprep.subr.bf16.mxu0 0
      %3695 = vmatpush1.bf16.msra.mxu0 0
      %3696 = vmatprep.subr.bf16.mxu0 0
      %3697 = vmatpush1.bf16.msra.mxu0 0
      %3698 = vmatprep.subr.bf16.mxu0 0
      %3699 = vmatpush1.bf16.msra.mxu0 0
      %3700 = vmatprep.subr.bf16.mxu0 0
      %3701 = vmatpush1.bf16.msra.mxu0 0
      %3702 = vmatprep.subr.bf16.mxu0 0
      %3703 = vmatpush1.bf16.msra.mxu0 0
      %3704 = vmatprep.subr.bf16.mxu0 0
      %3705 = vmatpush1.bf16.msra.mxu0 0
      %3706 = vmatprep.subr.bf16.mxu0 0
      %3707 = vmatpush1.bf16.msra.mxu0 0
      %3708 = vmatprep.subr.bf16.mxu0 0
      %3709 = vmatpush1.bf16.msra.mxu0 0
      %3710 = vmatprep.subr.bf16.mxu0 0
      %3711 = vmatpush1.bf16.msra.mxu0 0
      %3712 = vmatprep.subr.bf16.mxu0 0
      %3713 = vmatpush1.bf16.msra.mxu0 0
      %3714 = vmatprep.subr.bf16.mxu0 0
      %3715 = vmatpush1.bf16.msra.mxu0 0
      %3716 = vmatprep.subr.bf16.mxu0 0
      %3717 = vmatpush1.bf16.msra.mxu0 0
      %3718 = vmatprep.subr.bf16.mxu0 0
      %3719 = vmatpush1.bf16.msra.mxu0 0
      %3720 = vmatprep.mubr.bf16.mxu0 0
      %3721 = vmatmul.mubr.bf16.gmra.mrb[0].mxu0 %v3631
      %v3722 = vpop.f32.mrb[0].mxu0
      %v3723 = vadd.f32 0.0, %v3722
      %v3724 = vpop.f32.mrb[0].mxu0
      %v3725 = vadd.f32 0.0, %v3724
      %v3726 = vpop.f32.mrb[0].mxu0
      %v3727 = vadd.f32 0.0, %v3726
      %v3728 = vpop.f32.mrb[0].mxu0
      %v3729 = vadd.f32 0.0, %v3728
      %3730 = vdwg.mxu0
      %v3731 = vadd.f32 %v3594, %v3680
      %v3732 = vadd.f32 %v3595, %v3682
      %v3733 = vadd.f32 %v3596, %v3723
      %v3734 = vadd.f32 %v3597, %v3725
      %v3735 = vadd.f32 %v3598, %v3684
      %v3736 = vadd.f32 %v3599, %v3686
      %v3737 = vadd.f32 %v3600, %v3727
      %v3738 = vadd.f32 %v3601, %v3729
      %3739 = vrot.lane.b32.xlu0 %v1374, 112
      %v3740 = vpop.permute.xlu0 %3739
      %3741 = vrot.lane.b32.xlu0 %v1375, 112
      %v3742 = vpop.permute.xlu0 %3741
      %3743 = vrot.lane.b32.xlu0 %v1376, 112
      %v3744 = vpop.permute.xlu0 %3743
      %3745 = vrot.lane.b32.xlu0 %v1377, 112
      %v3746 = vpop.permute.xlu0 %3745
      %v3747 = vsel %vm1073, %v3744, %v3746
      %v3748 = vsel %vm1073, %v3742, %v3744
      %v3749 = vsel %vm1073, %v3740, %v3742
      %v3750 = vsel %vm1073, %v3746, %v3740
      %v3751 = vmul.f32 %v3749, %v1084
      %v3752 = vmul.f32 %v3748, %v1088
      %v3753 = vmul.f32 %v3747, %v1092
      %v3754 = vmul.f32 %v3750, %v1096
      %s3755 = scalar_lea.vmem %s7, 56
      %v3756 = vld [vmem:[%s3755] sm:$0xf]
      %v3757 = vld [vmem:[%s3755 + $0x4] sm:$0xf]
      %v3758 = vpack.c.bf16 %v3751, %v3751
      %v3759 = vpack.c.bf16 %v3752, %v3752
      %v3760 = vpack.c.bf16 %v3753, %v3753
      %v3761 = vpack.c.bf16 %v3754, %v3754
      %v3764 = vunpack.c.l.b16 %v3756
      %v3765 = vunpack.c.l.b16 %v3757
      %v3766 = vpack.c.b16 %v3765, %v3764
      %v3768 = vsel %vm174, %v3766, 0
      %v3771 = vsel %vm178, %v3758, 0
      %v3774 = vsel %vm178, %v3759, 0
      %v3777 = vsel %vm178, %v3760, 0
      %v3780 = vsel %vm178, %v3761, 0
      %3782 = vmatprep.subr.bf16.mxu0 %v3774
      %3783 = vmatpush1.bf16.msra.mxu0 %v3771
      %3784 = vmatprep.subr.bf16.mxu0 0
      %3785 = vmatpush1.bf16.msra.mxu0 0
      %3786 = vmatprep.subr.bf16.mxu0 0
      %3787 = vmatpush1.bf16.msra.mxu0 0
      %3788 = vmatprep.subr.bf16.mxu0 0
      %3789 = vmatpush1.bf16.msra.mxu0 0
      %3790 = vmatprep.subr.bf16.mxu0 0
      %3791 = vmatpush1.bf16.msra.mxu0 0
      %3792 = vmatprep.subr.bf16.mxu0 0
      %3793 = vmatpush1.bf16.msra.mxu0 0
      %3794 = vmatprep.subr.bf16.mxu0 0
      %3795 = vmatpush1.bf16.msra.mxu0 0
      %3796 = vmatprep.subr.bf16.mxu0 0
      %3797 = vmatpush1.bf16.msra.mxu0 0
      %3798 = vmatprep.subr.bf16.mxu0 0
      %3799 = vmatpush1.bf16.msra.mxu0 0
      %3800 = vmatprep.subr.bf16.mxu0 0
      %3801 = vmatpush1.bf16.msra.mxu0 0
      %3802 = vmatprep.subr.bf16.mxu0 0
      %3803 = vmatpush1.bf16.msra.mxu0 0
      %3804 = vmatprep.subr.bf16.mxu0 0
      %3805 = vmatpush1.bf16.msra.mxu0 0
      %3806 = vmatprep.subr.bf16.mxu0 0
      %3807 = vmatpush1.bf16.msra.mxu0 0
      %3808 = vmatprep.subr.bf16.mxu0 0
      %3809 = vmatpush1.bf16.msra.mxu0 0
      %3810 = vmatprep.subr.bf16.mxu0 0
      %3811 = vmatpush1.bf16.msra.mxu0 0
      %3812 = vmatprep.subr.bf16.mxu0 0
      %3813 = vmatpush1.bf16.msra.mxu0 0
      %3814 = vmatprep.mubr.bf16.mxu0 0
      %3815 = vmatmul.mubr.bf16.gmra.mrb[0].mxu0 %v3768
      %v3816 = vpop.f32.mrb[0].mxu0
      %v3817 = vadd.f32 0.0, %v3816
      %v3818 = vpop.f32.mrb[0].mxu0
      %v3819 = vadd.f32 0.0, %v3818
      %v3820 = vpop.f32.mrb[0].mxu0
      %v3821 = vadd.f32 0.0, %v3820
      %v3822 = vpop.f32.mrb[0].mxu0
      %v3823 = vadd.f32 0.0, %v3822
      %3824 = vdwg.mxu0
      %3825 = vmatprep.subr.bf16.mxu0 %v3780
      %3826 = vmatpush1.bf16.msra.mxu0 %v3777
      %3827 = vmatprep.subr.bf16.mxu0 0
      %3828 = vmatpush1.bf16.msra.mxu0 0
      %3829 = vmatprep.subr.bf16.mxu0 0
      %3830 = vmatpush1.bf16.msra.mxu0 0
      %3831 = vmatprep.subr.bf16.mxu0 0
      %3832 = vmatpush1.bf16.msra.mxu0 0
      %3833 = vmatprep.subr.bf16.mxu0 0
      %3834 = vmatpush1.bf16.msra.mxu0 0
      %3835 = vmatprep.subr.bf16.mxu0 0
      %3836 = vmatpush1.bf16.msra.mxu0 0
      %3837 = vmatprep.subr.bf16.mxu0 0
      %3838 = vmatpush1.bf16.msra.mxu0 0
      %3839 = vmatprep.subr.bf16.mxu0 0
      %3840 = vmatpush1.bf16.msra.mxu0 0
      %3841 = vmatprep.subr.bf16.mxu0 0
      %3842 = vmatpush1.bf16.msra.mxu0 0
      %3843 = vmatprep.subr.bf16.mxu0 0
      %3844 = vmatpush1.bf16.msra.mxu0 0
      %3845 = vmatprep.subr.bf16.mxu0 0
      %3846 = vmatpush1.bf16.msra.mxu0 0
      %3847 = vmatprep.subr.bf16.mxu0 0
      %3848 = vmatpush1.bf16.msra.mxu0 0
      %3849 = vmatprep.subr.bf16.mxu0 0
      %3850 = vmatpush1.bf16.msra.mxu0 0
      %3851 = vmatprep.subr.bf16.mxu0 0
      %3852 = vmatpush1.bf16.msra.mxu0 0
      %3853 = vmatprep.subr.bf16.mxu0 0
      %3854 = vmatpush1.bf16.msra.mxu0 0
      %3855 = vmatprep.subr.bf16.mxu0 0
      %3856 = vmatpush1.bf16.msra.mxu0 0
      %3857 = vmatprep.mubr.bf16.mxu0 0
      %3858 = vmatmul.mubr.bf16.gmra.mrb[0].mxu0 %v3768
      %v3859 = vpop.f32.mrb[0].mxu0
      %v3860 = vadd.f32 0.0, %v3859
      %v3861 = vpop.f32.mrb[0].mxu0
      %v3862 = vadd.f32 0.0, %v3861
      %v3863 = vpop.f32.mrb[0].mxu0
      %v3864 = vadd.f32 0.0, %v3863
      %v3865 = vpop.f32.mrb[0].mxu0
      %v3866 = vadd.f32 0.0, %v3865
      %3867 = vdwg.mxu0
      %v3868 = vadd.f32 %v3731, %v3817
      %v3869 = vadd.f32 %v3732, %v3819
      %v3870 = vadd.f32 %v3733, %v3860
      %v3871 = vadd.f32 %v3734, %v3862
      %v3872 = vadd.f32 %v3735, %v3821
      %v3873 = vadd.f32 %v3736, %v3823
      %v3874 = vadd.f32 %v3737, %v3864
      %v3875 = vadd.f32 %v3738, %v3866
      %3876 = vrot.lane.b32.xlu0 %v1374, 111
      %v3877 = vpop.permute.xlu0 %3876
      %3878 = vrot.lane.b32.xlu0 %v1375, 111
      %v3879 = vpop.permute.xlu0 %3878
      %3880 = vrot.lane.b32.xlu0 %v1376, 111
      %v3881 = vpop.permute.xlu0 %3880
      %3882 = vrot.lane.b32.xlu0 %v1377, 111
      %v3883 = vpop.permute.xlu0 %3882
      %v3884 = vsel %vm1220, %v3881, %v3883
      %v3885 = vsel %vm1220, %v3879, %v3881
      %v3886 = vsel %vm1220, %v3877, %v3879
      %v3887 = vsel %vm1220, %v3883, %v3877
      %v3888 = vmul.f32 %v3886, %v1231
      %v3889 = vmul.f32 %v3885, %v1235
      %v3890 = vmul.f32 %v3884, %v1239
      %v3891 = vmul.f32 %v3887, %v1243
      %s3892 = scalar_lea.vmem %s7, 64
      %v3893 = vld [vmem:[%s3892] sm:$0xf]
      %v3894 = vld [vmem:[%s3892 + $0x4] sm:$0xf]
      %v3895 = vpack.c.bf16 %v3888, %v3888
      %v3896 = vpack.c.bf16 %v3889, %v3889
      %v3897 = vpack.c.bf16 %v3890, %v3890
      %v3898 = vpack.c.bf16 %v3891, %v3891
      %v3901 = vunpack.c.l.b16 %v3893
      %v3902 = vunpack.c.l.b16 %v3894
      %v3903 = vpack.c.b16 %v3902, %v3901
      %v3905 = vsel %vm174, %v3903, 0
      %v3908 = vsel %vm178, %v3895, 0
      %v3911 = vsel %vm178, %v3896, 0
      %v3914 = vsel %vm178, %v3897, 0
      %v3917 = vsel %vm178, %v3898, 0
      %3919 = vmatprep.subr.bf16.mxu0 %v3911
      %3920 = vmatpush1.bf16.msra.mxu0 %v3908
      %3921 = vmatprep.subr.bf16.mxu0 0
      %3922 = vmatpush1.bf16.msra.mxu0 0
      %3923 = vmatprep.subr.bf16.mxu0 0
      %3924 = vmatpush1.bf16.msra.mxu0 0
      %3925 = vmatprep.subr.bf16.mxu0 0
      %3926 = vmatpush1.bf16.msra.mxu0 0
      %3927 = vmatprep.subr.bf16.mxu0 0
      %3928 = vmatpush1.bf16.msra.mxu0 0
      %3929 = vmatprep.subr.bf16.mxu0 0
      %3930 = vmatpush1.bf16.msra.mxu0 0
      %3931 = vmatprep.subr.bf16.mxu0 0
      %3932 = vmatpush1.bf16.msra.mxu0 0
      %3933 = vmatprep.subr.bf16.mxu0 0
      %3934 = vmatpush1.bf16.msra.mxu0 0
      %3935 = vmatprep.subr.bf16.mxu0 0
      %3936 = vmatpush1.bf16.msra.mxu0 0
      %3937 = vmatprep.subr.bf16.mxu0 0
      %3938 = vmatpush1.bf16.msra.mxu0 0
      %3939 = vmatprep.subr.bf16.mxu0 0
      %3940 = vmatpush1.bf16.msra.mxu0 0
      %3941 = vmatprep.subr.bf16.mxu0 0
      %3942 = vmatpush1.bf16.msra.mxu0 0
      %3943 = vmatprep.subr.bf16.mxu0 0
      %3944 = vmatpush1.bf16.msra.mxu0 0
      %3945 = vmatprep.subr.bf16.mxu0 0
      %3946 = vmatpush1.bf16.msra.mxu0 0
      %3947 = vmatprep.subr.bf16.mxu0 0
      %3948 = vmatpush1.bf16.msra.mxu0 0
      %3949 = vmatprep.subr.bf16.mxu0 0
      %3950 = vmatpush1.bf16.msra.mxu0 0
      %3951 = vmatprep.mubr.bf16.mxu0 0
      %3952 = vmatmul.mubr.bf16.gmra.mrb[0].mxu0 %v3905
      %v3953 = vpop.f32.mrb[0].mxu0
      %v3954 = vadd.f32 0.0, %v3953
      %v3955 = vpop.f32.mrb[0].mxu0
      %v3956 = vadd.f32 0.0, %v3955
      %v3957 = vpop.f32.mrb[0].mxu0
      %v3958 = vadd.f32 0.0, %v3957
      %v3959 = vpop.f32.mrb[0].mxu0
      %v3960 = vadd.f32 0.0, %v3959
      %3961 = vdwg.mxu0
      %3962 = vmatprep.subr.bf16.mxu0 %v3917
      %3963 = vmatpush1.bf16.msra.mxu0 %v3914
      %3964 = vmatprep.subr.bf16.mxu0 0
      %3965 = vmatpush1.bf16.msra.mxu0 0
      %3966 = vmatprep.subr.bf16.mxu0 0
      %3967 = vmatpush1.bf16.msra.mxu0 0
      %3968 = vmatprep.subr.bf16.mxu0 0
      %3969 = vmatpush1.bf16.msra.mxu0 0
      %3970 = vmatprep.subr.bf16.mxu0 0
      %3971 = vmatpush1.bf16.msra.mxu0 0
      %3972 = vmatprep.subr.bf16.mxu0 0
      %3973 = vmatpush1.bf16.msra.mxu0 0
      %3974 = vmatprep.subr.bf16.mxu0 0
      %3975 = vmatpush1.bf16.msra.mxu0 0
      %3976 = vmatprep.subr.bf16.mxu0 0
      %3977 = vmatpush1.bf16.msra.mxu0 0
      %3978 = vmatprep.subr.bf16.mxu0 0
      %3979 = vmatpush1.bf16.msra.mxu0 0
      %3980 = vmatprep.subr.bf16.mxu0 0
      %3981 = vmatpush1.bf16.msra.mxu0 0
      %3982 = vmatprep.subr.bf16.mxu0 0
      %3983 = vmatpush1.bf16.msra.mxu0 0
      %3984 = vmatprep.subr.bf16.mxu0 0
      %3985 = vmatpush1.bf16.msra.mxu0 0
      %3986 = vmatprep.subr.bf16.mxu0 0
      %3987 = vmatpush1.bf16.msra.mxu0 0
      %3988 = vmatprep.subr.bf16.mxu0 0
      %3989 = vmatpush1.bf16.msra.mxu0 0
      %3990 = vmatprep.subr.bf16.mxu0 0
      %3991 = vmatpush1.bf16.msra.mxu0 0
      %3992 = vmatprep.subr.bf16.mxu0 0
      %3993 = vmatpush1.bf16.msra.mxu0 0
      %3994 = vmatprep.mubr.bf16.mxu0 0
      %3995 = vmatmul.mubr.bf16.gmra.mrb[0].mxu0 %v3905
      %v3996 = vpop.f32.mrb[0].mxu0
      %v3997 = vadd.f32 0.0, %v3996
      %v3998 = vpop.f32.mrb[0].mxu0
      %v3999 = vadd.f32 0.0, %v3998
      %v4000 = vpop.f32.mrb[0].mxu0
      %v4001 = vadd.f32 0.0, %v4000
      %v4002 = vpop.f32.mrb[0].mxu0
      %v4003 = vadd.f32 0.0, %v4002
      %4004 = vdwg.mxu0
      %v4005 = vadd.f32 %v3868, %v3954
      %v4006 = vadd.f32 %v3869, %v3956
      %v4007 = vadd.f32 %v3870, %v3997
      %v4008 = vadd.f32 %v3871, %v3999
      %v4009 = vadd.f32 %v3872, %v3958
      %v4010 = vadd.f32 %v3873, %v3960
      %v4011 = vadd.f32 %v3874, %v4001
      %v4012 = vadd.f32 %v3875, %v4003
      %v4013 = vadd.f32 %v2801, %v4005
      %v4014 = vadd.f32 %v2802, %v4006
      %v4015 = vadd.f32 %v2803, %v4007
      %v4016 = vadd.f32 %v2804, %v4008
      %v4017 = vadd.f32 %v2805, %v4009
      %v4018 = vadd.f32 %v2806, %v4010
      %v4019 = vadd.f32 %v2807, %v4011
      %v4020 = vadd.f32 %v2808, %v4012
      %v4021 = vld [vmem:[%s8] sm:$0xff]
      %v4022 = vld [vmem:[%s8 + $0x8] sm:$0xff]
      %4024 = vset.pattern.permute.xlu0 0
      %4025 = vperm.xlu0 %4024, %v4021
      %v4026 = vpop.permute.xlu0 %4025
      %4029 = vset.pattern.permute.xlu0 0
      %4030 = vperm.xlu0 %4029, %v4022
      %v4031 = vpop.permute.xlu0 %4030
      %v4033 = vadd.f32 %v4013, %v4026
      %v4034 = vadd.f32 %v4014, %v4026
      %v4035 = vadd.f32 %v4015, %v4026
      %v4036 = vadd.f32 %v4016, %v4026
      %v4037 = vadd.f32 %v4017, %v4031
      %v4038 = vadd.f32 %v4018, %v4031
      %v4039 = vadd.f32 %v4019, %v4031
      %v4040 = vadd.f32 %v4020, %v4031
      %v4041 = vxor.u32 %v4033, 2147483648
      %v4042 = vxor.u32 %v4034, 2147483648
      %v4043 = vxor.u32 %v4035, 2147483648
      %v4044 = vxor.u32 %v4036, 2147483648
      %v4045 = vxor.u32 %v4037, 2147483648
      %v4046 = vxor.u32 %v4038, 2147483648
      %v4047 = vxor.u32 %v4039, 2147483648
      %v4048 = vxor.u32 %v4040, 2147483648
      %v4049 = vmul.f32 %v4041, 1.442695
      %v4050 = vpow.pop %v4049
      %v4051 = vmul.f32 %v4042, 1.442695
      %v4052 = vpow.pop %v4051
      %v4053 = vmul.f32 %v4043, 1.442695
      %v4054 = vpow.pop %v4053
      %v4055 = vmul.f32 %v4044, 1.442695
      %v4056 = vpow.pop %v4055
      %v4057 = vmul.f32 %v4045, 1.442695
      %v4058 = vpow.pop %v4057
      %v4059 = vmul.f32 %v4046, 1.442695
      %v4060 = vpow.pop %v4059
      %v4061 = vmul.f32 %v4047, 1.442695
      %v4062 = vpow.pop %v4061
      %v4063 = vmul.f32 %v4048, 1.442695
      %v4064 = vpow.pop %v4063
      %v4065 = vadd.f32 %v4050, 1.0
      %v4066 = vadd.f32 %v4052, 1.0
      %v4067 = vadd.f32 %v4054, 1.0
      %v4068 = vadd.f32 %v4056, 1.0
      %v4069 = vadd.f32 %v4058, 1.0
      %v4070 = vadd.f32 %v4060, 1.0
      %v4071 = vadd.f32 %v4062, 1.0
      %v4072 = vadd.f32 %v4064, 1.0
      %v4073 = vrcp.pop %v4065
      %v4074 = vmul.f32 1.0, %v4073
      %v4075 = vrcp.pop %v4066
      %v4076 = vmul.f32 1.0, %v4075
      %v4077 = vrcp.pop %v4067
      %v4078 = vmul.f32 1.0, %v4077
      %v4079 = vrcp.pop %v4068
      %v4080 = vmul.f32 1.0, %v4079
      %v4081 = vrcp.pop %v4069
      %v4082 = vmul.f32 1.0, %v4081
      %v4083 = vrcp.pop %v4070
      %v4084 = vmul.f32 1.0, %v4083
      %v4085 = vrcp.pop %v4071
      %v4086 = vmul.f32 1.0, %v4085
      %v4087 = vrcp.pop %v4072
      %v4088 = vmul.f32 1.0, %v4087
      %v4089 = vmul.f32 %v4074, %v1374
      %v4090 = vmul.f32 %v4076, %v1375
      %v4091 = vmul.f32 %v4078, %v1376
      %v4092 = vmul.f32 %v4080, %v1377
      %4093 = vrot.lane.b32.xlu0 %v4089, 17
      %v4094 = vpop.permute.xlu0 %4093
      %4095 = vrot.lane.b32.xlu0 %v4090, 17
      %v4096 = vpop.permute.xlu0 %4095
      %4097 = vrot.lane.b32.xlu0 %v4091, 17
      %v4098 = vpop.permute.xlu0 %4097
      %4099 = vrot.lane.b32.xlu0 %v4092, 17
      %v4100 = vpop.permute.xlu0 %4099
      %v4101 = vsel %vm92, %v4098, %v4100
      %v4102 = vsel %vm92, %v4096, %v4098
      %v4103 = vsel %vm92, %v4094, %v4096
      %v4104 = vsel %vm92, %v4100, %v4094
      %v4105 = vmul.f32 %v4104, %v102
      %v4106 = vmul.f32 %v4103, %v106
      %v4107 = vmul.f32 %v4102, %v110
      %v4108 = vmul.f32 %v4101, %v114
      %v4109 = vld [vmem:[%s9] sm:$0xf]
      %v4110 = vpack.c.bf16 %v4105, %v4105
      %v4111 = vpack.c.bf16 %v4106, %v4106
      %v4112 = vpack.c.bf16 %v4107, %v4107
      %v4113 = vpack.c.bf16 %v4108, %v4108
      %4114 = vrot.lane.b32.xlu0 %v4089, 16
      %v4115 = vpop.permute.xlu0 %4114
      %4116 = vrot.lane.b32.xlu0 %v4090, 16
      %v4117 = vpop.permute.xlu0 %4116
      %4118 = vrot.lane.b32.xlu0 %v4091, 16
      %v4119 = vpop.permute.xlu0 %4118
      %4120 = vrot.lane.b32.xlu0 %v4092, 16
      %v4121 = vpop.permute.xlu0 %4120
      %v4122 = vsel %vm136, %v4119, %v4121
      %v4123 = vsel %vm136, %v4117, %v4119
      %v4124 = vsel %vm136, %v4115, %v4117
      %v4125 = vsel %vm136, %v4121, %v4115
      %v4126 = vmul.f32 %v4125, %v147
      %v4127 = vmul.f32 %v4124, %v151
      %v4128 = vmul.f32 %v4123, %v155
      %v4129 = vmul.f32 %v4122, %v159
      %s4130 = scalar_lea.vmem %s9, 4
      %v4131 = vld [vmem:[%s4130] sm:$0xf]
      %v4132 = vpack.c.bf16 %v4126, %v4126
      %v4133 = vpack.c.bf16 %v4127, %v4127
      %v4134 = vpack.c.bf16 %v4128, %v4128
      %v4135 = vpack.c.bf16 %v4129, %v4129
      %v4137 = vsel %vm174, %v4131, 0
      %v4140 = vsel %vm178, %v4132, 0
      %v4143 = vsel %vm178, %v4133, 0
      %v4146 = vsel %vm178, %v4134, 0
      %v4149 = vsel %vm178, %v4135, 0
      %4151 = vmatprep.subr.bf16.mxu0 %v4143
      %4152 = vmatpush1.bf16.msra.mxu0 %v4140
      %4153 = vmatprep.subr.bf16.mxu0 0
      %4154 = vmatpush1.bf16.msra.mxu0 0
      %4155 = vmatprep.subr.bf16.mxu0 0
      %4156 = vmatpush1.bf16.msra.mxu0 0
      %4157 = vmatprep.subr.bf16.mxu0 0
      %4158 = vmatpush1.bf16.msra.mxu0 0
      %4159 = vmatprep.subr.bf16.mxu0 0
      %4160 = vmatpush1.bf16.msra.mxu0 0
      %4161 = vmatprep.subr.bf16.mxu0 0
      %4162 = vmatpush1.bf16.msra.mxu0 0
      %4163 = vmatprep.subr.bf16.mxu0 0
      %4164 = vmatpush1.bf16.msra.mxu0 0
      %4165 = vmatprep.subr.bf16.mxu0 0
      %4166 = vmatpush1.bf16.msra.mxu0 0
      %4167 = vmatprep.subr.bf16.mxu0 0
      %4168 = vmatpush1.bf16.msra.mxu0 0
      %4169 = vmatprep.subr.bf16.mxu0 0
      %4170 = vmatpush1.bf16.msra.mxu0 0
      %4171 = vmatprep.subr.bf16.mxu0 0
      %4172 = vmatpush1.bf16.msra.mxu0 0
      %4173 = vmatprep.subr.bf16.mxu0 0
      %4174 = vmatpush1.bf16.msra.mxu0 0
      %4175 = vmatprep.subr.bf16.mxu0 0
      %4176 = vmatpush1.bf16.msra.mxu0 0
      %4177 = vmatprep.subr.bf16.mxu0 0
      %4178 = vmatpush1.bf16.msra.mxu0 0
      %4179 = vmatprep.subr.bf16.mxu0 0
      %4180 = vmatpush1.bf16.msra.mxu0 0
      %4181 = vmatprep.subr.bf16.mxu0 0
      %4182 = vmatpush1.bf16.msra.mxu0 0
      %4183 = vmatprep.mubr.bf16.mxu0 0
      %4184 = vmatmul.mubr.bf16.gmra.mrb[0].mxu0 %v4137
      %v4185 = vpop.f32.mrb[0].mxu0
      %v4186 = vadd.f32 0.0, %v4185
      %v4187 = vpop.f32.mrb[0].mxu0
      %v4188 = vadd.f32 0.0, %v4187
      %v4189 = vpop.f32.mrb[0].mxu0
      %v4190 = vpop.f32.mrb[0].mxu0
      %4191 = vdwg.mxu0
      %4192 = vmatprep.subr.bf16.mxu0 %v4149
      %4193 = vmatpush1.bf16.msra.mxu0 %v4146
      %4194 = vmatprep.subr.bf16.mxu0 0
      %4195 = vmatpush1.bf16.msra.mxu0 0
      %4196 = vmatprep.subr.bf16.mxu0 0
      %4197 = vmatpush1.bf16.msra.mxu0 0
      %4198 = vmatprep.subr.bf16.mxu0 0
      %4199 = vmatpush1.bf16.msra.mxu0 0
      %4200 = vmatprep.subr.bf16.mxu0 0
      %4201 = vmatpush1.bf16.msra.mxu0 0
      %4202 = vmatprep.subr.bf16.mxu0 0
      %4203 = vmatpush1.bf16.msra.mxu0 0
      %4204 = vmatprep.subr.bf16.mxu0 0
      %4205 = vmatpush1.bf16.msra.mxu0 0
      %4206 = vmatprep.subr.bf16.mxu0 0
      %4207 = vmatpush1.bf16.msra.mxu0 0
      %4208 = vmatprep.subr.bf16.mxu0 0
      %4209 = vmatpush1.bf16.msra.mxu0 0
      %4210 = vmatprep.subr.bf16.mxu0 0
      %4211 = vmatpush1.bf16.msra.mxu0 0
      %4212 = vmatprep.subr.bf16.mxu0 0
      %4213 = vmatpush1.bf16.msra.mxu0 0
      %4214 = vmatprep.subr.bf16.mxu0 0
      %4215 = vmatpush1.bf16.msra.mxu0 0
      %4216 = vmatprep.subr.bf16.mxu0 0
      %4217 = vmatpush1.bf16.msra.mxu0 0
      %4218 = vmatprep.subr.bf16.mxu0 0
      %4219 = vmatpush1.bf16.msra.mxu0 0
      %4220 = vmatprep.subr.bf16.mxu0 0
      %4221 = vmatpush1.bf16.msra.mxu0 0
      %4222 = vmatprep.subr.bf16.mxu0 0
      %4223 = vmatpush1.bf16.msra.mxu0 0
      %4224 = vmatprep.mubr.bf16.mxu0 0
      %4225 = vmatmul.mubr.bf16.gmra.mrb[0].mxu0 %v4137
      %v4226 = vpop.f32.mrb[0].mxu0
      %v4227 = vadd.f32 0.0, %v4226
      %v4228 = vpop.f32.mrb[0].mxu0
      %v4229 = vadd.f32 0.0, %v4228
      %v4230 = vpop.f32.mrb[0].mxu0
      %v4231 = vpop.f32.mrb[0].mxu0
      %4232 = vdwg.mxu0
      %v4234 = vsel %vm174, %v4109, 0
      %v4237 = vsel %vm178, %v4110, 0
      %v4240 = vsel %vm178, %v4111, 0
      %v4243 = vsel %vm178, %v4112, 0
      %v4246 = vsel %vm178, %v4113, 0
      %4248 = vmatprep.subr.bf16.mxu0 %v4240
      %4249 = vmatpush1.bf16.msra.mxu0 %v4237
      %4250 = vmatprep.subr.bf16.mxu0 0
      %4251 = vmatpush1.bf16.msra.mxu0 0
      %4252 = vmatprep.subr.bf16.mxu0 0
      %4253 = vmatpush1.bf16.msra.mxu0 0
      %4254 = vmatprep.subr.bf16.mxu0 0
      %4255 = vmatpush1.bf16.msra.mxu0 0
      %4256 = vmatprep.subr.bf16.mxu0 0
      %4257 = vmatpush1.bf16.msra.mxu0 0
      %4258 = vmatprep.subr.bf16.mxu0 0
      %4259 = vmatpush1.bf16.msra.mxu0 0
      %4260 = vmatprep.subr.bf16.mxu0 0
      %4261 = vmatpush1.bf16.msra.mxu0 0
      %4262 = vmatprep.subr.bf16.mxu0 0
      %4263 = vmatpush1.bf16.msra.mxu0 0
      %4264 = vmatprep.subr.bf16.mxu0 0
      %4265 = vmatpush1.bf16.msra.mxu0 0
      %4266 = vmatprep.subr.bf16.mxu0 0
      %4267 = vmatpush1.bf16.msra.mxu0 0
      %4268 = vmatprep.subr.bf16.mxu0 0
      %4269 = vmatpush1.bf16.msra.mxu0 0
      %4270 = vmatprep.subr.bf16.mxu0 0
      %4271 = vmatpush1.bf16.msra.mxu0 0
      %4272 = vmatprep.subr.bf16.mxu0 0
      %4273 = vmatpush1.bf16.msra.mxu0 0
      %4274 = vmatprep.subr.bf16.mxu0 0
      %4275 = vmatpush1.bf16.msra.mxu0 0
      %4276 = vmatprep.subr.bf16.mxu0 0
      %4277 = vmatpush1.bf16.msra.mxu0 0
      %4278 = vmatprep.subr.bf16.mxu0 0
      %4279 = vmatpush1.bf16.msra.mxu0 0
      %4280 = vmatprep.mubr.bf16.mxu0 0
      %4281 = vmatmul.mubr.bf16.gmra.mrb[0].mxu0 %v4234
      %v4282 = vpop.f32.mrb[0].mxu0
      %v4283 = vadd.f32 %v4186, %v4282
      %v4284 = vpop.f32.mrb[0].mxu0
      %v4285 = vadd.f32 %v4188, %v4284
      %v4286 = vpop.f32.mrb[0].mxu0
      %v4287 = vpop.f32.mrb[0].mxu0
      %4288 = vdwg.mxu0
      %4289 = vmatprep.subr.bf16.mxu0 %v4246
      %4290 = vmatpush1.bf16.msra.mxu0 %v4243
      %4291 = vmatprep.subr.bf16.mxu0 0
      %4292 = vmatpush1.bf16.msra.mxu0 0
      %4293 = vmatprep.subr.bf16.mxu0 0
      %4294 = vmatpush1.bf16.msra.mxu0 0
      %4295 = vmatprep.subr.bf16.mxu0 0
      %4296 = vmatpush1.bf16.msra.mxu0 0
      %4297 = vmatprep.subr.bf16.mxu0 0
      %4298 = vmatpush1.bf16.msra.mxu0 0
      %4299 = vmatprep.subr.bf16.mxu0 0
      %4300 = vmatpush1.bf16.msra.mxu0 0
      %4301 = vmatprep.subr.bf16.mxu0 0
      %4302 = vmatpush1.bf16.msra.mxu0 0
      %4303 = vmatprep.subr.bf16.mxu0 0
      %4304 = vmatpush1.bf16.msra.mxu0 0
      %4305 = vmatprep.subr.bf16.mxu0 0
      %4306 = vmatpush1.bf16.msra.mxu0 0
      %4307 = vmatprep.subr.bf16.mxu0 0
      %4308 = vmatpush1.bf16.msra.mxu0 0
      %4309 = vmatprep.subr.bf16.mxu0 0
      %4310 = vmatpush1.bf16.msra.mxu0 0
      %4311 = vmatprep.subr.bf16.mxu0 0
      %4312 = vmatpush1.bf16.msra.mxu0 0
      %4313 = vmatprep.subr.bf16.mxu0 0
      %4314 = vmatpush1.bf16.msra.mxu0 0
      %4315 = vmatprep.subr.bf16.mxu0 0
      %4316 = vmatpush1.bf16.msra.mxu0 0
      %4317 = vmatprep.subr.bf16.mxu0 0
      %4318 = vmatpush1.bf16.msra.mxu0 0
      %4319 = vmatprep.subr.bf16.mxu0 0
      %4320 = vmatpush1.bf16.msra.mxu0 0
      %4321 = vmatprep.mubr.bf16.mxu0 0
      %4322 = vmatmul.mubr.bf16.gmra.mrb[0].mxu0 %v4234
      %v4323 = vpop.f32.mrb[0].mxu0
      %v4324 = vadd.f32 %v4227, %v4323
      %v4325 = vpop.f32.mrb[0].mxu0
      %v4326 = vadd.f32 %v4229, %v4325
      %v4327 = vpop.f32.mrb[0].mxu0
      %v4328 = vpop.f32.mrb[0].mxu0
      %4329 = vdwg.mxu0
      %4330 = vrot.lane.b32.xlu0 %v4089, 15
      %v4331 = vpop.permute.xlu0 %4330
      %4332 = vrot.lane.b32.xlu0 %v4090, 15
      %v4333 = vpop.permute.xlu0 %4332
      %4334 = vrot.lane.b32.xlu0 %v4091, 15
      %v4335 = vpop.permute.xlu0 %4334
      %4336 = vrot.lane.b32.xlu0 %v4092, 15
      %v4337 = vpop.permute.xlu0 %4336
      %v4338 = vsel %vm378, %v4335, %v4337
      %v4339 = vsel %vm378, %v4333, %v4335
      %v4340 = vsel %vm378, %v4331, %v4333
      %v4341 = vsel %vm378, %v4337, %v4331
      %v4342 = vmul.f32 %v4341, %v389
      %v4343 = vmul.f32 %v4340, %v393
      %v4344 = vmul.f32 %v4339, %v397
      %v4345 = vmul.f32 %v4338, %v401
      %s4346 = scalar_lea.vmem %s9, 8
      %v4347 = vld [vmem:[%s4346] sm:$0xf]
      %v4348 = vpack.c.bf16 %v4342, %v4342
      %v4349 = vpack.c.bf16 %v4343, %v4343
      %v4350 = vpack.c.bf16 %v4344, %v4344
      %v4351 = vpack.c.bf16 %v4345, %v4345
      %v4353 = vsel %vm174, %v4347, 0
      %v4356 = vsel %vm178, %v4348, 0
      %v4359 = vsel %vm178, %v4349, 0
      %v4362 = vsel %vm178, %v4350, 0
      %v4365 = vsel %vm178, %v4351, 0
      %4367 = vmatprep.subr.bf16.mxu0 %v4359
      %4368 = vmatpush1.bf16.msra.mxu0 %v4356
      %4369 = vmatprep.subr.bf16.mxu0 0
      %4370 = vmatpush1.bf16.msra.mxu0 0
      %4371 = vmatprep.subr.bf16.mxu0 0
      %4372 = vmatpush1.bf16.msra.mxu0 0
      %4373 = vmatprep.subr.bf16.mxu0 0
      %4374 = vmatpush1.bf16.msra.mxu0 0
      %4375 = vmatprep.subr.bf16.mxu0 0
      %4376 = vmatpush1.bf16.msra.mxu0 0
      %4377 = vmatprep.subr.bf16.mxu0 0
      %4378 = vmatpush1.bf16.msra.mxu0 0
      %4379 = vmatprep.subr.bf16.mxu0 0
      %4380 = vmatpush1.bf16.msra.mxu0 0
      %4381 = vmatprep.subr.bf16.mxu0 0
      %4382 = vmatpush1.bf16.msra.mxu0 0
      %4383 = vmatprep.subr.bf16.mxu0 0
      %4384 = vmatpush1.bf16.msra.mxu0 0
      %4385 = vmatprep.subr.bf16.mxu0 0
      %4386 = vmatpush1.bf16.msra.mxu0 0
      %4387 = vmatprep.subr.bf16.mxu0 0
      %4388 = vmatpush1.bf16.msra.mxu0 0
      %4389 = vmatprep.subr.bf16.mxu0 0
      %4390 = vmatpush1.bf16.msra.mxu0 0
      %4391 = vmatprep.subr.bf16.mxu0 0
      %4392 = vmatpush1.bf16.msra.mxu0 0
      %4393 = vmatprep.subr.bf16.mxu0 0
      %4394 = vmatpush1.bf16.msra.mxu0 0
      %4395 = vmatprep.subr.bf16.mxu0 0
      %4396 = vmatpush1.bf16.msra.mxu0 0
      %4397 = vmatprep.subr.bf16.mxu0 0
      %4398 = vmatpush1.bf16.msra.mxu0 0
      %4399 = vmatprep.mubr.bf16.mxu0 0
      %4400 = vmatmul.mubr.bf16.gmra.mrb[0].mxu0 %v4353
      %v4401 = vpop.f32.mrb[0].mxu0
      %v4402 = vadd.f32 0.0, %v4401
      %v4403 = vpop.f32.mrb[0].mxu0
      %v4404 = vadd.f32 0.0, %v4403
      %v4405 = vpop.f32.mrb[0].mxu0
      %v4406 = vpop.f32.mrb[0].mxu0
      %4407 = vdwg.mxu0
      %4408 = vmatprep.subr.bf16.mxu0 %v4365
      %4409 = vmatpush1.bf16.msra.mxu0 %v4362
      %4410 = vmatprep.subr.bf16.mxu0 0
      %4411 = vmatpush1.bf16.msra.mxu0 0
      %4412 = vmatprep.subr.bf16.mxu0 0
      %4413 = vmatpush1.bf16.msra.mxu0 0
      %4414 = vmatprep.subr.bf16.mxu0 0
      %4415 = vmatpush1.bf16.msra.mxu0 0
      %4416 = vmatprep.subr.bf16.mxu0 0
      %4417 = vmatpush1.bf16.msra.mxu0 0
      %4418 = vmatprep.subr.bf16.mxu0 0
      %4419 = vmatpush1.bf16.msra.mxu0 0
      %4420 = vmatprep.subr.bf16.mxu0 0
      %4421 = vmatpush1.bf16.msra.mxu0 0
      %4422 = vmatprep.subr.bf16.mxu0 0
      %4423 = vmatpush1.bf16.msra.mxu0 0
      %4424 = vmatprep.subr.bf16.mxu0 0
      %4425 = vmatpush1.bf16.msra.mxu0 0
      %4426 = vmatprep.subr.bf16.mxu0 0
      %4427 = vmatpush1.bf16.msra.mxu0 0
      %4428 = vmatprep.subr.bf16.mxu0 0
      %4429 = vmatpush1.bf16.msra.mxu0 0
      %4430 = vmatprep.subr.bf16.mxu0 0
      %4431 = vmatpush1.bf16.msra.mxu0 0
      %4432 = vmatprep.subr.bf16.mxu0 0
      %4433 = vmatpush1.bf16.msra.mxu0 0
      %4434 = vmatprep.subr.bf16.mxu0 0
      %4435 = vmatpush1.bf16.msra.mxu0 0
      %4436 = vmatprep.subr.bf16.mxu0 0
      %4437 = vmatpush1.bf16.msra.mxu0 0
      %4438 = vmatprep.subr.bf16.mxu0 0
      %4439 = vmatpush1.bf16.msra.mxu0 0
      %4440 = vmatprep.mubr.bf16.mxu0 0
      %4441 = vmatmul.mubr.bf16.gmra.mrb[0].mxu0 %v4353
      %v4442 = vpop.f32.mrb[0].mxu0
      %v4443 = vadd.f32 0.0, %v4442
      %v4444 = vpop.f32.mrb[0].mxu0
      %v4445 = vadd.f32 0.0, %v4444
      %v4446 = vpop.f32.mrb[0].mxu0
      %v4447 = vpop.f32.mrb[0].mxu0
      %4448 = vdwg.mxu0
      %v4449 = vadd.f32 %v4283, %v4402
      %v4450 = vadd.f32 %v4285, %v4404
      %v4451 = vadd.f32 %v4324, %v4443
      %v4452 = vadd.f32 %v4326, %v4445
      %4453 = vrot.lane.b32.xlu0 %v4089, 1
      %v4454 = vpop.permute.xlu0 %4453
      %4455 = vrot.lane.b32.xlu0 %v4090, 1
      %v4456 = vpop.permute.xlu0 %4455
      %4457 = vrot.lane.b32.xlu0 %v4091, 1
      %v4458 = vpop.permute.xlu0 %4457
      %4459 = vrot.lane.b32.xlu0 %v4092, 1
      %v4460 = vpop.permute.xlu0 %4459
      %v4461 = vsel %vm525, %v4458, %v4460
      %v4462 = vsel %vm525, %v4456, %v4458
      %v4463 = vsel %vm525, %v4454, %v4456
      %v4464 = vsel %vm525, %v4460, %v4454
      %v4465 = vmul.f32 %v4464, %v536
      %v4466 = vmul.f32 %v4463, %v540
      %v4467 = vmul.f32 %v4462, %v544
      %v4468 = vmul.f32 %v4461, %v548
      %s4469 = scalar_lea.vmem %s9, 12
      %v4470 = vld [vmem:[%s4469] sm:$0xf]
      %v4471 = vpack.c.bf16 %v4465, %v4465
      %v4472 = vpack.c.bf16 %v4466, %v4466
      %v4473 = vpack.c.bf16 %v4467, %v4467
      %v4474 = vpack.c.bf16 %v4468, %v4468
      %v4476 = vsel %vm174, %v4470, 0
      %v4479 = vsel %vm178, %v4471, 0
      %v4482 = vsel %vm178, %v4472, 0
      %v4485 = vsel %vm178, %v4473, 0
      %v4488 = vsel %vm178, %v4474, 0
      %4490 = vmatprep.subr.bf16.mxu0 %v4482
      %4491 = vmatpush1.bf16.msra.mxu0 %v4479
      %4492 = vmatprep.subr.bf16.mxu0 0
      %4493 = vmatpush1.bf16.msra.mxu0 0
      %4494 = vmatprep.subr.bf16.mxu0 0
      %4495 = vmatpush1.bf16.msra.mxu0 0
      %4496 = vmatprep.subr.bf16.mxu0 0
      %4497 = vmatpush1.bf16.msra.mxu0 0
      %4498 = vmatprep.subr.bf16.mxu0 0
      %4499 = vmatpush1.bf16.msra.mxu0 0
      %4500 = vmatprep.subr.bf16.mxu0 0
      %4501 = vmatpush1.bf16.msra.mxu0 0
      %4502 = vmatprep.subr.bf16.mxu0 0
      %4503 = vmatpush1.bf16.msra.mxu0 0
      %4504 = vmatprep.subr.bf16.mxu0 0
      %4505 = vmatpush1.bf16.msra.mxu0 0
      %4506 = vmatprep.subr.bf16.mxu0 0
      %4507 = vmatpush1.bf16.msra.mxu0 0
      %4508 = vmatprep.subr.bf16.mxu0 0
      %4509 = vmatpush1.bf16.msra.mxu0 0
      %4510 = vmatprep.subr.bf16.mxu0 0
      %4511 = vmatpush1.bf16.msra.mxu0 0
      %4512 = vmatprep.subr.bf16.mxu0 0
      %4513 = vmatpush1.bf16.msra.mxu0 0
      %4514 = vmatprep.subr.bf16.mxu0 0
      %4515 = vmatpush1.bf16.msra.mxu0 0
      %4516 = vmatprep.subr.bf16.mxu0 0
      %4517 = vmatpush1.bf16.msra.mxu0 0
      %4518 = vmatprep.subr.bf16.mxu0 0
      %4519 = vmatpush1.bf16.msra.mxu0 0
      %4520 = vmatprep.subr.bf16.mxu0 0
      %4521 = vmatpush1.bf16.msra.mxu0 0
      %4522 = vmatprep.mubr.bf16.mxu0 0
      %4523 = vmatmul.mubr.bf16.gmra.mrb[0].mxu0 %v4476
      %v4524 = vpop.f32.mrb[0].mxu0
      %v4525 = vadd.f32 0.0, %v4524
      %v4526 = vpop.f32.mrb[0].mxu0
      %v4527 = vadd.f32 0.0, %v4526
      %v4528 = vpop.f32.mrb[0].mxu0
      %v4529 = vpop.f32.mrb[0].mxu0
      %4530 = vdwg.mxu0
      %4531 = vmatprep.subr.bf16.mxu0 %v4488
      %4532 = vmatpush1.bf16.msra.mxu0 %v4485
      %4533 = vmatprep.subr.bf16.mxu0 0
      %4534 = vmatpush1.bf16.msra.mxu0 0
      %4535 = vmatprep.subr.bf16.mxu0 0
      %4536 = vmatpush1.bf16.msra.mxu0 0
      %4537 = vmatprep.subr.bf16.mxu0 0
      %4538 = vmatpush1.bf16.msra.mxu0 0
      %4539 = vmatprep.subr.bf16.mxu0 0
      %4540 = vmatpush1.bf16.msra.mxu0 0
      %4541 = vmatprep.subr.bf16.mxu0 0
      %4542 = vmatpush1.bf16.msra.mxu0 0
      %4543 = vmatprep.subr.bf16.mxu0 0
      %4544 = vmatpush1.bf16.msra.mxu0 0
      %4545 = vmatprep.subr.bf16.mxu0 0
      %4546 = vmatpush1.bf16.msra.mxu0 0
      %4547 = vmatprep.subr.bf16.mxu0 0
      %4548 = vmatpush1.bf16.msra.mxu0 0
      %4549 = vmatprep.subr.bf16.mxu0 0
      %4550 = vmatpush1.bf16.msra.mxu0 0
      %4551 = vmatprep.subr.bf16.mxu0 0
      %4552 = vmatpush1.bf16.msra.mxu0 0
      %4553 = vmatprep.subr.bf16.mxu0 0
      %4554 = vmatpush1.bf16.msra.mxu0 0
      %4555 = vmatprep.subr.bf16.mxu0 0
      %4556 = vmatpush1.bf16.msra.mxu0 0
      %4557 = vmatprep.subr.bf16.mxu0 0
      %4558 = vmatpush1.bf16.msra.mxu0 0
      %4559 = vmatprep.subr.bf16.mxu0 0
      %4560 = vmatpush1.bf16.msra.mxu0 0
      %4561 = vmatprep.subr.bf16.mxu0 0
      %4562 = vmatpush1.bf16.msra.mxu0 0
      %4563 = vmatprep.mubr.bf16.mxu0 0
      %4564 = vmatmul.mubr.bf16.gmra.mrb[0].mxu0 %v4476
      %v4565 = vpop.f32.mrb[0].mxu0
      %v4566 = vadd.f32 0.0, %v4565
      %v4567 = vpop.f32.mrb[0].mxu0
      %v4568 = vadd.f32 0.0, %v4567
      %v4569 = vpop.f32.mrb[0].mxu0
      %v4570 = vpop.f32.mrb[0].mxu0
      %4571 = vdwg.mxu0
      %v4572 = vadd.f32 %v4449, %v4525
      %v4573 = vadd.f32 %v4450, %v4527
      %v4574 = vadd.f32 %v4451, %v4566
      %v4575 = vadd.f32 %v4452, %v4568
      %s4576 = scalar_lea.vmem %s9, 16
      %v4577 = vld [vmem:[%s4576] sm:$0xf]
      %v4578 = vpack.c.bf16 %v4089, %v4089
      %v4579 = vpack.c.bf16 %v4090, %v4090
      %v4580 = vpack.c.bf16 %v4091, %v4091
      %v4581 = vpack.c.bf16 %v4092, %v4092
      %v4583 = vsel %vm174, %v4577, 0
      %v4586 = vsel %vm178, %v4578, 0
      %v4589 = vsel %vm178, %v4579, 0
      %v4592 = vsel %vm178, %v4580, 0
      %v4595 = vsel %vm178, %v4581, 0
      %4597 = vmatprep.subr.bf16.mxu0 %v4589
      %4598 = vmatpush1.bf16.msra.mxu0 %v4586
      %4599 = vmatprep.subr.bf16.mxu0 0
      %4600 = vmatpush1.bf16.msra.mxu0 0
      %4601 = vmatprep.subr.bf16.mxu0 0
      %4602 = vmatpush1.bf16.msra.mxu0 0
      %4603 = vmatprep.subr.bf16.mxu0 0
      %4604 = vmatpush1.bf16.msra.mxu0 0
      %4605 = vmatprep.subr.bf16.mxu0 0
      %4606 = vmatpush1.bf16.msra.mxu0 0
      %4607 = vmatprep.subr.bf16.mxu0 0
      %4608 = vmatpush1.bf16.msra.mxu0 0
      %4609 = vmatprep.subr.bf16.mxu0 0
      %4610 = vmatpush1.bf16.msra.mxu0 0
      %4611 = vmatprep.subr.bf16.mxu0 0
      %4612 = vmatpush1.bf16.msra.mxu0 0
      %4613 = vmatprep.subr.bf16.mxu0 0
      %4614 = vmatpush1.bf16.msra.mxu0 0
      %4615 = vmatprep.subr.bf16.mxu0 0
      %4616 = vmatpush1.bf16.msra.mxu0 0
      %4617 = vmatprep.subr.bf16.mxu0 0
      %4618 = vmatpush1.bf16.msra.mxu0 0
      %4619 = vmatprep.subr.bf16.mxu0 0
      %4620 = vmatpush1.bf16.msra.mxu0 0
      %4621 = vmatprep.subr.bf16.mxu0 0
      %4622 = vmatpush1.bf16.msra.mxu0 0
      %4623 = vmatprep.subr.bf16.mxu0 0
      %4624 = vmatpush1.bf16.msra.mxu0 0
      %4625 = vmatprep.subr.bf16.mxu0 0
      %4626 = vmatpush1.bf16.msra.mxu0 0
      %4627 = vmatprep.subr.bf16.mxu0 0
      %4628 = vmatpush1.bf16.msra.mxu0 0
      %4629 = vmatprep.mubr.bf16.mxu0 0
      %4630 = vmatmul.mubr.bf16.gmra.mrb[0].mxu0 %v4583
      %v4631 = vpop.f32.mrb[0].mxu0
      %v4632 = vadd.f32 0.0, %v4631
      %v4633 = vpop.f32.mrb[0].mxu0
      %v4634 = vadd.f32 0.0, %v4633
      %v4635 = vpop.f32.mrb[0].mxu0
      %v4636 = vpop.f32.mrb[0].mxu0
      %4637 = vdwg.mxu0
      %4638 = vmatprep.subr.bf16.mxu0 %v4595
      %4639 = vmatpush1.bf16.msra.mxu0 %v4592
      %4640 = vmatprep.subr.bf16.mxu0 0
      %4641 = vmatpush1.bf16.msra.mxu0 0
      %4642 = vmatprep.subr.bf16.mxu0 0
      %4643 = vmatpush1.bf16.msra.mxu0 0
      %4644 = vmatprep.subr.bf16.mxu0 0
      %4645 = vmatpush1.bf16.msra.mxu0 0
      %4646 = vmatprep.subr.bf16.mxu0 0
      %4647 = vmatpush1.bf16.msra.mxu0 0
      %4648 = vmatprep.subr.bf16.mxu0 0
      %4649 = vmatpush1.bf16.msra.mxu0 0
      %4650 = vmatprep.subr.bf16.mxu0 0
      %4651 = vmatpush1.bf16.msra.mxu0 0
      %4652 = vmatprep.subr.bf16.mxu0 0
      %4653 = vmatpush1.bf16.msra.mxu0 0
      %4654 = vmatprep.subr.bf16.mxu0 0
      %4655 = vmatpush1.bf16.msra.mxu0 0
      %4656 = vmatprep.subr.bf16.mxu0 0
      %4657 = vmatpush1.bf16.msra.mxu0 0
      %4658 = vmatprep.subr.bf16.mxu0 0
      %4659 = vmatpush1.bf16.msra.mxu0 0
      %4660 = vmatprep.subr.bf16.mxu0 0
      %4661 = vmatpush1.bf16.msra.mxu0 0
      %4662 = vmatprep.subr.bf16.mxu0 0
      %4663 = vmatpush1.bf16.msra.mxu0 0
      %4664 = vmatprep.subr.bf16.mxu0 0
      %4665 = vmatpush1.bf16.msra.mxu0 0
      %4666 = vmatprep.subr.bf16.mxu0 0
      %4667 = vmatpush1.bf16.msra.mxu0 0
      %4668 = vmatprep.subr.bf16.mxu0 0
      %4669 = vmatpush1.bf16.msra.mxu0 0
      %4670 = vmatprep.mubr.bf16.mxu0 0
      %4671 = vmatmul.mubr.bf16.gmra.mrb[0].mxu0 %v4583
      %v4672 = vpop.f32.mrb[0].mxu0
      %v4673 = vadd.f32 0.0, %v4672
      %v4674 = vpop.f32.mrb[0].mxu0
      %v4675 = vadd.f32 0.0, %v4674
      %v4676 = vpop.f32.mrb[0].mxu0
      %v4677 = vpop.f32.mrb[0].mxu0
      %4678 = vdwg.mxu0
      %v4679 = vadd.f32 %v4572, %v4632
      %v4680 = vadd.f32 %v4573, %v4634
      %v4681 = vadd.f32 %v4574, %v4673
      %v4682 = vadd.f32 %v4575, %v4675
      %4683 = vrot.lane.b32.xlu0 %v4089, 127
      %v4684 = vpop.permute.xlu0 %4683
      %4685 = vrot.lane.b32.xlu0 %v4090, 127
      %v4686 = vpop.permute.xlu0 %4685
      %4687 = vrot.lane.b32.xlu0 %v4091, 127
      %v4688 = vpop.permute.xlu0 %4687
      %4689 = vrot.lane.b32.xlu0 %v4092, 127
      %v4690 = vpop.permute.xlu0 %4689
      %v4691 = vsel %vm779, %v4688, %v4690
      %v4692 = vsel %vm779, %v4686, %v4688
      %v4693 = vsel %vm779, %v4684, %v4686
      %v4694 = vsel %vm779, %v4690, %v4684
      %v4695 = vmul.f32 %v4693, %v790
      %v4696 = vmul.f32 %v4692, %v794
      %v4697 = vmul.f32 %v4691, %v798
      %v4698 = vmul.f32 %v4694, %v802
      %s4699 = scalar_lea.vmem %s9, 20
      %v4700 = vld [vmem:[%s4699] sm:$0xf]
      %v4701 = vpack.c.bf16 %v4695, %v4695
      %v4702 = vpack.c.bf16 %v4696, %v4696
      %v4703 = vpack.c.bf16 %v4697, %v4697
      %v4704 = vpack.c.bf16 %v4698, %v4698
      %v4706 = vsel %vm174, %v4700, 0
      %v4709 = vsel %vm178, %v4701, 0
      %v4712 = vsel %vm178, %v4702, 0
      %v4715 = vsel %vm178, %v4703, 0
      %v4718 = vsel %vm178, %v4704, 0
      %4720 = vmatprep.subr.bf16.mxu0 %v4712
      %4721 = vmatpush1.bf16.msra.mxu0 %v4709
      %4722 = vmatprep.subr.bf16.mxu0 0
      %4723 = vmatpush1.bf16.msra.mxu0 0
      %4724 = vmatprep.subr.bf16.mxu0 0
      %4725 = vmatpush1.bf16.msra.mxu0 0
      %4726 = vmatprep.subr.bf16.mxu0 0
      %4727 = vmatpush1.bf16.msra.mxu0 0
      %4728 = vmatprep.subr.bf16.mxu0 0
      %4729 = vmatpush1.bf16.msra.mxu0 0
      %4730 = vmatprep.subr.bf16.mxu0 0
      %4731 = vmatpush1.bf16.msra.mxu0 0
      %4732 = vmatprep.subr.bf16.mxu0 0
      %4733 = vmatpush1.bf16.msra.mxu0 0
      %4734 = vmatprep.subr.bf16.mxu0 0
      %4735 = vmatpush1.bf16.msra.mxu0 0
      %4736 = vmatprep.subr.bf16.mxu0 0
      %4737 = vmatpush1.bf16.msra.mxu0 0
      %4738 = vmatprep.subr.bf16.mxu0 0
      %4739 = vmatpush1.bf16.msra.mxu0 0
      %4740 = vmatprep.subr.bf16.mxu0 0
      %4741 = vmatpush1.bf16.msra.mxu0 0
      %4742 = vmatprep.subr.bf16.mxu0 0
      %4743 = vmatpush1.bf16.msra.mxu0 0
      %4744 = vmatprep.subr.bf16.mxu0 0
      %4745 = vmatpush1.bf16.msra.mxu0 0
      %4746 = vmatprep.subr.bf16.mxu0 0
      %4747 = vmatpush1.bf16.msra.mxu0 0
      %4748 = vmatprep.subr.bf16.mxu0 0
      %4749 = vmatpush1.bf16.msra.mxu0 0
      %4750 = vmatprep.subr.bf16.mxu0 0
      %4751 = vmatpush1.bf16.msra.mxu0 0
      %4752 = vmatprep.mubr.bf16.mxu0 0
      %4753 = vmatmul.mubr.bf16.gmra.mrb[0].mxu0 %v4706
      %v4754 = vpop.f32.mrb[0].mxu0
      %v4755 = vadd.f32 0.0, %v4754
      %v4756 = vpop.f32.mrb[0].mxu0
      %v4757 = vadd.f32 0.0, %v4756
      %v4758 = vpop.f32.mrb[0].mxu0
      %v4759 = vpop.f32.mrb[0].mxu0
      %4760 = vdwg.mxu0
      %4761 = vmatprep.subr.bf16.mxu0 %v4718
      %4762 = vmatpush1.bf16.msra.mxu0 %v4715
      %4763 = vmatprep.subr.bf16.mxu0 0
      %4764 = vmatpush1.bf16.msra.mxu0 0
      %4765 = vmatprep.subr.bf16.mxu0 0
      %4766 = vmatpush1.bf16.msra.mxu0 0
      %4767 = vmatprep.subr.bf16.mxu0 0
      %4768 = vmatpush1.bf16.msra.mxu0 0
      %4769 = vmatprep.subr.bf16.mxu0 0
      %4770 = vmatpush1.bf16.msra.mxu0 0
      %4771 = vmatprep.subr.bf16.mxu0 0
      %4772 = vmatpush1.bf16.msra.mxu0 0
      %4773 = vmatprep.subr.bf16.mxu0 0
      %4774 = vmatpush1.bf16.msra.mxu0 0
      %4775 = vmatprep.subr.bf16.mxu0 0
      %4776 = vmatpush1.bf16.msra.mxu0 0
      %4777 = vmatprep.subr.bf16.mxu0 0
      %4778 = vmatpush1.bf16.msra.mxu0 0
      %4779 = vmatprep.subr.bf16.mxu0 0
      %4780 = vmatpush1.bf16.msra.mxu0 0
      %4781 = vmatprep.subr.bf16.mxu0 0
      %4782 = vmatpush1.bf16.msra.mxu0 0
      %4783 = vmatprep.subr.bf16.mxu0 0
      %4784 = vmatpush1.bf16.msra.mxu0 0
      %4785 = vmatprep.subr.bf16.mxu0 0
      %4786 = vmatpush1.bf16.msra.mxu0 0
      %4787 = vmatprep.subr.bf16.mxu0 0
      %4788 = vmatpush1.bf16.msra.mxu0 0
      %4789 = vmatprep.subr.bf16.mxu0 0
      %4790 = vmatpush1.bf16.msra.mxu0 0
      %4791 = vmatprep.subr.bf16.mxu0 0
      %4792 = vmatpush1.bf16.msra.mxu0 0
      %4793 = vmatprep.mubr.bf16.mxu0 0
      %4794 = vmatmul.mubr.bf16.gmra.mrb[0].mxu0 %v4706
      %v4795 = vpop.f32.mrb[0].mxu0
      %v4796 = vadd.f32 0.0, %v4795
      %v4797 = vpop.f32.mrb[0].mxu0
      %v4798 = vadd.f32 0.0, %v4797
      %v4799 = vpop.f32.mrb[0].mxu0
      %v4800 = vpop.f32.mrb[0].mxu0
      %4801 = vdwg.mxu0
      %v4802 = vadd.f32 %v4679, %v4755
      %v4803 = vadd.f32 %v4680, %v4757
      %v4804 = vadd.f32 %v4681, %v4796
      %v4805 = vadd.f32 %v4682, %v4798
      %4806 = vrot.lane.b32.xlu0 %v4089, 113
      %v4807 = vpop.permute.xlu0 %4806
      %4808 = vrot.lane.b32.xlu0 %v4090, 113
      %v4809 = vpop.permute.xlu0 %4808
      %4810 = vrot.lane.b32.xlu0 %v4091, 113
      %v4811 = vpop.permute.xlu0 %4810
      %4812 = vrot.lane.b32.xlu0 %v4092, 113
      %v4813 = vpop.permute.xlu0 %4812
      %v4814 = vsel %vm926, %v4811, %v4813
      %v4815 = vsel %vm926, %v4809, %v4811
      %v4816 = vsel %vm926, %v4807, %v4809
      %v4817 = vsel %vm926, %v4813, %v4807
      %v4818 = vmul.f32 %v4816, %v937
      %v4819 = vmul.f32 %v4815, %v941
      %v4820 = vmul.f32 %v4814, %v945
      %v4821 = vmul.f32 %v4817, %v949
      %s4822 = scalar_lea.vmem %s9, 24
      %v4823 = vld [vmem:[%s4822] sm:$0xf]
      %v4824 = vpack.c.bf16 %v4818, %v4818
      %v4825 = vpack.c.bf16 %v4819, %v4819
      %v4826 = vpack.c.bf16 %v4820, %v4820
      %v4827 = vpack.c.bf16 %v4821, %v4821
      %v4829 = vsel %vm174, %v4823, 0
      %v4832 = vsel %vm178, %v4824, 0
      %v4835 = vsel %vm178, %v4825, 0
      %v4838 = vsel %vm178, %v4826, 0
      %v4841 = vsel %vm178, %v4827, 0
      %4843 = vmatprep.subr.bf16.mxu0 %v4835
      %4844 = vmatpush1.bf16.msra.mxu0 %v4832
      %4845 = vmatprep.subr.bf16.mxu0 0
      %4846 = vmatpush1.bf16.msra.mxu0 0
      %4847 = vmatprep.subr.bf16.mxu0 0
      %4848 = vmatpush1.bf16.msra.mxu0 0
      %4849 = vmatprep.subr.bf16.mxu0 0
      %4850 = vmatpush1.bf16.msra.mxu0 0
      %4851 = vmatprep.subr.bf16.mxu0 0
      %4852 = vmatpush1.bf16.msra.mxu0 0
      %4853 = vmatprep.subr.bf16.mxu0 0
      %4854 = vmatpush1.bf16.msra.mxu0 0
      %4855 = vmatprep.subr.bf16.mxu0 0
      %4856 = vmatpush1.bf16.msra.mxu0 0
      %4857 = vmatprep.subr.bf16.mxu0 0
      %4858 = vmatpush1.bf16.msra.mxu0 0
      %4859 = vmatprep.subr.bf16.mxu0 0
      %4860 = vmatpush1.bf16.msra.mxu0 0
      %4861 = vmatprep.subr.bf16.mxu0 0
      %4862 = vmatpush1.bf16.msra.mxu0 0
      %4863 = vmatprep.subr.bf16.mxu0 0
      %4864 = vmatpush1.bf16.msra.mxu0 0
      %4865 = vmatprep.subr.bf16.mxu0 0
      %4866 = vmatpush1.bf16.msra.mxu0 0
      %4867 = vmatprep.subr.bf16.mxu0 0
      %4868 = vmatpush1.bf16.msra.mxu0 0
      %4869 = vmatprep.subr.bf16.mxu0 0
      %4870 = vmatpush1.bf16.msra.mxu0 0
      %4871 = vmatprep.subr.bf16.mxu0 0
      %4872 = vmatpush1.bf16.msra.mxu0 0
      %4873 = vmatprep.subr.bf16.mxu0 0
      %4874 = vmatpush1.bf16.msra.mxu0 0
      %4875 = vmatprep.mubr.bf16.mxu0 0
      %4876 = vmatmul.mubr.bf16.gmra.mrb[0].mxu0 %v4829
      %v4877 = vpop.f32.mrb[0].mxu0
      %v4878 = vadd.f32 0.0, %v4877
      %v4879 = vpop.f32.mrb[0].mxu0
      %v4880 = vadd.f32 0.0, %v4879
      %v4881 = vpop.f32.mrb[0].mxu0
      %v4882 = vpop.f32.mrb[0].mxu0
      %4883 = vdwg.mxu0
      %4884 = vmatprep.subr.bf16.mxu0 %v4841
      %4885 = vmatpush1.bf16.msra.mxu0 %v4838
      %4886 = vmatprep.subr.bf16.mxu0 0
      %4887 = vmatpush1.bf16.msra.mxu0 0
      %4888 = vmatprep.subr.bf16.mxu0 0
      %4889 = vmatpush1.bf16.msra.mxu0 0
      %4890 = vmatprep.subr.bf16.mxu0 0
      %4891 = vmatpush1.bf16.msra.mxu0 0
      %4892 = vmatprep.subr.bf16.mxu0 0
      %4893 = vmatpush1.bf16.msra.mxu0 0
      %4894 = vmatprep.subr.bf16.mxu0 0
      %4895 = vmatpush1.bf16.msra.mxu0 0
      %4896 = vmatprep.subr.bf16.mxu0 0
      %4897 = vmatpush1.bf16.msra.mxu0 0
      %4898 = vmatprep.subr.bf16.mxu0 0
      %4899 = vmatpush1.bf16.msra.mxu0 0
      %4900 = vmatprep.subr.bf16.mxu0 0
      %4901 = vmatpush1.bf16.msra.mxu0 0
      %4902 = vmatprep.subr.bf16.mxu0 0
      %4903 = vmatpush1.bf16.msra.mxu0 0
      %4904 = vmatprep.subr.bf16.mxu0 0
      %4905 = vmatpush1.bf16.msra.mxu0 0
      %4906 = vmatprep.subr.bf16.mxu0 0
      %4907 = vmatpush1.bf16.msra.mxu0 0
      %4908 = vmatprep.subr.bf16.mxu0 0
      %4909 = vmatpush1.bf16.msra.mxu0 0
      %4910 = vmatprep.subr.bf16.mxu0 0
      %4911 = vmatpush1.bf16.msra.mxu0 0
      %4912 = vmatprep.subr.bf16.mxu0 0
      %4913 = vmatpush1.bf16.msra.mxu0 0
      %4914 = vmatprep.subr.bf16.mxu0 0
      %4915 = vmatpush1.bf16.msra.mxu0 0
      %4916 = vmatprep.mubr.bf16.mxu0 0
      %4917 = vmatmul.mubr.bf16.gmra.mrb[0].mxu0 %v4829
      %v4918 = vpop.f32.mrb[0].mxu0
      %v4919 = vadd.f32 0.0, %v4918
      %v4920 = vpop.f32.mrb[0].mxu0
      %v4921 = vadd.f32 0.0, %v4920
      %v4922 = vpop.f32.mrb[0].mxu0
      %v4923 = vpop.f32.mrb[0].mxu0
      %4924 = vdwg.mxu0
      %v4925 = vadd.f32 %v4802, %v4878
      %v4926 = vadd.f32 %v4803, %v4880
      %v4927 = vadd.f32 %v4804, %v4919
      %v4928 = vadd.f32 %v4805, %v4921
      %4929 = vrot.lane.b32.xlu0 %v4089, 112
      %v4930 = vpop.permute.xlu0 %4929
      %4931 = vrot.lane.b32.xlu0 %v4090, 112
      %v4932 = vpop.permute.xlu0 %4931
      %4933 = vrot.lane.b32.xlu0 %v4091, 112
      %v4934 = vpop.permute.xlu0 %4933
      %4935 = vrot.lane.b32.xlu0 %v4092, 112
      %v4936 = vpop.permute.xlu0 %4935
      %v4937 = vsel %vm1073, %v4934, %v4936
      %v4938 = vsel %vm1073, %v4932, %v4934
      %v4939 = vsel %vm1073, %v4930, %v4932
      %v4940 = vsel %vm1073, %v4936, %v4930
      %v4941 = vmul.f32 %v4939, %v1084
      %v4942 = vmul.f32 %v4938, %v1088
      %v4943 = vmul.f32 %v4937, %v1092
      %v4944 = vmul.f32 %v4940, %v1096
      %s4945 = scalar_lea.vmem %s9, 28
      %v4946 = vld [vmem:[%s4945] sm:$0xf]
      %v4947 = vpack.c.bf16 %v4941, %v4941
      %v4948 = vpack.c.bf16 %v4942, %v4942
      %v4949 = vpack.c.bf16 %v4943, %v4943
      %v4950 = vpack.c.bf16 %v4944, %v4944
      %v4952 = vsel %vm174, %v4946, 0
      %v4955 = vsel %vm178, %v4947, 0
      %v4958 = vsel %vm178, %v4948, 0
      %v4961 = vsel %vm178, %v4949, 0
      %v4964 = vsel %vm178, %v4950, 0
      %4966 = vmatprep.subr.bf16.mxu0 %v4958
      %4967 = vmatpush1.bf16.msra.mxu0 %v4955
      %4968 = vmatprep.subr.bf16.mxu0 0
      %4969 = vmatpush1.bf16.msra.mxu0 0
      %4970 = vmatprep.subr.bf16.mxu0 0
      %4971 = vmatpush1.bf16.msra.mxu0 0
      %4972 = vmatprep.subr.bf16.mxu0 0
      %4973 = vmatpush1.bf16.msra.mxu0 0
      %4974 = vmatprep.subr.bf16.mxu0 0
      %4975 = vmatpush1.bf16.msra.mxu0 0
      %4976 = vmatprep.subr.bf16.mxu0 0
      %4977 = vmatpush1.bf16.msra.mxu0 0
      %4978 = vmatprep.subr.bf16.mxu0 0
      %4979 = vmatpush1.bf16.msra.mxu0 0
      %4980 = vmatprep.subr.bf16.mxu0 0
      %4981 = vmatpush1.bf16.msra.mxu0 0
      %4982 = vmatprep.subr.bf16.mxu0 0
      %4983 = vmatpush1.bf16.msra.mxu0 0
      %4984 = vmatprep.subr.bf16.mxu0 0
      %4985 = vmatpush1.bf16.msra.mxu0 0
      %4986 = vmatprep.subr.bf16.mxu0 0
      %4987 = vmatpush1.bf16.msra.mxu0 0
      %4988 = vmatprep.subr.bf16.mxu0 0
      %4989 = vmatpush1.bf16.msra.mxu0 0
      %4990 = vmatprep.subr.bf16.mxu0 0
      %4991 = vmatpush1.bf16.msra.mxu0 0
      %4992 = vmatprep.subr.bf16.mxu0 0
      %4993 = vmatpush1.bf16.msra.mxu0 0
      %4994 = vmatprep.subr.bf16.mxu0 0
      %4995 = vmatpush1.bf16.msra.mxu0 0
      %4996 = vmatprep.subr.bf16.mxu0 0
      %4997 = vmatpush1.bf16.msra.mxu0 0
      %4998 = vmatprep.mubr.bf16.mxu0 0
      %4999 = vmatmul.mubr.bf16.gmra.mrb[0].mxu0 %v4952
      %v5000 = vpop.f32.mrb[0].mxu0
      %v5001 = vadd.f32 0.0, %v5000
      %v5002 = vpop.f32.mrb[0].mxu0
      %v5003 = vadd.f32 0.0, %v5002
      %v5004 = vpop.f32.mrb[0].mxu0
      %v5005 = vpop.f32.mrb[0].mxu0
      %5006 = vdwg.mxu0
      %5007 = vmatprep.subr.bf16.mxu0 %v4964
      %5008 = vmatpush1.bf16.msra.mxu0 %v4961
      %5009 = vmatprep.subr.bf16.mxu0 0
      %5010 = vmatpush1.bf16.msra.mxu0 0
      %5011 = vmatprep.subr.bf16.mxu0 0
      %5012 = vmatpush1.bf16.msra.mxu0 0
      %5013 = vmatprep.subr.bf16.mxu0 0
      %5014 = vmatpush1.bf16.msra.mxu0 0
      %5015 = vmatprep.subr.bf16.mxu0 0
      %5016 = vmatpush1.bf16.msra.mxu0 0
      %5017 = vmatprep.subr.bf16.mxu0 0
      %5018 = vmatpush1.bf16.msra.mxu0 0
      %5019 = vmatprep.subr.bf16.mxu0 0
      %5020 = vmatpush1.bf16.msra.mxu0 0
      %5021 = vmatprep.subr.bf16.mxu0 0
      %5022 = vmatpush1.bf16.msra.mxu0 0
      %5023 = vmatprep.subr.bf16.mxu0 0
      %5024 = vmatpush1.bf16.msra.mxu0 0
      %5025 = vmatprep.subr.bf16.mxu0 0
      %5026 = vmatpush1.bf16.msra.mxu0 0
      %5027 = vmatprep.subr.bf16.mxu0 0
      %5028 = vmatpush1.bf16.msra.mxu0 0
      %5029 = vmatprep.subr.bf16.mxu0 0
      %5030 = vmatpush1.bf16.msra.mxu0 0
      %5031 = vmatprep.subr.bf16.mxu0 0
      %5032 = vmatpush1.bf16.msra.mxu0 0
      %5033 = vmatprep.subr.bf16.mxu0 0
      %5034 = vmatpush1.bf16.msra.mxu0 0
      %5035 = vmatprep.subr.bf16.mxu0 0
      %5036 = vmatpush1.bf16.msra.mxu0 0
      %5037 = vmatprep.subr.bf16.mxu0 0
      %5038 = vmatpush1.bf16.msra.mxu0 0
      %5039 = vmatprep.mubr.bf16.mxu0 0
      %5040 = vmatmul.mubr.bf16.gmra.mrb[0].mxu0 %v4952
      %v5041 = vpop.f32.mrb[0].mxu0
      %v5042 = vadd.f32 0.0, %v5041
      %v5043 = vpop.f32.mrb[0].mxu0
      %v5044 = vadd.f32 0.0, %v5043
      %v5045 = vpop.f32.mrb[0].mxu0
      %v5046 = vpop.f32.mrb[0].mxu0
      %5047 = vdwg.mxu0
      %v5048 = vadd.f32 %v4925, %v5001
      %v5049 = vadd.f32 %v4926, %v5003
      %v5050 = vadd.f32 %v4927, %v5042
      %v5051 = vadd.f32 %v4928, %v5044
      %5052 = vrot.lane.b32.xlu0 %v4089, 111
      %v5053 = vpop.permute.xlu0 %5052
      %5054 = vrot.lane.b32.xlu0 %v4090, 111
      %v5055 = vpop.permute.xlu0 %5054
      %5056 = vrot.lane.b32.xlu0 %v4091, 111
      %v5057 = vpop.permute.xlu0 %5056
      %5058 = vrot.lane.b32.xlu0 %v4092, 111
      %v5059 = vpop.permute.xlu0 %5058
      %v5060 = vsel %vm1220, %v5057, %v5059
      %v5061 = vsel %vm1220, %v5055, %v5057
      %v5062 = vsel %vm1220, %v5053, %v5055
      %v5063 = vsel %vm1220, %v5059, %v5053
      %v5064 = vmul.f32 %v5062, %v1231
      %v5065 = vmul.f32 %v5061, %v1235
      %v5066 = vmul.f32 %v5060, %v1239
      %v5067 = vmul.f32 %v5063, %v1243
      %s5068 = scalar_lea.vmem %s9, 32
      %v5069 = vld [vmem:[%s5068] sm:$0xf]
      %v5070 = vpack.c.bf16 %v5064, %v5064
      %v5071 = vpack.c.bf16 %v5065, %v5065
      %v5072 = vpack.c.bf16 %v5066, %v5066
      %v5073 = vpack.c.bf16 %v5067, %v5067
      %v5075 = vsel %vm174, %v5069, 0
      %v5078 = vsel %vm178, %v5070, 0
      %v5081 = vsel %vm178, %v5071, 0
      %v5084 = vsel %vm178, %v5072, 0
      %v5087 = vsel %vm178, %v5073, 0
      %5089 = vmatprep.subr.bf16.mxu0 %v5081
      %5090 = vmatpush1.bf16.msra.mxu0 %v5078
      %5091 = vmatprep.subr.bf16.mxu0 0
      %5092 = vmatpush1.bf16.msra.mxu0 0
      %5093 = vmatprep.subr.bf16.mxu0 0
      %5094 = vmatpush1.bf16.msra.mxu0 0
      %5095 = vmatprep.subr.bf16.mxu0 0
      %5096 = vmatpush1.bf16.msra.mxu0 0
      %5097 = vmatprep.subr.bf16.mxu0 0
      %5098 = vmatpush1.bf16.msra.mxu0 0
      %5099 = vmatprep.subr.bf16.mxu0 0
      %5100 = vmatpush1.bf16.msra.mxu0 0
      %5101 = vmatprep.subr.bf16.mxu0 0
      %5102 = vmatpush1.bf16.msra.mxu0 0
      %5103 = vmatprep.subr.bf16.mxu0 0
      %5104 = vmatpush1.bf16.msra.mxu0 0
      %5105 = vmatprep.subr.bf16.mxu0 0
      %5106 = vmatpush1.bf16.msra.mxu0 0
      %5107 = vmatprep.subr.bf16.mxu0 0
      %5108 = vmatpush1.bf16.msra.mxu0 0
      %5109 = vmatprep.subr.bf16.mxu0 0
      %5110 = vmatpush1.bf16.msra.mxu0 0
      %5111 = vmatprep.subr.bf16.mxu0 0
      %5112 = vmatpush1.bf16.msra.mxu0 0
      %5113 = vmatprep.subr.bf16.mxu0 0
      %5114 = vmatpush1.bf16.msra.mxu0 0
      %5115 = vmatprep.subr.bf16.mxu0 0
      %5116 = vmatpush1.bf16.msra.mxu0 0
      %5117 = vmatprep.subr.bf16.mxu0 0
      %5118 = vmatpush1.bf16.msra.mxu0 0
      %5119 = vmatprep.subr.bf16.mxu0 0
      %5120 = vmatpush1.bf16.msra.mxu0 0
      %5121 = vmatprep.mubr.bf16.mxu0 0
      %5122 = vmatmul.mubr.bf16.gmra.mrb[0].mxu0 %v5075
      %v5123 = vpop.f32.mrb[0].mxu0
      %v5124 = vadd.f32 0.0, %v5123
      %v5125 = vpop.f32.mrb[0].mxu0
      %v5126 = vadd.f32 0.0, %v5125
      %v5127 = vpop.f32.mrb[0].mxu0
      %v5128 = vpop.f32.mrb[0].mxu0
      %5129 = vdwg.mxu0
      %5130 = vmatprep.subr.bf16.mxu0 %v5087
      %5131 = vmatpush1.bf16.msra.mxu0 %v5084
      %5132 = vmatprep.subr.bf16.mxu0 0
      %5133 = vmatpush1.bf16.msra.mxu0 0
      %5134 = vmatprep.subr.bf16.mxu0 0
      %5135 = vmatpush1.bf16.msra.mxu0 0
      %5136 = vmatprep.subr.bf16.mxu0 0
      %5137 = vmatpush1.bf16.msra.mxu0 0
      %5138 = vmatprep.subr.bf16.mxu0 0
      %5139 = vmatpush1.bf16.msra.mxu0 0
      %5140 = vmatprep.subr.bf16.mxu0 0
      %5141 = vmatpush1.bf16.msra.mxu0 0
      %5142 = vmatprep.subr.bf16.mxu0 0
      %5143 = vmatpush1.bf16.msra.mxu0 0
      %5144 = vmatprep.subr.bf16.mxu0 0
      %5145 = vmatpush1.bf16.msra.mxu0 0
      %5146 = vmatprep.subr.bf16.mxu0 0
      %5147 = vmatpush1.bf16.msra.mxu0 0
      %5148 = vmatprep.subr.bf16.mxu0 0
      %5149 = vmatpush1.bf16.msra.mxu0 0
      %5150 = vmatprep.subr.bf16.mxu0 0
      %5151 = vmatpush1.bf16.msra.mxu0 0
      %5152 = vmatprep.subr.bf16.mxu0 0
      %5153 = vmatpush1.bf16.msra.mxu0 0
      %5154 = vmatprep.subr.bf16.mxu0 0
      %5155 = vmatpush1.bf16.msra.mxu0 0
      %5156 = vmatprep.subr.bf16.mxu0 0
      %5157 = vmatpush1.bf16.msra.mxu0 0
      %5158 = vmatprep.subr.bf16.mxu0 0
      %5159 = vmatpush1.bf16.msra.mxu0 0
      %5160 = vmatprep.subr.bf16.mxu0 0
      %5161 = vmatpush1.bf16.msra.mxu0 0
      %5162 = vmatprep.mubr.bf16.mxu0 0
      %5163 = vmatmul.mubr.bf16.gmra.mrb[0].mxu0 %v5075
      %v5164 = vpop.f32.mrb[0].mxu0
      %v5165 = vadd.f32 0.0, %v5164
      %v5166 = vpop.f32.mrb[0].mxu0
      %v5167 = vadd.f32 0.0, %v5166
      %v5168 = vpop.f32.mrb[0].mxu0
      %v5169 = vpop.f32.mrb[0].mxu0
      %5170 = vdwg.mxu0
      %v5171 = vadd.f32 %v5048, %v5124
      %v5172 = vadd.f32 %v5049, %v5126
      %v5173 = vadd.f32 %v5050, %v5165
      %v5174 = vadd.f32 %v5051, %v5167
      %v5175 = vadd.f32 %v2809, %v5171
      %v5176 = vadd.f32 %v2810, %v5172
      %v5177 = vadd.f32 %v2811, %v5173
      %v5178 = vadd.f32 %v2812, %v5174
      %v5179 = vld [vmem:[%s10] sm:$0xff]
      %5181 = vset.pattern.permute.xlu0 0
      %5182 = vperm.xlu0 %5181, %v5179
      %v5183 = vpop.permute.xlu0 %5182
      %v5185 = vadd.f32 %v5175, %v5183
      %v5186 = vadd.f32 %v5176, %v5183
      %v5187 = vadd.f32 %v5177, %v5183
      %v5188 = vadd.f32 %v5178, %v5183
      %v5189 = vtanh.pop %v5185
      %v5190 = vtanh.pop %v5186
      %v5191 = vtanh.pop %v5187
      %v5192 = vtanh.pop %v5188
      %v5193 = vsub.f32 %v5189, %v1374
      %v5194 = vsub.f32 %v5190, %v1375
      %v5195 = vsub.f32 %v5191, %v1376
      %v5196 = vsub.f32 %v5192, %v1377
      %v5197 = vmul.f32 %v4082, %v5193
      %v5198 = vmul.f32 %v4084, %v5194
      %v5199 = vmul.f32 %v4086, %v5195
      %v5200 = vmul.f32 %v4088, %v5196
      %v5201 = vadd.f32 %v1374, %v5197
      %v5202 = vadd.f32 %v1375, %v5198
      %v5203 = vadd.f32 %v1376, %v5199
      %v5204 = vadd.f32 %v1377, %v5200
      %s5205 = scalar_lea.vmem %s2, %s75
      %v5206 = vld [vmem:[%s5205] sm:$0xf]
      %v5207 = vsub.f32 %v5201, %v1374
      %v5208 = vsub.f32 %v5202, %v1375
      %v5209 = vsub.f32 %v5203, %v1376
      %v5210 = vsub.f32 %v5204, %v1377
      %v5212 = vlaneseq
      %v5213 = vshrl.u32 %v5212, 7
      %v5214 = vsub.s32 0, %v5213
      %v5215 = vrot.slane %v5206, %v5214
      %v5216 = vlaneseq
      %v5217 = vshrl.u32 %v5216, 7
      %v5218 = vsub.s32 1, %v5217
      %v5219 = vrot.slane %v5206, %v5218
      %v5220 = vlaneseq
      %v5221 = vshrl.u32 %v5220, 7
      %v5222 = vsub.s32 2, %v5221
      %v5223 = vrot.slane %v5206, %v5222
      %v5224 = vlaneseq
      %v5225 = vshrl.u32 %v5224, 7
      %v5226 = vsub.s32 3, %v5225
      %v5227 = vrot.slane %v5206, %v5226
      %v5232 = vmul.f32 %v5215, %v5207
      %v5233 = vmul.f32 %v5219, %v5208
      %v5234 = vmul.f32 %v5223, %v5209
      %v5235 = vmul.f32 %v5227, %v5210
      %v5236 = vadd.f32 %v1374, %v5232
      %v5237 = vadd.f32 %v1375, %v5233
      %v5238 = vadd.f32 %v1376, %v5234
      %v5239 = vadd.f32 %v1377, %v5235
    $region70: #{encoder_z0_ode_convgru_forward.1} parent=1 // loop_footer
      %s69 = sadd.s32 1, %s65
    $region71: #{encoder_z0_ode_convgru_forward.1} parent=1 // loop_footer_branch
      %64 = sbr.rel target = $region67
    $region72: #{encoder_z0_ode_convgru_forward.1} parent=1 // loop_exit
      _
    %v5240 = vld [vmem:[%s11] sm:$0xff]
    %v5241 = vld [vmem:[%s12] sm:$0xff]
    %5243 = vset.pattern.permute.xlu0 0
    %5244 = vperm.xlu0 %5243, %v5241
    %v5245 = vpop.permute.xlu0 %5244
    %vm5247 = vcmask 64512
    %v5249 = vsel %vm5247, %v5240, 0
    %5251 = vmatprep.subr.mxu0 %v71
    %5252 = vmatpush1.msra.mxu0 %v70
    %5253 = vmatprep.subr.mxu0 0.0
    %5254 = vmatpush1.msra.mxu0 0.0
    %5255 = vmatprep.subr.mxu0 0.0
    %5256 = vmatpush1.msra.mxu0 0.0
    %5257 = vmatprep.subr.mxu0 0.0
    %5258 = vmatpush1.msra.mxu0 0.0
    %5259 = vmatprep.subr.mxu0 0.0
    %5260 = vmatpush1.msra.mxu0 0.0
    %5261 = vmatprep.subr.mxu0 0.0
    %5262 = vmatpush1.msra.mxu0 0.0
    %5263 = vmatprep.subr.mxu0 0.0
    %5264 = vmatpush1.msra.mxu0 0.0
    %5265 = vmatprep.subr.mxu0 0.0
    %5266 = vmatpush1.msra.mxu0 0.0
    %5267 = vmatprep.subr.mxu0 0.0
    %5268 = vmatpush1.msra.mxu0 0.0
    %5269 = vmatprep.subr.mxu0 0.0
    %5270 = vmatpush1.msra.mxu0 0.0
    %5271 = vmatprep.subr.mxu0 0.0
    %5272 = vmatpush1.msra.mxu0 0.0
    %5273 = vmatprep.subr.mxu0 0.0
    %5274 = vmatpush1.msra.mxu0 0.0
    %5275 = vmatprep.subr.mxu0 0.0
    %5276 = vmatpush1.msra.mxu0 0.0
    %5277 = vmatprep.subr.mxu0 0.0
    %5278 = vmatpush1.msra.mxu0 0.0
    %5279 = vmatprep.subr.mxu0 0.0
    %5280 = vmatpush1.msra.mxu0 0.0
    %5281 = vmatprep.subr.mxu0 0.0
    %5282 = vmatpush1.msra.mxu0 0.0
    %5283 = vmatprep.subr.mxu0 0.0
    %5284 = vmatpush1.msra.mxu0 0.0
    %5285 = vmatprep.subr.mxu0 0.0
    %5286 = vmatpush1.msra.mxu0 0.0
    %5287 = vmatprep.subr.mxu0 0.0
    %5288 = vmatpush1.msra.mxu0 0.0
    %5289 = vmatprep.subr.mxu0 0.0
    %5290 = vmatpush1.msra.mxu0 0.0
    %5291 = vmatprep.subr.mxu0 0.0
    %5292 = vmatpush1.msra.mxu0 0.0
    %5293 = vmatprep.subr.mxu0 0.0
    %5294 = vmatpush1.msra.mxu0 0.0
    %5295 = vmatprep.subr.mxu0 0.0
    %5296 = vmatpush1.msra.mxu0 0.0
    %5297 = vmatprep.subr.mxu0 0.0
    %5298 = vmatpush1.msra.mxu0 0.0
    %5299 = vmatprep.subr.mxu0 0.0
    %5300 = vmatpush1.msra.mxu0 0.0
    %5301 = vmatprep.subr.mxu0 0.0
    %5302 = vmatpush1.msra.mxu0 0.0
    %5303 = vmatprep.subr.mxu0 0.0
    %5304 = vmatpush1.msra.mxu0 0.0
    %5305 = vmatprep.subr.mxu0 0.0
    %5306 = vmatpush1.msra.mxu0 0.0
    %5307 = vmatprep.subr.mxu0 0.0
    %5308 = vmatpush1.msra.mxu0 0.0
    %5309 = vmatprep.subr.mxu0 0.0
    %5310 = vmatpush1.msra.mxu0 0.0
    %5311 = vmatprep.subr.mxu0 0.0
    %5312 = vmatpush1.msra.mxu0 0.0
    %5313 = vmatprep.subr.mxu0 0.0
    %5314 = vmatpush1.msra.mxu0 0.0
    %5315 = vmatprep.mubr.f32.mxu0 0.0
    %5316 = vmatmul.mubr.f32.gmra.mrb[0].mxu0 %v5249
    %v5317 = vpop.f32.mrb[0].mxu0
    %v5318 = vadd.f32 %v5245, %v5317
    %v5319 = vpop.f32.mrb[0].mxu0
    %v5320 = vadd.f32 %v5245, %v5319
    %5321 = vdwg.mxu0
    %5322 = vmatprep.subr.mxu0 %v73
    %5323 = vmatpush1.msra.mxu0 %v72
    %5324 = vmatprep.subr.mxu0 0.0
    %5325 = vmatpush1.msra.mxu0 0.0
    %5326 = vmatprep.subr.mxu0 0.0
    %5327 = vmatpush1.msra.mxu0 0.0
    %5328 = vmatprep.subr.mxu0 0.0
    %5329 = vmatpush1.msra.mxu0 0.0
    %5330 = vmatprep.subr.mxu0 0.0
    %5331 = vmatpush1.msra.mxu0 0.0
    %5332 = vmatprep.subr.mxu0 0.0
    %5333 = vmatpush1.msra.mxu0 0.0
    %5334 = vmatprep.subr.mxu0 0.0
    %5335 = vmatpush1.msra.mxu0 0.0
    %5336 = vmatprep.subr.mxu0 0.0
    %5337 = vmatpush1.msra.mxu0 0.0
    %5338 = vmatprep.subr.mxu0 0.0
    %5339 = vmatpush1.msra.mxu0 0.0
    %5340 = vmatprep.subr.mxu0 0.0
    %5341 = vmatpush1.msra.mxu0 0.0
    %5342 = vmatprep.subr.mxu0 0.0
    %5343 = vmatpush1.msra.mxu0 0.0
    %5344 = vmatprep.subr.mxu0 0.0
    %5345 = vmatpush1.msra.mxu0 0.0
    %5346 = vmatprep.subr.mxu0 0.0
    %5347 = vmatpush1.msra.mxu0 0.0
    %5348 = vmatprep.subr.mxu0 0.0
    %5349 = vmatpush1.msra.mxu0 0.0
    %5350 = vmatprep.subr.mxu0 0.0
    %5351 = vmatpush1.msra.mxu0 0.0
    %5352 = vmatprep.subr.mxu0 0.0
    %5353 = vmatpush1.msra.mxu0 0.0
    %5354 = vmatprep.subr.mxu0 0.0
    %5355 = vmatpush1.msra.mxu0 0.0
    %5356 = vmatprep.subr.mxu0 0.0
    %5357 = vmatpush1.msra.mxu0 0.0
    %5358 = vmatprep.subr.mxu0 0.0
    %5359 = vmatpush1.msra.mxu0 0.0
    %5360 = vmatprep.subr.mxu0 0.0
    %5361 = vmatpush1.msra.mxu0 0.0
    %5362 = vmatprep.subr.mxu0 0.0
    %5363 = vmatpush1.msra.mxu0 0.0
    %5364 = vmatprep.subr.mxu0 0.0
    %5365 = vmatpush1.msra.mxu0 0.0
    %5366 = vmatprep.subr.mxu0 0.0
    %5367 = vmatpush1.msra.mxu0 0.0
    %5368 = vmatprep.subr.mxu0 0.0
    %5369 = vmatpush1.msra.mxu0 0.0
    %5370 = vmatprep.subr.mxu0 0.0
    %5371 = vmatpush1.msra.mxu0 0.0
    %5372 = vmatprep.subr.mxu0 0.0
    %5373 = vmatpush1.msra.mxu0 0.0
    %5374 = vmatprep.subr.mxu0 0.0
    %5375 = vmatpush1.msra.mxu0 0.0
    %5376 = vmatprep.subr.mxu0 0.0
    %5377 = vmatpush1.msra.mxu0 0.0
    %5378 = vmatprep.subr.mxu0 0.0
    %5379 = vmatpush1.msra.mxu0 0.0
    %5380 = vmatprep.subr.mxu0 0.0
    %5381 = vmatpush1.msra.mxu0 0.0
    %5382 = vmatprep.subr.mxu0 0.0
    %5383 = vmatpush1.msra.mxu0 0.0
    %5384 = vmatprep.subr.mxu0 0.0
    %5385 = vmatpush1.msra.mxu0 0.0
    %5386 = vmatprep.mubr.f32.mxu0 0.0
    %5387 = vmatmul.mubr.f32.gmra.mrb[0].mxu0 %v5249
    %v5388 = vpop.f32.mrb[0].mxu0
    %v5389 = vadd.f32 %v5245, %v5388
    %v5390 = vpop.f32.mrb[0].mxu0
    %v5391 = vadd.f32 %v5245, %v5390
    %5392 = vdwg.mxu0
    %v5393 = vmax.f32 %v5318, 0.0
    %v5394 = vmax.f32 %v5320, 0.0
    %v5395 = vmax.f32 %v5389, 0.0
    %v5396 = vmax.f32 %v5391, 0.0
    %v5397 = vld [vmem:[%s13] sm:$0xff]
    %v5398 = vld [vmem:[%s13 + $0x8] sm:$0xff]
    %v5399 = vld [vmem:[%s14] sm:$0xff]
    %v5400 = vld [vmem:[%s14 + $0x8] sm:$0xff]
    %5402 = vset.pattern.permute.xlu0 0
    %5403 = vperm.xlu0 %5402, %v5399
    %v5404 = vpop.permute.xlu0 %5403
    %5407 = vset.pattern.permute.xlu0 0
    %5408 = vperm.xlu0 %5407, %v5400
    %v5409 = vpop.permute.xlu0 %5408
    %v5412 = vsel %vm5247, %v5397, 0
    %v5415 = vsel %vm5247, %v5398, 0
    %5417 = vmatprep.subr.mxu0 %v5394
    %5418 = vmatpush1.msra.mxu0 %v5393
    %5419 = vmatprep.subr.mxu0 0.0
    %5420 = vmatpush1.msra.mxu0 0.0
    %5421 = vmatprep.subr.mxu0 0.0
    %5422 = vmatpush1.msra.mxu0 0.0
    %5423 = vmatprep.subr.mxu0 0.0
    %5424 = vmatpush1.msra.mxu0 0.0
    %5425 = vmatprep.subr.mxu0 0.0
    %5426 = vmatpush1.msra.mxu0 0.0
    %5427 = vmatprep.subr.mxu0 0.0
    %5428 = vmatpush1.msra.mxu0 0.0
    %5429 = vmatprep.subr.mxu0 0.0
    %5430 = vmatpush1.msra.mxu0 0.0
    %5431 = vmatprep.subr.mxu0 0.0
    %5432 = vmatpush1.msra.mxu0 0.0
    %5433 = vmatprep.subr.mxu0 0.0
    %5434 = vmatpush1.msra.mxu0 0.0
    %5435 = vmatprep.subr.mxu0 0.0
    %5436 = vmatpush1.msra.mxu0 0.0
    %5437 = vmatprep.subr.mxu0 0.0
    %5438 = vmatpush1.msra.mxu0 0.0
    %5439 = vmatprep.subr.mxu0 0.0
    %5440 = vmatpush1.msra.mxu0 0.0
    %5441 = vmatprep.subr.mxu0 0.0
    %5442 = vmatpush1.msra.mxu0 0.0
    %5443 = vmatprep.subr.mxu0 0.0
    %5444 = vmatpush1.msra.mxu0 0.0
    %5445 = vmatprep.subr.mxu0 0.0
    %5446 = vmatpush1.msra.mxu0 0.0
    %5447 = vmatprep.subr.mxu0 0.0
    %5448 = vmatpush1.msra.mxu0 0.0
    %5449 = vmatprep.subr.mxu0 0.0
    %5450 = vmatpush1.msra.mxu0 0.0
    %5451 = vmatprep.subr.mxu0 0.0
    %5452 = vmatpush1.msra.mxu0 0.0
    %5453 = vmatprep.subr.mxu0 0.0
    %5454 = vmatpush1.msra.mxu0 0.0
    %5455 = vmatprep.subr.mxu0 0.0
    %5456 = vmatpush1.msra.mxu0 0.0
    %5457 = vmatprep.subr.mxu0 0.0
    %5458 = vmatpush1.msra.mxu0 0.0
    %5459 = vmatprep.subr.mxu0 0.0
    %5460 = vmatpush1.msra.mxu0 0.0
    %5461 = vmatprep.subr.mxu0 0.0
    %5462 = vmatpush1.msra.mxu0 0.0
    %5463 = vmatprep.subr.mxu0 0.0
    %5464 = vmatpush1.msra.mxu0 0.0
    %5465 = vmatprep.subr.mxu0 0.0
    %5466 = vmatpush1.msra.mxu0 0.0
    %5467 = vmatprep.subr.mxu0 0.0
    %5468 = vmatpush1.msra.mxu0 0.0
    %5469 = vmatprep.subr.mxu0 0.0
    %5470 = vmatpush1.msra.mxu0 0.0
    %5471 = vmatprep.subr.mxu0 0.0
    %5472 = vmatpush1.msra.mxu0 0.0
    %5473 = vmatprep.subr.mxu0 0.0
    %5474 = vmatpush1.msra.mxu0 0.0
    %5475 = vmatprep.subr.mxu0 0.0
    %5476 = vmatpush1.msra.mxu0 0.0
    %5477 = vmatprep.subr.mxu0 0.0
    %5478 = vmatpush1.msra.mxu0 0.0
    %5479 = vmatprep.subr.mxu0 0.0
    %5480 = vmatpush1.msra.mxu0 0.0
    %5481 = vmatprep.mubr.f32.mxu0 0.0
    %5482 = vmatmul.mubr.f32.gmra.mrb[0].mxu0 %v5412
    %v5483 = vpop.f32.mrb[0].mxu0
    %v5484 = vadd.f32 %v5404, %v5483
    %v5485 = vpop.f32.mrb[0].mxu0
    %v5486 = vadd.f32 %v5404, %v5485
    %5487 = vmatprep.mubr.f32.mxu0 0.0
    %5488 = vmatmul.mubr.f32.gmra.mrb[0].mxu0 %v5415
    %v5489 = vpop.f32.mrb[0].mxu0
    %v5490 = vadd.f32 %v5409, %v5489
    %v5491 = vpop.f32.mrb[0].mxu0
    %v5492 = vadd.f32 %v5409, %v5491
    %5493 = vdwg.mxu0
    %5494 = vmatprep.subr.mxu0 %v5396
    %5495 = vmatpush1.msra.mxu0 %v5395
    %5496 = vmatprep.subr.mxu0 0.0
    %5497 = vmatpush1.msra.mxu0 0.0
    %5498 = vmatprep.subr.mxu0 0.0
    %5499 = vmatpush1.msra.mxu0 0.0
    %5500 = vmatprep.subr.mxu0 0.0
    %5501 = vmatpush1.msra.mxu0 0.0
    %5502 = vmatprep.subr.mxu0 0.0
    %5503 = vmatpush1.msra.mxu0 0.0
    %5504 = vmatprep.subr.mxu0 0.0
    %5505 = vmatpush1.msra.mxu0 0.0
    %5506 = vmatprep.subr.mxu0 0.0
    %5507 = vmatpush1.msra.mxu0 0.0
    %5508 = vmatprep.subr.mxu0 0.0
    %5509 = vmatpush1.msra.mxu0 0.0
    %5510 = vmatprep.subr.mxu0 0.0
    %5511 = vmatpush1.msra.mxu0 0.0
    %5512 = vmatprep.subr.mxu0 0.0
    %5513 = vmatpush1.msra.mxu0 0.0
    %5514 = vmatprep.subr.mxu0 0.0
    %5515 = vmatpush1.msra.mxu0 0.0
    %5516 = vmatprep.subr.mxu0 0.0
    %5517 = vmatpush1.msra.mxu0 0.0
    %5518 = vmatprep.subr.mxu0 0.0
    %5519 = vmatpush1.msra.mxu0 0.0
    %5520 = vmatprep.subr.mxu0 0.0
    %5521 = vmatpush1.msra.mxu0 0.0
    %5522 = vmatprep.subr.mxu0 0.0
    %5523 = vmatpush1.msra.mxu0 0.0
    %5524 = vmatprep.subr.mxu0 0.0
    %5525 = vmatpush1.msra.mxu0 0.0
    %5526 = vmatprep.subr.mxu0 0.0
    %5527 = vmatpush1.msra.mxu0 0.0
    %5528 = vmatprep.subr.mxu0 0.0
    %5529 = vmatpush1.msra.mxu0 0.0
    %5530 = vmatprep.subr.mxu0 0.0
    %5531 = vmatpush1.msra.mxu0 0.0
    %5532 = vmatprep.subr.mxu0 0.0
    %5533 = vmatpush1.msra.mxu0 0.0
    %5534 = vmatprep.subr.mxu0 0.0
    %5535 = vmatpush1.msra.mxu0 0.0
    %5536 = vmatprep.subr.mxu0 0.0
    %5537 = vmatpush1.msra.mxu0 0.0
    %5538 = vmatprep.subr.mxu0 0.0
    %5539 = vmatpush1.msra.mxu0 0.0
    %5540 = vmatprep.subr.mxu0 0.0
    %5541 = vmatpush1.msra.mxu0 0.0
    %5542 = vmatprep.subr.mxu0 0.0
    %5543 = vmatpush1.msra.mxu0 0.0
    %5544 = vmatprep.subr.mxu0 0.0
    %5545 = vmatpush1.msra.mxu0 0.0
    %5546 = vmatprep.subr.mxu0 0.0
    %5547 = vmatpush1.msra.mxu0 0.0
    %5548 = vmatprep.subr.mxu0 0.0
    %5549 = vmatpush1.msra.mxu0 0.0
    %5550 = vmatprep.subr.mxu0 0.0
    %5551 = vmatpush1.msra.mxu0 0.0
    %5552 = vmatprep.subr.mxu0 0.0
    %5553 = vmatpush1.msra.mxu0 0.0
    %5554 = vmatprep.subr.mxu0 0.0
    %5555 = vmatpush1.msra.mxu0 0.0
    %5556 = vmatprep.subr.mxu0 0.0
    %5557 = vmatpush1.msra.mxu0 0.0
    %5558 = vmatprep.mubr.f32.mxu0 0.0
    %5559 = vmatmul.mubr.f32.gmra.mrb[0].mxu0 %v5412
    %v5560 = vpop.f32.mrb[0].mxu0
    %v5561 = vadd.f32 %v5404, %v5560
    %v5562 = vpop.f32.mrb[0].mxu0
    %v5563 = vadd.f32 %v5404, %v5562
    %5564 = vmatprep.mubr.f32.mxu0 0.0
    %5565 = vmatmul.mubr.f32.gmra.mrb[0].mxu0 %v5415
    %v5566 = vpop.f32.mrb[0].mxu0
    %v5567 = vadd.f32 %v5409, %v5566
    %v5568 = vpop.f32.mrb[0].mxu0
    %v5569 = vadd.f32 %v5409, %v5568
    %5570 = vdwg.mxu0
    %5571 = vst [vmem:[%s15] sm:$0xff] %v5484
    %5572 = vst [vmem:[%s15 + $0x8] sm:$0xff] %v5486
    %5573 = vst [vmem:[%s15 + $0x10] sm:$0xff] %v5561
    %5574 = vst [vmem:[%s15 + $0x18] sm:$0xff] %v5563
    %5575 = vst [vmem:[%s15 + $0x20] sm:$0xff] %v5490
    %5576 = vst [vmem:[%s15 + $0x28] sm:$0xff] %v5492
    %5577 = vst [vmem:[%s15 + $0x30] sm:$0xff] %v5567
    %5578 = vst [vmem:[%s15 + $0x38] sm:$0xff] %v5569
    // Predicated region
    $region73: #{encoder_z0_ode_convgru_forward.1} parent=1 // pred_check
      _
    $region74: #{encoder_z0_ode_convgru_forward.1} parent=1 // pred_check_branch
      %5580 = sbr.rel (0) target = $region76
    $region75: #{encoder_z0_ode_convgru_forward.1} parent=1 // pred_region
      _
    $region76: #{encoder_z0_ode_convgru_forward.1} parent=1 // pred_fallthru
      _
    // Predicated region
    $region77: #{encoder_z0_ode_convgru_forward.1} parent=1 // pred_check
      _
    $region78: #{encoder_z0_ode_convgru_forward.1} parent=1 // pred_check_branch
      %5582 = sbr.rel (0) target = $region80
    $region79: #{encoder_z0_ode_convgru_forward.1} parent=1 // pred_region
      _
    $region80: #{encoder_z0_ode_convgru_forward.1} parent=1 // pred_fallthru
      _
    %5583 = vsyncpa [#allocation3], 1

</llo_original>
